<compile_context>
chip_gen: v7x
topology: tpu7x:2x2x1
jax: 0.10.0
libtpu: 0.0.40
codegen_flags: <defaults>
</compile_context>

<pallas_src>
import functools
import math

import numpy as np
import jax
import jax.numpy as jnp
from jax import lax
from jax.experimental import pallas as pl
from jax.experimental.pallas import tpu as pltpu

# Model hyper-params (match the PyTorch module defaults).
FEATURES = ['value', 'trend', 'insulin', 'carbs', 'time_since_start',
            'hourly_mean', 'hourly_std', 'hour_sin', 'hour_cos',
            'day_sin', 'day_cos']
INPUT_SIZE = len(FEATURES)   # 11
F_PAD = 16                   # feature dim padded to 16 lanes (zero columns)
D_MODEL = 64
NHEAD = 8
NUM_LAYERS = 2
DIM_FF = 128
LN_EPS = 1e-5

# Set to jnp.bfloat16 on v6e/v7x for ~2x MXU throughput (accumulation stays
# f32 via preferred_element_type).  f32 default keeps exact PyTorch parity.
MATMUL_DTYPE = jnp.float32


def _mm(a, b):
    return jnp.dot(a.astype(MATMUL_DTYPE), b.astype(MATMUL_DTYPE),
                   preferred_element_type=jnp.float32)


def _layernorm(x, g, b):
    mu = jnp.mean(x, axis=-1, keepdims=True)
    var = jnp.mean((x - mu) ** 2, axis=-1, keepdims=True)
    return (x - mu) * lax.rsqrt(var + LN_EPS) * g + b


def transformer_kernel(src_ref, pe_ref, w_in_ref, b_in_ref,
                       wqkv_ref, bqkv_ref, wo_ref, bo_ref,
                       ln1_g_ref, ln1_b_ref, ln2_g_ref, ln2_b_ref,
                       w1_ref, b1_ref, w2_ref, b2_ref, out_ref,
                       *, b_tile, seq, d_model, nhead, num_layers):
    """One batch tile per program.  VPU math (LN/softmax/residuals) in f32."""
    H = nhead
    hd = d_model // H
    M = b_tile * seq

    # input_linear(src) * sqrt(d_model) + positional encoding          (M, D)
    src = src_ref[...].reshape(M, src_ref.shape[-1])
    x = _mm(src, w_in_ref[...]) + b_in_ref[...]
    x = x * jnp.float32(math.sqrt(d_model))
    x = (x.reshape(b_tile, seq, d_model) + pe_ref[...]).reshape(M, d_model)

    for l in range(num_layers):
        # ---- multi-head self-attention ---------------------------------
        # Fused QKV projection: single (M, D) @ (D, 3D) matmul.
        # 1/sqrt(head_dim) is already folded into the Q third (weights+bias).
        qkv = _mm(x, wqkv_ref[l]) + bqkv_ref[l]                 # (M, 3D)

        def split_heads(t2d):
            # (M, D) -> (b_tile*H, S, hd)
            t = t2d.reshape(b_tile, seq, H, hd)
            return jnp.transpose(t, (0, 2, 1, 3)).reshape(b_tile * H, seq, hd)

        q = split_heads(qkv[:, 0:d_model])
        k = split_heads(qkv[:, d_model:2 * d_model])
        v = split_heads(qkv[:, 2 * d_model:3 * d_model])

        # scores (b_tile*H, S, S); exact softmax (PyTorch parity).
        s = jnp.einsum('bqd,bkd->bqk', q, k,
                       preferred_element_type=jnp.float32)
        s = s - jnp.max(s, axis=-1, keepdims=True)
        p = jnp.exp(s)
        p = p / jnp.sum(p, axis=-1, keepdims=True)
        ctx = jnp.einsum('bqk,bkd->bqd', p, v,
                         preferred_element_type=jnp.float32)    # (bH, S, hd)

        # merge heads -> (M, D), single output-projection matmul.
        ctx = jnp.transpose(ctx.reshape(b_tile, H, seq, hd),
                            (0, 2, 1, 3)).reshape(M, d_model)
        attn = _mm(ctx, wo_ref[l]) + bo_ref[l]
        # TODO(synk): dropout skipped (eval-mode identity).
        x = _layernorm(x + attn, ln1_g_ref[l], ln1_b_ref[l])

        # ---- feed-forward: linear -> relu -> linear ---------------------
        ff = _mm(x, w1_ref[l]) + b1_ref[l]
        ff = jnp.maximum(ff, 0.0)
        ff = _mm(ff, w2_ref[l]) + b2_ref[l]
        x = _layernorm(x + ff, ln2_g_ref[l], ln2_b_ref[l])

    # Lane-dense output: last sequence position's hidden state (b_tile, D).
    # The 64 -> 1 decoder matmul is done in the XLA wrapper.
    out_ref[...] = x.reshape(b_tile, seq, d_model)[:, seq - 1, :]


def positional_encoding(seq_len, d_model):
    position = jnp.arange(seq_len, dtype=jnp.float32)[:, None]
    div_term = jnp.exp(jnp.arange(0, d_model, 2, dtype=jnp.float32)
                       * (-np.log(10000.0) / d_model))
    pe = jnp.zeros((seq_len, d_model), jnp.float32)
    pe = pe.at[:, 0::2].set(jnp.sin(position * div_term))
    pe = pe.at[:, 1::2].set(jnp.cos(position * div_term))
    return pe


def init_params(key):
    """Deterministic synthetic parameters (Linear weights stored (in, out))."""
    ks = jax.random.split(key, 12)

    def u(k, shape, scale=0.1):
        return jax.random.uniform(k, shape, jnp.float32, -scale, scale)

    return {
        'w_in': u(ks[0], (INPUT_SIZE, D_MODEL)),
        'b_in': u(ks[1], (1, D_MODEL)),
        'wqkv': u(ks[2], (NUM_LAYERS, D_MODEL, 3 * D_MODEL)),   # cols = [Q|K|V]
        'bqkv': u(ks[3], (NUM_LAYERS, 3 * D_MODEL)),
        'wo':   u(ks[4], (NUM_LAYERS, D_MODEL, D_MODEL)),
        'bo':   u(ks[5], (NUM_LAYERS, D_MODEL)),
        'ln1_g': jnp.ones((NUM_LAYERS, D_MODEL), jnp.float32),
        'ln1_b': jnp.zeros((NUM_LAYERS, D_MODEL), jnp.float32),
        'ln2_g': jnp.ones((NUM_LAYERS, D_MODEL), jnp.float32),
        'ln2_b': jnp.zeros((NUM_LAYERS, D_MODEL), jnp.float32),
        'w1': u(ks[6], (NUM_LAYERS, D_MODEL, DIM_FF)),
        'b1': u(ks[7], (NUM_LAYERS, DIM_FF)),
        'w2': u(ks[8], (NUM_LAYERS, DIM_FF, D_MODEL)),
        'b2': u(ks[9], (NUM_LAYERS, D_MODEL)),
        'w_dec': u(ks[10], (D_MODEL, 1)),
        'b_dec': u(ks[11], (1, 1)),
    }


def pack_params(p, seq_len):
    """One-time host-side repack into kernel-friendly layouts."""
    L, D = NUM_LAYERS, D_MODEL
    hd = D // NHEAD
    scale = 1.0 / math.sqrt(hd)

    # Fold 1/sqrt(head_dim) into the Q third of the fused in-proj (w AND b).
    qscale = jnp.concatenate([jnp.full((D,), scale, jnp.float32),
                              jnp.ones((2 * D,), jnp.float32)])
    wqkv = p['wqkv'] * qscale[None, None, :]                 # (L, D, 3D)
    bqkv = (p['bqkv'] * qscale[None, :])[:, None, :]         # (L, 1, 3D)

    # Pad feature dim 11 -> 16 with zero rows (avoids masked 11-lane loads).
    w_in = jnp.zeros((F_PAD, D), jnp.float32).at[:INPUT_SIZE, :].set(p['w_in'])

    return {
        'pe': positional_encoding(seq_len, D),               # (S, D)
        'w_in': w_in, 'b_in': p['b_in'],
        'wqkv': wqkv, 'bqkv': bqkv,
        'wo': p['wo'], 'bo': p['bo'][:, None, :],
        'ln1_g': p['ln1_g'][:, None, :], 'ln1_b': p['ln1_b'][:, None, :],
        'ln2_g': p['ln2_g'][:, None, :], 'ln2_b': p['ln2_b'][:, None, :],
        'w1': p['w1'], 'b1': p['b1'][:, None, :],
        'w2': p['w2'], 'b2': p['b2'][:, None, :],
        'w_dec': p['w_dec'], 'b_dec': p['b_dec'],
    }


def _choose_b_tile(batch, seq):
    # Target M = b_tile*seq ~ 256 (fills the 256-deep MXU on v6e/v7x, a clean
    # multiple of 128 on v5e) while keeping multiple grid blocks at large
    # batch so v7x's two TensorCores both get work.
    bt = max(1, 256 // max(seq, 1))
    if bt >= batch:
        return batch                       # single block: shapes == full dims
    return max(8, (bt // 8) * 8)           # multi-block: 8-aligned sublane dim


@jax.jit
def transformer_forward(src, pk):
    """src: (B, S, INPUT_SIZE) float32, pk: packed params -> (B, 1) float32."""
    B, S, F = src.shape

    # Host-side (XLA) prep: pad features to F_PAD, pad batch to tile multiple.
    src_p = jnp.pad(src, ((0, 0), (0, 0), (0, F_PAD - F)))
    b_tile = _choose_b_tile(B, S)
    n_blocks = pl.cdiv(B, b_tile)
    B_pad = n_blocks * b_tile
    if B_pad != B:
        src_p = jnp.pad(src_p, ((0, B_pad - B), (0, 0), (0, 0)))

    kernel = functools.partial(transformer_kernel, b_tile=b_tile, seq=S,
                               d_model=D_MODEL, nhead=NHEAD,
                               num_layers=NUM_LAYERS)

    def whole(a):
        zeros = (0,) * a.ndim
        return pl.BlockSpec(a.shape, lambda b, _z=zeros: _z)   # grid-constant

    order = ('pe', 'w_in', 'b_in', 'wqkv', 'bqkv', 'wo', 'bo',
             'ln1_g', 'ln1_b', 'ln2_g', 'ln2_b',
             'w1', 'b1', 'w2', 'b2')
    weights = [pk[k] for k in order]

    in_specs = ([pl.BlockSpec((b_tile, S, F_PAD), lambda b: (b, 0, 0))]
                + [whole(w) for w in weights])

    hidden = pl.pallas_call(
        kernel,
        out_shape=jax.ShapeDtypeStruct((B_pad, D_MODEL), jnp.float32),
        grid=(n_blocks,),
        in_specs=in_specs,
        out_specs=pl.BlockSpec((b_tile, D_MODEL), lambda b: (b, 0)),
        compiler_params=pltpu.CompilerParams(
            dimension_semantics=("parallel",)),
    )(src_p, *weights)

    # Trivial decoder (64 -> 1) in XLA; keeps the kernel output lane-dense.
    hidden = hidden[:B]
    return jnp.dot(hidden, pk['w_dec'],
                   preferred_element_type=jnp.float32) + pk['b_dec']


if __name__ == "__main__":
    key = jax.random.PRNGKey(0)
    k_src, k_param = jax.random.split(key)
    B, S = 2, 8
    src = jax.random.normal(k_src, (B, S, INPUT_SIZE), jnp.float32)

    params = init_params(k_param)
    packed = pack_params(params, S)        # one-time host-side prep

    out = transformer_forward(src, packed)
    out = jax.block_until_ready(out)
    assert out.shape == (B, 1) and out.dtype == jnp.float32
    assert bool(jnp.all(jnp.isfinite(out)))
    print("KERNEL_OK")
</pallas_src>

<mosaic_0001>
module attributes {stable_mosaic.version = 11 : i64} {
  func.func @transformer_kernel(%arg0: i32, %arg1: memref<2x8x16xf32, #tpu.memory_space<vmem>>, %arg2: memref<8x64xf32, #tpu.memory_space<vmem>>, %arg3: memref<16x64xf32, #tpu.memory_space<vmem>>, %arg4: memref<1x64xf32, #tpu.memory_space<vmem>>, %arg5: memref<2x64x192xf32, #tpu.memory_space<vmem>>, %arg6: memref<2x1x192xf32, #tpu.memory_space<vmem>>, %arg7: memref<2x64x64xf32, #tpu.memory_space<vmem>>, %arg8: memref<2x1x64xf32, #tpu.memory_space<vmem>>, %arg9: memref<2x1x64xf32, #tpu.memory_space<vmem>>, %arg10: memref<2x1x64xf32, #tpu.memory_space<vmem>>, %arg11: memref<2x1x64xf32, #tpu.memory_space<vmem>>, %arg12: memref<2x1x64xf32, #tpu.memory_space<vmem>>, %arg13: memref<2x64x128xf32, #tpu.memory_space<vmem>>, %arg14: memref<2x1x128xf32, #tpu.memory_space<vmem>>, %arg15: memref<2x128x64xf32, #tpu.memory_space<vmem>>, %arg16: memref<2x1x64xf32, #tpu.memory_space<vmem>>, %arg17: memref<2x64xf32, #tpu.memory_space<vmem>>) attributes {dimension_semantics = [#tpu.dimension_semantics<parallel>], iteration_bounds = array<i64: 1>, scalar_prefetch = 0 : i64, scratch_operands = 0 : i64, tpu.core_type = #tpu.core_type<tc>, window_params = [{transform_indices = @transform_0, window_bounds = array<i64: 2, 8, 16>}, {pipeline_mode = #tpu.pipeline_mode<synchronous>, transform_indices = @transform_1, window_bounds = array<i64: 8, 64>}, {pipeline_mode = #tpu.pipeline_mode<synchronous>, transform_indices = @transform_2, window_bounds = array<i64: 16, 64>}, {pipeline_mode = #tpu.pipeline_mode<synchronous>, transform_indices = @transform_3, window_bounds = array<i64: 1, 64>}, {pipeline_mode = #tpu.pipeline_mode<synchronous>, transform_indices = @transform_4, window_bounds = array<i64: 2, 64, 192>}, {pipeline_mode = #tpu.pipeline_mode<synchronous>, transform_indices = @transform_5, window_bounds = array<i64: 2, 1, 192>}, {pipeline_mode = #tpu.pipeline_mode<synchronous>, transform_indices = @transform_6, window_bounds = array<i64: 2, 64, 64>}, {pipeline_mode = #tpu.pipeline_mode<synchronous>, transform_indices = @transform_7, window_bounds = array<i64: 2, 1, 64>}, {pipeline_mode = #tpu.pipeline_mode<synchronous>, transform_indices = @transform_8, window_bounds = array<i64: 2, 1, 64>}, {pipeline_mode = #tpu.pipeline_mode<synchronous>, transform_indices = @transform_9, window_bounds = array<i64: 2, 1, 64>}, {pipeline_mode = #tpu.pipeline_mode<synchronous>, transform_indices = @transform_10, window_bounds = array<i64: 2, 1, 64>}, {pipeline_mode = #tpu.pipeline_mode<synchronous>, transform_indices = @transform_11, window_bounds = array<i64: 2, 1, 64>}, {pipeline_mode = #tpu.pipeline_mode<synchronous>, transform_indices = @transform_12, window_bounds = array<i64: 2, 64, 128>}, {pipeline_mode = #tpu.pipeline_mode<synchronous>, transform_indices = @transform_13, window_bounds = array<i64: 2, 1, 128>}, {pipeline_mode = #tpu.pipeline_mode<synchronous>, transform_indices = @transform_14, window_bounds = array<i64: 2, 128, 64>}, {pipeline_mode = #tpu.pipeline_mode<synchronous>, transform_indices = @transform_15, window_bounds = array<i64: 2, 1, 64>}, {transform_indices = @transform_16, window_bounds = array<i64: 2, 64>}]} {
    %c0 = arith.constant 0 : index
    %c0_0 = arith.constant 0 : index
    %c0_1 = arith.constant 0 : index
    %0 = vector.load %arg1[%c0, %c0_0, %c0_1] : memref<2x8x16xf32, #tpu.memory_space<vmem>>, vector<2x8x16xf32>
    %1 = vector.shape_cast %0 : vector<2x8x16xf32> to vector<16x16xf32>
    %c0_2 = arith.constant 0 : index
    %c0_3 = arith.constant 0 : index
    %2 = vector.load %arg3[%c0_2, %c0_3] : memref<16x64xf32, #tpu.memory_space<vmem>>, vector<16x64xf32>
    %cst = arith.constant dense<0.000000e+00> : vector<16x64xf32>
    %3 = tpu.matmul %1, %2, %cst {dimension_numbers = #tpu.dot_dimension_numbers<[1], [0], [0], [1], [0, 0, 1, 1], [], []>} : vector<16x16xf32>, vector<16x64xf32>, vector<16x64xf32> -> vector<16x64xf32>
    %c0_4 = arith.constant 0 : index
    %c0_5 = arith.constant 0 : index
    %4 = vector.load %arg4[%c0_4, %c0_5] : memref<1x64xf32, #tpu.memory_space<vmem>>, vector<1x64xf32>
    %5 = vector.broadcast %4 : vector<1x64xf32> to vector<16x64xf32>
    %6 = arith.addf %3, %5 : vector<16x64xf32>
    %cst_6 = arith.constant 8.000000e+00 : f32
    %7 = vector.broadcast %cst_6 : f32 to vector<16x64xf32>
    %8 = arith.mulf %6, %7 : vector<16x64xf32>
    %9 = vector.shape_cast %8 : vector<16x64xf32> to vector<2x8x64xf32>
    %c0_7 = arith.constant 0 : index
    %c0_8 = arith.constant 0 : index
    %10 = vector.load %arg2[%c0_7, %c0_8] : memref<8x64xf32, #tpu.memory_space<vmem>>, vector<8x64xf32>
    %11 = vector.shape_cast %10 : vector<8x64xf32> to vector<1x8x64xf32>
    %12 = vector.broadcast %11 : vector<1x8x64xf32> to vector<2x8x64xf32>
    %13 = arith.addf %9, %12 : vector<2x8x64xf32>
    %14 = vector.shape_cast %13 : vector<2x8x64xf32> to vector<16x64xf32>
    %c0_9 = arith.constant 0 : index
    %c0_10 = arith.constant 0 : index
    %c0_11 = arith.constant 0 : index
    %15 = vector.load %arg5[%c0_9, %c0_10, %c0_11] : memref<2x64x192xf32, #tpu.memory_space<vmem>>, vector<1x64x192xf32>
    %16 = vector.shape_cast %15 : vector<1x64x192xf32> to vector<64x192xf32>
    %cst_12 = arith.constant dense<0.000000e+00> : vector<16x192xf32>
    %17 = tpu.matmul %14, %16, %cst_12 {dimension_numbers = #tpu.dot_dimension_numbers<[1], [0], [0], [1], [0, 0, 1, 1], [], []>} : vector<16x64xf32>, vector<64x192xf32>, vector<16x192xf32> -> vector<16x192xf32>
    %c0_13 = arith.constant 0 : index
    %c0_14 = arith.constant 0 : index
    %c0_15 = arith.constant 0 : index
    %18 = vector.load %arg6[%c0_13, %c0_14, %c0_15] : memref<2x1x192xf32, #tpu.memory_space<vmem>>, vector<1x1x192xf32>
    %19 = vector.shape_cast %18 : vector<1x1x192xf32> to vector<1x192xf32>
    %20 = vector.broadcast %19 : vector<1x192xf32> to vector<16x192xf32>
    %21 = arith.addf %17, %20 : vector<16x192xf32>
    %22 = vector.extract_strided_slice %21 {offsets = [0, 0], sizes = [16, 64], strides = [1, 1]} : vector<16x192xf32> to vector<16x64xf32>
    %23 = vector.shape_cast %22 : vector<16x64xf32> to vector<2x8x8x8xf32>
    %24 = tpu.transpose %23, [0, 2, 1, 3] : vector<2x8x8x8xf32> -> vector<2x8x8x8xf32>
    %25 = vector.shape_cast %24 : vector<2x8x8x8xf32> to vector<16x8x8xf32>
    %26 = vector.extract_strided_slice %21 {offsets = [0, 64], sizes = [16, 64], strides = [1, 1]} : vector<16x192xf32> to vector<16x64xf32>
    %27 = vector.shape_cast %26 : vector<16x64xf32> to vector<2x8x8x8xf32>
    %28 = tpu.transpose %27, [0, 2, 1, 3] : vector<2x8x8x8xf32> -> vector<2x8x8x8xf32>
    %29 = vector.shape_cast %28 : vector<2x8x8x8xf32> to vector<16x8x8xf32>
    %30 = vector.extract_strided_slice %21 {offsets = [0, 128], sizes = [16, 64], strides = [1, 1]} : vector<16x192xf32> to vector<16x64xf32>
    %31 = vector.shape_cast %30 : vector<16x64xf32> to vector<2x8x8x8xf32>
    %32 = tpu.transpose %31, [0, 2, 1, 3] : vector<2x8x8x8xf32> -> vector<2x8x8x8xf32>
    %33 = vector.shape_cast %32 : vector<2x8x8x8xf32> to vector<16x8x8xf32>
    "tpu.trace_start"() <{level = 10 : i32, message = "bqd,bkd->bqk"}> : () -> ()
    %cst_16 = arith.constant dense<0.000000e+00> : vector<16x8x8xf32>
    %34 = tpu.matmul %25, %29, %cst_16 {dimension_numbers = #tpu.dot_dimension_numbers<[2], [2], [1], [1], [0, 0, 0, 1, 1, 1], [0], [0]>} : vector<16x8x8xf32>, vector<16x8x8xf32>, vector<16x8x8xf32> -> vector<16x8x8xf32>
    "tpu.trace_stop"() : () -> ()
    %cst_17 = arith.constant dense<0xFF800000> : vector<16x8xf32>
    %35 = vector.multi_reduction <maximumf>, %34, %cst_17 [2] : vector<16x8x8xf32> to vector<16x8xf32>
    %36 = vector.shape_cast %35 : vector<16x8xf32> to vector<16x8x1xf32>
    %37 = vector.broadcast %36 : vector<16x8x1xf32> to vector<16x8x8xf32>
    %38 = arith.subf %34, %37 : vector<16x8x8xf32>
    %39 = math.exp %38 : vector<16x8x8xf32>
    %cst_18 = arith.constant dense<0.000000e+00> : vector<16x8xf32>
    %40 = vector.multi_reduction <add>, %39, %cst_18 [2] : vector<16x8x8xf32> to vector<16x8xf32>
    %41 = vector.shape_cast %40 : vector<16x8xf32> to vector<16x8x1xf32>
    %42 = vector.broadcast %41 : vector<16x8x1xf32> to vector<16x8x8xf32>
    %43 = arith.divf %39, %42 : vector<16x8x8xf32>
    "tpu.trace_start"() <{level = 10 : i32, message = "bqk,bkd->bqd"}> : () -> ()
    %cst_19 = arith.constant dense<0.000000e+00> : vector<16x8x8xf32>
    %44 = tpu.matmul %43, %33, %cst_19 {dimension_numbers = #tpu.dot_dimension_numbers<[2], [1], [1], [2], [0, 0, 0, 1, 1, 2], [0], [0]>} : vector<16x8x8xf32>, vector<16x8x8xf32>, vector<16x8x8xf32> -> vector<16x8x8xf32>
    "tpu.trace_stop"() : () -> ()
    %45 = vector.shape_cast %44 : vector<16x8x8xf32> to vector<2x8x8x8xf32>
    %46 = tpu.transpose %45, [0, 2, 1, 3] : vector<2x8x8x8xf32> -> vector<2x8x8x8xf32>
    %47 = vector.shape_cast %46 : vector<2x8x8x8xf32> to vector<16x64xf32>
    %c0_20 = arith.constant 0 : index
    %c0_21 = arith.constant 0 : index
    %c0_22 = arith.constant 0 : index
    %48 = vector.load %arg7[%c0_20, %c0_21, %c0_22] : memref<2x64x64xf32, #tpu.memory_space<vmem>>, vector<1x64x64xf32>
    %49 = vector.shape_cast %48 : vector<1x64x64xf32> to vector<64x64xf32>
    %cst_23 = arith.constant dense<0.000000e+00> : vector<16x64xf32>
    %50 = tpu.matmul %47, %49, %cst_23 {dimension_numbers = #tpu.dot_dimension_numbers<[1], [0], [0], [1], [0, 0, 1, 1], [], []>} : vector<16x64xf32>, vector<64x64xf32>, vector<16x64xf32> -> vector<16x64xf32>
    %c0_24 = arith.constant 0 : index
    %c0_25 = arith.constant 0 : index
    %c0_26 = arith.constant 0 : index
    %51 = vector.load %arg8[%c0_24, %c0_25, %c0_26] : memref<2x1x64xf32, #tpu.memory_space<vmem>>, vector<1x1x64xf32>
    %52 = vector.shape_cast %51 : vector<1x1x64xf32> to vector<1x64xf32>
    %53 = vector.broadcast %52 : vector<1x64xf32> to vector<16x64xf32>
    %54 = arith.addf %50, %53 : vector<16x64xf32>
    %55 = arith.addf %14, %54 : vector<16x64xf32>
    %c0_27 = arith.constant 0 : index
    %c0_28 = arith.constant 0 : index
    %c0_29 = arith.constant 0 : index
    %56 = vector.load %arg9[%c0_27, %c0_28, %c0_29] : memref<2x1x64xf32, #tpu.memory_space<vmem>>, vector<1x1x64xf32>
    %57 = vector.shape_cast %56 : vector<1x1x64xf32> to vector<1x64xf32>
    %c0_30 = arith.constant 0 : index
    %c0_31 = arith.constant 0 : index
    %c0_32 = arith.constant 0 : index
    %58 = vector.load %arg10[%c0_30, %c0_31, %c0_32] : memref<2x1x64xf32, #tpu.memory_space<vmem>>, vector<1x1x64xf32>
    %59 = vector.shape_cast %58 : vector<1x1x64xf32> to vector<1x64xf32>
    %cst_33 = arith.constant dense<0.000000e+00> : vector<16xf32>
    %60 = vector.multi_reduction <add>, %55, %cst_33 [1] : vector<16x64xf32> to vector<16xf32>
    %61 = vector.shape_cast %60 : vector<16xf32> to vector<16x1xf32>
    %cst_34 = arith.constant 6.400000e+01 : f32
    %62 = vector.broadcast %cst_34 : f32 to vector<16x1xf32>
    %63 = arith.divf %61, %62 : vector<16x1xf32>
    %64 = vector.broadcast %63 : vector<16x1xf32> to vector<16x64xf32>
    %65 = arith.subf %55, %64 : vector<16x64xf32>
    %66 = arith.mulf %65, %65 : vector<16x64xf32>
    %cst_35 = arith.constant dense<0.000000e+00> : vector<16xf32>
    %67 = vector.multi_reduction <add>, %66, %cst_35 [1] : vector<16x64xf32> to vector<16xf32>
    %68 = vector.shape_cast %67 : vector<16xf32> to vector<16x1xf32>
    %cst_36 = arith.constant 6.400000e+01 : f32
    %69 = vector.broadcast %cst_36 : f32 to vector<16x1xf32>
    %70 = arith.divf %68, %69 : vector<16x1xf32>
    %71 = vector.broadcast %63 : vector<16x1xf32> to vector<16x64xf32>
    %72 = arith.subf %55, %71 : vector<16x64xf32>
    %cst_37 = arith.constant 9.99999974E-6 : f32
    %73 = vector.broadcast %cst_37 : f32 to vector<16x1xf32>
    %74 = arith.addf %70, %73 : vector<16x1xf32>
    %75 = math.rsqrt %74 : vector<16x1xf32>
    %76 = vector.broadcast %75 : vector<16x1xf32> to vector<16x64xf32>
    %77 = arith.mulf %72, %76 : vector<16x64xf32>
    %78 = vector.broadcast %57 : vector<1x64xf32> to vector<16x64xf32>
    %79 = arith.mulf %77, %78 : vector<16x64xf32>
    %80 = vector.broadcast %59 : vector<1x64xf32> to vector<16x64xf32>
    %81 = arith.addf %79, %80 : vector<16x64xf32>
    %c0_38 = arith.constant 0 : index
    %c0_39 = arith.constant 0 : index
    %c0_40 = arith.constant 0 : index
    %82 = vector.load %arg13[%c0_38, %c0_39, %c0_40] : memref<2x64x128xf32, #tpu.memory_space<vmem>>, vector<1x64x128xf32>
    %83 = vector.shape_cast %82 : vector<1x64x128xf32> to vector<64x128xf32>
    %cst_41 = arith.constant dense<0.000000e+00> : vector<16x128xf32>
    %84 = tpu.matmul %81, %83, %cst_41 {dimension_numbers = #tpu.dot_dimension_numbers<[1], [0], [0], [1], [0, 0, 1, 1], [], []>} : vector<16x64xf32>, vector<64x128xf32>, vector<16x128xf32> -> vector<16x128xf32>
    %c0_42 = arith.constant 0 : index
    %c0_43 = arith.constant 0 : index
    %c0_44 = arith.constant 0 : index
    %85 = vector.load %arg14[%c0_42, %c0_43, %c0_44] : memref<2x1x128xf32, #tpu.memory_space<vmem>>, vector<1x1x128xf32>
    %86 = vector.shape_cast %85 : vector<1x1x128xf32> to vector<1x128xf32>
    %87 = vector.broadcast %86 : vector<1x128xf32> to vector<16x128xf32>
    %88 = arith.addf %84, %87 : vector<16x128xf32>
    %cst_45 = arith.constant 0.000000e+00 : f32
    %89 = vector.broadcast %cst_45 : f32 to vector<16x128xf32>
    %90 = arith.maximumf %88, %89 : vector<16x128xf32>
    %c0_46 = arith.constant 0 : index
    %c0_47 = arith.constant 0 : index
    %c0_48 = arith.constant 0 : index
    %91 = vector.load %arg15[%c0_46, %c0_47, %c0_48] : memref<2x128x64xf32, #tpu.memory_space<vmem>>, vector<1x128x64xf32>
    %92 = vector.shape_cast %91 : vector<1x128x64xf32> to vector<128x64xf32>
    %cst_49 = arith.constant dense<0.000000e+00> : vector<16x64xf32>
    %93 = tpu.matmul %90, %92, %cst_49 {dimension_numbers = #tpu.dot_dimension_numbers<[1], [0], [0], [1], [0, 0, 1, 1], [], []>} : vector<16x128xf32>, vector<128x64xf32>, vector<16x64xf32> -> vector<16x64xf32>
    %c0_50 = arith.constant 0 : index
    %c0_51 = arith.constant 0 : index
    %c0_52 = arith.constant 0 : index
    %94 = vector.load %arg16[%c0_50, %c0_51, %c0_52] : memref<2x1x64xf32, #tpu.memory_space<vmem>>, vector<1x1x64xf32>
    %95 = vector.shape_cast %94 : vector<1x1x64xf32> to vector<1x64xf32>
    %96 = vector.broadcast %95 : vector<1x64xf32> to vector<16x64xf32>
    %97 = arith.addf %93, %96 : vector<16x64xf32>
    %98 = arith.addf %81, %97 : vector<16x64xf32>
    %c0_53 = arith.constant 0 : index
    %c0_54 = arith.constant 0 : index
    %c0_55 = arith.constant 0 : index
    %99 = vector.load %arg11[%c0_53, %c0_54, %c0_55] : memref<2x1x64xf32, #tpu.memory_space<vmem>>, vector<1x1x64xf32>
    %100 = vector.shape_cast %99 : vector<1x1x64xf32> to vector<1x64xf32>
    %c0_56 = arith.constant 0 : index
    %c0_57 = arith.constant 0 : index
    %c0_58 = arith.constant 0 : index
    %101 = vector.load %arg12[%c0_56, %c0_57, %c0_58] : memref<2x1x64xf32, #tpu.memory_space<vmem>>, vector<1x1x64xf32>
    %102 = vector.shape_cast %101 : vector<1x1x64xf32> to vector<1x64xf32>
    %cst_59 = arith.constant dense<0.000000e+00> : vector<16xf32>
    %103 = vector.multi_reduction <add>, %98, %cst_59 [1] : vector<16x64xf32> to vector<16xf32>
    %104 = vector.shape_cast %103 : vector<16xf32> to vector<16x1xf32>
    %cst_60 = arith.constant 6.400000e+01 : f32
    %105 = vector.broadcast %cst_60 : f32 to vector<16x1xf32>
    %106 = arith.divf %104, %105 : vector<16x1xf32>
    %107 = vector.broadcast %106 : vector<16x1xf32> to vector<16x64xf32>
    %108 = arith.subf %98, %107 : vector<16x64xf32>
    %109 = arith.mulf %108, %108 : vector<16x64xf32>
    %cst_61 = arith.constant dense<0.000000e+00> : vector<16xf32>
    %110 = vector.multi_reduction <add>, %109, %cst_61 [1] : vector<16x64xf32> to vector<16xf32>
    %111 = vector.shape_cast %110 : vector<16xf32> to vector<16x1xf32>
    %cst_62 = arith.constant 6.400000e+01 : f32
    %112 = vector.broadcast %cst_62 : f32 to vector<16x1xf32>
    %113 = arith.divf %111, %112 : vector<16x1xf32>
    %114 = vector.broadcast %106 : vector<16x1xf32> to vector<16x64xf32>
    %115 = arith.subf %98, %114 : vector<16x64xf32>
    %cst_63 = arith.constant 9.99999974E-6 : f32
    %116 = vector.broadcast %cst_63 : f32 to vector<16x1xf32>
    %117 = arith.addf %113, %116 : vector<16x1xf32>
    %118 = math.rsqrt %117 : vector<16x1xf32>
    %119 = vector.broadcast %118 : vector<16x1xf32> to vector<16x64xf32>
    %120 = arith.mulf %115, %119 : vector<16x64xf32>
    %121 = vector.broadcast %100 : vector<1x64xf32> to vector<16x64xf32>
    %122 = arith.mulf %120, %121 : vector<16x64xf32>
    %123 = vector.broadcast %102 : vector<1x64xf32> to vector<16x64xf32>
    %124 = arith.addf %122, %123 : vector<16x64xf32>
    %c1 = arith.constant 1 : index
    %c0_64 = arith.constant 0 : index
    %c0_65 = arith.constant 0 : index
    %125 = vector.load %arg5[%c1, %c0_64, %c0_65] : memref<2x64x192xf32, #tpu.memory_space<vmem>>, vector<1x64x192xf32>
    %126 = vector.shape_cast %125 : vector<1x64x192xf32> to vector<64x192xf32>
    %cst_66 = arith.constant dense<0.000000e+00> : vector<16x192xf32>
    %127 = tpu.matmul %124, %126, %cst_66 {dimension_numbers = #tpu.dot_dimension_numbers<[1], [0], [0], [1], [0, 0, 1, 1], [], []>} : vector<16x64xf32>, vector<64x192xf32>, vector<16x192xf32> -> vector<16x192xf32>
    %c1_67 = arith.constant 1 : index
    %c0_68 = arith.constant 0 : index
    %c0_69 = arith.constant 0 : index
    %128 = vector.load %arg6[%c1_67, %c0_68, %c0_69] : memref<2x1x192xf32, #tpu.memory_space<vmem>>, vector<1x1x192xf32>
    %129 = vector.shape_cast %128 : vector<1x1x192xf32> to vector<1x192xf32>
    %130 = vector.broadcast %129 : vector<1x192xf32> to vector<16x192xf32>
    %131 = arith.addf %127, %130 : vector<16x192xf32>
    %132 = vector.extract_strided_slice %131 {offsets = [0, 0], sizes = [16, 64], strides = [1, 1]} : vector<16x192xf32> to vector<16x64xf32>
    %133 = vector.shape_cast %132 : vector<16x64xf32> to vector<2x8x8x8xf32>
    %134 = tpu.transpose %133, [0, 2, 1, 3] : vector<2x8x8x8xf32> -> vector<2x8x8x8xf32>
    %135 = vector.shape_cast %134 : vector<2x8x8x8xf32> to vector<16x8x8xf32>
    %136 = vector.extract_strided_slice %131 {offsets = [0, 64], sizes = [16, 64], strides = [1, 1]} : vector<16x192xf32> to vector<16x64xf32>
    %137 = vector.shape_cast %136 : vector<16x64xf32> to vector<2x8x8x8xf32>
    %138 = tpu.transpose %137, [0, 2, 1, 3] : vector<2x8x8x8xf32> -> vector<2x8x8x8xf32>
    %139 = vector.shape_cast %138 : vector<2x8x8x8xf32> to vector<16x8x8xf32>
    %140 = vector.extract_strided_slice %131 {offsets = [0, 128], sizes = [16, 64], strides = [1, 1]} : vector<16x192xf32> to vector<16x64xf32>
    %141 = vector.shape_cast %140 : vector<16x64xf32> to vector<2x8x8x8xf32>
    %142 = tpu.transpose %141, [0, 2, 1, 3] : vector<2x8x8x8xf32> -> vector<2x8x8x8xf32>
    %143 = vector.shape_cast %142 : vector<2x8x8x8xf32> to vector<16x8x8xf32>
    "tpu.trace_start"() <{level = 10 : i32, message = "bqd,bkd->bqk"}> : () -> ()
    %cst_70 = arith.constant dense<0.000000e+00> : vector<16x8x8xf32>
    %144 = tpu.matmul %135, %139, %cst_70 {dimension_numbers = #tpu.dot_dimension_numbers<[2], [2], [1], [1], [0, 0, 0, 1, 1, 1], [0], [0]>} : vector<16x8x8xf32>, vector<16x8x8xf32>, vector<16x8x8xf32> -> vector<16x8x8xf32>
    "tpu.trace_stop"() : () -> ()
    %cst_71 = arith.constant dense<0xFF800000> : vector<16x8xf32>
    %145 = vector.multi_reduction <maximumf>, %144, %cst_71 [2] : vector<16x8x8xf32> to vector<16x8xf32>
    %146 = vector.shape_cast %145 : vector<16x8xf32> to vector<16x8x1xf32>
    %147 = vector.broadcast %146 : vector<16x8x1xf32> to vector<16x8x8xf32>
    %148 = arith.subf %144, %147 : vector<16x8x8xf32>
    %149 = math.exp %148 : vector<16x8x8xf32>
    %cst_72 = arith.constant dense<0.000000e+00> : vector<16x8xf32>
    %150 = vector.multi_reduction <add>, %149, %cst_72 [2] : vector<16x8x8xf32> to vector<16x8xf32>
    %151 = vector.shape_cast %150 : vector<16x8xf32> to vector<16x8x1xf32>
    %152 = vector.broadcast %151 : vector<16x8x1xf32> to vector<16x8x8xf32>
    %153 = arith.divf %149, %152 : vector<16x8x8xf32>
    "tpu.trace_start"() <{level = 10 : i32, message = "bqk,bkd->bqd"}> : () -> ()
    %cst_73 = arith.constant dense<0.000000e+00> : vector<16x8x8xf32>
    %154 = tpu.matmul %153, %143, %cst_73 {dimension_numbers = #tpu.dot_dimension_numbers<[2], [1], [1], [2], [0, 0, 0, 1, 1, 2], [0], [0]>} : vector<16x8x8xf32>, vector<16x8x8xf32>, vector<16x8x8xf32> -> vector<16x8x8xf32>
    "tpu.trace_stop"() : () -> ()
    %155 = vector.shape_cast %154 : vector<16x8x8xf32> to vector<2x8x8x8xf32>
    %156 = tpu.transpose %155, [0, 2, 1, 3] : vector<2x8x8x8xf32> -> vector<2x8x8x8xf32>
    %157 = vector.shape_cast %156 : vector<2x8x8x8xf32> to vector<16x64xf32>
    %c1_74 = arith.constant 1 : index
    %c0_75 = arith.constant 0 : index
    %c0_76 = arith.constant 0 : index
    %158 = vector.load %arg7[%c1_74, %c0_75, %c0_76] : memref<2x64x64xf32, #tpu.memory_space<vmem>>, vector<1x64x64xf32>
    %159 = vector.shape_cast %158 : vector<1x64x64xf32> to vector<64x64xf32>
    %cst_77 = arith.constant dense<0.000000e+00> : vector<16x64xf32>
    %160 = tpu.matmul %157, %159, %cst_77 {dimension_numbers = #tpu.dot_dimension_numbers<[1], [0], [0], [1], [0, 0, 1, 1], [], []>} : vector<16x64xf32>, vector<64x64xf32>, vector<16x64xf32> -> vector<16x64xf32>
    %c1_78 = arith.constant 1 : index
    %c0_79 = arith.constant 0 : index
    %c0_80 = arith.constant 0 : index
    %161 = vector.load %arg8[%c1_78, %c0_79, %c0_80] : memref<2x1x64xf32, #tpu.memory_space<vmem>>, vector<1x1x64xf32>
    %162 = vector.shape_cast %161 : vector<1x1x64xf32> to vector<1x64xf32>
    %163 = vector.broadcast %162 : vector<1x64xf32> to vector<16x64xf32>
    %164 = arith.addf %160, %163 : vector<16x64xf32>
    %165 = arith.addf %124, %164 : vector<16x64xf32>
    %c1_81 = arith.constant 1 : index
    %c0_82 = arith.constant 0 : index
    %c0_83 = arith.constant 0 : index
    %166 = vector.load %arg9[%c1_81, %c0_82, %c0_83] : memref<2x1x64xf32, #tpu.memory_space<vmem>>, vector<1x1x64xf32>
    %167 = vector.shape_cast %166 : vector<1x1x64xf32> to vector<1x64xf32>
    %c1_84 = arith.constant 1 : index
    %c0_85 = arith.constant 0 : index
    %c0_86 = arith.constant 0 : index
    %168 = vector.load %arg10[%c1_84, %c0_85, %c0_86] : memref<2x1x64xf32, #tpu.memory_space<vmem>>, vector<1x1x64xf32>
    %169 = vector.shape_cast %168 : vector<1x1x64xf32> to vector<1x64xf32>
    %cst_87 = arith.constant dense<0.000000e+00> : vector<16xf32>
    %170 = vector.multi_reduction <add>, %165, %cst_87 [1] : vector<16x64xf32> to vector<16xf32>
    %171 = vector.shape_cast %170 : vector<16xf32> to vector<16x1xf32>
    %cst_88 = arith.constant 6.400000e+01 : f32
    %172 = vector.broadcast %cst_88 : f32 to vector<16x1xf32>
    %173 = arith.divf %171, %172 : vector<16x1xf32>
    %174 = vector.broadcast %173 : vector<16x1xf32> to vector<16x64xf32>
    %175 = arith.subf %165, %174 : vector<16x64xf32>
    %176 = arith.mulf %175, %175 : vector<16x64xf32>
    %cst_89 = arith.constant dense<0.000000e+00> : vector<16xf32>
    %177 = vector.multi_reduction <add>, %176, %cst_89 [1] : vector<16x64xf32> to vector<16xf32>
    %178 = vector.shape_cast %177 : vector<16xf32> to vector<16x1xf32>
    %cst_90 = arith.constant 6.400000e+01 : f32
    %179 = vector.broadcast %cst_90 : f32 to vector<16x1xf32>
    %180 = arith.divf %178, %179 : vector<16x1xf32>
    %181 = vector.broadcast %173 : vector<16x1xf32> to vector<16x64xf32>
    %182 = arith.subf %165, %181 : vector<16x64xf32>
    %cst_91 = arith.constant 9.99999974E-6 : f32
    %183 = vector.broadcast %cst_91 : f32 to vector<16x1xf32>
    %184 = arith.addf %180, %183 : vector<16x1xf32>
    %185 = math.rsqrt %184 : vector<16x1xf32>
    %186 = vector.broadcast %185 : vector<16x1xf32> to vector<16x64xf32>
    %187 = arith.mulf %182, %186 : vector<16x64xf32>
    %188 = vector.broadcast %167 : vector<1x64xf32> to vector<16x64xf32>
    %189 = arith.mulf %187, %188 : vector<16x64xf32>
    %190 = vector.broadcast %169 : vector<1x64xf32> to vector<16x64xf32>
    %191 = arith.addf %189, %190 : vector<16x64xf32>
    %c1_92 = arith.constant 1 : index
    %c0_93 = arith.constant 0 : index
    %c0_94 = arith.constant 0 : index
    %192 = vector.load %arg13[%c1_92, %c0_93, %c0_94] : memref<2x64x128xf32, #tpu.memory_space<vmem>>, vector<1x64x128xf32>
    %193 = vector.shape_cast %192 : vector<1x64x128xf32> to vector<64x128xf32>
    %cst_95 = arith.constant dense<0.000000e+00> : vector<16x128xf32>
    %194 = tpu.matmul %191, %193, %cst_95 {dimension_numbers = #tpu.dot_dimension_numbers<[1], [0], [0], [1], [0, 0, 1, 1], [], []>} : vector<16x64xf32>, vector<64x128xf32>, vector<16x128xf32> -> vector<16x128xf32>
    %c1_96 = arith.constant 1 : index
    %c0_97 = arith.constant 0 : index
    %c0_98 = arith.constant 0 : index
    %195 = vector.load %arg14[%c1_96, %c0_97, %c0_98] : memref<2x1x128xf32, #tpu.memory_space<vmem>>, vector<1x1x128xf32>
    %196 = vector.shape_cast %195 : vector<1x1x128xf32> to vector<1x128xf32>
    %197 = vector.broadcast %196 : vector<1x128xf32> to vector<16x128xf32>
    %198 = arith.addf %194, %197 : vector<16x128xf32>
    %cst_99 = arith.constant 0.000000e+00 : f32
    %199 = vector.broadcast %cst_99 : f32 to vector<16x128xf32>
    %200 = arith.maximumf %198, %199 : vector<16x128xf32>
    %c1_100 = arith.constant 1 : index
    %c0_101 = arith.constant 0 : index
    %c0_102 = arith.constant 0 : index
    %201 = vector.load %arg15[%c1_100, %c0_101, %c0_102] : memref<2x128x64xf32, #tpu.memory_space<vmem>>, vector<1x128x64xf32>
    %202 = vector.shape_cast %201 : vector<1x128x64xf32> to vector<128x64xf32>
    %cst_103 = arith.constant dense<0.000000e+00> : vector<16x64xf32>
    %203 = tpu.matmul %200, %202, %cst_103 {dimension_numbers = #tpu.dot_dimension_numbers<[1], [0], [0], [1], [0, 0, 1, 1], [], []>} : vector<16x128xf32>, vector<128x64xf32>, vector<16x64xf32> -> vector<16x64xf32>
    %c1_104 = arith.constant 1 : index
    %c0_105 = arith.constant 0 : index
    %c0_106 = arith.constant 0 : index
    %204 = vector.load %arg16[%c1_104, %c0_105, %c0_106] : memref<2x1x64xf32, #tpu.memory_space<vmem>>, vector<1x1x64xf32>
    %205 = vector.shape_cast %204 : vector<1x1x64xf32> to vector<1x64xf32>
    %206 = vector.broadcast %205 : vector<1x64xf32> to vector<16x64xf32>
    %207 = arith.addf %203, %206 : vector<16x64xf32>
    %208 = arith.addf %191, %207 : vector<16x64xf32>
    %c1_107 = arith.constant 1 : index
    %c0_108 = arith.constant 0 : index
    %c0_109 = arith.constant 0 : index
    %209 = vector.load %arg11[%c1_107, %c0_108, %c0_109] : memref<2x1x64xf32, #tpu.memory_space<vmem>>, vector<1x1x64xf32>
    %210 = vector.shape_cast %209 : vector<1x1x64xf32> to vector<1x64xf32>
    %c1_110 = arith.constant 1 : index
    %c0_111 = arith.constant 0 : index
    %c0_112 = arith.constant 0 : index
    %211 = vector.load %arg12[%c1_110, %c0_111, %c0_112] : memref<2x1x64xf32, #tpu.memory_space<vmem>>, vector<1x1x64xf32>
    %212 = vector.shape_cast %211 : vector<1x1x64xf32> to vector<1x64xf32>
    %cst_113 = arith.constant dense<0.000000e+00> : vector<16xf32>
    %213 = vector.multi_reduction <add>, %208, %cst_113 [1] : vector<16x64xf32> to vector<16xf32>
    %214 = vector.shape_cast %213 : vector<16xf32> to vector<16x1xf32>
    %cst_114 = arith.constant 6.400000e+01 : f32
    %215 = vector.broadcast %cst_114 : f32 to vector<16x1xf32>
    %216 = arith.divf %214, %215 : vector<16x1xf32>
    %217 = vector.broadcast %216 : vector<16x1xf32> to vector<16x64xf32>
    %218 = arith.subf %208, %217 : vector<16x64xf32>
    %219 = arith.mulf %218, %218 : vector<16x64xf32>
    %cst_115 = arith.constant dense<0.000000e+00> : vector<16xf32>
    %220 = vector.multi_reduction <add>, %219, %cst_115 [1] : vector<16x64xf32> to vector<16xf32>
    %221 = vector.shape_cast %220 : vector<16xf32> to vector<16x1xf32>
    %cst_116 = arith.constant 6.400000e+01 : f32
    %222 = vector.broadcast %cst_116 : f32 to vector<16x1xf32>
    %223 = arith.divf %221, %222 : vector<16x1xf32>
    %224 = vector.broadcast %216 : vector<16x1xf32> to vector<16x64xf32>
    %225 = arith.subf %208, %224 : vector<16x64xf32>
    %cst_117 = arith.constant 9.99999974E-6 : f32
    %226 = vector.broadcast %cst_117 : f32 to vector<16x1xf32>
    %227 = arith.addf %223, %226 : vector<16x1xf32>
    %228 = math.rsqrt %227 : vector<16x1xf32>
    %229 = vector.broadcast %228 : vector<16x1xf32> to vector<16x64xf32>
    %230 = arith.mulf %225, %229 : vector<16x64xf32>
    %231 = vector.broadcast %210 : vector<1x64xf32> to vector<16x64xf32>
    %232 = arith.mulf %230, %231 : vector<16x64xf32>
    %233 = vector.broadcast %212 : vector<1x64xf32> to vector<16x64xf32>
    %234 = arith.addf %232, %233 : vector<16x64xf32>
    %235 = vector.shape_cast %234 : vector<16x64xf32> to vector<2x8x64xf32>
    %236 = vector.extract_strided_slice %235 {offsets = [0, 7, 0], sizes = [2, 1, 64], strides = [1, 1, 1]} : vector<2x8x64xf32> to vector<2x1x64xf32>
    %237 = vector.shape_cast %236 : vector<2x1x64xf32> to vector<2x64xf32>
    %c0_118 = arith.constant 0 : index
    %c0_119 = arith.constant 0 : index
    %238 = vector.load %arg17[%c0_118, %c0_119] : memref<2x64xf32, #tpu.memory_space<vmem>>, vector<2x64xf32>
    tpu.vector_store %arg17[%c0_118, %c0_119], %237 {strides = array<i32>} : memref<2x64xf32, #tpu.memory_space<vmem>>, vector<2x64xf32>,
    return
  }
  func.func @transform_0(%arg0: i32) -> (i32, i32, i32) {
    %c0_i32 = arith.constant 0 : i32
    %c0_i32_0 = arith.constant 0 : i32
    %c0_i32_1 = arith.constant 0 : i32
    return %arg0, %c0_i32, %c0_i32_0 : i32, i32, i32
  }
  func.func @transform_1(%arg0: i32) -> (i32, i32) {
    %c0_i32 = arith.constant 0 : i32
    %c0_i32_0 = arith.constant 0 : i32
    %c0_i32_1 = arith.constant 0 : i32
    return %c0_i32, %c0_i32_0 : i32, i32
  }
  func.func @transform_2(%arg0: i32) -> (i32, i32) {
    %c0_i32 = arith.constant 0 : i32
    %c0_i32_0 = arith.constant 0 : i32
    %c0_i32_1 = arith.constant 0 : i32
    return %c0_i32, %c0_i32_0 : i32, i32
  }
  func.func @transform_3(%arg0: i32) -> (i32, i32) {
    %c0_i32 = arith.constant 0 : i32
    %c0_i32_0 = arith.constant 0 : i32
    %c0_i32_1 = arith.constant 0 : i32
    return %c0_i32, %c0_i32_0 : i32, i32
  }
  func.func @transform_4(%arg0: i32) -> (i32, i32, i32) {
    %c0_i32 = arith.constant 0 : i32
    %c0_i32_0 = arith.constant 0 : i32
    %c0_i32_1 = arith.constant 0 : i32
    %c0_i32_2 = arith.constant 0 : i32
    return %c0_i32, %c0_i32_0, %c0_i32_1 : i32, i32, i32
  }
  func.func @transform_5(%arg0: i32) -> (i32, i32, i32) {
    %c0_i32 = arith.constant 0 : i32
    %c0_i32_0 = arith.constant 0 : i32
    %c0_i32_1 = arith.constant 0 : i32
    %c0_i32_2 = arith.constant 0 : i32
    return %c0_i32, %c0_i32_0, %c0_i32_1 : i32, i32, i32
  }
  func.func @transform_6(%arg0: i32) -> (i32, i32, i32) {
    %c0_i32 = arith.constant 0 : i32
    %c0_i32_0 = arith.constant 0 : i32
    %c0_i32_1 = arith.constant 0 : i32
    %c0_i32_2 = arith.constant 0 : i32
    return %c0_i32, %c0_i32_0, %c0_i32_1 : i32, i32, i32
  }
  func.func @transform_7(%arg0: i32) -> (i32, i32, i32) {
    %c0_i32 = arith.constant 0 : i32
    %c0_i32_0 = arith.constant 0 : i32
    %c0_i32_1 = arith.constant 0 : i32
    %c0_i32_2 = arith.constant 0 : i32
    return %c0_i32, %c0_i32_0, %c0_i32_1 : i32, i32, i32
  }
  func.func @transform_8(%arg0: i32) -> (i32, i32, i32) {
    %c0_i32 = arith.constant 0 : i32
    %c0_i32_0 = arith.constant 0 : i32
    %c0_i32_1 = arith.constant 0 : i32
    %c0_i32_2 = arith.constant 0 : i32
    return %c0_i32, %c0_i32_0, %c0_i32_1 : i32, i32, i32
  }
  func.func @transform_9(%arg0: i32) -> (i32, i32, i32) {
    %c0_i32 = arith.constant 0 : i32
    %c0_i32_0 = arith.constant 0 : i32
    %c0_i32_1 = arith.constant 0 : i32
    %c0_i32_2 = arith.constant 0 : i32
    return %c0_i32, %c0_i32_0, %c0_i32_1 : i32, i32, i32
  }
  func.func @transform_10(%arg0: i32) -> (i32, i32, i32) {
    %c0_i32 = arith.constant 0 : i32
    %c0_i32_0 = arith.constant 0 : i32
    %c0_i32_1 = arith.constant 0 : i32
    %c0_i32_2 = arith.constant 0 : i32
    return %c0_i32, %c0_i32_0, %c0_i32_1 : i32, i32, i32
  }
  func.func @transform_11(%arg0: i32) -> (i32, i32, i32) {
    %c0_i32 = arith.constant 0 : i32
    %c0_i32_0 = arith.constant 0 : i32
    %c0_i32_1 = arith.constant 0 : i32
    %c0_i32_2 = arith.constant 0 : i32
    return %c0_i32, %c0_i32_0, %c0_i32_1 : i32, i32, i32
  }
  func.func @transform_12(%arg0: i32) -> (i32, i32, i32) {
    %c0_i32 = arith.constant 0 : i32
    %c0_i32_0 = arith.constant 0 : i32
    %c0_i32_1 = arith.constant 0 : i32
    %c0_i32_2 = arith.constant 0 : i32
    return %c0_i32, %c0_i32_0, %c0_i32_1 : i32, i32, i32
  }
  func.func @transform_13(%arg0: i32) -> (i32, i32, i32) {
    %c0_i32 = arith.constant 0 : i32
    %c0_i32_0 = arith.constant 0 : i32
    %c0_i32_1 = arith.constant 0 : i32
    %c0_i32_2 = arith.constant 0 : i32
    return %c0_i32, %c0_i32_0, %c0_i32_1 : i32, i32, i32
  }
  func.func @transform_14(%arg0: i32) -> (i32, i32, i32) {
    %c0_i32 = arith.constant 0 : i32
    %c0_i32_0 = arith.constant 0 : i32
    %c0_i32_1 = arith.constant 0 : i32
    %c0_i32_2 = arith.constant 0 : i32
    return %c0_i32, %c0_i32_0, %c0_i32_1 : i32, i32, i32
  }
  func.func @transform_15(%arg0: i32) -> (i32, i32, i32) {
    %c0_i32 = arith.constant 0 : i32
    %c0_i32_0 = arith.constant 0 : i32
    %c0_i32_1 = arith.constant 0 : i32
    %c0_i32_2 = arith.constant 0 : i32
    return %c0_i32, %c0_i32_0, %c0_i32_1 : i32, i32, i32
  }
  func.func @transform_16(%arg0: i32) -> (i32, i32) {
    %c0_i32 = arith.constant 0 : i32
    %c0_i32_0 = arith.constant 0 : i32
    return %arg0, %c0_i32 : i32, i32
  }
}

</mosaic_0001>

<llo_original>
// kernel: transformer_forward.1
$region0: #{transformer_forward.1}
  #allocation0 [shape = 'u32[]', space=smem, size = 0x4, offset = 0x4, fixed_abs, tag = 'smem constant byte address 0x4 - core index']
  #allocation1 [shape = 'u32[144,128]{1,0:T(1,128)}', space=vmem, size = 0x12000, scoped, tag = 'internal scratch']
  %s0 = inlined_call_operand.vmem [shape: f32[2,8,16], index: 0, kind: input, shape index: {}]
  %s1 = inlined_call_operand.vmem [shape: f32[8,64], index: 1, kind: input, shape index: {}]
  %s2 = inlined_call_operand.vmem [shape: f32[16,64], index: 2, kind: input, shape index: {}]
  %s3 = inlined_call_operand.vmem [shape: f32[1,64], index: 3, kind: input, shape index: {}]
  %s4 = inlined_call_operand.vmem [shape: f32[2,64,192], index: 4, kind: input, shape index: {}]
  %s5 = inlined_call_operand.vmem [shape: f32[2,1,192], index: 5, kind: input, shape index: {}]
  %s6 = inlined_call_operand.vmem [shape: f32[2,64,64], index: 6, kind: input, shape index: {}]
  %s7 = inlined_call_operand.vmem [shape: f32[2,1,64], index: 7, kind: input, shape index: {}]
  %s8 = inlined_call_operand.vmem [shape: f32[2,1,64], index: 8, kind: input, shape index: {}]
  %s9 = inlined_call_operand.vmem [shape: f32[2,1,64], index: 9, kind: input, shape index: {}]
  %s10 = inlined_call_operand.vmem [shape: f32[2,1,64], index: 10, kind: input, shape index: {}]
  %s11 = inlined_call_operand.vmem [shape: f32[2,1,64], index: 11, kind: input, shape index: {}]
  %s12 = inlined_call_operand.hbm [shape: f32[2,64,128], index: 12, kind: input, shape index: {}]
  %s13 = inlined_call_operand.vmem [shape: f32[2,1,128], index: 13, kind: input, shape index: {}]
  %s14 = inlined_call_operand.vmem [shape: f32[2,128,64], index: 14, kind: input, shape index: {}]
  %s15 = inlined_call_operand.vmem [shape: f32[2,1,64], index: 15, kind: input, shape index: {}]
  %s16 = inlined_call_operand.vmem [shape: f32[2,64], index: 16, kind: output, shape index: {}]
  %s17 = sld [smem:[#allocation0]]
  $region78: #{transformer_forward.1} parent=0
    _
  %s19 = ssub.s32 1, %s17
  %s20 = scalar_select 0, %s19, %s17
  $region1: #{transformer_forward.1} parent=0
    #allocation2 [shape = 'u8[65536]{0}', space=vmem, size = 0x10000, scoped, tag = 'input window, operand 12, single buffered']
    #allocation3 [shape = 's32[1]{0}', space=sflag, size = 0x4, scoped, tag = 'scoped memory for transformer_forward.1']
    %21 = vsyncpa [#allocation3], 0
    // Predicated region
    $region2: #{transformer_forward.1} parent=1 // pred_check
      _
    $region3: #{transformer_forward.1} parent=1 // pred_check_branch
      %23 = sbr.rel (0) target = $region5
    $region4: #{transformer_forward.1} parent=1 // pred_region
      _
    $region5: #{transformer_forward.1} parent=1 // pred_fallthru
      _
    // Predicated region
    $region6: #{transformer_forward.1} parent=1 // pred_check
      _
    $region7: #{transformer_forward.1} parent=1 // pred_check_branch
      %25 = sbr.rel (0) target = $region9
    $region8: #{transformer_forward.1} parent=1 // pred_region
      _
    $region9: #{transformer_forward.1} parent=1 // pred_fallthru
      _
    // Predicated region
    $region10: #{transformer_forward.1} parent=1 // pred_check
      _
    $region11: #{transformer_forward.1} parent=1 // pred_check_branch
      %27 = sbr.rel (0) target = $region13
    $region12: #{transformer_forward.1} parent=1 // pred_region
      _
    $region13: #{transformer_forward.1} parent=1 // pred_fallthru
      _
    // Predicated region
    $region14: #{transformer_forward.1} parent=1 // pred_check
      _
    $region15: #{transformer_forward.1} parent=1 // pred_check_branch
      %29 = sbr.rel (0) target = $region17
    $region16: #{transformer_forward.1} parent=1 // pred_region
      _
    $region17: #{transformer_forward.1} parent=1 // pred_fallthru
      _
    // Predicated region
    $region18: #{transformer_forward.1} parent=1 // pred_check
      _
    $region19: #{transformer_forward.1} parent=1 // pred_check_branch
      %31 = sbr.rel (0) target = $region21
    $region20: #{transformer_forward.1} parent=1 // pred_region
      _
    $region21: #{transformer_forward.1} parent=1 // pred_fallthru
      _
    // Predicated region
    $region22: #{transformer_forward.1} parent=1 // pred_check
      _
    $region23: #{transformer_forward.1} parent=1 // pred_check_branch
      %33 = sbr.rel (0) target = $region25
    $region24: #{transformer_forward.1} parent=1 // pred_region
      _
    $region25: #{transformer_forward.1} parent=1 // pred_fallthru
      _
    // Predicated region
    $region26: #{transformer_forward.1} parent=1 // pred_check
      _
    $region27: #{transformer_forward.1} parent=1 // pred_check_branch
      %35 = sbr.rel (0) target = $region29
    $region28: #{transformer_forward.1} parent=1 // pred_region
      _
    $region29: #{transformer_forward.1} parent=1 // pred_fallthru
      _
    // Predicated region
    $region30: #{transformer_forward.1} parent=1 // pred_check
      _
    $region31: #{transformer_forward.1} parent=1 // pred_check_branch
      %37 = sbr.rel (0) target = $region33
    $region32: #{transformer_forward.1} parent=1 // pred_region
      _
    $region33: #{transformer_forward.1} parent=1 // pred_fallthru
      _
    // Predicated region
    $region34: #{transformer_forward.1} parent=1 // pred_check
      _
    $region35: #{transformer_forward.1} parent=1 // pred_check_branch
      %39 = sbr.rel (0) target = $region37
    $region36: #{transformer_forward.1} parent=1 // pred_region
      _
    $region37: #{transformer_forward.1} parent=1 // pred_fallthru
      _
    // Predicated region
    $region38: #{transformer_forward.1} parent=1 // pred_check
      _
    $region39: #{transformer_forward.1} parent=1 // pred_check_branch
      %41 = sbr.rel (0) target = $region41
    $region40: #{transformer_forward.1} parent=1 // pred_region
      _
    $region41: #{transformer_forward.1} parent=1 // pred_fallthru
      _
    // Predicated region
    $region42: #{transformer_forward.1} parent=1 // pred_check
      _
    $region43: #{transformer_forward.1} parent=1 // pred_check_branch
      %43 = sbr.rel (0) target = $region45
    $region44: #{transformer_forward.1} parent=1 // pred_region
      _
    $region45: #{transformer_forward.1} parent=1 // pred_fallthru
      _
    // Predicated region
    $region46: #{transformer_forward.1} parent=1 // pred_check
      _
    $region47: #{transformer_forward.1} parent=1 // pred_check_branch
      %45 = sbr.rel (0) target = $region49
    $region48: #{transformer_forward.1} parent=1 // pred_region
      _
    $region49: #{transformer_forward.1} parent=1 // pred_fallthru
      _
    // Predicated region
    $region50: #{transformer_forward.1} parent=1 // pred_check
      _
    $region51: #{transformer_forward.1} parent=1 // pred_check_branch
      %47 = sbr.rel (0) target = $region53
    $region52: #{transformer_forward.1} parent=1 // pred_region
      %s49 = ssub.s32 2048, 2048
      %50 = vsyncadd [#allocation3], %s49
      %s51 = sshll.u32 [#allocation2], 4
      %s52 = int_to_ptr.vmem [resolvable:$true] %s51
      %57 = dma.hbm_to_vmem [thread:$0]  %s12, 2048, %s52, [#allocation3], 128, 128, 8
    $region53: #{transformer_forward.1} parent=1 // pred_fallthru
      _
    // Predicated region
    $region54: #{transformer_forward.1} parent=1 // pred_check
      _
    $region55: #{transformer_forward.1} parent=1 // pred_check_branch
      %59 = sbr.rel (0) target = $region57
    $region56: #{transformer_forward.1} parent=1 // pred_region
      _
    $region57: #{transformer_forward.1} parent=1 // pred_fallthru
      _
    // Predicated region
    $region58: #{transformer_forward.1} parent=1 // pred_check
      _
    $region59: #{transformer_forward.1} parent=1 // pred_check_branch
      %61 = sbr.rel (0) target = $region61
    $region60: #{transformer_forward.1} parent=1 // pred_region
      _
    $region61: #{transformer_forward.1} parent=1 // pred_fallthru
      _
    // Predicated region
    $region62: #{transformer_forward.1} parent=1 // pred_check
      _
    $region63: #{transformer_forward.1} parent=1 // pred_check_branch
      %63 = sbr.rel (0) target = $region65
    $region64: #{transformer_forward.1} parent=1 // pred_region
      _
    $region65: #{transformer_forward.1} parent=1 // pred_fallthru
      _
    // Predicated region
    $region66: #{transformer_forward.1} parent=1 // pred_check
      _
    $region67: #{transformer_forward.1} parent=1 // pred_check_branch
      %65 = sbr.rel (0) target = $region69
    $region68: #{transformer_forward.1} parent=1 // pred_region
      %66 = dma.done [#allocation3], 2048
    $region69: #{transformer_forward.1} parent=1 // pred_fallthru
      _
    %v67 = vld [vmem:[%s0] sm:$0xff]
    %v68 = vld [vmem:[%s0 + $0x8] sm:$0xff]
    %v69 = vld [vmem:[%s2] sm:$0xff]
    %v70 = vld [vmem:[%s2 + $0x8] sm:$0xff]
    %v71 = vld [vmem:[%s3] sm:$0x1]
    %v73 = vlaneseq
    %v74 = vshrl.u32 %v73, 7
    %v75 = vsub.s32 0, %v74
    %v76 = vrot.slane %v71, %v75
    %vm78 = vcmask 130048
    %v80 = vsel %vm78, %v67, 0
    %v83 = vsel %vm78, %v68, 0
    %85 = vmatprep.subr.mxu0 0.0
    %86 = vmatpush1.msra.mxu0 %v69
    %87 = vmatprep.subr.mxu0 0.0
    %88 = vmatpush1.msra.mxu0 %v70
    %89 = vmatprep.subr.mxu0 0.0
    %90 = vmatpush1.msra.mxu0 0.0
    %91 = vmatprep.subr.mxu0 0.0
    %92 = vmatpush1.msra.mxu0 0.0
    %93 = vmatprep.subr.mxu0 0.0
    %94 = vmatpush1.msra.mxu0 0.0
    %95 = vmatprep.subr.mxu0 0.0
    %96 = vmatpush1.msra.mxu0 0.0
    %97 = vmatprep.subr.mxu0 0.0
    %98 = vmatpush1.msra.mxu0 0.0
    %99 = vmatprep.subr.mxu0 0.0
    %100 = vmatpush1.msra.mxu0 0.0
    %101 = vmatprep.subr.mxu0 0.0
    %102 = vmatpush1.msra.mxu0 0.0
    %103 = vmatprep.subr.mxu0 0.0
    %104 = vmatpush1.msra.mxu0 0.0
    %105 = vmatprep.subr.mxu0 0.0
    %106 = vmatpush1.msra.mxu0 0.0
    %107 = vmatprep.subr.mxu0 0.0
    %108 = vmatpush1.msra.mxu0 0.0
    %109 = vmatprep.subr.mxu0 0.0
    %110 = vmatpush1.msra.mxu0 0.0
    %111 = vmatprep.subr.mxu0 0.0
    %112 = vmatpush1.msra.mxu0 0.0
    %113 = vmatprep.subr.mxu0 0.0
    %114 = vmatpush1.msra.mxu0 0.0
    %115 = vmatprep.subr.mxu0 0.0
    %116 = vmatpush1.msra.mxu0 0.0
    %117 = vmatprep.subr.mxu0 0.0
    %118 = vmatpush1.msra.mxu0 0.0
    %119 = vmatprep.subr.mxu0 0.0
    %120 = vmatpush1.msra.mxu0 0.0
    %121 = vmatprep.subr.mxu0 0.0
    %122 = vmatpush1.msra.mxu0 0.0
    %123 = vmatprep.subr.mxu0 0.0
    %124 = vmatpush1.msra.mxu0 0.0
    %125 = vmatprep.subr.mxu0 0.0
    %126 = vmatpush1.msra.mxu0 0.0
    %127 = vmatprep.subr.mxu0 0.0
    %128 = vmatpush1.msra.mxu0 0.0
    %129 = vmatprep.subr.mxu0 0.0
    %130 = vmatpush1.msra.mxu0 0.0
    %131 = vmatprep.subr.mxu0 0.0
    %132 = vmatpush1.msra.mxu0 0.0
    %133 = vmatprep.subr.mxu0 0.0
    %134 = vmatpush1.msra.mxu0 0.0
    %135 = vmatprep.subr.mxu0 0.0
    %136 = vmatpush1.msra.mxu0 0.0
    %137 = vmatprep.subr.mxu0 0.0
    %138 = vmatpush1.msra.mxu0 0.0
    %139 = vmatprep.subr.mxu0 0.0
    %140 = vmatpush1.msra.mxu0 0.0
    %141 = vmatprep.subr.mxu0 0.0
    %142 = vmatpush1.msra.mxu0 0.0
    %143 = vmatprep.subr.mxu0 0.0
    %144 = vmatpush1.msra.mxu0 0.0
    %145 = vmatprep.subr.mxu0 0.0
    %146 = vmatpush1.msra.mxu0 0.0
    %147 = vmatprep.subr.mxu0 0.0
    %148 = vmatpush1.msra.mxu0 0.0
    %149 = vmatprep.mubr.f32.mxu0 0.0
    %150 = vmatmul.mubr.f32.gmra.mrb[0].mxu0 %v80
    %v151 = vpop.f32.mrb[0].mxu0
    %v152 = vadd.f32 %v76, %v151
    %v153 = vpop.f32.mrb[0].mxu0
    %154 = vmatprep.mubr.f32.mxu0 0.0
    %155 = vmatmul.mubr.f32.gmra.mrb[0].mxu0 %v83
    %v156 = vpop.f32.mrb[0].mxu0
    %v157 = vadd.f32 %v76, %v156
    %v158 = vpop.f32.mrb[0].mxu0
    %159 = vdwg.mxu0
    %v160 = vmul.f32 %v152, 8.0
    %v161 = vmul.f32 %v157, 8.0
    %v162 = vld [vmem:[%s1] sm:$0xff]
    %v163 = vadd.f32 %v160, %v162
    %v164 = vadd.f32 %v161, %v162
    %v165 = vld [vmem:[%s4] sm:$0xff]
    %v166 = vld [vmem:[%s4 + $0x8] sm:$0xff]
    %v167 = vld [vmem:[%s4 + $0x10] sm:$0xff]
    %v168 = vld [vmem:[%s4 + $0x18] sm:$0xff]
    %v169 = vld [vmem:[%s4 + $0x20] sm:$0xff]
    %v170 = vld [vmem:[%s4 + $0x28] sm:$0xff]
    %v171 = vld [vmem:[%s4 + $0x30] sm:$0xff]
    %v172 = vld [vmem:[%s4 + $0x38] sm:$0xff]
    %v173 = vld [vmem:[%s4 + $0x40] sm:$0xff]
    %v174 = vld [vmem:[%s4 + $0x48] sm:$0xff]
    %v175 = vld [vmem:[%s4 + $0x50] sm:$0xff]
    %v176 = vld [vmem:[%s4 + $0x58] sm:$0xff]
    %v177 = vld [vmem:[%s4 + $0x60] sm:$0xff]
    %v178 = vld [vmem:[%s4 + $0x68] sm:$0xff]
    %v179 = vld [vmem:[%s4 + $0x70] sm:$0xff]
    %v180 = vld [vmem:[%s4 + $0x78] sm:$0xff]
    %v181 = vld [vmem:[%s5] sm:$0x3]
    %v183 = vlaneseq
    %v184 = vshrl.u32 %v183, 7
    %v185 = vsub.s32 0, %v184
    %v186 = vrot.slane %v181, %v185
    %v187 = vlaneseq
    %v188 = vshrl.u32 %v187, 7
    %v189 = vsub.s32 1, %v188
    %v190 = vrot.slane %v181, %v189
    %vm193 = vcmask 523264
    %v195 = vsel %vm193, %v163, 0
    %v198 = vsel %vm193, %v164, 0
    %200 = vmatprep.subr.mxu0 %v166
    %201 = vmatpush1.msra.mxu0 %v165
    %202 = vmatprep.subr.mxu0 %v168
    %203 = vmatpush1.msra.mxu0 %v167
    %204 = vmatprep.subr.mxu0 %v170
    %205 = vmatpush1.msra.mxu0 %v169
    %206 = vmatprep.subr.mxu0 %v172
    %207 = vmatpush1.msra.mxu0 %v171
    %208 = vmatprep.subr.mxu0 %v174
    %209 = vmatpush1.msra.mxu0 %v173
    %210 = vmatprep.subr.mxu0 %v176
    %211 = vmatpush1.msra.mxu0 %v175
    %212 = vmatprep.subr.mxu0 %v178
    %213 = vmatpush1.msra.mxu0 %v177
    %214 = vmatprep.subr.mxu0 %v180
    %215 = vmatpush1.msra.mxu0 %v179
    %216 = vmatprep.subr.mxu0 0.0
    %217 = vmatpush1.msra.mxu0 0.0
    %218 = vmatprep.subr.mxu0 0.0
    %219 = vmatpush1.msra.mxu0 0.0
    %220 = vmatprep.subr.mxu0 0.0
    %221 = vmatpush1.msra.mxu0 0.0
    %222 = vmatprep.subr.mxu0 0.0
    %223 = vmatpush1.msra.mxu0 0.0
    %224 = vmatprep.subr.mxu0 0.0
    %225 = vmatpush1.msra.mxu0 0.0
    %226 = vmatprep.subr.mxu0 0.0
    %227 = vmatpush1.msra.mxu0 0.0
    %228 = vmatprep.subr.mxu0 0.0
    %229 = vmatpush1.msra.mxu0 0.0
    %230 = vmatprep.subr.mxu0 0.0
    %231 = vmatpush1.msra.mxu0 0.0
    %232 = vmatprep.subr.mxu0 0.0
    %233 = vmatpush1.msra.mxu0 0.0
    %234 = vmatprep.subr.mxu0 0.0
    %235 = vmatpush1.msra.mxu0 0.0
    %236 = vmatprep.subr.mxu0 0.0
    %237 = vmatpush1.msra.mxu0 0.0
    %238 = vmatprep.subr.mxu0 0.0
    %239 = vmatpush1.msra.mxu0 0.0
    %240 = vmatprep.subr.mxu0 0.0
    %241 = vmatpush1.msra.mxu0 0.0
    %242 = vmatprep.subr.mxu0 0.0
    %243 = vmatpush1.msra.mxu0 0.0
    %244 = vmatprep.subr.mxu0 0.0
    %245 = vmatpush1.msra.mxu0 0.0
    %246 = vmatprep.subr.mxu0 0.0
    %247 = vmatpush1.msra.mxu0 0.0
    %248 = vmatprep.subr.mxu0 0.0
    %249 = vmatpush1.msra.mxu0 0.0
    %250 = vmatprep.subr.mxu0 0.0
    %251 = vmatpush1.msra.mxu0 0.0
    %252 = vmatprep.subr.mxu0 0.0
    %253 = vmatpush1.msra.mxu0 0.0
    %254 = vmatprep.subr.mxu0 0.0
    %255 = vmatpush1.msra.mxu0 0.0
    %256 = vmatprep.subr.mxu0 0.0
    %257 = vmatpush1.msra.mxu0 0.0
    %258 = vmatprep.subr.mxu0 0.0
    %259 = vmatpush1.msra.mxu0 0.0
    %260 = vmatprep.subr.mxu0 0.0
    %261 = vmatpush1.msra.mxu0 0.0
    %262 = vmatprep.subr.mxu0 0.0
    %263 = vmatpush1.msra.mxu0 0.0
    %264 = vmatprep.mubr.f32.mxu0 0.0
    %265 = vmatmul.mubr.f32.gmra.mrb[0].mxu0 %v195
    %v266 = vpop.f32.mrb[0].mxu0
    %v267 = vadd.f32 %v186, %v266
    %v268 = vpop.f32.mrb[0].mxu0
    %v269 = vadd.f32 %v190, %v268
    %270 = vmatprep.mubr.f32.mxu0 0.0
    %271 = vmatmul.mubr.f32.gmra.mrb[0].mxu0 %v198
    %v272 = vpop.f32.mrb[0].mxu0
    %v273 = vadd.f32 %v186, %v272
    %v274 = vpop.f32.mrb[0].mxu0
    %v275 = vadd.f32 %v190, %v274
    %276 = vdwg.mxu0
    %279 = vrot.lane.b32.xlu0 %v267, 120
    %v280 = vpop.permute.xlu0 %279
    %281 = vrot.lane.b32.xlu0 %v273, 120
    %v282 = vpop.permute.xlu0 %281
    %285 = vrot.lane.b32.xlu0 %v267, 112
    %v286 = vpop.permute.xlu0 %285
    %287 = vrot.lane.b32.xlu0 %v273, 112
    %v288 = vpop.permute.xlu0 %287
    %291 = vrot.lane.b32.xlu0 %v267, 104
    %v292 = vpop.permute.xlu0 %291
    %293 = vrot.lane.b32.xlu0 %v273, 104
    %v294 = vpop.permute.xlu0 %293
    %297 = vrot.lane.b32.xlu0 %v267, 96
    %v298 = vpop.permute.xlu0 %297
    %299 = vrot.lane.b32.xlu0 %v273, 96
    %v300 = vpop.permute.xlu0 %299
    %303 = vrot.lane.b32.xlu0 %v267, 88
    %v304 = vpop.permute.xlu0 %303
    %305 = vrot.lane.b32.xlu0 %v273, 88
    %v306 = vpop.permute.xlu0 %305
    %309 = vrot.lane.b32.xlu0 %v267, 80
    %v310 = vpop.permute.xlu0 %309
    %311 = vrot.lane.b32.xlu0 %v273, 80
    %v312 = vpop.permute.xlu0 %311
    %315 = vrot.lane.b32.xlu0 %v267, 72
    %v316 = vpop.permute.xlu0 %315
    %317 = vrot.lane.b32.xlu0 %v273, 72
    %v318 = vpop.permute.xlu0 %317
    %v321 = vcombine.low %v267, %v286
    %v322 = vcombine.high %v267, %v286
    %v324 = vunpack.c.l.s4 1983009808
    %v325 = vunpack.c.0.s8 %v324
    %v326 = vlaneseq
    %v327 = vshrl.u32 %v326, 7
    %v328 = vsub.s32 %v325, %v327
    %v329 = vrot.slane %v321, %v328
    %v331 = vunpack.c.l.s4 1983009808
    %v332 = vunpack.c.0.s8 %v331
    %v333 = vlaneseq
    %v334 = vshrl.u32 %v333, 7
    %v335 = vsub.s32 %v332, %v334
    %v336 = vrot.slane %v322, %v335
    %v337 = vcombine.low %v280, %v292
    %v338 = vcombine.high %v280, %v292
    %v340 = vunpack.c.l.s4 1983009808
    %v341 = vunpack.c.0.s8 %v340
    %v342 = vlaneseq
    %v343 = vshrl.u32 %v342, 7
    %v344 = vsub.s32 %v341, %v343
    %v345 = vrot.slane %v337, %v344
    %v347 = vunpack.c.l.s4 1983009808
    %v348 = vunpack.c.0.s8 %v347
    %v349 = vlaneseq
    %v350 = vshrl.u32 %v349, 7
    %v351 = vsub.s32 %v348, %v350
    %v352 = vrot.slane %v338, %v351
    %v353 = vcombine.low %v298, %v310
    %v354 = vcombine.high %v298, %v310
    %v356 = vunpack.c.l.s4 1983009808
    %v357 = vunpack.c.0.s8 %v356
    %v358 = vlaneseq
    %v359 = vshrl.u32 %v358, 7
    %v360 = vsub.s32 %v357, %v359
    %v361 = vrot.slane %v353, %v360
    %v363 = vunpack.c.l.s4 1983009808
    %v364 = vunpack.c.0.s8 %v363
    %v365 = vlaneseq
    %v366 = vshrl.u32 %v365, 7
    %v367 = vsub.s32 %v364, %v366
    %v368 = vrot.slane %v354, %v367
    %v369 = vcombine.low %v304, %v316
    %v370 = vcombine.high %v304, %v316
    %v372 = vunpack.c.l.s4 1983009808
    %v373 = vunpack.c.0.s8 %v372
    %v374 = vlaneseq
    %v375 = vshrl.u32 %v374, 7
    %v376 = vsub.s32 %v373, %v375
    %v377 = vrot.slane %v369, %v376
    %v379 = vunpack.c.l.s4 1983009808
    %v380 = vunpack.c.0.s8 %v379
    %v381 = vlaneseq
    %v382 = vshrl.u32 %v381, 7
    %v383 = vsub.s32 %v380, %v382
    %v384 = vrot.slane %v370, %v383
    %v385 = vcombine.low %v329, %v345
    %v386 = vcombine.high %v329, %v345
    %v388 = vunpack.c.l.s4 1934713408
    %v389 = vunpack.c.0.s8 %v388
    %v390 = vlaneseq
    %v391 = vshrl.u32 %v390, 7
    %v392 = vsub.s32 %v389, %v391
    %v393 = vrot.slane %v385, %v392
    %v395 = vunpack.c.l.s4 1934713408
    %v396 = vunpack.c.0.s8 %v395
    %v397 = vlaneseq
    %v398 = vshrl.u32 %v397, 7
    %v399 = vsub.s32 %v396, %v398
    %v400 = vrot.slane %v386, %v399
    %v401 = vcombine.low %v336, %v352
    %v402 = vcombine.high %v336, %v352
    %v404 = vunpack.c.l.s4 1934713408
    %v405 = vunpack.c.0.s8 %v404
    %v406 = vlaneseq
    %v407 = vshrl.u32 %v406, 7
    %v408 = vsub.s32 %v405, %v407
    %v409 = vrot.slane %v401, %v408
    %v411 = vunpack.c.l.s4 1934713408
    %v412 = vunpack.c.0.s8 %v411
    %v413 = vlaneseq
    %v414 = vshrl.u32 %v413, 7
    %v415 = vsub.s32 %v412, %v414
    %v416 = vrot.slane %v402, %v415
    %v417 = vcombine.low %v361, %v377
    %v418 = vcombine.high %v361, %v377
    %v420 = vunpack.c.l.s4 1934713408
    %v421 = vunpack.c.0.s8 %v420
    %v422 = vlaneseq
    %v423 = vshrl.u32 %v422, 7
    %v424 = vsub.s32 %v421, %v423
    %v425 = vrot.slane %v417, %v424
    %v427 = vunpack.c.l.s4 1934713408
    %v428 = vunpack.c.0.s8 %v427
    %v429 = vlaneseq
    %v430 = vshrl.u32 %v429, 7
    %v431 = vsub.s32 %v428, %v430
    %v432 = vrot.slane %v418, %v431
    %v433 = vcombine.low %v368, %v384
    %v434 = vcombine.high %v368, %v384
    %v436 = vunpack.c.l.s4 1934713408
    %v437 = vunpack.c.0.s8 %v436
    %v438 = vlaneseq
    %v439 = vshrl.u32 %v438, 7
    %v440 = vsub.s32 %v437, %v439
    %v441 = vrot.slane %v433, %v440
    %v443 = vunpack.c.l.s4 1934713408
    %v444 = vunpack.c.0.s8 %v443
    %v445 = vlaneseq
    %v446 = vshrl.u32 %v445, 7
    %v447 = vsub.s32 %v444, %v446
    %v448 = vrot.slane %v434, %v447
    %v449 = vcombine.low %v393, %v425
    %v450 = vcombine.high %v393, %v425
    %v451 = vcombine.low %v400, %v432
    %v452 = vcombine.high %v400, %v432
    %v453 = vcombine.low %v409, %v441
    %v454 = vcombine.high %v409, %v441
    %v455 = vcombine.low %v416, %v448
    %v456 = vcombine.high %v416, %v448
    %v457 = vcombine.low %v273, %v288
    %v458 = vcombine.high %v273, %v288
    %v460 = vunpack.c.l.s4 1983009808
    %v461 = vunpack.c.0.s8 %v460
    %v462 = vlaneseq
    %v463 = vshrl.u32 %v462, 7
    %v464 = vsub.s32 %v461, %v463
    %v465 = vrot.slane %v457, %v464
    %v467 = vunpack.c.l.s4 1983009808
    %v468 = vunpack.c.0.s8 %v467
    %v469 = vlaneseq
    %v470 = vshrl.u32 %v469, 7
    %v471 = vsub.s32 %v468, %v470
    %v472 = vrot.slane %v458, %v471
    %v473 = vcombine.low %v282, %v294
    %v474 = vcombine.high %v282, %v294
    %v476 = vunpack.c.l.s4 1983009808
    %v477 = vunpack.c.0.s8 %v476
    %v478 = vlaneseq
    %v479 = vshrl.u32 %v478, 7
    %v480 = vsub.s32 %v477, %v479
    %v481 = vrot.slane %v473, %v480
    %v483 = vunpack.c.l.s4 1983009808
    %v484 = vunpack.c.0.s8 %v483
    %v485 = vlaneseq
    %v486 = vshrl.u32 %v485, 7
    %v487 = vsub.s32 %v484, %v486
    %v488 = vrot.slane %v474, %v487
    %v489 = vcombine.low %v300, %v312
    %v490 = vcombine.high %v300, %v312
    %v492 = vunpack.c.l.s4 1983009808
    %v493 = vunpack.c.0.s8 %v492
    %v494 = vlaneseq
    %v495 = vshrl.u32 %v494, 7
    %v496 = vsub.s32 %v493, %v495
    %v497 = vrot.slane %v489, %v496
    %v499 = vunpack.c.l.s4 1983009808
    %v500 = vunpack.c.0.s8 %v499
    %v501 = vlaneseq
    %v502 = vshrl.u32 %v501, 7
    %v503 = vsub.s32 %v500, %v502
    %v504 = vrot.slane %v490, %v503
    %v505 = vcombine.low %v306, %v318
    %v506 = vcombine.high %v306, %v318
    %v508 = vunpack.c.l.s4 1983009808
    %v509 = vunpack.c.0.s8 %v508
    %v510 = vlaneseq
    %v511 = vshrl.u32 %v510, 7
    %v512 = vsub.s32 %v509, %v511
    %v513 = vrot.slane %v505, %v512
    %v515 = vunpack.c.l.s4 1983009808
    %v516 = vunpack.c.0.s8 %v515
    %v517 = vlaneseq
    %v518 = vshrl.u32 %v517, 7
    %v519 = vsub.s32 %v516, %v518
    %v520 = vrot.slane %v506, %v519
    %v521 = vcombine.low %v465, %v481
    %v522 = vcombine.high %v465, %v481
    %v524 = vunpack.c.l.s4 1934713408
    %v525 = vunpack.c.0.s8 %v524
    %v526 = vlaneseq
    %v527 = vshrl.u32 %v526, 7
    %v528 = vsub.s32 %v525, %v527
    %v529 = vrot.slane %v521, %v528
    %v531 = vunpack.c.l.s4 1934713408
    %v532 = vunpack.c.0.s8 %v531
    %v533 = vlaneseq
    %v534 = vshrl.u32 %v533, 7
    %v535 = vsub.s32 %v532, %v534
    %v536 = vrot.slane %v522, %v535
    %v537 = vcombine.low %v472, %v488
    %v538 = vcombine.high %v472, %v488
    %v540 = vunpack.c.l.s4 1934713408
    %v541 = vunpack.c.0.s8 %v540
    %v542 = vlaneseq
    %v543 = vshrl.u32 %v542, 7
    %v544 = vsub.s32 %v541, %v543
    %v545 = vrot.slane %v537, %v544
    %v547 = vunpack.c.l.s4 1934713408
    %v548 = vunpack.c.0.s8 %v547
    %v549 = vlaneseq
    %v550 = vshrl.u32 %v549, 7
    %v551 = vsub.s32 %v548, %v550
    %v552 = vrot.slane %v538, %v551
    %v553 = vcombine.low %v497, %v513
    %v554 = vcombine.high %v497, %v513
    %v556 = vunpack.c.l.s4 1934713408
    %v557 = vunpack.c.0.s8 %v556
    %v558 = vlaneseq
    %v559 = vshrl.u32 %v558, 7
    %v560 = vsub.s32 %v557, %v559
    %v561 = vrot.slane %v553, %v560
    %v563 = vunpack.c.l.s4 1934713408
    %v564 = vunpack.c.0.s8 %v563
    %v565 = vlaneseq
    %v566 = vshrl.u32 %v565, 7
    %v567 = vsub.s32 %v564, %v566
    %v568 = vrot.slane %v554, %v567
    %v569 = vcombine.low %v504, %v520
    %v570 = vcombine.high %v504, %v520
    %v572 = vunpack.c.l.s4 1934713408
    %v573 = vunpack.c.0.s8 %v572
    %v574 = vlaneseq
    %v575 = vshrl.u32 %v574, 7
    %v576 = vsub.s32 %v573, %v575
    %v577 = vrot.slane %v569, %v576
    %v579 = vunpack.c.l.s4 1934713408
    %v580 = vunpack.c.0.s8 %v579
    %v581 = vlaneseq
    %v582 = vshrl.u32 %v581, 7
    %v583 = vsub.s32 %v580, %v582
    %v584 = vrot.slane %v570, %v583
    %v585 = vcombine.low %v529, %v561
    %v586 = vcombine.high %v529, %v561
    %v587 = vcombine.low %v536, %v568
    %v588 = vcombine.high %v536, %v568
    %v589 = vcombine.low %v545, %v577
    %v590 = vcombine.high %v545, %v577
    %v591 = vcombine.low %v552, %v584
    %v592 = vcombine.high %v552, %v584
    %v593 = vcombine.low %v449, %v451
    %v594 = vcombine.high %v449, %v451
    %v596 = vunpack.c.l.s4 1983009808
    %v597 = vunpack.c.0.s8 %v596
    %v598 = vlaneseq
    %v599 = vshrl.u32 %v598, 7
    %v600 = vsub.s32 %v597, %v599
    %v601 = vrot.slane %v593, %v600
    %v603 = vunpack.c.l.s4 1983009808
    %v604 = vunpack.c.0.s8 %v603
    %v605 = vlaneseq
    %v606 = vshrl.u32 %v605, 7
    %v607 = vsub.s32 %v604, %v606
    %v608 = vrot.slane %v594, %v607
    %v609 = vcombine.low %v450, %v452
    %v610 = vcombine.high %v450, %v452
    %v612 = vunpack.c.l.s4 1983009808
    %v613 = vunpack.c.0.s8 %v612
    %v614 = vlaneseq
    %v615 = vshrl.u32 %v614, 7
    %v616 = vsub.s32 %v613, %v615
    %v617 = vrot.slane %v609, %v616
    %v619 = vunpack.c.l.s4 1983009808
    %v620 = vunpack.c.0.s8 %v619
    %v621 = vlaneseq
    %v622 = vshrl.u32 %v621, 7
    %v623 = vsub.s32 %v620, %v622
    %v624 = vrot.slane %v610, %v623
    %v625 = vcombine.low %v453, %v455
    %v626 = vcombine.high %v453, %v455
    %v628 = vunpack.c.l.s4 1983009808
    %v629 = vunpack.c.0.s8 %v628
    %v630 = vlaneseq
    %v631 = vshrl.u32 %v630, 7
    %v632 = vsub.s32 %v629, %v631
    %v633 = vrot.slane %v625, %v632
    %v635 = vunpack.c.l.s4 1983009808
    %v636 = vunpack.c.0.s8 %v635
    %v637 = vlaneseq
    %v638 = vshrl.u32 %v637, 7
    %v639 = vsub.s32 %v636, %v638
    %v640 = vrot.slane %v626, %v639
    %v641 = vcombine.low %v454, %v456
    %v642 = vcombine.high %v454, %v456
    %v644 = vunpack.c.l.s4 1983009808
    %v645 = vunpack.c.0.s8 %v644
    %v646 = vlaneseq
    %v647 = vshrl.u32 %v646, 7
    %v648 = vsub.s32 %v645, %v647
    %v649 = vrot.slane %v641, %v648
    %v651 = vunpack.c.l.s4 1983009808
    %v652 = vunpack.c.0.s8 %v651
    %v653 = vlaneseq
    %v654 = vshrl.u32 %v653, 7
    %v655 = vsub.s32 %v652, %v654
    %v656 = vrot.slane %v642, %v655
    %v657 = vcombine.low %v601, %v617
    %v658 = vcombine.high %v601, %v617
    %v660 = vunpack.c.l.s4 1934713408
    %v661 = vunpack.c.0.s8 %v660
    %v662 = vlaneseq
    %v663 = vshrl.u32 %v662, 7
    %v664 = vsub.s32 %v661, %v663
    %v665 = vrot.slane %v657, %v664
    %v667 = vunpack.c.l.s4 1934713408
    %v668 = vunpack.c.0.s8 %v667
    %v669 = vlaneseq
    %v670 = vshrl.u32 %v669, 7
    %v671 = vsub.s32 %v668, %v670
    %v672 = vrot.slane %v658, %v671
    %v673 = vcombine.low %v608, %v624
    %v674 = vcombine.high %v608, %v624
    %v676 = vunpack.c.l.s4 1934713408
    %v677 = vunpack.c.0.s8 %v676
    %v678 = vlaneseq
    %v679 = vshrl.u32 %v678, 7
    %v680 = vsub.s32 %v677, %v679
    %v681 = vrot.slane %v673, %v680
    %v683 = vunpack.c.l.s4 1934713408
    %v684 = vunpack.c.0.s8 %v683
    %v685 = vlaneseq
    %v686 = vshrl.u32 %v685, 7
    %v687 = vsub.s32 %v684, %v686
    %v688 = vrot.slane %v674, %v687
    %v689 = vcombine.low %v633, %v649
    %v690 = vcombine.high %v633, %v649
    %v692 = vunpack.c.l.s4 1934713408
    %v693 = vunpack.c.0.s8 %v692
    %v694 = vlaneseq
    %v695 = vshrl.u32 %v694, 7
    %v696 = vsub.s32 %v693, %v695
    %v697 = vrot.slane %v689, %v696
    %v699 = vunpack.c.l.s4 1934713408
    %v700 = vunpack.c.0.s8 %v699
    %v701 = vlaneseq
    %v702 = vshrl.u32 %v701, 7
    %v703 = vsub.s32 %v700, %v702
    %v704 = vrot.slane %v690, %v703
    %v705 = vcombine.low %v640, %v656
    %v706 = vcombine.high %v640, %v656
    %v708 = vunpack.c.l.s4 1934713408
    %v709 = vunpack.c.0.s8 %v708
    %v710 = vlaneseq
    %v711 = vshrl.u32 %v710, 7
    %v712 = vsub.s32 %v709, %v711
    %v713 = vrot.slane %v705, %v712
    %v715 = vunpack.c.l.s4 1934713408
    %v716 = vunpack.c.0.s8 %v715
    %v717 = vlaneseq
    %v718 = vshrl.u32 %v717, 7
    %v719 = vsub.s32 %v716, %v718
    %v720 = vrot.slane %v706, %v719
    %v721 = vcombine.low %v665, %v697
    %v722 = vcombine.high %v665, %v697
    %v723 = vcombine.low %v672, %v704
    %v724 = vcombine.high %v672, %v704
    %v725 = vcombine.low %v681, %v713
    %v726 = vcombine.high %v681, %v713
    %v727 = vcombine.low %v688, %v720
    %v728 = vcombine.high %v688, %v720
    %v729 = vcombine.low %v585, %v587
    %v730 = vcombine.high %v585, %v587
    %v732 = vunpack.c.l.s4 1983009808
    %v733 = vunpack.c.0.s8 %v732
    %v734 = vlaneseq
    %v735 = vshrl.u32 %v734, 7
    %v736 = vsub.s32 %v733, %v735
    %v737 = vrot.slane %v729, %v736
    %v739 = vunpack.c.l.s4 1983009808
    %v740 = vunpack.c.0.s8 %v739
    %v741 = vlaneseq
    %v742 = vshrl.u32 %v741, 7
    %v743 = vsub.s32 %v740, %v742
    %v744 = vrot.slane %v730, %v743
    %v745 = vcombine.low %v586, %v588
    %v746 = vcombine.high %v586, %v588
    %v748 = vunpack.c.l.s4 1983009808
    %v749 = vunpack.c.0.s8 %v748
    %v750 = vlaneseq
    %v751 = vshrl.u32 %v750, 7
    %v752 = vsub.s32 %v749, %v751
    %v753 = vrot.slane %v745, %v752
    %v755 = vunpack.c.l.s4 1983009808
    %v756 = vunpack.c.0.s8 %v755
    %v757 = vlaneseq
    %v758 = vshrl.u32 %v757, 7
    %v759 = vsub.s32 %v756, %v758
    %v760 = vrot.slane %v746, %v759
    %v761 = vcombine.low %v589, %v591
    %v762 = vcombine.high %v589, %v591
    %v764 = vunpack.c.l.s4 1983009808
    %v765 = vunpack.c.0.s8 %v764
    %v766 = vlaneseq
    %v767 = vshrl.u32 %v766, 7
    %v768 = vsub.s32 %v765, %v767
    %v769 = vrot.slane %v761, %v768
    %v771 = vunpack.c.l.s4 1983009808
    %v772 = vunpack.c.0.s8 %v771
    %v773 = vlaneseq
    %v774 = vshrl.u32 %v773, 7
    %v775 = vsub.s32 %v772, %v774
    %v776 = vrot.slane %v762, %v775
    %v777 = vcombine.low %v590, %v592
    %v778 = vcombine.high %v590, %v592
    %v780 = vunpack.c.l.s4 1983009808
    %v781 = vunpack.c.0.s8 %v780
    %v782 = vlaneseq
    %v783 = vshrl.u32 %v782, 7
    %v784 = vsub.s32 %v781, %v783
    %v785 = vrot.slane %v777, %v784
    %v787 = vunpack.c.l.s4 1983009808
    %v788 = vunpack.c.0.s8 %v787
    %v789 = vlaneseq
    %v790 = vshrl.u32 %v789, 7
    %v791 = vsub.s32 %v788, %v790
    %v792 = vrot.slane %v778, %v791
    %v793 = vcombine.low %v737, %v753
    %v794 = vcombine.high %v737, %v753
    %v796 = vunpack.c.l.s4 1934713408
    %v797 = vunpack.c.0.s8 %v796
    %v798 = vlaneseq
    %v799 = vshrl.u32 %v798, 7
    %v800 = vsub.s32 %v797, %v799
    %v801 = vrot.slane %v793, %v800
    %v803 = vunpack.c.l.s4 1934713408
    %v804 = vunpack.c.0.s8 %v803
    %v805 = vlaneseq
    %v806 = vshrl.u32 %v805, 7
    %v807 = vsub.s32 %v804, %v806
    %v808 = vrot.slane %v794, %v807
    %v809 = vcombine.low %v744, %v760
    %v810 = vcombine.high %v744, %v760
    %v812 = vunpack.c.l.s4 1934713408
    %v813 = vunpack.c.0.s8 %v812
    %v814 = vlaneseq
    %v815 = vshrl.u32 %v814, 7
    %v816 = vsub.s32 %v813, %v815
    %v817 = vrot.slane %v809, %v816
    %v819 = vunpack.c.l.s4 1934713408
    %v820 = vunpack.c.0.s8 %v819
    %v821 = vlaneseq
    %v822 = vshrl.u32 %v821, 7
    %v823 = vsub.s32 %v820, %v822
    %v824 = vrot.slane %v810, %v823
    %v825 = vcombine.low %v769, %v785
    %v826 = vcombine.high %v769, %v785
    %v828 = vunpack.c.l.s4 1934713408
    %v829 = vunpack.c.0.s8 %v828
    %v830 = vlaneseq
    %v831 = vshrl.u32 %v830, 7
    %v832 = vsub.s32 %v829, %v831
    %v833 = vrot.slane %v825, %v832
    %v835 = vunpack.c.l.s4 1934713408
    %v836 = vunpack.c.0.s8 %v835
    %v837 = vlaneseq
    %v838 = vshrl.u32 %v837, 7
    %v839 = vsub.s32 %v836, %v838
    %v840 = vrot.slane %v826, %v839
    %v841 = vcombine.low %v776, %v792
    %v842 = vcombine.high %v776, %v792
    %v844 = vunpack.c.l.s4 1934713408
    %v845 = vunpack.c.0.s8 %v844
    %v846 = vlaneseq
    %v847 = vshrl.u32 %v846, 7
    %v848 = vsub.s32 %v845, %v847
    %v849 = vrot.slane %v841, %v848
    %v851 = vunpack.c.l.s4 1934713408
    %v852 = vunpack.c.0.s8 %v851
    %v853 = vlaneseq
    %v854 = vshrl.u32 %v853, 7
    %v855 = vsub.s32 %v852, %v854
    %v856 = vrot.slane %v842, %v855
    %v857 = vcombine.low %v801, %v833
    %v858 = vcombine.high %v801, %v833
    %v859 = vcombine.low %v808, %v840
    %v860 = vcombine.high %v808, %v840
    %v861 = vcombine.low %v817, %v849
    %v862 = vcombine.high %v817, %v849
    %v863 = vcombine.low %v824, %v856
    %v864 = vcombine.high %v824, %v856
    %865 = vrot.lane.b32.xlu0 %v267, 64
    %v866 = vpop.permute.xlu0 %865
    %867 = vrot.lane.b32.xlu0 %v273, 64
    %v868 = vpop.permute.xlu0 %867
    %869 = vrot.lane.b32.xlu0 %v280, 64
    %v870 = vpop.permute.xlu0 %869
    %871 = vrot.lane.b32.xlu0 %v282, 64
    %v872 = vpop.permute.xlu0 %871
    %873 = vrot.lane.b32.xlu0 %v286, 64
    %v874 = vpop.permute.xlu0 %873
    %875 = vrot.lane.b32.xlu0 %v288, 64
    %v876 = vpop.permute.xlu0 %875
    %877 = vrot.lane.b32.xlu0 %v292, 64
    %v878 = vpop.permute.xlu0 %877
    %879 = vrot.lane.b32.xlu0 %v294, 64
    %v880 = vpop.permute.xlu0 %879
    %881 = vrot.lane.b32.xlu0 %v298, 64
    %v882 = vpop.permute.xlu0 %881
    %883 = vrot.lane.b32.xlu0 %v300, 64
    %v884 = vpop.permute.xlu0 %883
    %885 = vrot.lane.b32.xlu0 %v304, 64
    %v886 = vpop.permute.xlu0 %885
    %887 = vrot.lane.b32.xlu0 %v306, 64
    %v888 = vpop.permute.xlu0 %887
    %889 = vrot.lane.b32.xlu0 %v310, 64
    %v890 = vpop.permute.xlu0 %889
    %891 = vrot.lane.b32.xlu0 %v312, 64
    %v892 = vpop.permute.xlu0 %891
    %893 = vrot.lane.b32.xlu0 %v316, 64
    %v894 = vpop.permute.xlu0 %893
    %895 = vrot.lane.b32.xlu0 %v318, 64
    %v896 = vpop.permute.xlu0 %895
    %v913 = vcombine.low %v866, %v874
    %v914 = vcombine.high %v866, %v874
    %v916 = vunpack.c.l.s4 1983009808
    %v917 = vunpack.c.0.s8 %v916
    %v918 = vlaneseq
    %v919 = vshrl.u32 %v918, 7
    %v920 = vsub.s32 %v917, %v919
    %v921 = vrot.slane %v913, %v920
    %v923 = vunpack.c.l.s4 1983009808
    %v924 = vunpack.c.0.s8 %v923
    %v925 = vlaneseq
    %v926 = vshrl.u32 %v925, 7
    %v927 = vsub.s32 %v924, %v926
    %v928 = vrot.slane %v914, %v927
    %v929 = vcombine.low %v870, %v878
    %v930 = vcombine.high %v870, %v878
    %v932 = vunpack.c.l.s4 1983009808
    %v933 = vunpack.c.0.s8 %v932
    %v934 = vlaneseq
    %v935 = vshrl.u32 %v934, 7
    %v936 = vsub.s32 %v933, %v935
    %v937 = vrot.slane %v929, %v936
    %v939 = vunpack.c.l.s4 1983009808
    %v940 = vunpack.c.0.s8 %v939
    %v941 = vlaneseq
    %v942 = vshrl.u32 %v941, 7
    %v943 = vsub.s32 %v940, %v942
    %v944 = vrot.slane %v930, %v943
    %v945 = vcombine.low %v882, %v890
    %v946 = vcombine.high %v882, %v890
    %v948 = vunpack.c.l.s4 1983009808
    %v949 = vunpack.c.0.s8 %v948
    %v950 = vlaneseq
    %v951 = vshrl.u32 %v950, 7
    %v952 = vsub.s32 %v949, %v951
    %v953 = vrot.slane %v945, %v952
    %v955 = vunpack.c.l.s4 1983009808
    %v956 = vunpack.c.0.s8 %v955
    %v957 = vlaneseq
    %v958 = vshrl.u32 %v957, 7
    %v959 = vsub.s32 %v956, %v958
    %v960 = vrot.slane %v946, %v959
    %v961 = vcombine.low %v886, %v894
    %v962 = vcombine.high %v886, %v894
    %v964 = vunpack.c.l.s4 1983009808
    %v965 = vunpack.c.0.s8 %v964
    %v966 = vlaneseq
    %v967 = vshrl.u32 %v966, 7
    %v968 = vsub.s32 %v965, %v967
    %v969 = vrot.slane %v961, %v968
    %v971 = vunpack.c.l.s4 1983009808
    %v972 = vunpack.c.0.s8 %v971
    %v973 = vlaneseq
    %v974 = vshrl.u32 %v973, 7
    %v975 = vsub.s32 %v972, %v974
    %v976 = vrot.slane %v962, %v975
    %v977 = vcombine.low %v921, %v937
    %v978 = vcombine.high %v921, %v937
    %v980 = vunpack.c.l.s4 1934713408
    %v981 = vunpack.c.0.s8 %v980
    %v982 = vlaneseq
    %v983 = vshrl.u32 %v982, 7
    %v984 = vsub.s32 %v981, %v983
    %v985 = vrot.slane %v977, %v984
    %v987 = vunpack.c.l.s4 1934713408
    %v988 = vunpack.c.0.s8 %v987
    %v989 = vlaneseq
    %v990 = vshrl.u32 %v989, 7
    %v991 = vsub.s32 %v988, %v990
    %v992 = vrot.slane %v978, %v991
    %v993 = vcombine.low %v928, %v944
    %v994 = vcombine.high %v928, %v944
    %v996 = vunpack.c.l.s4 1934713408
    %v997 = vunpack.c.0.s8 %v996
    %v998 = vlaneseq
    %v999 = vshrl.u32 %v998, 7
    %v1000 = vsub.s32 %v997, %v999
    %v1001 = vrot.slane %v993, %v1000
    %v1003 = vunpack.c.l.s4 1934713408
    %v1004 = vunpack.c.0.s8 %v1003
    %v1005 = vlaneseq
    %v1006 = vshrl.u32 %v1005, 7
    %v1007 = vsub.s32 %v1004, %v1006
    %v1008 = vrot.slane %v994, %v1007
    %v1009 = vcombine.low %v953, %v969
    %v1010 = vcombine.high %v953, %v969
    %v1012 = vunpack.c.l.s4 1934713408
    %v1013 = vunpack.c.0.s8 %v1012
    %v1014 = vlaneseq
    %v1015 = vshrl.u32 %v1014, 7
    %v1016 = vsub.s32 %v1013, %v1015
    %v1017 = vrot.slane %v1009, %v1016
    %v1019 = vunpack.c.l.s4 1934713408
    %v1020 = vunpack.c.0.s8 %v1019
    %v1021 = vlaneseq
    %v1022 = vshrl.u32 %v1021, 7
    %v1023 = vsub.s32 %v1020, %v1022
    %v1024 = vrot.slane %v1010, %v1023
    %v1025 = vcombine.low %v960, %v976
    %v1026 = vcombine.high %v960, %v976
    %v1028 = vunpack.c.l.s4 1934713408
    %v1029 = vunpack.c.0.s8 %v1028
    %v1030 = vlaneseq
    %v1031 = vshrl.u32 %v1030, 7
    %v1032 = vsub.s32 %v1029, %v1031
    %v1033 = vrot.slane %v1025, %v1032
    %v1035 = vunpack.c.l.s4 1934713408
    %v1036 = vunpack.c.0.s8 %v1035
    %v1037 = vlaneseq
    %v1038 = vshrl.u32 %v1037, 7
    %v1039 = vsub.s32 %v1036, %v1038
    %v1040 = vrot.slane %v1026, %v1039
    %v1041 = vcombine.low %v985, %v1017
    %v1042 = vcombine.high %v985, %v1017
    %v1043 = vcombine.low %v992, %v1024
    %v1044 = vcombine.high %v992, %v1024
    %v1045 = vcombine.low %v1001, %v1033
    %v1046 = vcombine.high %v1001, %v1033
    %v1047 = vcombine.low %v1008, %v1040
    %v1048 = vcombine.high %v1008, %v1040
    %v1049 = vcombine.low %v868, %v876
    %v1050 = vcombine.high %v868, %v876
    %v1052 = vunpack.c.l.s4 1983009808
    %v1053 = vunpack.c.0.s8 %v1052
    %v1054 = vlaneseq
    %v1055 = vshrl.u32 %v1054, 7
    %v1056 = vsub.s32 %v1053, %v1055
    %v1057 = vrot.slane %v1049, %v1056
    %v1059 = vunpack.c.l.s4 1983009808
    %v1060 = vunpack.c.0.s8 %v1059
    %v1061 = vlaneseq
    %v1062 = vshrl.u32 %v1061, 7
    %v1063 = vsub.s32 %v1060, %v1062
    %v1064 = vrot.slane %v1050, %v1063
    %v1065 = vcombine.low %v872, %v880
    %v1066 = vcombine.high %v872, %v880
    %v1068 = vunpack.c.l.s4 1983009808
    %v1069 = vunpack.c.0.s8 %v1068
    %v1070 = vlaneseq
    %v1071 = vshrl.u32 %v1070, 7
    %v1072 = vsub.s32 %v1069, %v1071
    %v1073 = vrot.slane %v1065, %v1072
    %v1075 = vunpack.c.l.s4 1983009808
    %v1076 = vunpack.c.0.s8 %v1075
    %v1077 = vlaneseq
    %v1078 = vshrl.u32 %v1077, 7
    %v1079 = vsub.s32 %v1076, %v1078
    %v1080 = vrot.slane %v1066, %v1079
    %v1081 = vcombine.low %v884, %v892
    %v1082 = vcombine.high %v884, %v892
    %v1084 = vunpack.c.l.s4 1983009808
    %v1085 = vunpack.c.0.s8 %v1084
    %v1086 = vlaneseq
    %v1087 = vshrl.u32 %v1086, 7
    %v1088 = vsub.s32 %v1085, %v1087
    %v1089 = vrot.slane %v1081, %v1088
    %v1091 = vunpack.c.l.s4 1983009808
    %v1092 = vunpack.c.0.s8 %v1091
    %v1093 = vlaneseq
    %v1094 = vshrl.u32 %v1093, 7
    %v1095 = vsub.s32 %v1092, %v1094
    %v1096 = vrot.slane %v1082, %v1095
    %v1097 = vcombine.low %v888, %v896
    %v1098 = vcombine.high %v888, %v896
    %v1100 = vunpack.c.l.s4 1983009808
    %v1101 = vunpack.c.0.s8 %v1100
    %v1102 = vlaneseq
    %v1103 = vshrl.u32 %v1102, 7
    %v1104 = vsub.s32 %v1101, %v1103
    %v1105 = vrot.slane %v1097, %v1104
    %v1107 = vunpack.c.l.s4 1983009808
    %v1108 = vunpack.c.0.s8 %v1107
    %v1109 = vlaneseq
    %v1110 = vshrl.u32 %v1109, 7
    %v1111 = vsub.s32 %v1108, %v1110
    %v1112 = vrot.slane %v1098, %v1111
    %v1113 = vcombine.low %v1057, %v1073
    %v1114 = vcombine.high %v1057, %v1073
    %v1116 = vunpack.c.l.s4 1934713408
    %v1117 = vunpack.c.0.s8 %v1116
    %v1118 = vlaneseq
    %v1119 = vshrl.u32 %v1118, 7
    %v1120 = vsub.s32 %v1117, %v1119
    %v1121 = vrot.slane %v1113, %v1120
    %v1123 = vunpack.c.l.s4 1934713408
    %v1124 = vunpack.c.0.s8 %v1123
    %v1125 = vlaneseq
    %v1126 = vshrl.u32 %v1125, 7
    %v1127 = vsub.s32 %v1124, %v1126
    %v1128 = vrot.slane %v1114, %v1127
    %v1129 = vcombine.low %v1064, %v1080
    %v1130 = vcombine.high %v1064, %v1080
    %v1132 = vunpack.c.l.s4 1934713408
    %v1133 = vunpack.c.0.s8 %v1132
    %v1134 = vlaneseq
    %v1135 = vshrl.u32 %v1134, 7
    %v1136 = vsub.s32 %v1133, %v1135
    %v1137 = vrot.slane %v1129, %v1136
    %v1139 = vunpack.c.l.s4 1934713408
    %v1140 = vunpack.c.0.s8 %v1139
    %v1141 = vlaneseq
    %v1142 = vshrl.u32 %v1141, 7
    %v1143 = vsub.s32 %v1140, %v1142
    %v1144 = vrot.slane %v1130, %v1143
    %v1145 = vcombine.low %v1089, %v1105
    %v1146 = vcombine.high %v1089, %v1105
    %v1148 = vunpack.c.l.s4 1934713408
    %v1149 = vunpack.c.0.s8 %v1148
    %v1150 = vlaneseq
    %v1151 = vshrl.u32 %v1150, 7
    %v1152 = vsub.s32 %v1149, %v1151
    %v1153 = vrot.slane %v1145, %v1152
    %v1155 = vunpack.c.l.s4 1934713408
    %v1156 = vunpack.c.0.s8 %v1155
    %v1157 = vlaneseq
    %v1158 = vshrl.u32 %v1157, 7
    %v1159 = vsub.s32 %v1156, %v1158
    %v1160 = vrot.slane %v1146, %v1159
    %v1161 = vcombine.low %v1096, %v1112
    %v1162 = vcombine.high %v1096, %v1112
    %v1164 = vunpack.c.l.s4 1934713408
    %v1165 = vunpack.c.0.s8 %v1164
    %v1166 = vlaneseq
    %v1167 = vshrl.u32 %v1166, 7
    %v1168 = vsub.s32 %v1165, %v1167
    %v1169 = vrot.slane %v1161, %v1168
    %v1171 = vunpack.c.l.s4 1934713408
    %v1172 = vunpack.c.0.s8 %v1171
    %v1173 = vlaneseq
    %v1174 = vshrl.u32 %v1173, 7
    %v1175 = vsub.s32 %v1172, %v1174
    %v1176 = vrot.slane %v1162, %v1175
    %v1177 = vcombine.low %v1121, %v1153
    %v1178 = vcombine.high %v1121, %v1153
    %v1179 = vcombine.low %v1128, %v1160
    %v1180 = vcombine.high %v1128, %v1160
    %v1181 = vcombine.low %v1137, %v1169
    %v1182 = vcombine.high %v1137, %v1169
    %v1183 = vcombine.low %v1144, %v1176
    %v1184 = vcombine.high %v1144, %v1176
    %v1185 = vcombine.low %v1041, %v1043
    %v1186 = vcombine.high %v1041, %v1043
    %v1188 = vunpack.c.l.s4 1983009808
    %v1189 = vunpack.c.0.s8 %v1188
    %v1190 = vlaneseq
    %v1191 = vshrl.u32 %v1190, 7
    %v1192 = vsub.s32 %v1189, %v1191
    %v1193 = vrot.slane %v1185, %v1192
    %v1195 = vunpack.c.l.s4 1983009808
    %v1196 = vunpack.c.0.s8 %v1195
    %v1197 = vlaneseq
    %v1198 = vshrl.u32 %v1197, 7
    %v1199 = vsub.s32 %v1196, %v1198
    %v1200 = vrot.slane %v1186, %v1199
    %v1201 = vcombine.low %v1042, %v1044
    %v1202 = vcombine.high %v1042, %v1044
    %v1204 = vunpack.c.l.s4 1983009808
    %v1205 = vunpack.c.0.s8 %v1204
    %v1206 = vlaneseq
    %v1207 = vshrl.u32 %v1206, 7
    %v1208 = vsub.s32 %v1205, %v1207
    %v1209 = vrot.slane %v1201, %v1208
    %v1211 = vunpack.c.l.s4 1983009808
    %v1212 = vunpack.c.0.s8 %v1211
    %v1213 = vlaneseq
    %v1214 = vshrl.u32 %v1213, 7
    %v1215 = vsub.s32 %v1212, %v1214
    %v1216 = vrot.slane %v1202, %v1215
    %v1217 = vcombine.low %v1045, %v1047
    %v1218 = vcombine.high %v1045, %v1047
    %v1220 = vunpack.c.l.s4 1983009808
    %v1221 = vunpack.c.0.s8 %v1220
    %v1222 = vlaneseq
    %v1223 = vshrl.u32 %v1222, 7
    %v1224 = vsub.s32 %v1221, %v1223
    %v1225 = vrot.slane %v1217, %v1224
    %v1227 = vunpack.c.l.s4 1983009808
    %v1228 = vunpack.c.0.s8 %v1227
    %v1229 = vlaneseq
    %v1230 = vshrl.u32 %v1229, 7
    %v1231 = vsub.s32 %v1228, %v1230
    %v1232 = vrot.slane %v1218, %v1231
    %v1233 = vcombine.low %v1046, %v1048
    %v1234 = vcombine.high %v1046, %v1048
    %v1236 = vunpack.c.l.s4 1983009808
    %v1237 = vunpack.c.0.s8 %v1236
    %v1238 = vlaneseq
    %v1239 = vshrl.u32 %v1238, 7
    %v1240 = vsub.s32 %v1237, %v1239
    %v1241 = vrot.slane %v1233, %v1240
    %v1243 = vunpack.c.l.s4 1983009808
    %v1244 = vunpack.c.0.s8 %v1243
    %v1245 = vlaneseq
    %v1246 = vshrl.u32 %v1245, 7
    %v1247 = vsub.s32 %v1244, %v1246
    %v1248 = vrot.slane %v1234, %v1247
    %v1249 = vcombine.low %v1193, %v1209
    %v1250 = vcombine.high %v1193, %v1209
    %v1252 = vunpack.c.l.s4 1934713408
    %v1253 = vunpack.c.0.s8 %v1252
    %v1254 = vlaneseq
    %v1255 = vshrl.u32 %v1254, 7
    %v1256 = vsub.s32 %v1253, %v1255
    %v1257 = vrot.slane %v1249, %v1256
    %v1259 = vunpack.c.l.s4 1934713408
    %v1260 = vunpack.c.0.s8 %v1259
    %v1261 = vlaneseq
    %v1262 = vshrl.u32 %v1261, 7
    %v1263 = vsub.s32 %v1260, %v1262
    %v1264 = vrot.slane %v1250, %v1263
    %v1265 = vcombine.low %v1200, %v1216
    %v1266 = vcombine.high %v1200, %v1216
    %v1268 = vunpack.c.l.s4 1934713408
    %v1269 = vunpack.c.0.s8 %v1268
    %v1270 = vlaneseq
    %v1271 = vshrl.u32 %v1270, 7
    %v1272 = vsub.s32 %v1269, %v1271
    %v1273 = vrot.slane %v1265, %v1272
    %v1275 = vunpack.c.l.s4 1934713408
    %v1276 = vunpack.c.0.s8 %v1275
    %v1277 = vlaneseq
    %v1278 = vshrl.u32 %v1277, 7
    %v1279 = vsub.s32 %v1276, %v1278
    %v1280 = vrot.slane %v1266, %v1279
    %v1281 = vcombine.low %v1225, %v1241
    %v1282 = vcombine.high %v1225, %v1241
    %v1284 = vunpack.c.l.s4 1934713408
    %v1285 = vunpack.c.0.s8 %v1284
    %v1286 = vlaneseq
    %v1287 = vshrl.u32 %v1286, 7
    %v1288 = vsub.s32 %v1285, %v1287
    %v1289 = vrot.slane %v1281, %v1288
    %v1291 = vunpack.c.l.s4 1934713408
    %v1292 = vunpack.c.0.s8 %v1291
    %v1293 = vlaneseq
    %v1294 = vshrl.u32 %v1293, 7
    %v1295 = vsub.s32 %v1292, %v1294
    %v1296 = vrot.slane %v1282, %v1295
    %v1297 = vcombine.low %v1232, %v1248
    %v1298 = vcombine.high %v1232, %v1248
    %v1300 = vunpack.c.l.s4 1934713408
    %v1301 = vunpack.c.0.s8 %v1300
    %v1302 = vlaneseq
    %v1303 = vshrl.u32 %v1302, 7
    %v1304 = vsub.s32 %v1301, %v1303
    %v1305 = vrot.slane %v1297, %v1304
    %v1307 = vunpack.c.l.s4 1934713408
    %v1308 = vunpack.c.0.s8 %v1307
    %v1309 = vlaneseq
    %v1310 = vshrl.u32 %v1309, 7
    %v1311 = vsub.s32 %v1308, %v1310
    %v1312 = vrot.slane %v1298, %v1311
    %v1313 = vcombine.low %v1257, %v1289
    %v1314 = vcombine.high %v1257, %v1289
    %v1315 = vcombine.low %v1264, %v1296
    %v1316 = vcombine.high %v1264, %v1296
    %v1317 = vcombine.low %v1273, %v1305
    %v1318 = vcombine.high %v1273, %v1305
    %v1319 = vcombine.low %v1280, %v1312
    %v1320 = vcombine.high %v1280, %v1312
    %v1321 = vcombine.low %v1177, %v1179
    %v1322 = vcombine.high %v1177, %v1179
    %v1324 = vunpack.c.l.s4 1983009808
    %v1325 = vunpack.c.0.s8 %v1324
    %v1326 = vlaneseq
    %v1327 = vshrl.u32 %v1326, 7
    %v1328 = vsub.s32 %v1325, %v1327
    %v1329 = vrot.slane %v1321, %v1328
    %v1331 = vunpack.c.l.s4 1983009808
    %v1332 = vunpack.c.0.s8 %v1331
    %v1333 = vlaneseq
    %v1334 = vshrl.u32 %v1333, 7
    %v1335 = vsub.s32 %v1332, %v1334
    %v1336 = vrot.slane %v1322, %v1335
    %v1337 = vcombine.low %v1178, %v1180
    %v1338 = vcombine.high %v1178, %v1180
    %v1340 = vunpack.c.l.s4 1983009808
    %v1341 = vunpack.c.0.s8 %v1340
    %v1342 = vlaneseq
    %v1343 = vshrl.u32 %v1342, 7
    %v1344 = vsub.s32 %v1341, %v1343
    %v1345 = vrot.slane %v1337, %v1344
    %v1347 = vunpack.c.l.s4 1983009808
    %v1348 = vunpack.c.0.s8 %v1347
    %v1349 = vlaneseq
    %v1350 = vshrl.u32 %v1349, 7
    %v1351 = vsub.s32 %v1348, %v1350
    %v1352 = vrot.slane %v1338, %v1351
    %v1353 = vcombine.low %v1181, %v1183
    %v1354 = vcombine.high %v1181, %v1183
    %v1356 = vunpack.c.l.s4 1983009808
    %v1357 = vunpack.c.0.s8 %v1356
    %v1358 = vlaneseq
    %v1359 = vshrl.u32 %v1358, 7
    %v1360 = vsub.s32 %v1357, %v1359
    %v1361 = vrot.slane %v1353, %v1360
    %v1363 = vunpack.c.l.s4 1983009808
    %v1364 = vunpack.c.0.s8 %v1363
    %v1365 = vlaneseq
    %v1366 = vshrl.u32 %v1365, 7
    %v1367 = vsub.s32 %v1364, %v1366
    %v1368 = vrot.slane %v1354, %v1367
    %v1369 = vcombine.low %v1182, %v1184
    %v1370 = vcombine.high %v1182, %v1184
    %v1372 = vunpack.c.l.s4 1983009808
    %v1373 = vunpack.c.0.s8 %v1372
    %v1374 = vlaneseq
    %v1375 = vshrl.u32 %v1374, 7
    %v1376 = vsub.s32 %v1373, %v1375
    %v1377 = vrot.slane %v1369, %v1376
    %v1379 = vunpack.c.l.s4 1983009808
    %v1380 = vunpack.c.0.s8 %v1379
    %v1381 = vlaneseq
    %v1382 = vshrl.u32 %v1381, 7
    %v1383 = vsub.s32 %v1380, %v1382
    %v1384 = vrot.slane %v1370, %v1383
    %v1385 = vcombine.low %v1329, %v1345
    %v1386 = vcombine.high %v1329, %v1345
    %v1388 = vunpack.c.l.s4 1934713408
    %v1389 = vunpack.c.0.s8 %v1388
    %v1390 = vlaneseq
    %v1391 = vshrl.u32 %v1390, 7
    %v1392 = vsub.s32 %v1389, %v1391
    %v1393 = vrot.slane %v1385, %v1392
    %v1395 = vunpack.c.l.s4 1934713408
    %v1396 = vunpack.c.0.s8 %v1395
    %v1397 = vlaneseq
    %v1398 = vshrl.u32 %v1397, 7
    %v1399 = vsub.s32 %v1396, %v1398
    %v1400 = vrot.slane %v1386, %v1399
    %v1401 = vcombine.low %v1336, %v1352
    %v1402 = vcombine.high %v1336, %v1352
    %v1404 = vunpack.c.l.s4 1934713408
    %v1405 = vunpack.c.0.s8 %v1404
    %v1406 = vlaneseq
    %v1407 = vshrl.u32 %v1406, 7
    %v1408 = vsub.s32 %v1405, %v1407
    %v1409 = vrot.slane %v1401, %v1408
    %v1411 = vunpack.c.l.s4 1934713408
    %v1412 = vunpack.c.0.s8 %v1411
    %v1413 = vlaneseq
    %v1414 = vshrl.u32 %v1413, 7
    %v1415 = vsub.s32 %v1412, %v1414
    %v1416 = vrot.slane %v1402, %v1415
    %v1417 = vcombine.low %v1361, %v1377
    %v1418 = vcombine.high %v1361, %v1377
    %v1420 = vunpack.c.l.s4 1934713408
    %v1421 = vunpack.c.0.s8 %v1420
    %v1422 = vlaneseq
    %v1423 = vshrl.u32 %v1422, 7
    %v1424 = vsub.s32 %v1421, %v1423
    %v1425 = vrot.slane %v1417, %v1424
    %v1427 = vunpack.c.l.s4 1934713408
    %v1428 = vunpack.c.0.s8 %v1427
    %v1429 = vlaneseq
    %v1430 = vshrl.u32 %v1429, 7
    %v1431 = vsub.s32 %v1428, %v1430
    %v1432 = vrot.slane %v1418, %v1431
    %v1433 = vcombine.low %v1368, %v1384
    %v1434 = vcombine.high %v1368, %v1384
    %v1436 = vunpack.c.l.s4 1934713408
    %v1437 = vunpack.c.0.s8 %v1436
    %v1438 = vlaneseq
    %v1439 = vshrl.u32 %v1438, 7
    %v1440 = vsub.s32 %v1437, %v1439
    %v1441 = vrot.slane %v1433, %v1440
    %v1443 = vunpack.c.l.s4 1934713408
    %v1444 = vunpack.c.0.s8 %v1443
    %v1445 = vlaneseq
    %v1446 = vshrl.u32 %v1445, 7
    %v1447 = vsub.s32 %v1444, %v1446
    %v1448 = vrot.slane %v1434, %v1447
    %v1449 = vcombine.low %v1393, %v1425
    %v1450 = vcombine.high %v1393, %v1425
    %v1451 = vcombine.low %v1400, %v1432
    %v1452 = vcombine.high %v1400, %v1432
    %v1453 = vcombine.low %v1409, %v1441
    %v1454 = vcombine.high %v1409, %v1441
    %v1455 = vcombine.low %v1416, %v1448
    %v1456 = vcombine.high %v1416, %v1448
    %1459 = vrot.lane.b32.xlu0 %v269, 120
    %v1460 = vpop.permute.xlu0 %1459
    %1461 = vrot.lane.b32.xlu0 %v275, 120
    %v1462 = vpop.permute.xlu0 %1461
    %1465 = vrot.lane.b32.xlu0 %v269, 112
    %v1466 = vpop.permute.xlu0 %1465
    %1467 = vrot.lane.b32.xlu0 %v275, 112
    %v1468 = vpop.permute.xlu0 %1467
    %1471 = vrot.lane.b32.xlu0 %v269, 104
    %v1472 = vpop.permute.xlu0 %1471
    %1473 = vrot.lane.b32.xlu0 %v275, 104
    %v1474 = vpop.permute.xlu0 %1473
    %1477 = vrot.lane.b32.xlu0 %v269, 96
    %v1478 = vpop.permute.xlu0 %1477
    %1479 = vrot.lane.b32.xlu0 %v275, 96
    %v1480 = vpop.permute.xlu0 %1479
    %1483 = vrot.lane.b32.xlu0 %v269, 88
    %v1484 = vpop.permute.xlu0 %1483
    %1485 = vrot.lane.b32.xlu0 %v275, 88
    %v1486 = vpop.permute.xlu0 %1485
    %1489 = vrot.lane.b32.xlu0 %v269, 80
    %v1490 = vpop.permute.xlu0 %1489
    %1491 = vrot.lane.b32.xlu0 %v275, 80
    %v1492 = vpop.permute.xlu0 %1491
    %1495 = vrot.lane.b32.xlu0 %v269, 72
    %v1496 = vpop.permute.xlu0 %1495
    %1497 = vrot.lane.b32.xlu0 %v275, 72
    %v1498 = vpop.permute.xlu0 %1497
    %v1501 = vcombine.low %v269, %v1466
    %v1502 = vcombine.high %v269, %v1466
    %v1504 = vunpack.c.l.s4 1983009808
    %v1505 = vunpack.c.0.s8 %v1504
    %v1506 = vlaneseq
    %v1507 = vshrl.u32 %v1506, 7
    %v1508 = vsub.s32 %v1505, %v1507
    %v1509 = vrot.slane %v1501, %v1508
    %v1511 = vunpack.c.l.s4 1983009808
    %v1512 = vunpack.c.0.s8 %v1511
    %v1513 = vlaneseq
    %v1514 = vshrl.u32 %v1513, 7
    %v1515 = vsub.s32 %v1512, %v1514
    %v1516 = vrot.slane %v1502, %v1515
    %v1517 = vcombine.low %v1460, %v1472
    %v1518 = vcombine.high %v1460, %v1472
    %v1520 = vunpack.c.l.s4 1983009808
    %v1521 = vunpack.c.0.s8 %v1520
    %v1522 = vlaneseq
    %v1523 = vshrl.u32 %v1522, 7
    %v1524 = vsub.s32 %v1521, %v1523
    %v1525 = vrot.slane %v1517, %v1524
    %v1527 = vunpack.c.l.s4 1983009808
    %v1528 = vunpack.c.0.s8 %v1527
    %v1529 = vlaneseq
    %v1530 = vshrl.u32 %v1529, 7
    %v1531 = vsub.s32 %v1528, %v1530
    %v1532 = vrot.slane %v1518, %v1531
    %v1533 = vcombine.low %v1478, %v1490
    %v1534 = vcombine.high %v1478, %v1490
    %v1536 = vunpack.c.l.s4 1983009808
    %v1537 = vunpack.c.0.s8 %v1536
    %v1538 = vlaneseq
    %v1539 = vshrl.u32 %v1538, 7
    %v1540 = vsub.s32 %v1537, %v1539
    %v1541 = vrot.slane %v1533, %v1540
    %v1543 = vunpack.c.l.s4 1983009808
    %v1544 = vunpack.c.0.s8 %v1543
    %v1545 = vlaneseq
    %v1546 = vshrl.u32 %v1545, 7
    %v1547 = vsub.s32 %v1544, %v1546
    %v1548 = vrot.slane %v1534, %v1547
    %v1549 = vcombine.low %v1484, %v1496
    %v1550 = vcombine.high %v1484, %v1496
    %v1552 = vunpack.c.l.s4 1983009808
    %v1553 = vunpack.c.0.s8 %v1552
    %v1554 = vlaneseq
    %v1555 = vshrl.u32 %v1554, 7
    %v1556 = vsub.s32 %v1553, %v1555
    %v1557 = vrot.slane %v1549, %v1556
    %v1559 = vunpack.c.l.s4 1983009808
    %v1560 = vunpack.c.0.s8 %v1559
    %v1561 = vlaneseq
    %v1562 = vshrl.u32 %v1561, 7
    %v1563 = vsub.s32 %v1560, %v1562
    %v1564 = vrot.slane %v1550, %v1563
    %v1565 = vcombine.low %v1509, %v1525
    %v1566 = vcombine.high %v1509, %v1525
    %v1568 = vunpack.c.l.s4 1934713408
    %v1569 = vunpack.c.0.s8 %v1568
    %v1570 = vlaneseq
    %v1571 = vshrl.u32 %v1570, 7
    %v1572 = vsub.s32 %v1569, %v1571
    %v1573 = vrot.slane %v1565, %v1572
    %v1575 = vunpack.c.l.s4 1934713408
    %v1576 = vunpack.c.0.s8 %v1575
    %v1577 = vlaneseq
    %v1578 = vshrl.u32 %v1577, 7
    %v1579 = vsub.s32 %v1576, %v1578
    %v1580 = vrot.slane %v1566, %v1579
    %v1581 = vcombine.low %v1516, %v1532
    %v1582 = vcombine.high %v1516, %v1532
    %v1584 = vunpack.c.l.s4 1934713408
    %v1585 = vunpack.c.0.s8 %v1584
    %v1586 = vlaneseq
    %v1587 = vshrl.u32 %v1586, 7
    %v1588 = vsub.s32 %v1585, %v1587
    %v1589 = vrot.slane %v1581, %v1588
    %v1591 = vunpack.c.l.s4 1934713408
    %v1592 = vunpack.c.0.s8 %v1591
    %v1593 = vlaneseq
    %v1594 = vshrl.u32 %v1593, 7
    %v1595 = vsub.s32 %v1592, %v1594
    %v1596 = vrot.slane %v1582, %v1595
    %v1597 = vcombine.low %v1541, %v1557
    %v1598 = vcombine.high %v1541, %v1557
    %v1600 = vunpack.c.l.s4 1934713408
    %v1601 = vunpack.c.0.s8 %v1600
    %v1602 = vlaneseq
    %v1603 = vshrl.u32 %v1602, 7
    %v1604 = vsub.s32 %v1601, %v1603
    %v1605 = vrot.slane %v1597, %v1604
    %v1607 = vunpack.c.l.s4 1934713408
    %v1608 = vunpack.c.0.s8 %v1607
    %v1609 = vlaneseq
    %v1610 = vshrl.u32 %v1609, 7
    %v1611 = vsub.s32 %v1608, %v1610
    %v1612 = vrot.slane %v1598, %v1611
    %v1613 = vcombine.low %v1548, %v1564
    %v1614 = vcombine.high %v1548, %v1564
    %v1616 = vunpack.c.l.s4 1934713408
    %v1617 = vunpack.c.0.s8 %v1616
    %v1618 = vlaneseq
    %v1619 = vshrl.u32 %v1618, 7
    %v1620 = vsub.s32 %v1617, %v1619
    %v1621 = vrot.slane %v1613, %v1620
    %v1623 = vunpack.c.l.s4 1934713408
    %v1624 = vunpack.c.0.s8 %v1623
    %v1625 = vlaneseq
    %v1626 = vshrl.u32 %v1625, 7
    %v1627 = vsub.s32 %v1624, %v1626
    %v1628 = vrot.slane %v1614, %v1627
    %v1629 = vcombine.low %v1573, %v1605
    %v1630 = vcombine.high %v1573, %v1605
    %v1631 = vcombine.low %v1580, %v1612
    %v1632 = vcombine.high %v1580, %v1612
    %v1633 = vcombine.low %v1589, %v1621
    %v1634 = vcombine.high %v1589, %v1621
    %v1635 = vcombine.low %v1596, %v1628
    %v1636 = vcombine.high %v1596, %v1628
    %v1637 = vcombine.low %v275, %v1468
    %v1638 = vcombine.high %v275, %v1468
    %v1640 = vunpack.c.l.s4 1983009808
    %v1641 = vunpack.c.0.s8 %v1640
    %v1642 = vlaneseq
    %v1643 = vshrl.u32 %v1642, 7
    %v1644 = vsub.s32 %v1641, %v1643
    %v1645 = vrot.slane %v1637, %v1644
    %v1647 = vunpack.c.l.s4 1983009808
    %v1648 = vunpack.c.0.s8 %v1647
    %v1649 = vlaneseq
    %v1650 = vshrl.u32 %v1649, 7
    %v1651 = vsub.s32 %v1648, %v1650
    %v1652 = vrot.slane %v1638, %v1651
    %v1653 = vcombine.low %v1462, %v1474
    %v1654 = vcombine.high %v1462, %v1474
    %v1656 = vunpack.c.l.s4 1983009808
    %v1657 = vunpack.c.0.s8 %v1656
    %v1658 = vlaneseq
    %v1659 = vshrl.u32 %v1658, 7
    %v1660 = vsub.s32 %v1657, %v1659
    %v1661 = vrot.slane %v1653, %v1660
    %v1663 = vunpack.c.l.s4 1983009808
    %v1664 = vunpack.c.0.s8 %v1663
    %v1665 = vlaneseq
    %v1666 = vshrl.u32 %v1665, 7
    %v1667 = vsub.s32 %v1664, %v1666
    %v1668 = vrot.slane %v1654, %v1667
    %v1669 = vcombine.low %v1480, %v1492
    %v1670 = vcombine.high %v1480, %v1492
    %v1672 = vunpack.c.l.s4 1983009808
    %v1673 = vunpack.c.0.s8 %v1672
    %v1674 = vlaneseq
    %v1675 = vshrl.u32 %v1674, 7
    %v1676 = vsub.s32 %v1673, %v1675
    %v1677 = vrot.slane %v1669, %v1676
    %v1679 = vunpack.c.l.s4 1983009808
    %v1680 = vunpack.c.0.s8 %v1679
    %v1681 = vlaneseq
    %v1682 = vshrl.u32 %v1681, 7
    %v1683 = vsub.s32 %v1680, %v1682
    %v1684 = vrot.slane %v1670, %v1683
    %v1685 = vcombine.low %v1486, %v1498
    %v1686 = vcombine.high %v1486, %v1498
    %v1688 = vunpack.c.l.s4 1983009808
    %v1689 = vunpack.c.0.s8 %v1688
    %v1690 = vlaneseq
    %v1691 = vshrl.u32 %v1690, 7
    %v1692 = vsub.s32 %v1689, %v1691
    %v1693 = vrot.slane %v1685, %v1692
    %v1695 = vunpack.c.l.s4 1983009808
    %v1696 = vunpack.c.0.s8 %v1695
    %v1697 = vlaneseq
    %v1698 = vshrl.u32 %v1697, 7
    %v1699 = vsub.s32 %v1696, %v1698
    %v1700 = vrot.slane %v1686, %v1699
    %v1701 = vcombine.low %v1645, %v1661
    %v1702 = vcombine.high %v1645, %v1661
    %v1704 = vunpack.c.l.s4 1934713408
    %v1705 = vunpack.c.0.s8 %v1704
    %v1706 = vlaneseq
    %v1707 = vshrl.u32 %v1706, 7
    %v1708 = vsub.s32 %v1705, %v1707
    %v1709 = vrot.slane %v1701, %v1708
    %v1711 = vunpack.c.l.s4 1934713408
    %v1712 = vunpack.c.0.s8 %v1711
    %v1713 = vlaneseq
    %v1714 = vshrl.u32 %v1713, 7
    %v1715 = vsub.s32 %v1712, %v1714
    %v1716 = vrot.slane %v1702, %v1715
    %v1717 = vcombine.low %v1652, %v1668
    %v1718 = vcombine.high %v1652, %v1668
    %v1720 = vunpack.c.l.s4 1934713408
    %v1721 = vunpack.c.0.s8 %v1720
    %v1722 = vlaneseq
    %v1723 = vshrl.u32 %v1722, 7
    %v1724 = vsub.s32 %v1721, %v1723
    %v1725 = vrot.slane %v1717, %v1724
    %v1727 = vunpack.c.l.s4 1934713408
    %v1728 = vunpack.c.0.s8 %v1727
    %v1729 = vlaneseq
    %v1730 = vshrl.u32 %v1729, 7
    %v1731 = vsub.s32 %v1728, %v1730
    %v1732 = vrot.slane %v1718, %v1731
    %v1733 = vcombine.low %v1677, %v1693
    %v1734 = vcombine.high %v1677, %v1693
    %v1736 = vunpack.c.l.s4 1934713408
    %v1737 = vunpack.c.0.s8 %v1736
    %v1738 = vlaneseq
    %v1739 = vshrl.u32 %v1738, 7
    %v1740 = vsub.s32 %v1737, %v1739
    %v1741 = vrot.slane %v1733, %v1740
    %v1743 = vunpack.c.l.s4 1934713408
    %v1744 = vunpack.c.0.s8 %v1743
    %v1745 = vlaneseq
    %v1746 = vshrl.u32 %v1745, 7
    %v1747 = vsub.s32 %v1744, %v1746
    %v1748 = vrot.slane %v1734, %v1747
    %v1749 = vcombine.low %v1684, %v1700
    %v1750 = vcombine.high %v1684, %v1700
    %v1752 = vunpack.c.l.s4 1934713408
    %v1753 = vunpack.c.0.s8 %v1752
    %v1754 = vlaneseq
    %v1755 = vshrl.u32 %v1754, 7
    %v1756 = vsub.s32 %v1753, %v1755
    %v1757 = vrot.slane %v1749, %v1756
    %v1759 = vunpack.c.l.s4 1934713408
    %v1760 = vunpack.c.0.s8 %v1759
    %v1761 = vlaneseq
    %v1762 = vshrl.u32 %v1761, 7
    %v1763 = vsub.s32 %v1760, %v1762
    %v1764 = vrot.slane %v1750, %v1763
    %v1765 = vcombine.low %v1709, %v1741
    %v1766 = vcombine.high %v1709, %v1741
    %v1767 = vcombine.low %v1716, %v1748
    %v1768 = vcombine.high %v1716, %v1748
    %v1769 = vcombine.low %v1725, %v1757
    %v1770 = vcombine.high %v1725, %v1757
    %v1771 = vcombine.low %v1732, %v1764
    %v1772 = vcombine.high %v1732, %v1764
    %v1773 = vcombine.low %v1629, %v1631
    %v1774 = vcombine.high %v1629, %v1631
    %v1776 = vunpack.c.l.s4 1983009808
    %v1777 = vunpack.c.0.s8 %v1776
    %v1778 = vlaneseq
    %v1779 = vshrl.u32 %v1778, 7
    %v1780 = vsub.s32 %v1777, %v1779
    %v1781 = vrot.slane %v1773, %v1780
    %v1783 = vunpack.c.l.s4 1983009808
    %v1784 = vunpack.c.0.s8 %v1783
    %v1785 = vlaneseq
    %v1786 = vshrl.u32 %v1785, 7
    %v1787 = vsub.s32 %v1784, %v1786
    %v1788 = vrot.slane %v1774, %v1787
    %v1789 = vcombine.low %v1630, %v1632
    %v1790 = vcombine.high %v1630, %v1632
    %v1792 = vunpack.c.l.s4 1983009808
    %v1793 = vunpack.c.0.s8 %v1792
    %v1794 = vlaneseq
    %v1795 = vshrl.u32 %v1794, 7
    %v1796 = vsub.s32 %v1793, %v1795
    %v1797 = vrot.slane %v1789, %v1796
    %v1799 = vunpack.c.l.s4 1983009808
    %v1800 = vunpack.c.0.s8 %v1799
    %v1801 = vlaneseq
    %v1802 = vshrl.u32 %v1801, 7
    %v1803 = vsub.s32 %v1800, %v1802
    %v1804 = vrot.slane %v1790, %v1803
    %v1805 = vcombine.low %v1633, %v1635
    %v1806 = vcombine.high %v1633, %v1635
    %v1808 = vunpack.c.l.s4 1983009808
    %v1809 = vunpack.c.0.s8 %v1808
    %v1810 = vlaneseq
    %v1811 = vshrl.u32 %v1810, 7
    %v1812 = vsub.s32 %v1809, %v1811
    %v1813 = vrot.slane %v1805, %v1812
    %v1815 = vunpack.c.l.s4 1983009808
    %v1816 = vunpack.c.0.s8 %v1815
    %v1817 = vlaneseq
    %v1818 = vshrl.u32 %v1817, 7
    %v1819 = vsub.s32 %v1816, %v1818
    %v1820 = vrot.slane %v1806, %v1819
    %v1821 = vcombine.low %v1634, %v1636
    %v1822 = vcombine.high %v1634, %v1636
    %v1824 = vunpack.c.l.s4 1983009808
    %v1825 = vunpack.c.0.s8 %v1824
    %v1826 = vlaneseq
    %v1827 = vshrl.u32 %v1826, 7
    %v1828 = vsub.s32 %v1825, %v1827
    %v1829 = vrot.slane %v1821, %v1828
    %v1831 = vunpack.c.l.s4 1983009808
    %v1832 = vunpack.c.0.s8 %v1831
    %v1833 = vlaneseq
    %v1834 = vshrl.u32 %v1833, 7
    %v1835 = vsub.s32 %v1832, %v1834
    %v1836 = vrot.slane %v1822, %v1835
    %v1837 = vcombine.low %v1781, %v1797
    %v1838 = vcombine.high %v1781, %v1797
    %v1840 = vunpack.c.l.s4 1934713408
    %v1841 = vunpack.c.0.s8 %v1840
    %v1842 = vlaneseq
    %v1843 = vshrl.u32 %v1842, 7
    %v1844 = vsub.s32 %v1841, %v1843
    %v1845 = vrot.slane %v1837, %v1844
    %v1847 = vunpack.c.l.s4 1934713408
    %v1848 = vunpack.c.0.s8 %v1847
    %v1849 = vlaneseq
    %v1850 = vshrl.u32 %v1849, 7
    %v1851 = vsub.s32 %v1848, %v1850
    %v1852 = vrot.slane %v1838, %v1851
    %v1853 = vcombine.low %v1788, %v1804
    %v1854 = vcombine.high %v1788, %v1804
    %v1856 = vunpack.c.l.s4 1934713408
    %v1857 = vunpack.c.0.s8 %v1856
    %v1858 = vlaneseq
    %v1859 = vshrl.u32 %v1858, 7
    %v1860 = vsub.s32 %v1857, %v1859
    %v1861 = vrot.slane %v1853, %v1860
    %v1863 = vunpack.c.l.s4 1934713408
    %v1864 = vunpack.c.0.s8 %v1863
    %v1865 = vlaneseq
    %v1866 = vshrl.u32 %v1865, 7
    %v1867 = vsub.s32 %v1864, %v1866
    %v1868 = vrot.slane %v1854, %v1867
    %v1869 = vcombine.low %v1813, %v1829
    %v1870 = vcombine.high %v1813, %v1829
    %v1872 = vunpack.c.l.s4 1934713408
    %v1873 = vunpack.c.0.s8 %v1872
    %v1874 = vlaneseq
    %v1875 = vshrl.u32 %v1874, 7
    %v1876 = vsub.s32 %v1873, %v1875
    %v1877 = vrot.slane %v1869, %v1876
    %v1879 = vunpack.c.l.s4 1934713408
    %v1880 = vunpack.c.0.s8 %v1879
    %v1881 = vlaneseq
    %v1882 = vshrl.u32 %v1881, 7
    %v1883 = vsub.s32 %v1880, %v1882
    %v1884 = vrot.slane %v1870, %v1883
    %v1885 = vcombine.low %v1820, %v1836
    %v1886 = vcombine.high %v1820, %v1836
    %v1888 = vunpack.c.l.s4 1934713408
    %v1889 = vunpack.c.0.s8 %v1888
    %v1890 = vlaneseq
    %v1891 = vshrl.u32 %v1890, 7
    %v1892 = vsub.s32 %v1889, %v1891
    %v1893 = vrot.slane %v1885, %v1892
    %v1895 = vunpack.c.l.s4 1934713408
    %v1896 = vunpack.c.0.s8 %v1895
    %v1897 = vlaneseq
    %v1898 = vshrl.u32 %v1897, 7
    %v1899 = vsub.s32 %v1896, %v1898
    %v1900 = vrot.slane %v1886, %v1899
    %v1901 = vcombine.low %v1845, %v1877
    %v1902 = vcombine.high %v1845, %v1877
    %v1903 = vcombine.low %v1852, %v1884
    %v1904 = vcombine.high %v1852, %v1884
    %v1905 = vcombine.low %v1861, %v1893
    %v1906 = vcombine.high %v1861, %v1893
    %v1907 = vcombine.low %v1868, %v1900
    %v1908 = vcombine.high %v1868, %v1900
    %v1909 = vcombine.low %v1765, %v1767
    %v1910 = vcombine.high %v1765, %v1767
    %v1912 = vunpack.c.l.s4 1983009808
    %v1913 = vunpack.c.0.s8 %v1912
    %v1914 = vlaneseq
    %v1915 = vshrl.u32 %v1914, 7
    %v1916 = vsub.s32 %v1913, %v1915
    %v1917 = vrot.slane %v1909, %v1916
    %v1919 = vunpack.c.l.s4 1983009808
    %v1920 = vunpack.c.0.s8 %v1919
    %v1921 = vlaneseq
    %v1922 = vshrl.u32 %v1921, 7
    %v1923 = vsub.s32 %v1920, %v1922
    %v1924 = vrot.slane %v1910, %v1923
    %v1925 = vcombine.low %v1766, %v1768
    %v1926 = vcombine.high %v1766, %v1768
    %v1928 = vunpack.c.l.s4 1983009808
    %v1929 = vunpack.c.0.s8 %v1928
    %v1930 = vlaneseq
    %v1931 = vshrl.u32 %v1930, 7
    %v1932 = vsub.s32 %v1929, %v1931
    %v1933 = vrot.slane %v1925, %v1932
    %v1935 = vunpack.c.l.s4 1983009808
    %v1936 = vunpack.c.0.s8 %v1935
    %v1937 = vlaneseq
    %v1938 = vshrl.u32 %v1937, 7
    %v1939 = vsub.s32 %v1936, %v1938
    %v1940 = vrot.slane %v1926, %v1939
    %v1941 = vcombine.low %v1769, %v1771
    %v1942 = vcombine.high %v1769, %v1771
    %v1944 = vunpack.c.l.s4 1983009808
    %v1945 = vunpack.c.0.s8 %v1944
    %v1946 = vlaneseq
    %v1947 = vshrl.u32 %v1946, 7
    %v1948 = vsub.s32 %v1945, %v1947
    %v1949 = vrot.slane %v1941, %v1948
    %v1951 = vunpack.c.l.s4 1983009808
    %v1952 = vunpack.c.0.s8 %v1951
    %v1953 = vlaneseq
    %v1954 = vshrl.u32 %v1953, 7
    %v1955 = vsub.s32 %v1952, %v1954
    %v1956 = vrot.slane %v1942, %v1955
    %v1957 = vcombine.low %v1770, %v1772
    %v1958 = vcombine.high %v1770, %v1772
    %v1960 = vunpack.c.l.s4 1983009808
    %v1961 = vunpack.c.0.s8 %v1960
    %v1962 = vlaneseq
    %v1963 = vshrl.u32 %v1962, 7
    %v1964 = vsub.s32 %v1961, %v1963
    %v1965 = vrot.slane %v1957, %v1964
    %v1967 = vunpack.c.l.s4 1983009808
    %v1968 = vunpack.c.0.s8 %v1967
    %v1969 = vlaneseq
    %v1970 = vshrl.u32 %v1969, 7
    %v1971 = vsub.s32 %v1968, %v1970
    %v1972 = vrot.slane %v1958, %v1971
    %v1973 = vcombine.low %v1917, %v1933
    %v1974 = vcombine.high %v1917, %v1933
    %v1976 = vunpack.c.l.s4 1934713408
    %v1977 = vunpack.c.0.s8 %v1976
    %v1978 = vlaneseq
    %v1979 = vshrl.u32 %v1978, 7
    %v1980 = vsub.s32 %v1977, %v1979
    %v1981 = vrot.slane %v1973, %v1980
    %v1983 = vunpack.c.l.s4 1934713408
    %v1984 = vunpack.c.0.s8 %v1983
    %v1985 = vlaneseq
    %v1986 = vshrl.u32 %v1985, 7
    %v1987 = vsub.s32 %v1984, %v1986
    %v1988 = vrot.slane %v1974, %v1987
    %v1989 = vcombine.low %v1924, %v1940
    %v1990 = vcombine.high %v1924, %v1940
    %v1992 = vunpack.c.l.s4 1934713408
    %v1993 = vunpack.c.0.s8 %v1992
    %v1994 = vlaneseq
    %v1995 = vshrl.u32 %v1994, 7
    %v1996 = vsub.s32 %v1993, %v1995
    %v1997 = vrot.slane %v1989, %v1996
    %v1999 = vunpack.c.l.s4 1934713408
    %v2000 = vunpack.c.0.s8 %v1999
    %v2001 = vlaneseq
    %v2002 = vshrl.u32 %v2001, 7
    %v2003 = vsub.s32 %v2000, %v2002
    %v2004 = vrot.slane %v1990, %v2003
    %v2005 = vcombine.low %v1949, %v1965
    %v2006 = vcombine.high %v1949, %v1965
    %v2008 = vunpack.c.l.s4 1934713408
    %v2009 = vunpack.c.0.s8 %v2008
    %v2010 = vlaneseq
    %v2011 = vshrl.u32 %v2010, 7
    %v2012 = vsub.s32 %v2009, %v2011
    %v2013 = vrot.slane %v2005, %v2012
    %v2015 = vunpack.c.l.s4 1934713408
    %v2016 = vunpack.c.0.s8 %v2015
    %v2017 = vlaneseq
    %v2018 = vshrl.u32 %v2017, 7
    %v2019 = vsub.s32 %v2016, %v2018
    %v2020 = vrot.slane %v2006, %v2019
    %v2021 = vcombine.low %v1956, %v1972
    %v2022 = vcombine.high %v1956, %v1972
    %v2024 = vunpack.c.l.s4 1934713408
    %v2025 = vunpack.c.0.s8 %v2024
    %v2026 = vlaneseq
    %v2027 = vshrl.u32 %v2026, 7
    %v2028 = vsub.s32 %v2025, %v2027
    %v2029 = vrot.slane %v2021, %v2028
    %v2031 = vunpack.c.l.s4 1934713408
    %v2032 = vunpack.c.0.s8 %v2031
    %v2033 = vlaneseq
    %v2034 = vshrl.u32 %v2033, 7
    %v2035 = vsub.s32 %v2032, %v2034
    %v2036 = vrot.slane %v2022, %v2035
    %v2037 = vcombine.low %v1981, %v2013
    %v2038 = vcombine.high %v1981, %v2013
    %v2039 = vcombine.low %v1988, %v2020
    %v2040 = vcombine.high %v1988, %v2020
    %v2041 = vcombine.low %v1997, %v2029
    %v2042 = vcombine.high %v1997, %v2029
    %v2043 = vcombine.low %v2004, %v2036
    %v2044 = vcombine.high %v2004, %v2036
    %vm2045 = vcmask 64512
    %v2047 = vsel %vm2045, %v721, 0
    %v2050 = vsel %vm2045, %v1313, 0
    %2052 = vmatprep.subr.mxu0 0.0
    %2053 = vmatpush1.xpose.msra.mxu0 %v2050
    %2054 = vmatprep.subr.mxu0 0.0
    %2055 = vmatpush1.xpose.msra.mxu0 0.0
    %2056 = vmatprep.subr.mxu0 0.0
    %2057 = vmatpush1.xpose.msra.mxu0 0.0
    %2058 = vmatprep.subr.mxu0 0.0
    %2059 = vmatpush1.xpose.msra.mxu0 0.0
    %2060 = vmatprep.subr.mxu0 0.0
    %2061 = vmatpush1.xpose.msra.mxu0 0.0
    %2062 = vmatprep.subr.mxu0 0.0
    %2063 = vmatpush1.xpose.msra.mxu0 0.0
    %2064 = vmatprep.subr.mxu0 0.0
    %2065 = vmatpush1.xpose.msra.mxu0 0.0
    %2066 = vmatprep.subr.mxu0 0.0
    %2067 = vmatpush1.xpose.msra.mxu0 0.0
    %2068 = vmatprep.subr.mxu0 0.0
    %2069 = vmatpush1.xpose.msra.mxu0 0.0
    %2070 = vmatprep.subr.mxu0 0.0
    %2071 = vmatpush1.xpose.msra.mxu0 0.0
    %2072 = vmatprep.subr.mxu0 0.0
    %2073 = vmatpush1.xpose.msra.mxu0 0.0
    %2074 = vmatprep.subr.mxu0 0.0
    %2075 = vmatpush1.xpose.msra.mxu0 0.0
    %2076 = vmatprep.subr.mxu0 0.0
    %2077 = vmatpush1.xpose.msra.mxu0 0.0
    %2078 = vmatprep.subr.mxu0 0.0
    %2079 = vmatpush1.xpose.msra.mxu0 0.0
    %2080 = vmatprep.subr.mxu0 0.0
    %2081 = vmatpush1.xpose.msra.mxu0 0.0
    %2082 = vmatprep.subr.mxu0 0.0
    %2083 = vmatpush1.xpose.msra.mxu0 0.0
    %2084 = vmatprep.subr.mxu0 0.0
    %2085 = vmatpush1.xpose.msra.mxu0 0.0
    %2086 = vmatprep.subr.mxu0 0.0
    %2087 = vmatpush1.xpose.msra.mxu0 0.0
    %2088 = vmatprep.subr.mxu0 0.0
    %2089 = vmatpush1.xpose.msra.mxu0 0.0
    %2090 = vmatprep.subr.mxu0 0.0
    %2091 = vmatpush1.xpose.msra.mxu0 0.0
    %2092 = vmatprep.subr.mxu0 0.0
    %2093 = vmatpush1.xpose.msra.mxu0 0.0
    %2094 = vmatprep.subr.mxu0 0.0
    %2095 = vmatpush1.xpose.msra.mxu0 0.0
    %2096 = vmatprep.subr.mxu0 0.0
    %2097 = vmatpush1.xpose.msra.mxu0 0.0
    %2098 = vmatprep.subr.mxu0 0.0
    %2099 = vmatpush1.xpose.msra.mxu0 0.0
    %2100 = vmatprep.subr.mxu0 0.0
    %2101 = vmatpush1.xpose.msra.mxu0 0.0
    %2102 = vmatprep.subr.mxu0 0.0
    %2103 = vmatpush1.xpose.msra.mxu0 0.0
    %2104 = vmatprep.subr.mxu0 0.0
    %2105 = vmatpush1.xpose.msra.mxu0 0.0
    %2106 = vmatprep.subr.mxu0 0.0
    %2107 = vmatpush1.xpose.msra.mxu0 0.0
    %2108 = vmatprep.subr.mxu0 0.0
    %2109 = vmatpush1.xpose.msra.mxu0 0.0
    %2110 = vmatprep.subr.mxu0 0.0
    %2111 = vmatpush1.xpose.msra.mxu0 0.0
    %2112 = vmatprep.subr.mxu0 0.0
    %2113 = vmatpush1.xpose.msra.mxu0 0.0
    %2114 = vmatprep.subr.mxu0 0.0
    %2115 = vmatpush1.xpose.msra.mxu0 0.0
    %2116 = vmatprep.mubr.f32.mxu0 0.0
    %2117 = vmatmul.mubr.f32.gmra.mrb[0].mxu0 %v2047
    %v2118 = vpop.f32.mrb[0].mxu0
    %v2119 = vadd.f32 0.0, %v2118
    %v2120 = vpop.f32.mrb[0].mxu0
    %2121 = vdwg.mxu0
    %v2123 = vsel %vm2045, %v722, 0
    %v2126 = vsel %vm2045, %v1314, 0
    %2128 = vmatprep.subr.mxu0 0.0
    %2129 = vmatpush1.xpose.msra.mxu0 %v2126
    %2130 = vmatprep.subr.mxu0 0.0
    %2131 = vmatpush1.xpose.msra.mxu0 0.0
    %2132 = vmatprep.subr.mxu0 0.0
    %2133 = vmatpush1.xpose.msra.mxu0 0.0
    %2134 = vmatprep.subr.mxu0 0.0
    %2135 = vmatpush1.xpose.msra.mxu0 0.0
    %2136 = vmatprep.subr.mxu0 0.0
    %2137 = vmatpush1.xpose.msra.mxu0 0.0
    %2138 = vmatprep.subr.mxu0 0.0
    %2139 = vmatpush1.xpose.msra.mxu0 0.0
    %2140 = vmatprep.subr.mxu0 0.0
    %2141 = vmatpush1.xpose.msra.mxu0 0.0
    %2142 = vmatprep.subr.mxu0 0.0
    %2143 = vmatpush1.xpose.msra.mxu0 0.0
    %2144 = vmatprep.subr.mxu0 0.0
    %2145 = vmatpush1.xpose.msra.mxu0 0.0
    %2146 = vmatprep.subr.mxu0 0.0
    %2147 = vmatpush1.xpose.msra.mxu0 0.0
    %2148 = vmatprep.subr.mxu0 0.0
    %2149 = vmatpush1.xpose.msra.mxu0 0.0
    %2150 = vmatprep.subr.mxu0 0.0
    %2151 = vmatpush1.xpose.msra.mxu0 0.0
    %2152 = vmatprep.subr.mxu0 0.0
    %2153 = vmatpush1.xpose.msra.mxu0 0.0
    %2154 = vmatprep.subr.mxu0 0.0
    %2155 = vmatpush1.xpose.msra.mxu0 0.0
    %2156 = vmatprep.subr.mxu0 0.0
    %2157 = vmatpush1.xpose.msra.mxu0 0.0
    %2158 = vmatprep.subr.mxu0 0.0
    %2159 = vmatpush1.xpose.msra.mxu0 0.0
    %2160 = vmatprep.subr.mxu0 0.0
    %2161 = vmatpush1.xpose.msra.mxu0 0.0
    %2162 = vmatprep.subr.mxu0 0.0
    %2163 = vmatpush1.xpose.msra.mxu0 0.0
    %2164 = vmatprep.subr.mxu0 0.0
    %2165 = vmatpush1.xpose.msra.mxu0 0.0
    %2166 = vmatprep.subr.mxu0 0.0
    %2167 = vmatpush1.xpose.msra.mxu0 0.0
    %2168 = vmatprep.subr.mxu0 0.0
    %2169 = vmatpush1.xpose.msra.mxu0 0.0
    %2170 = vmatprep.subr.mxu0 0.0
    %2171 = vmatpush1.xpose.msra.mxu0 0.0
    %2172 = vmatprep.subr.mxu0 0.0
    %2173 = vmatpush1.xpose.msra.mxu0 0.0
    %2174 = vmatprep.subr.mxu0 0.0
    %2175 = vmatpush1.xpose.msra.mxu0 0.0
    %2176 = vmatprep.subr.mxu0 0.0
    %2177 = vmatpush1.xpose.msra.mxu0 0.0
    %2178 = vmatprep.subr.mxu0 0.0
    %2179 = vmatpush1.xpose.msra.mxu0 0.0
    %2180 = vmatprep.subr.mxu0 0.0
    %2181 = vmatpush1.xpose.msra.mxu0 0.0
    %2182 = vmatprep.subr.mxu0 0.0
    %2183 = vmatpush1.xpose.msra.mxu0 0.0
    %2184 = vmatprep.subr.mxu0 0.0
    %2185 = vmatpush1.xpose.msra.mxu0 0.0
    %2186 = vmatprep.subr.mxu0 0.0
    %2187 = vmatpush1.xpose.msra.mxu0 0.0
    %2188 = vmatprep.subr.mxu0 0.0
    %2189 = vmatpush1.xpose.msra.mxu0 0.0
    %2190 = vmatprep.subr.mxu0 0.0
    %2191 = vmatpush1.xpose.msra.mxu0 0.0
    %2192 = vmatprep.mubr.f32.mxu0 0.0
    %2193 = vmatmul.mubr.f32.gmra.mrb[0].mxu0 %v2123
    %v2194 = vpop.f32.mrb[0].mxu0
    %v2195 = vadd.f32 0.0, %v2194
    %v2196 = vpop.f32.mrb[0].mxu0
    %2197 = vdwg.mxu0
    %v2199 = vsel %vm2045, %v723, 0
    %v2202 = vsel %vm2045, %v1315, 0
    %2204 = vmatprep.subr.mxu0 0.0
    %2205 = vmatpush1.xpose.msra.mxu0 %v2202
    %2206 = vmatprep.subr.mxu0 0.0
    %2207 = vmatpush1.xpose.msra.mxu0 0.0
    %2208 = vmatprep.subr.mxu0 0.0
    %2209 = vmatpush1.xpose.msra.mxu0 0.0
    %2210 = vmatprep.subr.mxu0 0.0
    %2211 = vmatpush1.xpose.msra.mxu0 0.0
    %2212 = vmatprep.subr.mxu0 0.0
    %2213 = vmatpush1.xpose.msra.mxu0 0.0
    %2214 = vmatprep.subr.mxu0 0.0
    %2215 = vmatpush1.xpose.msra.mxu0 0.0
    %2216 = vmatprep.subr.mxu0 0.0
    %2217 = vmatpush1.xpose.msra.mxu0 0.0
    %2218 = vmatprep.subr.mxu0 0.0
    %2219 = vmatpush1.xpose.msra.mxu0 0.0
    %2220 = vmatprep.subr.mxu0 0.0
    %2221 = vmatpush1.xpose.msra.mxu0 0.0
    %2222 = vmatprep.subr.mxu0 0.0
    %2223 = vmatpush1.xpose.msra.mxu0 0.0
    %2224 = vmatprep.subr.mxu0 0.0
    %2225 = vmatpush1.xpose.msra.mxu0 0.0
    %2226 = vmatprep.subr.mxu0 0.0
    %2227 = vmatpush1.xpose.msra.mxu0 0.0
    %2228 = vmatprep.subr.mxu0 0.0
    %2229 = vmatpush1.xpose.msra.mxu0 0.0
    %2230 = vmatprep.subr.mxu0 0.0
    %2231 = vmatpush1.xpose.msra.mxu0 0.0
    %2232 = vmatprep.subr.mxu0 0.0
    %2233 = vmatpush1.xpose.msra.mxu0 0.0
    %2234 = vmatprep.subr.mxu0 0.0
    %2235 = vmatpush1.xpose.msra.mxu0 0.0
    %2236 = vmatprep.subr.mxu0 0.0
    %2237 = vmatpush1.xpose.msra.mxu0 0.0
    %2238 = vmatprep.subr.mxu0 0.0
    %2239 = vmatpush1.xpose.msra.mxu0 0.0
    %2240 = vmatprep.subr.mxu0 0.0
    %2241 = vmatpush1.xpose.msra.mxu0 0.0
    %2242 = vmatprep.subr.mxu0 0.0
    %2243 = vmatpush1.xpose.msra.mxu0 0.0
    %2244 = vmatprep.subr.mxu0 0.0
    %2245 = vmatpush1.xpose.msra.mxu0 0.0
    %2246 = vmatprep.subr.mxu0 0.0
    %2247 = vmatpush1.xpose.msra.mxu0 0.0
    %2248 = vmatprep.subr.mxu0 0.0
    %2249 = vmatpush1.xpose.msra.mxu0 0.0
    %2250 = vmatprep.subr.mxu0 0.0
    %2251 = vmatpush1.xpose.msra.mxu0 0.0
    %2252 = vmatprep.subr.mxu0 0.0
    %2253 = vmatpush1.xpose.msra.mxu0 0.0
    %2254 = vmatprep.subr.mxu0 0.0
    %2255 = vmatpush1.xpose.msra.mxu0 0.0
    %2256 = vmatprep.subr.mxu0 0.0
    %2257 = vmatpush1.xpose.msra.mxu0 0.0
    %2258 = vmatprep.subr.mxu0 0.0
    %2259 = vmatpush1.xpose.msra.mxu0 0.0
    %2260 = vmatprep.subr.mxu0 0.0
    %2261 = vmatpush1.xpose.msra.mxu0 0.0
    %2262 = vmatprep.subr.mxu0 0.0
    %2263 = vmatpush1.xpose.msra.mxu0 0.0
    %2264 = vmatprep.subr.mxu0 0.0
    %2265 = vmatpush1.xpose.msra.mxu0 0.0
    %2266 = vmatprep.subr.mxu0 0.0
    %2267 = vmatpush1.xpose.msra.mxu0 0.0
    %2268 = vmatprep.mubr.f32.mxu0 0.0
    %2269 = vmatmul.mubr.f32.gmra.mrb[0].mxu0 %v2199
    %v2270 = vpop.f32.mrb[0].mxu0
    %v2271 = vadd.f32 0.0, %v2270
    %v2272 = vpop.f32.mrb[0].mxu0
    %2273 = vdwg.mxu0
    %v2275 = vsel %vm2045, %v724, 0
    %v2278 = vsel %vm2045, %v1316, 0
    %2280 = vmatprep.subr.mxu0 0.0
    %2281 = vmatpush1.xpose.msra.mxu0 %v2278
    %2282 = vmatprep.subr.mxu0 0.0
    %2283 = vmatpush1.xpose.msra.mxu0 0.0
    %2284 = vmatprep.subr.mxu0 0.0
    %2285 = vmatpush1.xpose.msra.mxu0 0.0
    %2286 = vmatprep.subr.mxu0 0.0
    %2287 = vmatpush1.xpose.msra.mxu0 0.0
    %2288 = vmatprep.subr.mxu0 0.0
    %2289 = vmatpush1.xpose.msra.mxu0 0.0
    %2290 = vmatprep.subr.mxu0 0.0
    %2291 = vmatpush1.xpose.msra.mxu0 0.0
    %2292 = vmatprep.subr.mxu0 0.0
    %2293 = vmatpush1.xpose.msra.mxu0 0.0
    %2294 = vmatprep.subr.mxu0 0.0
    %2295 = vmatpush1.xpose.msra.mxu0 0.0
    %2296 = vmatprep.subr.mxu0 0.0
    %2297 = vmatpush1.xpose.msra.mxu0 0.0
    %2298 = vmatprep.subr.mxu0 0.0
    %2299 = vmatpush1.xpose.msra.mxu0 0.0
    %2300 = vmatprep.subr.mxu0 0.0
    %2301 = vmatpush1.xpose.msra.mxu0 0.0
    %2302 = vmatprep.subr.mxu0 0.0
    %2303 = vmatpush1.xpose.msra.mxu0 0.0
    %2304 = vmatprep.subr.mxu0 0.0
    %2305 = vmatpush1.xpose.msra.mxu0 0.0
    %2306 = vmatprep.subr.mxu0 0.0
    %2307 = vmatpush1.xpose.msra.mxu0 0.0
    %2308 = vmatprep.subr.mxu0 0.0
    %2309 = vmatpush1.xpose.msra.mxu0 0.0
    %2310 = vmatprep.subr.mxu0 0.0
    %2311 = vmatpush1.xpose.msra.mxu0 0.0
    %2312 = vmatprep.subr.mxu0 0.0
    %2313 = vmatpush1.xpose.msra.mxu0 0.0
    %2314 = vmatprep.subr.mxu0 0.0
    %2315 = vmatpush1.xpose.msra.mxu0 0.0
    %2316 = vmatprep.subr.mxu0 0.0
    %2317 = vmatpush1.xpose.msra.mxu0 0.0
    %2318 = vmatprep.subr.mxu0 0.0
    %2319 = vmatpush1.xpose.msra.mxu0 0.0
    %2320 = vmatprep.subr.mxu0 0.0
    %2321 = vmatpush1.xpose.msra.mxu0 0.0
    %2322 = vmatprep.subr.mxu0 0.0
    %2323 = vmatpush1.xpose.msra.mxu0 0.0
    %2324 = vmatprep.subr.mxu0 0.0
    %2325 = vmatpush1.xpose.msra.mxu0 0.0
    %2326 = vmatprep.subr.mxu0 0.0
    %2327 = vmatpush1.xpose.msra.mxu0 0.0
    %2328 = vmatprep.subr.mxu0 0.0
    %2329 = vmatpush1.xpose.msra.mxu0 0.0
    %2330 = vmatprep.subr.mxu0 0.0
    %2331 = vmatpush1.xpose.msra.mxu0 0.0
    %2332 = vmatprep.subr.mxu0 0.0
    %2333 = vmatpush1.xpose.msra.mxu0 0.0
    %2334 = vmatprep.subr.mxu0 0.0
    %2335 = vmatpush1.xpose.msra.mxu0 0.0
    %2336 = vmatprep.subr.mxu0 0.0
    %2337 = vmatpush1.xpose.msra.mxu0 0.0
    %2338 = vmatprep.subr.mxu0 0.0
    %2339 = vmatpush1.xpose.msra.mxu0 0.0
    %2340 = vmatprep.subr.mxu0 0.0
    %2341 = vmatpush1.xpose.msra.mxu0 0.0
    %2342 = vmatprep.subr.mxu0 0.0
    %2343 = vmatpush1.xpose.msra.mxu0 0.0
    %2344 = vmatprep.mubr.f32.mxu0 0.0
    %2345 = vmatmul.mubr.f32.gmra.mrb[0].mxu0 %v2275
    %v2346 = vpop.f32.mrb[0].mxu0
    %v2347 = vadd.f32 0.0, %v2346
    %v2348 = vpop.f32.mrb[0].mxu0
    %2349 = vdwg.mxu0
    %v2351 = vsel %vm2045, %v725, 0
    %v2354 = vsel %vm2045, %v1317, 0
    %2356 = vmatprep.subr.mxu0 0.0
    %2357 = vmatpush1.xpose.msra.mxu0 %v2354
    %2358 = vmatprep.subr.mxu0 0.0
    %2359 = vmatpush1.xpose.msra.mxu0 0.0
    %2360 = vmatprep.subr.mxu0 0.0
    %2361 = vmatpush1.xpose.msra.mxu0 0.0
    %2362 = vmatprep.subr.mxu0 0.0
    %2363 = vmatpush1.xpose.msra.mxu0 0.0
    %2364 = vmatprep.subr.mxu0 0.0
    %2365 = vmatpush1.xpose.msra.mxu0 0.0
    %2366 = vmatprep.subr.mxu0 0.0
    %2367 = vmatpush1.xpose.msra.mxu0 0.0
    %2368 = vmatprep.subr.mxu0 0.0
    %2369 = vmatpush1.xpose.msra.mxu0 0.0
    %2370 = vmatprep.subr.mxu0 0.0
    %2371 = vmatpush1.xpose.msra.mxu0 0.0
    %2372 = vmatprep.subr.mxu0 0.0
    %2373 = vmatpush1.xpose.msra.mxu0 0.0
    %2374 = vmatprep.subr.mxu0 0.0
    %2375 = vmatpush1.xpose.msra.mxu0 0.0
    %2376 = vmatprep.subr.mxu0 0.0
    %2377 = vmatpush1.xpose.msra.mxu0 0.0
    %2378 = vmatprep.subr.mxu0 0.0
    %2379 = vmatpush1.xpose.msra.mxu0 0.0
    %2380 = vmatprep.subr.mxu0 0.0
    %2381 = vmatpush1.xpose.msra.mxu0 0.0
    %2382 = vmatprep.subr.mxu0 0.0
    %2383 = vmatpush1.xpose.msra.mxu0 0.0
    %2384 = vmatprep.subr.mxu0 0.0
    %2385 = vmatpush1.xpose.msra.mxu0 0.0
    %2386 = vmatprep.subr.mxu0 0.0
    %2387 = vmatpush1.xpose.msra.mxu0 0.0
    %2388 = vmatprep.subr.mxu0 0.0
    %2389 = vmatpush1.xpose.msra.mxu0 0.0
    %2390 = vmatprep.subr.mxu0 0.0
    %2391 = vmatpush1.xpose.msra.mxu0 0.0
    %2392 = vmatprep.subr.mxu0 0.0
    %2393 = vmatpush1.xpose.msra.mxu0 0.0
    %2394 = vmatprep.subr.mxu0 0.0
    %2395 = vmatpush1.xpose.msra.mxu0 0.0
    %2396 = vmatprep.subr.mxu0 0.0
    %2397 = vmatpush1.xpose.msra.mxu0 0.0
    %2398 = vmatprep.subr.mxu0 0.0
    %2399 = vmatpush1.xpose.msra.mxu0 0.0
    %2400 = vmatprep.subr.mxu0 0.0
    %2401 = vmatpush1.xpose.msra.mxu0 0.0
    %2402 = vmatprep.subr.mxu0 0.0
    %2403 = vmatpush1.xpose.msra.mxu0 0.0
    %2404 = vmatprep.subr.mxu0 0.0
    %2405 = vmatpush1.xpose.msra.mxu0 0.0
    %2406 = vmatprep.subr.mxu0 0.0
    %2407 = vmatpush1.xpose.msra.mxu0 0.0
    %2408 = vmatprep.subr.mxu0 0.0
    %2409 = vmatpush1.xpose.msra.mxu0 0.0
    %2410 = vmatprep.subr.mxu0 0.0
    %2411 = vmatpush1.xpose.msra.mxu0 0.0
    %2412 = vmatprep.subr.mxu0 0.0
    %2413 = vmatpush1.xpose.msra.mxu0 0.0
    %2414 = vmatprep.subr.mxu0 0.0
    %2415 = vmatpush1.xpose.msra.mxu0 0.0
    %2416 = vmatprep.subr.mxu0 0.0
    %2417 = vmatpush1.xpose.msra.mxu0 0.0
    %2418 = vmatprep.subr.mxu0 0.0
    %2419 = vmatpush1.xpose.msra.mxu0 0.0
    %2420 = vmatprep.mubr.f32.mxu0 0.0
    %2421 = vmatmul.mubr.f32.gmra.mrb[0].mxu0 %v2351
    %v2422 = vpop.f32.mrb[0].mxu0
    %v2423 = vadd.f32 0.0, %v2422
    %v2424 = vpop.f32.mrb[0].mxu0
    %2425 = vdwg.mxu0
    %v2427 = vsel %vm2045, %v726, 0
    %v2430 = vsel %vm2045, %v1318, 0
    %2432 = vmatprep.subr.mxu0 0.0
    %2433 = vmatpush1.xpose.msra.mxu0 %v2430
    %2434 = vmatprep.subr.mxu0 0.0
    %2435 = vmatpush1.xpose.msra.mxu0 0.0
    %2436 = vmatprep.subr.mxu0 0.0
    %2437 = vmatpush1.xpose.msra.mxu0 0.0
    %2438 = vmatprep.subr.mxu0 0.0
    %2439 = vmatpush1.xpose.msra.mxu0 0.0
    %2440 = vmatprep.subr.mxu0 0.0
    %2441 = vmatpush1.xpose.msra.mxu0 0.0
    %2442 = vmatprep.subr.mxu0 0.0
    %2443 = vmatpush1.xpose.msra.mxu0 0.0
    %2444 = vmatprep.subr.mxu0 0.0
    %2445 = vmatpush1.xpose.msra.mxu0 0.0
    %2446 = vmatprep.subr.mxu0 0.0
    %2447 = vmatpush1.xpose.msra.mxu0 0.0
    %2448 = vmatprep.subr.mxu0 0.0
    %2449 = vmatpush1.xpose.msra.mxu0 0.0
    %2450 = vmatprep.subr.mxu0 0.0
    %2451 = vmatpush1.xpose.msra.mxu0 0.0
    %2452 = vmatprep.subr.mxu0 0.0
    %2453 = vmatpush1.xpose.msra.mxu0 0.0
    %2454 = vmatprep.subr.mxu0 0.0
    %2455 = vmatpush1.xpose.msra.mxu0 0.0
    %2456 = vmatprep.subr.mxu0 0.0
    %2457 = vmatpush1.xpose.msra.mxu0 0.0
    %2458 = vmatprep.subr.mxu0 0.0
    %2459 = vmatpush1.xpose.msra.mxu0 0.0
    %2460 = vmatprep.subr.mxu0 0.0
    %2461 = vmatpush1.xpose.msra.mxu0 0.0
    %2462 = vmatprep.subr.mxu0 0.0
    %2463 = vmatpush1.xpose.msra.mxu0 0.0
    %2464 = vmatprep.subr.mxu0 0.0
    %2465 = vmatpush1.xpose.msra.mxu0 0.0
    %2466 = vmatprep.subr.mxu0 0.0
    %2467 = vmatpush1.xpose.msra.mxu0 0.0
    %2468 = vmatprep.subr.mxu0 0.0
    %2469 = vmatpush1.xpose.msra.mxu0 0.0
    %2470 = vmatprep.subr.mxu0 0.0
    %2471 = vmatpush1.xpose.msra.mxu0 0.0
    %2472 = vmatprep.subr.mxu0 0.0
    %2473 = vmatpush1.xpose.msra.mxu0 0.0
    %2474 = vmatprep.subr.mxu0 0.0
    %2475 = vmatpush1.xpose.msra.mxu0 0.0
    %2476 = vmatprep.subr.mxu0 0.0
    %2477 = vmatpush1.xpose.msra.mxu0 0.0
    %2478 = vmatprep.subr.mxu0 0.0
    %2479 = vmatpush1.xpose.msra.mxu0 0.0
    %2480 = vmatprep.subr.mxu0 0.0
    %2481 = vmatpush1.xpose.msra.mxu0 0.0
    %2482 = vmatprep.subr.mxu0 0.0
    %2483 = vmatpush1.xpose.msra.mxu0 0.0
    %2484 = vmatprep.subr.mxu0 0.0
    %2485 = vmatpush1.xpose.msra.mxu0 0.0
    %2486 = vmatprep.subr.mxu0 0.0
    %2487 = vmatpush1.xpose.msra.mxu0 0.0
    %2488 = vmatprep.subr.mxu0 0.0
    %2489 = vmatpush1.xpose.msra.mxu0 0.0
    %2490 = vmatprep.subr.mxu0 0.0
    %2491 = vmatpush1.xpose.msra.mxu0 0.0
    %2492 = vmatprep.subr.mxu0 0.0
    %2493 = vmatpush1.xpose.msra.mxu0 0.0
    %2494 = vmatprep.subr.mxu0 0.0
    %2495 = vmatpush1.xpose.msra.mxu0 0.0
    %2496 = vmatprep.mubr.f32.mxu0 0.0
    %2497 = vmatmul.mubr.f32.gmra.mrb[0].mxu0 %v2427
    %v2498 = vpop.f32.mrb[0].mxu0
    %v2499 = vadd.f32 0.0, %v2498
    %v2500 = vpop.f32.mrb[0].mxu0
    %2501 = vdwg.mxu0
    %v2503 = vsel %vm2045, %v727, 0
    %v2506 = vsel %vm2045, %v1319, 0
    %2508 = vmatprep.subr.mxu0 0.0
    %2509 = vmatpush1.xpose.msra.mxu0 %v2506
    %2510 = vmatprep.subr.mxu0 0.0
    %2511 = vmatpush1.xpose.msra.mxu0 0.0
    %2512 = vmatprep.subr.mxu0 0.0
    %2513 = vmatpush1.xpose.msra.mxu0 0.0
    %2514 = vmatprep.subr.mxu0 0.0
    %2515 = vmatpush1.xpose.msra.mxu0 0.0
    %2516 = vmatprep.subr.mxu0 0.0
    %2517 = vmatpush1.xpose.msra.mxu0 0.0
    %2518 = vmatprep.subr.mxu0 0.0
    %2519 = vmatpush1.xpose.msra.mxu0 0.0
    %2520 = vmatprep.subr.mxu0 0.0
    %2521 = vmatpush1.xpose.msra.mxu0 0.0
    %2522 = vmatprep.subr.mxu0 0.0
    %2523 = vmatpush1.xpose.msra.mxu0 0.0
    %2524 = vmatprep.subr.mxu0 0.0
    %2525 = vmatpush1.xpose.msra.mxu0 0.0
    %2526 = vmatprep.subr.mxu0 0.0
    %2527 = vmatpush1.xpose.msra.mxu0 0.0
    %2528 = vmatprep.subr.mxu0 0.0
    %2529 = vmatpush1.xpose.msra.mxu0 0.0
    %2530 = vmatprep.subr.mxu0 0.0
    %2531 = vmatpush1.xpose.msra.mxu0 0.0
    %2532 = vmatprep.subr.mxu0 0.0
    %2533 = vmatpush1.xpose.msra.mxu0 0.0
    %2534 = vmatprep.subr.mxu0 0.0
    %2535 = vmatpush1.xpose.msra.mxu0 0.0
    %2536 = vmatprep.subr.mxu0 0.0
    %2537 = vmatpush1.xpose.msra.mxu0 0.0
    %2538 = vmatprep.subr.mxu0 0.0
    %2539 = vmatpush1.xpose.msra.mxu0 0.0
    %2540 = vmatprep.subr.mxu0 0.0
    %2541 = vmatpush1.xpose.msra.mxu0 0.0
    %2542 = vmatprep.subr.mxu0 0.0
    %2543 = vmatpush1.xpose.msra.mxu0 0.0
    %2544 = vmatprep.subr.mxu0 0.0
    %2545 = vmatpush1.xpose.msra.mxu0 0.0
    %2546 = vmatprep.subr.mxu0 0.0
    %2547 = vmatpush1.xpose.msra.mxu0 0.0
    %2548 = vmatprep.subr.mxu0 0.0
    %2549 = vmatpush1.xpose.msra.mxu0 0.0
    %2550 = vmatprep.subr.mxu0 0.0
    %2551 = vmatpush1.xpose.msra.mxu0 0.0
    %2552 = vmatprep.subr.mxu0 0.0
    %2553 = vmatpush1.xpose.msra.mxu0 0.0
    %2554 = vmatprep.subr.mxu0 0.0
    %2555 = vmatpush1.xpose.msra.mxu0 0.0
    %2556 = vmatprep.subr.mxu0 0.0
    %2557 = vmatpush1.xpose.msra.mxu0 0.0
    %2558 = vmatprep.subr.mxu0 0.0
    %2559 = vmatpush1.xpose.msra.mxu0 0.0
    %2560 = vmatprep.subr.mxu0 0.0
    %2561 = vmatpush1.xpose.msra.mxu0 0.0
    %2562 = vmatprep.subr.mxu0 0.0
    %2563 = vmatpush1.xpose.msra.mxu0 0.0
    %2564 = vmatprep.subr.mxu0 0.0
    %2565 = vmatpush1.xpose.msra.mxu0 0.0
    %2566 = vmatprep.subr.mxu0 0.0
    %2567 = vmatpush1.xpose.msra.mxu0 0.0
    %2568 = vmatprep.subr.mxu0 0.0
    %2569 = vmatpush1.xpose.msra.mxu0 0.0
    %2570 = vmatprep.subr.mxu0 0.0
    %2571 = vmatpush1.xpose.msra.mxu0 0.0
    %2572 = vmatprep.mubr.f32.mxu0 0.0
    %2573 = vmatmul.mubr.f32.gmra.mrb[0].mxu0 %v2503
    %v2574 = vpop.f32.mrb[0].mxu0
    %v2575 = vadd.f32 0.0, %v2574
    %v2576 = vpop.f32.mrb[0].mxu0
    %2577 = vdwg.mxu0
    %v2579 = vsel %vm2045, %v728, 0
    %v2582 = vsel %vm2045, %v1320, 0
    %2584 = vmatprep.subr.mxu0 0.0
    %2585 = vmatpush1.xpose.msra.mxu0 %v2582
    %2586 = vmatprep.subr.mxu0 0.0
    %2587 = vmatpush1.xpose.msra.mxu0 0.0
    %2588 = vmatprep.subr.mxu0 0.0
    %2589 = vmatpush1.xpose.msra.mxu0 0.0
    %2590 = vmatprep.subr.mxu0 0.0
    %2591 = vmatpush1.xpose.msra.mxu0 0.0
    %2592 = vmatprep.subr.mxu0 0.0
    %2593 = vmatpush1.xpose.msra.mxu0 0.0
    %2594 = vmatprep.subr.mxu0 0.0
    %2595 = vmatpush1.xpose.msra.mxu0 0.0
    %2596 = vmatprep.subr.mxu0 0.0
    %2597 = vmatpush1.xpose.msra.mxu0 0.0
    %2598 = vmatprep.subr.mxu0 0.0
    %2599 = vmatpush1.xpose.msra.mxu0 0.0
    %2600 = vmatprep.subr.mxu0 0.0
    %2601 = vmatpush1.xpose.msra.mxu0 0.0
    %2602 = vmatprep.subr.mxu0 0.0
    %2603 = vmatpush1.xpose.msra.mxu0 0.0
    %2604 = vmatprep.subr.mxu0 0.0
    %2605 = vmatpush1.xpose.msra.mxu0 0.0
    %2606 = vmatprep.subr.mxu0 0.0
    %2607 = vmatpush1.xpose.msra.mxu0 0.0
    %2608 = vmatprep.subr.mxu0 0.0
    %2609 = vmatpush1.xpose.msra.mxu0 0.0
    %2610 = vmatprep.subr.mxu0 0.0
    %2611 = vmatpush1.xpose.msra.mxu0 0.0
    %2612 = vmatprep.subr.mxu0 0.0
    %2613 = vmatpush1.xpose.msra.mxu0 0.0
    %2614 = vmatprep.subr.mxu0 0.0
    %2615 = vmatpush1.xpose.msra.mxu0 0.0
    %2616 = vmatprep.subr.mxu0 0.0
    %2617 = vmatpush1.xpose.msra.mxu0 0.0
    %2618 = vmatprep.subr.mxu0 0.0
    %2619 = vmatpush1.xpose.msra.mxu0 0.0
    %2620 = vmatprep.subr.mxu0 0.0
    %2621 = vmatpush1.xpose.msra.mxu0 0.0
    %2622 = vmatprep.subr.mxu0 0.0
    %2623 = vmatpush1.xpose.msra.mxu0 0.0
    %2624 = vmatprep.subr.mxu0 0.0
    %2625 = vmatpush1.xpose.msra.mxu0 0.0
    %2626 = vmatprep.subr.mxu0 0.0
    %2627 = vmatpush1.xpose.msra.mxu0 0.0
    %2628 = vmatprep.subr.mxu0 0.0
    %2629 = vmatpush1.xpose.msra.mxu0 0.0
    %2630 = vmatprep.subr.mxu0 0.0
    %2631 = vmatpush1.xpose.msra.mxu0 0.0
    %2632 = vmatprep.subr.mxu0 0.0
    %2633 = vmatpush1.xpose.msra.mxu0 0.0
    %2634 = vmatprep.subr.mxu0 0.0
    %2635 = vmatpush1.xpose.msra.mxu0 0.0
    %2636 = vmatprep.subr.mxu0 0.0
    %2637 = vmatpush1.xpose.msra.mxu0 0.0
    %2638 = vmatprep.subr.mxu0 0.0
    %2639 = vmatpush1.xpose.msra.mxu0 0.0
    %2640 = vmatprep.subr.mxu0 0.0
    %2641 = vmatpush1.xpose.msra.mxu0 0.0
    %2642 = vmatprep.subr.mxu0 0.0
    %2643 = vmatpush1.xpose.msra.mxu0 0.0
    %2644 = vmatprep.subr.mxu0 0.0
    %2645 = vmatpush1.xpose.msra.mxu0 0.0
    %2646 = vmatprep.subr.mxu0 0.0
    %2647 = vmatpush1.xpose.msra.mxu0 0.0
    %2648 = vmatprep.mubr.f32.mxu0 0.0
    %2649 = vmatmul.mubr.f32.gmra.mrb[0].mxu0 %v2579
    %v2650 = vpop.f32.mrb[0].mxu0
    %v2651 = vadd.f32 0.0, %v2650
    %v2652 = vpop.f32.mrb[0].mxu0
    %2653 = vdwg.mxu0
    %v2655 = vsel %vm2045, %v857, 0
    %v2658 = vsel %vm2045, %v1449, 0
    %2660 = vmatprep.subr.mxu0 0.0
    %2661 = vmatpush1.xpose.msra.mxu0 %v2658
    %2662 = vmatprep.subr.mxu0 0.0
    %2663 = vmatpush1.xpose.msra.mxu0 0.0
    %2664 = vmatprep.subr.mxu0 0.0
    %2665 = vmatpush1.xpose.msra.mxu0 0.0
    %2666 = vmatprep.subr.mxu0 0.0
    %2667 = vmatpush1.xpose.msra.mxu0 0.0
    %2668 = vmatprep.subr.mxu0 0.0
    %2669 = vmatpush1.xpose.msra.mxu0 0.0
    %2670 = vmatprep.subr.mxu0 0.0
    %2671 = vmatpush1.xpose.msra.mxu0 0.0
    %2672 = vmatprep.subr.mxu0 0.0
    %2673 = vmatpush1.xpose.msra.mxu0 0.0
    %2674 = vmatprep.subr.mxu0 0.0
    %2675 = vmatpush1.xpose.msra.mxu0 0.0
    %2676 = vmatprep.subr.mxu0 0.0
    %2677 = vmatpush1.xpose.msra.mxu0 0.0
    %2678 = vmatprep.subr.mxu0 0.0
    %2679 = vmatpush1.xpose.msra.mxu0 0.0
    %2680 = vmatprep.subr.mxu0 0.0
    %2681 = vmatpush1.xpose.msra.mxu0 0.0
    %2682 = vmatprep.subr.mxu0 0.0
    %2683 = vmatpush1.xpose.msra.mxu0 0.0
    %2684 = vmatprep.subr.mxu0 0.0
    %2685 = vmatpush1.xpose.msra.mxu0 0.0
    %2686 = vmatprep.subr.mxu0 0.0
    %2687 = vmatpush1.xpose.msra.mxu0 0.0
    %2688 = vmatprep.subr.mxu0 0.0
    %2689 = vmatpush1.xpose.msra.mxu0 0.0
    %2690 = vmatprep.subr.mxu0 0.0
    %2691 = vmatpush1.xpose.msra.mxu0 0.0
    %2692 = vmatprep.subr.mxu0 0.0
    %2693 = vmatpush1.xpose.msra.mxu0 0.0
    %2694 = vmatprep.subr.mxu0 0.0
    %2695 = vmatpush1.xpose.msra.mxu0 0.0
    %2696 = vmatprep.subr.mxu0 0.0
    %2697 = vmatpush1.xpose.msra.mxu0 0.0
    %2698 = vmatprep.subr.mxu0 0.0
    %2699 = vmatpush1.xpose.msra.mxu0 0.0
    %2700 = vmatprep.subr.mxu0 0.0
    %2701 = vmatpush1.xpose.msra.mxu0 0.0
    %2702 = vmatprep.subr.mxu0 0.0
    %2703 = vmatpush1.xpose.msra.mxu0 0.0
    %2704 = vmatprep.subr.mxu0 0.0
    %2705 = vmatpush1.xpose.msra.mxu0 0.0
    %2706 = vmatprep.subr.mxu0 0.0
    %2707 = vmatpush1.xpose.msra.mxu0 0.0
    %2708 = vmatprep.subr.mxu0 0.0
    %2709 = vmatpush1.xpose.msra.mxu0 0.0
    %2710 = vmatprep.subr.mxu0 0.0
    %2711 = vmatpush1.xpose.msra.mxu0 0.0
    %2712 = vmatprep.subr.mxu0 0.0
    %2713 = vmatpush1.xpose.msra.mxu0 0.0
    %2714 = vmatprep.subr.mxu0 0.0
    %2715 = vmatpush1.xpose.msra.mxu0 0.0
    %2716 = vmatprep.subr.mxu0 0.0
    %2717 = vmatpush1.xpose.msra.mxu0 0.0
    %2718 = vmatprep.subr.mxu0 0.0
    %2719 = vmatpush1.xpose.msra.mxu0 0.0
    %2720 = vmatprep.subr.mxu0 0.0
    %2721 = vmatpush1.xpose.msra.mxu0 0.0
    %2722 = vmatprep.subr.mxu0 0.0
    %2723 = vmatpush1.xpose.msra.mxu0 0.0
    %2724 = vmatprep.mubr.f32.mxu0 0.0
    %2725 = vmatmul.mubr.f32.gmra.mrb[0].mxu0 %v2655
    %v2726 = vpop.f32.mrb[0].mxu0
    %v2727 = vadd.f32 0.0, %v2726
    %v2728 = vpop.f32.mrb[0].mxu0
    %2729 = vdwg.mxu0
    %v2731 = vsel %vm2045, %v858, 0
    %v2734 = vsel %vm2045, %v1450, 0
    %2736 = vmatprep.subr.mxu0 0.0
    %2737 = vmatpush1.xpose.msra.mxu0 %v2734
    %2738 = vmatprep.subr.mxu0 0.0
    %2739 = vmatpush1.xpose.msra.mxu0 0.0
    %2740 = vmatprep.subr.mxu0 0.0
    %2741 = vmatpush1.xpose.msra.mxu0 0.0
    %2742 = vmatprep.subr.mxu0 0.0
    %2743 = vmatpush1.xpose.msra.mxu0 0.0
    %2744 = vmatprep.subr.mxu0 0.0
    %2745 = vmatpush1.xpose.msra.mxu0 0.0
    %2746 = vmatprep.subr.mxu0 0.0
    %2747 = vmatpush1.xpose.msra.mxu0 0.0
    %2748 = vmatprep.subr.mxu0 0.0
    %2749 = vmatpush1.xpose.msra.mxu0 0.0
    %2750 = vmatprep.subr.mxu0 0.0
    %2751 = vmatpush1.xpose.msra.mxu0 0.0
    %2752 = vmatprep.subr.mxu0 0.0
    %2753 = vmatpush1.xpose.msra.mxu0 0.0
    %2754 = vmatprep.subr.mxu0 0.0
    %2755 = vmatpush1.xpose.msra.mxu0 0.0
    %2756 = vmatprep.subr.mxu0 0.0
    %2757 = vmatpush1.xpose.msra.mxu0 0.0
    %2758 = vmatprep.subr.mxu0 0.0
    %2759 = vmatpush1.xpose.msra.mxu0 0.0
    %2760 = vmatprep.subr.mxu0 0.0
    %2761 = vmatpush1.xpose.msra.mxu0 0.0
    %2762 = vmatprep.subr.mxu0 0.0
    %2763 = vmatpush1.xpose.msra.mxu0 0.0
    %2764 = vmatprep.subr.mxu0 0.0
    %2765 = vmatpush1.xpose.msra.mxu0 0.0
    %2766 = vmatprep.subr.mxu0 0.0
    %2767 = vmatpush1.xpose.msra.mxu0 0.0
    %2768 = vmatprep.subr.mxu0 0.0
    %2769 = vmatpush1.xpose.msra.mxu0 0.0
    %2770 = vmatprep.subr.mxu0 0.0
    %2771 = vmatpush1.xpose.msra.mxu0 0.0
    %2772 = vmatprep.subr.mxu0 0.0
    %2773 = vmatpush1.xpose.msra.mxu0 0.0
    %2774 = vmatprep.subr.mxu0 0.0
    %2775 = vmatpush1.xpose.msra.mxu0 0.0
    %2776 = vmatprep.subr.mxu0 0.0
    %2777 = vmatpush1.xpose.msra.mxu0 0.0
    %2778 = vmatprep.subr.mxu0 0.0
    %2779 = vmatpush1.xpose.msra.mxu0 0.0
    %2780 = vmatprep.subr.mxu0 0.0
    %2781 = vmatpush1.xpose.msra.mxu0 0.0
    %2782 = vmatprep.subr.mxu0 0.0
    %2783 = vmatpush1.xpose.msra.mxu0 0.0
    %2784 = vmatprep.subr.mxu0 0.0
    %2785 = vmatpush1.xpose.msra.mxu0 0.0
    %2786 = vmatprep.subr.mxu0 0.0
    %2787 = vmatpush1.xpose.msra.mxu0 0.0
    %2788 = vmatprep.subr.mxu0 0.0
    %2789 = vmatpush1.xpose.msra.mxu0 0.0
    %2790 = vmatprep.subr.mxu0 0.0
    %2791 = vmatpush1.xpose.msra.mxu0 0.0
    %2792 = vmatprep.subr.mxu0 0.0
    %2793 = vmatpush1.xpose.msra.mxu0 0.0
    %2794 = vmatprep.subr.mxu0 0.0
    %2795 = vmatpush1.xpose.msra.mxu0 0.0
    %2796 = vmatprep.subr.mxu0 0.0
    %2797 = vmatpush1.xpose.msra.mxu0 0.0
    %2798 = vmatprep.subr.mxu0 0.0
    %2799 = vmatpush1.xpose.msra.mxu0 0.0
    %2800 = vmatprep.mubr.f32.mxu0 0.0
    %2801 = vmatmul.mubr.f32.gmra.mrb[0].mxu0 %v2731
    %v2802 = vpop.f32.mrb[0].mxu0
    %v2803 = vadd.f32 0.0, %v2802
    %v2804 = vpop.f32.mrb[0].mxu0
    %2805 = vdwg.mxu0
    %v2807 = vsel %vm2045, %v859, 0
    %v2810 = vsel %vm2045, %v1451, 0
    %2812 = vmatprep.subr.mxu0 0.0
    %2813 = vmatpush1.xpose.msra.mxu0 %v2810
    %2814 = vmatprep.subr.mxu0 0.0
    %2815 = vmatpush1.xpose.msra.mxu0 0.0
    %2816 = vmatprep.subr.mxu0 0.0
    %2817 = vmatpush1.xpose.msra.mxu0 0.0
    %2818 = vmatprep.subr.mxu0 0.0
    %2819 = vmatpush1.xpose.msra.mxu0 0.0
    %2820 = vmatprep.subr.mxu0 0.0
    %2821 = vmatpush1.xpose.msra.mxu0 0.0
    %2822 = vmatprep.subr.mxu0 0.0
    %2823 = vmatpush1.xpose.msra.mxu0 0.0
    %2824 = vmatprep.subr.mxu0 0.0
    %2825 = vmatpush1.xpose.msra.mxu0 0.0
    %2826 = vmatprep.subr.mxu0 0.0
    %2827 = vmatpush1.xpose.msra.mxu0 0.0
    %2828 = vmatprep.subr.mxu0 0.0
    %2829 = vmatpush1.xpose.msra.mxu0 0.0
    %2830 = vmatprep.subr.mxu0 0.0
    %2831 = vmatpush1.xpose.msra.mxu0 0.0
    %2832 = vmatprep.subr.mxu0 0.0
    %2833 = vmatpush1.xpose.msra.mxu0 0.0
    %2834 = vmatprep.subr.mxu0 0.0
    %2835 = vmatpush1.xpose.msra.mxu0 0.0
    %2836 = vmatprep.subr.mxu0 0.0
    %2837 = vmatpush1.xpose.msra.mxu0 0.0
    %2838 = vmatprep.subr.mxu0 0.0
    %2839 = vmatpush1.xpose.msra.mxu0 0.0
    %2840 = vmatprep.subr.mxu0 0.0
    %2841 = vmatpush1.xpose.msra.mxu0 0.0
    %2842 = vmatprep.subr.mxu0 0.0
    %2843 = vmatpush1.xpose.msra.mxu0 0.0
    %2844 = vmatprep.subr.mxu0 0.0
    %2845 = vmatpush1.xpose.msra.mxu0 0.0
    %2846 = vmatprep.subr.mxu0 0.0
    %2847 = vmatpush1.xpose.msra.mxu0 0.0
    %2848 = vmatprep.subr.mxu0 0.0
    %2849 = vmatpush1.xpose.msra.mxu0 0.0
    %2850 = vmatprep.subr.mxu0 0.0
    %2851 = vmatpush1.xpose.msra.mxu0 0.0
    %2852 = vmatprep.subr.mxu0 0.0
    %2853 = vmatpush1.xpose.msra.mxu0 0.0
    %2854 = vmatprep.subr.mxu0 0.0
    %2855 = vmatpush1.xpose.msra.mxu0 0.0
    %2856 = vmatprep.subr.mxu0 0.0
    %2857 = vmatpush1.xpose.msra.mxu0 0.0
    %2858 = vmatprep.subr.mxu0 0.0
    %2859 = vmatpush1.xpose.msra.mxu0 0.0
    %2860 = vmatprep.subr.mxu0 0.0
    %2861 = vmatpush1.xpose.msra.mxu0 0.0
    %2862 = vmatprep.subr.mxu0 0.0
    %2863 = vmatpush1.xpose.msra.mxu0 0.0
    %2864 = vmatprep.subr.mxu0 0.0
    %2865 = vmatpush1.xpose.msra.mxu0 0.0
    %2866 = vmatprep.subr.mxu0 0.0
    %2867 = vmatpush1.xpose.msra.mxu0 0.0
    %2868 = vmatprep.subr.mxu0 0.0
    %2869 = vmatpush1.xpose.msra.mxu0 0.0
    %2870 = vmatprep.subr.mxu0 0.0
    %2871 = vmatpush1.xpose.msra.mxu0 0.0
    %2872 = vmatprep.subr.mxu0 0.0
    %2873 = vmatpush1.xpose.msra.mxu0 0.0
    %2874 = vmatprep.subr.mxu0 0.0
    %2875 = vmatpush1.xpose.msra.mxu0 0.0
    %2876 = vmatprep.mubr.f32.mxu0 0.0
    %2877 = vmatmul.mubr.f32.gmra.mrb[0].mxu0 %v2807
    %v2878 = vpop.f32.mrb[0].mxu0
    %v2879 = vadd.f32 0.0, %v2878
    %v2880 = vpop.f32.mrb[0].mxu0
    %2881 = vdwg.mxu0
    %v2883 = vsel %vm2045, %v860, 0
    %v2886 = vsel %vm2045, %v1452, 0
    %2888 = vmatprep.subr.mxu0 0.0
    %2889 = vmatpush1.xpose.msra.mxu0 %v2886
    %2890 = vmatprep.subr.mxu0 0.0
    %2891 = vmatpush1.xpose.msra.mxu0 0.0
    %2892 = vmatprep.subr.mxu0 0.0
    %2893 = vmatpush1.xpose.msra.mxu0 0.0
    %2894 = vmatprep.subr.mxu0 0.0
    %2895 = vmatpush1.xpose.msra.mxu0 0.0
    %2896 = vmatprep.subr.mxu0 0.0
    %2897 = vmatpush1.xpose.msra.mxu0 0.0
    %2898 = vmatprep.subr.mxu0 0.0
    %2899 = vmatpush1.xpose.msra.mxu0 0.0
    %2900 = vmatprep.subr.mxu0 0.0
    %2901 = vmatpush1.xpose.msra.mxu0 0.0
    %2902 = vmatprep.subr.mxu0 0.0
    %2903 = vmatpush1.xpose.msra.mxu0 0.0
    %2904 = vmatprep.subr.mxu0 0.0
    %2905 = vmatpush1.xpose.msra.mxu0 0.0
    %2906 = vmatprep.subr.mxu0 0.0
    %2907 = vmatpush1.xpose.msra.mxu0 0.0
    %2908 = vmatprep.subr.mxu0 0.0
    %2909 = vmatpush1.xpose.msra.mxu0 0.0
    %2910 = vmatprep.subr.mxu0 0.0
    %2911 = vmatpush1.xpose.msra.mxu0 0.0
    %2912 = vmatprep.subr.mxu0 0.0
    %2913 = vmatpush1.xpose.msra.mxu0 0.0
    %2914 = vmatprep.subr.mxu0 0.0
    %2915 = vmatpush1.xpose.msra.mxu0 0.0
    %2916 = vmatprep.subr.mxu0 0.0
    %2917 = vmatpush1.xpose.msra.mxu0 0.0
    %2918 = vmatprep.subr.mxu0 0.0
    %2919 = vmatpush1.xpose.msra.mxu0 0.0
    %2920 = vmatprep.subr.mxu0 0.0
    %2921 = vmatpush1.xpose.msra.mxu0 0.0
    %2922 = vmatprep.subr.mxu0 0.0
    %2923 = vmatpush1.xpose.msra.mxu0 0.0
    %2924 = vmatprep.subr.mxu0 0.0
    %2925 = vmatpush1.xpose.msra.mxu0 0.0
    %2926 = vmatprep.subr.mxu0 0.0
    %2927 = vmatpush1.xpose.msra.mxu0 0.0
    %2928 = vmatprep.subr.mxu0 0.0
    %2929 = vmatpush1.xpose.msra.mxu0 0.0
    %2930 = vmatprep.subr.mxu0 0.0
    %2931 = vmatpush1.xpose.msra.mxu0 0.0
    %2932 = vmatprep.subr.mxu0 0.0
    %2933 = vmatpush1.xpose.msra.mxu0 0.0
    %2934 = vmatprep.subr.mxu0 0.0
    %2935 = vmatpush1.xpose.msra.mxu0 0.0
    %2936 = vmatprep.subr.mxu0 0.0
    %2937 = vmatpush1.xpose.msra.mxu0 0.0
    %2938 = vmatprep.subr.mxu0 0.0
    %2939 = vmatpush1.xpose.msra.mxu0 0.0
    %2940 = vmatprep.subr.mxu0 0.0
    %2941 = vmatpush1.xpose.msra.mxu0 0.0
    %2942 = vmatprep.subr.mxu0 0.0
    %2943 = vmatpush1.xpose.msra.mxu0 0.0
    %2944 = vmatprep.subr.mxu0 0.0
    %2945 = vmatpush1.xpose.msra.mxu0 0.0
    %2946 = vmatprep.subr.mxu0 0.0
    %2947 = vmatpush1.xpose.msra.mxu0 0.0
    %2948 = vmatprep.subr.mxu0 0.0
    %2949 = vmatpush1.xpose.msra.mxu0 0.0
    %2950 = vmatprep.subr.mxu0 0.0
    %2951 = vmatpush1.xpose.msra.mxu0 0.0
    %2952 = vmatprep.mubr.f32.mxu0 0.0
    %2953 = vmatmul.mubr.f32.gmra.mrb[0].mxu0 %v2883
    %v2954 = vpop.f32.mrb[0].mxu0
    %v2955 = vadd.f32 0.0, %v2954
    %v2956 = vpop.f32.mrb[0].mxu0
    %2957 = vdwg.mxu0
    %v2959 = vsel %vm2045, %v861, 0
    %v2962 = vsel %vm2045, %v1453, 0
    %2964 = vmatprep.subr.mxu0 0.0
    %2965 = vmatpush1.xpose.msra.mxu0 %v2962
    %2966 = vmatprep.subr.mxu0 0.0
    %2967 = vmatpush1.xpose.msra.mxu0 0.0
    %2968 = vmatprep.subr.mxu0 0.0
    %2969 = vmatpush1.xpose.msra.mxu0 0.0
    %2970 = vmatprep.subr.mxu0 0.0
    %2971 = vmatpush1.xpose.msra.mxu0 0.0
    %2972 = vmatprep.subr.mxu0 0.0
    %2973 = vmatpush1.xpose.msra.mxu0 0.0
    %2974 = vmatprep.subr.mxu0 0.0
    %2975 = vmatpush1.xpose.msra.mxu0 0.0
    %2976 = vmatprep.subr.mxu0 0.0
    %2977 = vmatpush1.xpose.msra.mxu0 0.0
    %2978 = vmatprep.subr.mxu0 0.0
    %2979 = vmatpush1.xpose.msra.mxu0 0.0
    %2980 = vmatprep.subr.mxu0 0.0
    %2981 = vmatpush1.xpose.msra.mxu0 0.0
    %2982 = vmatprep.subr.mxu0 0.0
    %2983 = vmatpush1.xpose.msra.mxu0 0.0
    %2984 = vmatprep.subr.mxu0 0.0
    %2985 = vmatpush1.xpose.msra.mxu0 0.0
    %2986 = vmatprep.subr.mxu0 0.0
    %2987 = vmatpush1.xpose.msra.mxu0 0.0
    %2988 = vmatprep.subr.mxu0 0.0
    %2989 = vmatpush1.xpose.msra.mxu0 0.0
    %2990 = vmatprep.subr.mxu0 0.0
    %2991 = vmatpush1.xpose.msra.mxu0 0.0
    %2992 = vmatprep.subr.mxu0 0.0
    %2993 = vmatpush1.xpose.msra.mxu0 0.0
    %2994 = vmatprep.subr.mxu0 0.0
    %2995 = vmatpush1.xpose.msra.mxu0 0.0
    %2996 = vmatprep.subr.mxu0 0.0
    %2997 = vmatpush1.xpose.msra.mxu0 0.0
    %2998 = vmatprep.subr.mxu0 0.0
    %2999 = vmatpush1.xpose.msra.mxu0 0.0
    %3000 = vmatprep.subr.mxu0 0.0
    %3001 = vmatpush1.xpose.msra.mxu0 0.0
    %3002 = vmatprep.subr.mxu0 0.0
    %3003 = vmatpush1.xpose.msra.mxu0 0.0
    %3004 = vmatprep.subr.mxu0 0.0
    %3005 = vmatpush1.xpose.msra.mxu0 0.0
    %3006 = vmatprep.subr.mxu0 0.0
    %3007 = vmatpush1.xpose.msra.mxu0 0.0
    %3008 = vmatprep.subr.mxu0 0.0
    %3009 = vmatpush1.xpose.msra.mxu0 0.0
    %3010 = vmatprep.subr.mxu0 0.0
    %3011 = vmatpush1.xpose.msra.mxu0 0.0
    %3012 = vmatprep.subr.mxu0 0.0
    %3013 = vmatpush1.xpose.msra.mxu0 0.0
    %3014 = vmatprep.subr.mxu0 0.0
    %3015 = vmatpush1.xpose.msra.mxu0 0.0
    %3016 = vmatprep.subr.mxu0 0.0
    %3017 = vmatpush1.xpose.msra.mxu0 0.0
    %3018 = vmatprep.subr.mxu0 0.0
    %3019 = vmatpush1.xpose.msra.mxu0 0.0
    %3020 = vmatprep.subr.mxu0 0.0
    %3021 = vmatpush1.xpose.msra.mxu0 0.0
    %3022 = vmatprep.subr.mxu0 0.0
    %3023 = vmatpush1.xpose.msra.mxu0 0.0
    %3024 = vmatprep.subr.mxu0 0.0
    %3025 = vmatpush1.xpose.msra.mxu0 0.0
    %3026 = vmatprep.subr.mxu0 0.0
    %3027 = vmatpush1.xpose.msra.mxu0 0.0
    %3028 = vmatprep.mubr.f32.mxu0 0.0
    %3029 = vmatmul.mubr.f32.gmra.mrb[0].mxu0 %v2959
    %v3030 = vpop.f32.mrb[0].mxu0
    %v3031 = vadd.f32 0.0, %v3030
    %v3032 = vpop.f32.mrb[0].mxu0
    %3033 = vdwg.mxu0
    %v3035 = vsel %vm2045, %v862, 0
    %v3038 = vsel %vm2045, %v1454, 0
    %3040 = vmatprep.subr.mxu0 0.0
    %3041 = vmatpush1.xpose.msra.mxu0 %v3038
    %3042 = vmatprep.subr.mxu0 0.0
    %3043 = vmatpush1.xpose.msra.mxu0 0.0
    %3044 = vmatprep.subr.mxu0 0.0
    %3045 = vmatpush1.xpose.msra.mxu0 0.0
    %3046 = vmatprep.subr.mxu0 0.0
    %3047 = vmatpush1.xpose.msra.mxu0 0.0
    %3048 = vmatprep.subr.mxu0 0.0
    %3049 = vmatpush1.xpose.msra.mxu0 0.0
    %3050 = vmatprep.subr.mxu0 0.0
    %3051 = vmatpush1.xpose.msra.mxu0 0.0
    %3052 = vmatprep.subr.mxu0 0.0
    %3053 = vmatpush1.xpose.msra.mxu0 0.0
    %3054 = vmatprep.subr.mxu0 0.0
    %3055 = vmatpush1.xpose.msra.mxu0 0.0
    %3056 = vmatprep.subr.mxu0 0.0
    %3057 = vmatpush1.xpose.msra.mxu0 0.0
    %3058 = vmatprep.subr.mxu0 0.0
    %3059 = vmatpush1.xpose.msra.mxu0 0.0
    %3060 = vmatprep.subr.mxu0 0.0
    %3061 = vmatpush1.xpose.msra.mxu0 0.0
    %3062 = vmatprep.subr.mxu0 0.0
    %3063 = vmatpush1.xpose.msra.mxu0 0.0
    %3064 = vmatprep.subr.mxu0 0.0
    %3065 = vmatpush1.xpose.msra.mxu0 0.0
    %3066 = vmatprep.subr.mxu0 0.0
    %3067 = vmatpush1.xpose.msra.mxu0 0.0
    %3068 = vmatprep.subr.mxu0 0.0
    %3069 = vmatpush1.xpose.msra.mxu0 0.0
    %3070 = vmatprep.subr.mxu0 0.0
    %3071 = vmatpush1.xpose.msra.mxu0 0.0
    %3072 = vmatprep.subr.mxu0 0.0
    %3073 = vmatpush1.xpose.msra.mxu0 0.0
    %3074 = vmatprep.subr.mxu0 0.0
    %3075 = vmatpush1.xpose.msra.mxu0 0.0
    %3076 = vmatprep.subr.mxu0 0.0
    %3077 = vmatpush1.xpose.msra.mxu0 0.0
    %3078 = vmatprep.subr.mxu0 0.0
    %3079 = vmatpush1.xpose.msra.mxu0 0.0
    %3080 = vmatprep.subr.mxu0 0.0
    %3081 = vmatpush1.xpose.msra.mxu0 0.0
    %3082 = vmatprep.subr.mxu0 0.0
    %3083 = vmatpush1.xpose.msra.mxu0 0.0
    %3084 = vmatprep.subr.mxu0 0.0
    %3085 = vmatpush1.xpose.msra.mxu0 0.0
    %3086 = vmatprep.subr.mxu0 0.0
    %3087 = vmatpush1.xpose.msra.mxu0 0.0
    %3088 = vmatprep.subr.mxu0 0.0
    %3089 = vmatpush1.xpose.msra.mxu0 0.0
    %3090 = vmatprep.subr.mxu0 0.0
    %3091 = vmatpush1.xpose.msra.mxu0 0.0
    %3092 = vmatprep.subr.mxu0 0.0
    %3093 = vmatpush1.xpose.msra.mxu0 0.0
    %3094 = vmatprep.subr.mxu0 0.0
    %3095 = vmatpush1.xpose.msra.mxu0 0.0
    %3096 = vmatprep.subr.mxu0 0.0
    %3097 = vmatpush1.xpose.msra.mxu0 0.0
    %3098 = vmatprep.subr.mxu0 0.0
    %3099 = vmatpush1.xpose.msra.mxu0 0.0
    %3100 = vmatprep.subr.mxu0 0.0
    %3101 = vmatpush1.xpose.msra.mxu0 0.0
    %3102 = vmatprep.subr.mxu0 0.0
    %3103 = vmatpush1.xpose.msra.mxu0 0.0
    %3104 = vmatprep.mubr.f32.mxu0 0.0
    %3105 = vmatmul.mubr.f32.gmra.mrb[0].mxu0 %v3035
    %v3106 = vpop.f32.mrb[0].mxu0
    %v3107 = vadd.f32 0.0, %v3106
    %v3108 = vpop.f32.mrb[0].mxu0
    %3109 = vdwg.mxu0
    %v3111 = vsel %vm2045, %v863, 0
    %v3114 = vsel %vm2045, %v1455, 0
    %3116 = vmatprep.subr.mxu0 0.0
    %3117 = vmatpush1.xpose.msra.mxu0 %v3114
    %3118 = vmatprep.subr.mxu0 0.0
    %3119 = vmatpush1.xpose.msra.mxu0 0.0
    %3120 = vmatprep.subr.mxu0 0.0
    %3121 = vmatpush1.xpose.msra.mxu0 0.0
    %3122 = vmatprep.subr.mxu0 0.0
    %3123 = vmatpush1.xpose.msra.mxu0 0.0
    %3124 = vmatprep.subr.mxu0 0.0
    %3125 = vmatpush1.xpose.msra.mxu0 0.0
    %3126 = vmatprep.subr.mxu0 0.0
    %3127 = vmatpush1.xpose.msra.mxu0 0.0
    %3128 = vmatprep.subr.mxu0 0.0
    %3129 = vmatpush1.xpose.msra.mxu0 0.0
    %3130 = vmatprep.subr.mxu0 0.0
    %3131 = vmatpush1.xpose.msra.mxu0 0.0
    %3132 = vmatprep.subr.mxu0 0.0
    %3133 = vmatpush1.xpose.msra.mxu0 0.0
    %3134 = vmatprep.subr.mxu0 0.0
    %3135 = vmatpush1.xpose.msra.mxu0 0.0
    %3136 = vmatprep.subr.mxu0 0.0
    %3137 = vmatpush1.xpose.msra.mxu0 0.0
    %3138 = vmatprep.subr.mxu0 0.0
    %3139 = vmatpush1.xpose.msra.mxu0 0.0
    %3140 = vmatprep.subr.mxu0 0.0
    %3141 = vmatpush1.xpose.msra.mxu0 0.0
    %3142 = vmatprep.subr.mxu0 0.0
    %3143 = vmatpush1.xpose.msra.mxu0 0.0
    %3144 = vmatprep.subr.mxu0 0.0
    %3145 = vmatpush1.xpose.msra.mxu0 0.0
    %3146 = vmatprep.subr.mxu0 0.0
    %3147 = vmatpush1.xpose.msra.mxu0 0.0
    %3148 = vmatprep.subr.mxu0 0.0
    %3149 = vmatpush1.xpose.msra.mxu0 0.0
    %3150 = vmatprep.subr.mxu0 0.0
    %3151 = vmatpush1.xpose.msra.mxu0 0.0
    %3152 = vmatprep.subr.mxu0 0.0
    %3153 = vmatpush1.xpose.msra.mxu0 0.0
    %3154 = vmatprep.subr.mxu0 0.0
    %3155 = vmatpush1.xpose.msra.mxu0 0.0
    %3156 = vmatprep.subr.mxu0 0.0
    %3157 = vmatpush1.xpose.msra.mxu0 0.0
    %3158 = vmatprep.subr.mxu0 0.0
    %3159 = vmatpush1.xpose.msra.mxu0 0.0
    %3160 = vmatprep.subr.mxu0 0.0
    %3161 = vmatpush1.xpose.msra.mxu0 0.0
    %3162 = vmatprep.subr.mxu0 0.0
    %3163 = vmatpush1.xpose.msra.mxu0 0.0
    %3164 = vmatprep.subr.mxu0 0.0
    %3165 = vmatpush1.xpose.msra.mxu0 0.0
    %3166 = vmatprep.subr.mxu0 0.0
    %3167 = vmatpush1.xpose.msra.mxu0 0.0
    %3168 = vmatprep.subr.mxu0 0.0
    %3169 = vmatpush1.xpose.msra.mxu0 0.0
    %3170 = vmatprep.subr.mxu0 0.0
    %3171 = vmatpush1.xpose.msra.mxu0 0.0
    %3172 = vmatprep.subr.mxu0 0.0
    %3173 = vmatpush1.xpose.msra.mxu0 0.0
    %3174 = vmatprep.subr.mxu0 0.0
    %3175 = vmatpush1.xpose.msra.mxu0 0.0
    %3176 = vmatprep.subr.mxu0 0.0
    %3177 = vmatpush1.xpose.msra.mxu0 0.0
    %3178 = vmatprep.subr.mxu0 0.0
    %3179 = vmatpush1.xpose.msra.mxu0 0.0
    %3180 = vmatprep.mubr.f32.mxu0 0.0
    %3181 = vmatmul.mubr.f32.gmra.mrb[0].mxu0 %v3111
    %v3182 = vpop.f32.mrb[0].mxu0
    %v3183 = vadd.f32 0.0, %v3182
    %v3184 = vpop.f32.mrb[0].mxu0
    %3185 = vdwg.mxu0
    %v3187 = vsel %vm2045, %v864, 0
    %v3190 = vsel %vm2045, %v1456, 0
    %3192 = vmatprep.subr.mxu0 0.0
    %3193 = vmatpush1.xpose.msra.mxu0 %v3190
    %3194 = vmatprep.subr.mxu0 0.0
    %3195 = vmatpush1.xpose.msra.mxu0 0.0
    %3196 = vmatprep.subr.mxu0 0.0
    %3197 = vmatpush1.xpose.msra.mxu0 0.0
    %3198 = vmatprep.subr.mxu0 0.0
    %3199 = vmatpush1.xpose.msra.mxu0 0.0
    %3200 = vmatprep.subr.mxu0 0.0
    %3201 = vmatpush1.xpose.msra.mxu0 0.0
    %3202 = vmatprep.subr.mxu0 0.0
    %3203 = vmatpush1.xpose.msra.mxu0 0.0
    %3204 = vmatprep.subr.mxu0 0.0
    %3205 = vmatpush1.xpose.msra.mxu0 0.0
    %3206 = vmatprep.subr.mxu0 0.0
    %3207 = vmatpush1.xpose.msra.mxu0 0.0
    %3208 = vmatprep.subr.mxu0 0.0
    %3209 = vmatpush1.xpose.msra.mxu0 0.0
    %3210 = vmatprep.subr.mxu0 0.0
    %3211 = vmatpush1.xpose.msra.mxu0 0.0
    %3212 = vmatprep.subr.mxu0 0.0
    %3213 = vmatpush1.xpose.msra.mxu0 0.0
    %3214 = vmatprep.subr.mxu0 0.0
    %3215 = vmatpush1.xpose.msra.mxu0 0.0
    %3216 = vmatprep.subr.mxu0 0.0
    %3217 = vmatpush1.xpose.msra.mxu0 0.0
    %3218 = vmatprep.subr.mxu0 0.0
    %3219 = vmatpush1.xpose.msra.mxu0 0.0
    %3220 = vmatprep.subr.mxu0 0.0
    %3221 = vmatpush1.xpose.msra.mxu0 0.0
    %3222 = vmatprep.subr.mxu0 0.0
    %3223 = vmatpush1.xpose.msra.mxu0 0.0
    %3224 = vmatprep.subr.mxu0 0.0
    %3225 = vmatpush1.xpose.msra.mxu0 0.0
    %3226 = vmatprep.subr.mxu0 0.0
    %3227 = vmatpush1.xpose.msra.mxu0 0.0
    %3228 = vmatprep.subr.mxu0 0.0
    %3229 = vmatpush1.xpose.msra.mxu0 0.0
    %3230 = vmatprep.subr.mxu0 0.0
    %3231 = vmatpush1.xpose.msra.mxu0 0.0
    %3232 = vmatprep.subr.mxu0 0.0
    %3233 = vmatpush1.xpose.msra.mxu0 0.0
    %3234 = vmatprep.subr.mxu0 0.0
    %3235 = vmatpush1.xpose.msra.mxu0 0.0
    %3236 = vmatprep.subr.mxu0 0.0
    %3237 = vmatpush1.xpose.msra.mxu0 0.0
    %3238 = vmatprep.subr.mxu0 0.0
    %3239 = vmatpush1.xpose.msra.mxu0 0.0
    %3240 = vmatprep.subr.mxu0 0.0
    %3241 = vmatpush1.xpose.msra.mxu0 0.0
    %3242 = vmatprep.subr.mxu0 0.0
    %3243 = vmatpush1.xpose.msra.mxu0 0.0
    %3244 = vmatprep.subr.mxu0 0.0
    %3245 = vmatpush1.xpose.msra.mxu0 0.0
    %3246 = vmatprep.subr.mxu0 0.0
    %3247 = vmatpush1.xpose.msra.mxu0 0.0
    %3248 = vmatprep.subr.mxu0 0.0
    %3249 = vmatpush1.xpose.msra.mxu0 0.0
    %3250 = vmatprep.subr.mxu0 0.0
    %3251 = vmatpush1.xpose.msra.mxu0 0.0
    %3252 = vmatprep.subr.mxu0 0.0
    %3253 = vmatpush1.xpose.msra.mxu0 0.0
    %3254 = vmatprep.subr.mxu0 0.0
    %3255 = vmatpush1.xpose.msra.mxu0 0.0
    %3256 = vmatprep.mubr.f32.mxu0 0.0
    %3257 = vmatmul.mubr.f32.gmra.mrb[0].mxu0 %v3187
    %v3258 = vpop.f32.mrb[0].mxu0
    %v3259 = vadd.f32 0.0, %v3258
    %v3260 = vpop.f32.mrb[0].mxu0
    %3261 = vdwg.mxu0
    %v3262 = vsel %vm2045, %v2119, -inf
    %3263 = vmax.xlane.f32.xlu0 %v3262
    %v3264 = vpop.xlane.xlu0 %3263
    %v3265 = vsel %vm2045, %v2195, -inf
    %3266 = vmax.xlane.f32.xlu0 %v3265
    %v3267 = vpop.xlane.xlu0 %3266
    %v3268 = vsel %vm2045, %v2271, -inf
    %3269 = vmax.xlane.f32.xlu0 %v3268
    %v3270 = vpop.xlane.xlu0 %3269
    %v3271 = vsel %vm2045, %v2347, -inf
    %3272 = vmax.xlane.f32.xlu0 %v3271
    %v3273 = vpop.xlane.xlu0 %3272
    %v3274 = vsel %vm2045, %v2423, -inf
    %3275 = vmax.xlane.f32.xlu0 %v3274
    %v3276 = vpop.xlane.xlu0 %3275
    %v3277 = vsel %vm2045, %v2499, -inf
    %3278 = vmax.xlane.f32.xlu0 %v3277
    %v3279 = vpop.xlane.xlu0 %3278
    %v3280 = vsel %vm2045, %v2575, -inf
    %3281 = vmax.xlane.f32.xlu0 %v3280
    %v3282 = vpop.xlane.xlu0 %3281
    %v3283 = vsel %vm2045, %v2651, -inf
    %3284 = vmax.xlane.f32.xlu0 %v3283
    %v3285 = vpop.xlane.xlu0 %3284
    %v3286 = vsel %vm2045, %v2727, -inf
    %3287 = vmax.xlane.f32.xlu0 %v3286
    %v3288 = vpop.xlane.xlu0 %3287
    %v3289 = vsel %vm2045, %v2803, -inf
    %3290 = vmax.xlane.f32.xlu0 %v3289
    %v3291 = vpop.xlane.xlu0 %3290
    %v3292 = vsel %vm2045, %v2879, -inf
    %3293 = vmax.xlane.f32.xlu0 %v3292
    %v3294 = vpop.xlane.xlu0 %3293
    %v3295 = vsel %vm2045, %v2955, -inf
    %3296 = vmax.xlane.f32.xlu0 %v3295
    %v3297 = vpop.xlane.xlu0 %3296
    %v3298 = vsel %vm2045, %v3031, -inf
    %3299 = vmax.xlane.f32.xlu0 %v3298
    %v3300 = vpop.xlane.xlu0 %3299
    %v3301 = vsel %vm2045, %v3107, -inf
    %3302 = vmax.xlane.f32.xlu0 %v3301
    %v3303 = vpop.xlane.xlu0 %3302
    %v3304 = vsel %vm2045, %v3183, -inf
    %3305 = vmax.xlane.f32.xlu0 %v3304
    %v3306 = vpop.xlane.xlu0 %3305
    %v3307 = vsel %vm2045, %v3259, -inf
    %3308 = vmax.xlane.f32.xlu0 %v3307
    %v3309 = vpop.xlane.xlu0 %3308
    %v3310 = vsub.f32 %v2119, %v3264
    %v3311 = vsub.f32 %v2195, %v3267
    %v3312 = vsub.f32 %v2271, %v3270
    %v3313 = vsub.f32 %v2347, %v3273
    %v3314 = vsub.f32 %v2423, %v3276
    %v3315 = vsub.f32 %v2499, %v3279
    %v3316 = vsub.f32 %v2575, %v3282
    %v3317 = vsub.f32 %v2651, %v3285
    %v3318 = vsub.f32 %v2727, %v3288
    %v3319 = vsub.f32 %v2803, %v3291
    %v3320 = vsub.f32 %v2879, %v3294
    %v3321 = vsub.f32 %v2955, %v3297
    %v3322 = vsub.f32 %v3031, %v3300
    %v3323 = vsub.f32 %v3107, %v3303
    %v3324 = vsub.f32 %v3183, %v3306
    %v3325 = vsub.f32 %v3259, %v3309
    %v3326 = vmul.f32 %v3310, 1.442695
    %v3327 = vpow.pop %v3326
    %v3328 = vmul.f32 %v3311, 1.442695
    %v3329 = vpow.pop %v3328
    %v3330 = vmul.f32 %v3312, 1.442695
    %v3331 = vpow.pop %v3330
    %v3332 = vmul.f32 %v3313, 1.442695
    %v3333 = vpow.pop %v3332
    %v3334 = vmul.f32 %v3314, 1.442695
    %v3335 = vpow.pop %v3334
    %v3336 = vmul.f32 %v3315, 1.442695
    %v3337 = vpow.pop %v3336
    %v3338 = vmul.f32 %v3316, 1.442695
    %v3339 = vpow.pop %v3338
    %v3340 = vmul.f32 %v3317, 1.442695
    %v3341 = vpow.pop %v3340
    %v3342 = vmul.f32 %v3318, 1.442695
    %v3343 = vpow.pop %v3342
    %v3344 = vmul.f32 %v3319, 1.442695
    %v3345 = vpow.pop %v3344
    %v3346 = vmul.f32 %v3320, 1.442695
    %v3347 = vpow.pop %v3346
    %v3348 = vmul.f32 %v3321, 1.442695
    %v3349 = vpow.pop %v3348
    %v3350 = vmul.f32 %v3322, 1.442695
    %v3351 = vpow.pop %v3350
    %v3352 = vmul.f32 %v3323, 1.442695
    %v3353 = vpow.pop %v3352
    %v3354 = vmul.f32 %v3324, 1.442695
    %v3355 = vpow.pop %v3354
    %v3356 = vmul.f32 %v3325, 1.442695
    %v3357 = vpow.pop %v3356
    %v3358 = vsel %vm2045, %v3327, 0.0
    %3359 = vadd.xlane.f32.xlu0 %v3358
    %v3360 = vpop.xlane.xlu0 %3359
    %v3361 = vsel %vm2045, %v3329, 0.0
    %3362 = vadd.xlane.f32.xlu0 %v3361
    %v3363 = vpop.xlane.xlu0 %3362
    %v3364 = vsel %vm2045, %v3331, 0.0
    %3365 = vadd.xlane.f32.xlu0 %v3364
    %v3366 = vpop.xlane.xlu0 %3365
    %v3367 = vsel %vm2045, %v3333, 0.0
    %3368 = vadd.xlane.f32.xlu0 %v3367
    %v3369 = vpop.xlane.xlu0 %3368
    %v3370 = vsel %vm2045, %v3335, 0.0
    %3371 = vadd.xlane.f32.xlu0 %v3370
    %v3372 = vpop.xlane.xlu0 %3371
    %v3373 = vsel %vm2045, %v3337, 0.0
    %3374 = vadd.xlane.f32.xlu0 %v3373
    %v3375 = vpop.xlane.xlu0 %3374
    %v3376 = vsel %vm2045, %v3339, 0.0
    %3377 = vadd.xlane.f32.xlu0 %v3376
    %v3378 = vpop.xlane.xlu0 %3377
    %v3379 = vsel %vm2045, %v3341, 0.0
    %3380 = vadd.xlane.f32.xlu0 %v3379
    %v3381 = vpop.xlane.xlu0 %3380
    %v3382 = vsel %vm2045, %v3343, 0.0
    %3383 = vadd.xlane.f32.xlu0 %v3382
    %v3384 = vpop.xlane.xlu0 %3383
    %v3385 = vsel %vm2045, %v3345, 0.0
    %3386 = vadd.xlane.f32.xlu0 %v3385
    %v3387 = vpop.xlane.xlu0 %3386
    %v3388 = vsel %vm2045, %v3347, 0.0
    %3389 = vadd.xlane.f32.xlu0 %v3388
    %v3390 = vpop.xlane.xlu0 %3389
    %v3391 = vsel %vm2045, %v3349, 0.0
    %3392 = vadd.xlane.f32.xlu0 %v3391
    %v3393 = vpop.xlane.xlu0 %3392
    %v3394 = vsel %vm2045, %v3351, 0.0
    %3395 = vadd.xlane.f32.xlu0 %v3394
    %v3396 = vpop.xlane.xlu0 %3395
    %v3397 = vsel %vm2045, %v3353, 0.0
    %3398 = vadd.xlane.f32.xlu0 %v3397
    %v3399 = vpop.xlane.xlu0 %3398
    %v3400 = vsel %vm2045, %v3355, 0.0
    %3401 = vadd.xlane.f32.xlu0 %v3400
    %v3402 = vpop.xlane.xlu0 %3401
    %v3403 = vsel %vm2045, %v3357, 0.0
    %3404 = vadd.xlane.f32.xlu0 %v3403
    %v3405 = vpop.xlane.xlu0 %3404
    %v3406 = vrcp.pop %v3360
    %v3407 = vmul.f32 %v3327, %v3406
    %v3408 = vrcp.pop %v3363
    %v3409 = vmul.f32 %v3329, %v3408
    %v3410 = vrcp.pop %v3366
    %v3411 = vmul.f32 %v3331, %v3410
    %v3412 = vrcp.pop %v3369
    %v3413 = vmul.f32 %v3333, %v3412
    %v3414 = vrcp.pop %v3372
    %v3415 = vmul.f32 %v3335, %v3414
    %v3416 = vrcp.pop %v3375
    %v3417 = vmul.f32 %v3337, %v3416
    %v3418 = vrcp.pop %v3378
    %v3419 = vmul.f32 %v3339, %v3418
    %v3420 = vrcp.pop %v3381
    %v3421 = vmul.f32 %v3341, %v3420
    %v3422 = vrcp.pop %v3384
    %v3423 = vmul.f32 %v3343, %v3422
    %v3424 = vrcp.pop %v3387
    %v3425 = vmul.f32 %v3345, %v3424
    %v3426 = vrcp.pop %v3390
    %v3427 = vmul.f32 %v3347, %v3426
    %v3428 = vrcp.pop %v3393
    %v3429 = vmul.f32 %v3349, %v3428
    %v3430 = vrcp.pop %v3396
    %v3431 = vmul.f32 %v3351, %v3430
    %v3432 = vrcp.pop %v3399
    %v3433 = vmul.f32 %v3353, %v3432
    %v3434 = vrcp.pop %v3402
    %v3435 = vmul.f32 %v3355, %v3434
    %v3436 = vrcp.pop %v3405
    %v3437 = vmul.f32 %v3357, %v3436
    %v3439 = vsel %vm2045, %v3407, 0
    %3441 = vmatprep.subr.mxu0 0.0
    %3442 = vmatpush1.msra.mxu0 %v1901
    %3443 = vmatprep.subr.mxu0 0.0
    %3444 = vmatpush1.msra.mxu0 0.0
    %3445 = vmatprep.subr.mxu0 0.0
    %3446 = vmatpush1.msra.mxu0 0.0
    %3447 = vmatprep.subr.mxu0 0.0
    %3448 = vmatpush1.msra.mxu0 0.0
    %3449 = vmatprep.subr.mxu0 0.0
    %3450 = vmatpush1.msra.mxu0 0.0
    %3451 = vmatprep.subr.mxu0 0.0
    %3452 = vmatpush1.msra.mxu0 0.0
    %3453 = vmatprep.subr.mxu0 0.0
    %3454 = vmatpush1.msra.mxu0 0.0
    %3455 = vmatprep.subr.mxu0 0.0
    %3456 = vmatpush1.msra.mxu0 0.0
    %3457 = vmatprep.subr.mxu0 0.0
    %3458 = vmatpush1.msra.mxu0 0.0
    %3459 = vmatprep.subr.mxu0 0.0
    %3460 = vmatpush1.msra.mxu0 0.0
    %3461 = vmatprep.subr.mxu0 0.0
    %3462 = vmatpush1.msra.mxu0 0.0
    %3463 = vmatprep.subr.mxu0 0.0
    %3464 = vmatpush1.msra.mxu0 0.0
    %3465 = vmatprep.subr.mxu0 0.0
    %3466 = vmatpush1.msra.mxu0 0.0
    %3467 = vmatprep.subr.mxu0 0.0
    %3468 = vmatpush1.msra.mxu0 0.0
    %3469 = vmatprep.subr.mxu0 0.0
    %3470 = vmatpush1.msra.mxu0 0.0
    %3471 = vmatprep.subr.mxu0 0.0
    %3472 = vmatpush1.msra.mxu0 0.0
    %3473 = vmatprep.subr.mxu0 0.0
    %3474 = vmatpush1.msra.mxu0 0.0
    %3475 = vmatprep.subr.mxu0 0.0
    %3476 = vmatpush1.msra.mxu0 0.0
    %3477 = vmatprep.subr.mxu0 0.0
    %3478 = vmatpush1.msra.mxu0 0.0
    %3479 = vmatprep.subr.mxu0 0.0
    %3480 = vmatpush1.msra.mxu0 0.0
    %3481 = vmatprep.subr.mxu0 0.0
    %3482 = vmatpush1.msra.mxu0 0.0
    %3483 = vmatprep.subr.mxu0 0.0
    %3484 = vmatpush1.msra.mxu0 0.0
    %3485 = vmatprep.subr.mxu0 0.0
    %3486 = vmatpush1.msra.mxu0 0.0
    %3487 = vmatprep.subr.mxu0 0.0
    %3488 = vmatpush1.msra.mxu0 0.0
    %3489 = vmatprep.subr.mxu0 0.0
    %3490 = vmatpush1.msra.mxu0 0.0
    %3491 = vmatprep.subr.mxu0 0.0
    %3492 = vmatpush1.msra.mxu0 0.0
    %3493 = vmatprep.subr.mxu0 0.0
    %3494 = vmatpush1.msra.mxu0 0.0
    %3495 = vmatprep.subr.mxu0 0.0
    %3496 = vmatpush1.msra.mxu0 0.0
    %3497 = vmatprep.subr.mxu0 0.0
    %3498 = vmatpush1.msra.mxu0 0.0
    %3499 = vmatprep.subr.mxu0 0.0
    %3500 = vmatpush1.msra.mxu0 0.0
    %3501 = vmatprep.subr.mxu0 0.0
    %3502 = vmatpush1.msra.mxu0 0.0
    %3503 = vmatprep.subr.mxu0 0.0
    %3504 = vmatpush1.msra.mxu0 0.0
    %3505 = vmatprep.mubr.f32.mxu0 0.0
    %3506 = vmatmul.mubr.f32.gmra.mrb[0].mxu0 %v3439
    %v3507 = vpop.f32.mrb[0].mxu0
    %v3508 = vadd.f32 0.0, %v3507
    %v3509 = vpop.f32.mrb[0].mxu0
    %3510 = vdwg.mxu0
    %v3512 = vsel %vm2045, %v3409, 0
    %3514 = vmatprep.subr.mxu0 0.0
    %3515 = vmatpush1.msra.mxu0 %v1902
    %3516 = vmatprep.subr.mxu0 0.0
    %3517 = vmatpush1.msra.mxu0 0.0
    %3518 = vmatprep.subr.mxu0 0.0
    %3519 = vmatpush1.msra.mxu0 0.0
    %3520 = vmatprep.subr.mxu0 0.0
    %3521 = vmatpush1.msra.mxu0 0.0
    %3522 = vmatprep.subr.mxu0 0.0
    %3523 = vmatpush1.msra.mxu0 0.0
    %3524 = vmatprep.subr.mxu0 0.0
    %3525 = vmatpush1.msra.mxu0 0.0
    %3526 = vmatprep.subr.mxu0 0.0
    %3527 = vmatpush1.msra.mxu0 0.0
    %3528 = vmatprep.subr.mxu0 0.0
    %3529 = vmatpush1.msra.mxu0 0.0
    %3530 = vmatprep.subr.mxu0 0.0
    %3531 = vmatpush1.msra.mxu0 0.0
    %3532 = vmatprep.subr.mxu0 0.0
    %3533 = vmatpush1.msra.mxu0 0.0
    %3534 = vmatprep.subr.mxu0 0.0
    %3535 = vmatpush1.msra.mxu0 0.0
    %3536 = vmatprep.subr.mxu0 0.0
    %3537 = vmatpush1.msra.mxu0 0.0
    %3538 = vmatprep.subr.mxu0 0.0
    %3539 = vmatpush1.msra.mxu0 0.0
    %3540 = vmatprep.subr.mxu0 0.0
    %3541 = vmatpush1.msra.mxu0 0.0
    %3542 = vmatprep.subr.mxu0 0.0
    %3543 = vmatpush1.msra.mxu0 0.0
    %3544 = vmatprep.subr.mxu0 0.0
    %3545 = vmatpush1.msra.mxu0 0.0
    %3546 = vmatprep.subr.mxu0 0.0
    %3547 = vmatpush1.msra.mxu0 0.0
    %3548 = vmatprep.subr.mxu0 0.0
    %3549 = vmatpush1.msra.mxu0 0.0
    %3550 = vmatprep.subr.mxu0 0.0
    %3551 = vmatpush1.msra.mxu0 0.0
    %3552 = vmatprep.subr.mxu0 0.0
    %3553 = vmatpush1.msra.mxu0 0.0
    %3554 = vmatprep.subr.mxu0 0.0
    %3555 = vmatpush1.msra.mxu0 0.0
    %3556 = vmatprep.subr.mxu0 0.0
    %3557 = vmatpush1.msra.mxu0 0.0
    %3558 = vmatprep.subr.mxu0 0.0
    %3559 = vmatpush1.msra.mxu0 0.0
    %3560 = vmatprep.subr.mxu0 0.0
    %3561 = vmatpush1.msra.mxu0 0.0
    %3562 = vmatprep.subr.mxu0 0.0
    %3563 = vmatpush1.msra.mxu0 0.0
    %3564 = vmatprep.subr.mxu0 0.0
    %3565 = vmatpush1.msra.mxu0 0.0
    %3566 = vmatprep.subr.mxu0 0.0
    %3567 = vmatpush1.msra.mxu0 0.0
    %3568 = vmatprep.subr.mxu0 0.0
    %3569 = vmatpush1.msra.mxu0 0.0
    %3570 = vmatprep.subr.mxu0 0.0
    %3571 = vmatpush1.msra.mxu0 0.0
    %3572 = vmatprep.subr.mxu0 0.0
    %3573 = vmatpush1.msra.mxu0 0.0
    %3574 = vmatprep.subr.mxu0 0.0
    %3575 = vmatpush1.msra.mxu0 0.0
    %3576 = vmatprep.subr.mxu0 0.0
    %3577 = vmatpush1.msra.mxu0 0.0
    %3578 = vmatprep.mubr.f32.mxu0 0.0
    %3579 = vmatmul.mubr.f32.gmra.mrb[0].mxu0 %v3512
    %v3580 = vpop.f32.mrb[0].mxu0
    %v3581 = vadd.f32 0.0, %v3580
    %v3582 = vpop.f32.mrb[0].mxu0
    %3583 = vdwg.mxu0
    %v3585 = vsel %vm2045, %v3411, 0
    %3587 = vmatprep.subr.mxu0 0.0
    %3588 = vmatpush1.msra.mxu0 %v1903
    %3589 = vmatprep.subr.mxu0 0.0
    %3590 = vmatpush1.msra.mxu0 0.0
    %3591 = vmatprep.subr.mxu0 0.0
    %3592 = vmatpush1.msra.mxu0 0.0
    %3593 = vmatprep.subr.mxu0 0.0
    %3594 = vmatpush1.msra.mxu0 0.0
    %3595 = vmatprep.subr.mxu0 0.0
    %3596 = vmatpush1.msra.mxu0 0.0
    %3597 = vmatprep.subr.mxu0 0.0
    %3598 = vmatpush1.msra.mxu0 0.0
    %3599 = vmatprep.subr.mxu0 0.0
    %3600 = vmatpush1.msra.mxu0 0.0
    %3601 = vmatprep.subr.mxu0 0.0
    %3602 = vmatpush1.msra.mxu0 0.0
    %3603 = vmatprep.subr.mxu0 0.0
    %3604 = vmatpush1.msra.mxu0 0.0
    %3605 = vmatprep.subr.mxu0 0.0
    %3606 = vmatpush1.msra.mxu0 0.0
    %3607 = vmatprep.subr.mxu0 0.0
    %3608 = vmatpush1.msra.mxu0 0.0
    %3609 = vmatprep.subr.mxu0 0.0
    %3610 = vmatpush1.msra.mxu0 0.0
    %3611 = vmatprep.subr.mxu0 0.0
    %3612 = vmatpush1.msra.mxu0 0.0
    %3613 = vmatprep.subr.mxu0 0.0
    %3614 = vmatpush1.msra.mxu0 0.0
    %3615 = vmatprep.subr.mxu0 0.0
    %3616 = vmatpush1.msra.mxu0 0.0
    %3617 = vmatprep.subr.mxu0 0.0
    %3618 = vmatpush1.msra.mxu0 0.0
    %3619 = vmatprep.subr.mxu0 0.0
    %3620 = vmatpush1.msra.mxu0 0.0
    %3621 = vmatprep.subr.mxu0 0.0
    %3622 = vmatpush1.msra.mxu0 0.0
    %3623 = vmatprep.subr.mxu0 0.0
    %3624 = vmatpush1.msra.mxu0 0.0
    %3625 = vmatprep.subr.mxu0 0.0
    %3626 = vmatpush1.msra.mxu0 0.0
    %3627 = vmatprep.subr.mxu0 0.0
    %3628 = vmatpush1.msra.mxu0 0.0
    %3629 = vmatprep.subr.mxu0 0.0
    %3630 = vmatpush1.msra.mxu0 0.0
    %3631 = vmatprep.subr.mxu0 0.0
    %3632 = vmatpush1.msra.mxu0 0.0
    %3633 = vmatprep.subr.mxu0 0.0
    %3634 = vmatpush1.msra.mxu0 0.0
    %3635 = vmatprep.subr.mxu0 0.0
    %3636 = vmatpush1.msra.mxu0 0.0
    %3637 = vmatprep.subr.mxu0 0.0
    %3638 = vmatpush1.msra.mxu0 0.0
    %3639 = vmatprep.subr.mxu0 0.0
    %3640 = vmatpush1.msra.mxu0 0.0
    %3641 = vmatprep.subr.mxu0 0.0
    %3642 = vmatpush1.msra.mxu0 0.0
    %3643 = vmatprep.subr.mxu0 0.0
    %3644 = vmatpush1.msra.mxu0 0.0
    %3645 = vmatprep.subr.mxu0 0.0
    %3646 = vmatpush1.msra.mxu0 0.0
    %3647 = vmatprep.subr.mxu0 0.0
    %3648 = vmatpush1.msra.mxu0 0.0
    %3649 = vmatprep.subr.mxu0 0.0
    %3650 = vmatpush1.msra.mxu0 0.0
    %3651 = vmatprep.mubr.f32.mxu0 0.0
    %3652 = vmatmul.mubr.f32.gmra.mrb[0].mxu0 %v3585
    %v3653 = vpop.f32.mrb[0].mxu0
    %v3654 = vadd.f32 0.0, %v3653
    %v3655 = vpop.f32.mrb[0].mxu0
    %3656 = vdwg.mxu0
    %v3658 = vsel %vm2045, %v3413, 0
    %3660 = vmatprep.subr.mxu0 0.0
    %3661 = vmatpush1.msra.mxu0 %v1904
    %3662 = vmatprep.subr.mxu0 0.0
    %3663 = vmatpush1.msra.mxu0 0.0
    %3664 = vmatprep.subr.mxu0 0.0
    %3665 = vmatpush1.msra.mxu0 0.0
    %3666 = vmatprep.subr.mxu0 0.0
    %3667 = vmatpush1.msra.mxu0 0.0
    %3668 = vmatprep.subr.mxu0 0.0
    %3669 = vmatpush1.msra.mxu0 0.0
    %3670 = vmatprep.subr.mxu0 0.0
    %3671 = vmatpush1.msra.mxu0 0.0
    %3672 = vmatprep.subr.mxu0 0.0
    %3673 = vmatpush1.msra.mxu0 0.0
    %3674 = vmatprep.subr.mxu0 0.0
    %3675 = vmatpush1.msra.mxu0 0.0
    %3676 = vmatprep.subr.mxu0 0.0
    %3677 = vmatpush1.msra.mxu0 0.0
    %3678 = vmatprep.subr.mxu0 0.0
    %3679 = vmatpush1.msra.mxu0 0.0
    %3680 = vmatprep.subr.mxu0 0.0
    %3681 = vmatpush1.msra.mxu0 0.0
    %3682 = vmatprep.subr.mxu0 0.0
    %3683 = vmatpush1.msra.mxu0 0.0
    %3684 = vmatprep.subr.mxu0 0.0
    %3685 = vmatpush1.msra.mxu0 0.0
    %3686 = vmatprep.subr.mxu0 0.0
    %3687 = vmatpush1.msra.mxu0 0.0
    %3688 = vmatprep.subr.mxu0 0.0
    %3689 = vmatpush1.msra.mxu0 0.0
    %3690 = vmatprep.subr.mxu0 0.0
    %3691 = vmatpush1.msra.mxu0 0.0
    %3692 = vmatprep.subr.mxu0 0.0
    %3693 = vmatpush1.msra.mxu0 0.0
    %3694 = vmatprep.subr.mxu0 0.0
    %3695 = vmatpush1.msra.mxu0 0.0
    %3696 = vmatprep.subr.mxu0 0.0
    %3697 = vmatpush1.msra.mxu0 0.0
    %3698 = vmatprep.subr.mxu0 0.0
    %3699 = vmatpush1.msra.mxu0 0.0
    %3700 = vmatprep.subr.mxu0 0.0
    %3701 = vmatpush1.msra.mxu0 0.0
    %3702 = vmatprep.subr.mxu0 0.0
    %3703 = vmatpush1.msra.mxu0 0.0
    %3704 = vmatprep.subr.mxu0 0.0
    %3705 = vmatpush1.msra.mxu0 0.0
    %3706 = vmatprep.subr.mxu0 0.0
    %3707 = vmatpush1.msra.mxu0 0.0
    %3708 = vmatprep.subr.mxu0 0.0
    %3709 = vmatpush1.msra.mxu0 0.0
    %3710 = vmatprep.subr.mxu0 0.0
    %3711 = vmatpush1.msra.mxu0 0.0
    %3712 = vmatprep.subr.mxu0 0.0
    %3713 = vmatpush1.msra.mxu0 0.0
    %3714 = vmatprep.subr.mxu0 0.0
    %3715 = vmatpush1.msra.mxu0 0.0
    %3716 = vmatprep.subr.mxu0 0.0
    %3717 = vmatpush1.msra.mxu0 0.0
    %3718 = vmatprep.subr.mxu0 0.0
    %3719 = vmatpush1.msra.mxu0 0.0
    %3720 = vmatprep.subr.mxu0 0.0
    %3721 = vmatpush1.msra.mxu0 0.0
    %3722 = vmatprep.subr.mxu0 0.0
    %3723 = vmatpush1.msra.mxu0 0.0
    %3724 = vmatprep.mubr.f32.mxu0 0.0
    %3725 = vmatmul.mubr.f32.gmra.mrb[0].mxu0 %v3658
    %v3726 = vpop.f32.mrb[0].mxu0
    %v3727 = vadd.f32 0.0, %v3726
    %v3728 = vpop.f32.mrb[0].mxu0
    %3729 = vdwg.mxu0
    %v3731 = vsel %vm2045, %v3415, 0
    %3733 = vmatprep.subr.mxu0 0.0
    %3734 = vmatpush1.msra.mxu0 %v1905
    %3735 = vmatprep.subr.mxu0 0.0
    %3736 = vmatpush1.msra.mxu0 0.0
    %3737 = vmatprep.subr.mxu0 0.0
    %3738 = vmatpush1.msra.mxu0 0.0
    %3739 = vmatprep.subr.mxu0 0.0
    %3740 = vmatpush1.msra.mxu0 0.0
    %3741 = vmatprep.subr.mxu0 0.0
    %3742 = vmatpush1.msra.mxu0 0.0
    %3743 = vmatprep.subr.mxu0 0.0
    %3744 = vmatpush1.msra.mxu0 0.0
    %3745 = vmatprep.subr.mxu0 0.0
    %3746 = vmatpush1.msra.mxu0 0.0
    %3747 = vmatprep.subr.mxu0 0.0
    %3748 = vmatpush1.msra.mxu0 0.0
    %3749 = vmatprep.subr.mxu0 0.0
    %3750 = vmatpush1.msra.mxu0 0.0
    %3751 = vmatprep.subr.mxu0 0.0
    %3752 = vmatpush1.msra.mxu0 0.0
    %3753 = vmatprep.subr.mxu0 0.0
    %3754 = vmatpush1.msra.mxu0 0.0
    %3755 = vmatprep.subr.mxu0 0.0
    %3756 = vmatpush1.msra.mxu0 0.0
    %3757 = vmatprep.subr.mxu0 0.0
    %3758 = vmatpush1.msra.mxu0 0.0
    %3759 = vmatprep.subr.mxu0 0.0
    %3760 = vmatpush1.msra.mxu0 0.0
    %3761 = vmatprep.subr.mxu0 0.0
    %3762 = vmatpush1.msra.mxu0 0.0
    %3763 = vmatprep.subr.mxu0 0.0
    %3764 = vmatpush1.msra.mxu0 0.0
    %3765 = vmatprep.subr.mxu0 0.0
    %3766 = vmatpush1.msra.mxu0 0.0
    %3767 = vmatprep.subr.mxu0 0.0
    %3768 = vmatpush1.msra.mxu0 0.0
    %3769 = vmatprep.subr.mxu0 0.0
    %3770 = vmatpush1.msra.mxu0 0.0
    %3771 = vmatprep.subr.mxu0 0.0
    %3772 = vmatpush1.msra.mxu0 0.0
    %3773 = vmatprep.subr.mxu0 0.0
    %3774 = vmatpush1.msra.mxu0 0.0
    %3775 = vmatprep.subr.mxu0 0.0
    %3776 = vmatpush1.msra.mxu0 0.0
    %3777 = vmatprep.subr.mxu0 0.0
    %3778 = vmatpush1.msra.mxu0 0.0
    %3779 = vmatprep.subr.mxu0 0.0
    %3780 = vmatpush1.msra.mxu0 0.0
    %3781 = vmatprep.subr.mxu0 0.0
    %3782 = vmatpush1.msra.mxu0 0.0
    %3783 = vmatprep.subr.mxu0 0.0
    %3784 = vmatpush1.msra.mxu0 0.0
    %3785 = vmatprep.subr.mxu0 0.0
    %3786 = vmatpush1.msra.mxu0 0.0
    %3787 = vmatprep.subr.mxu0 0.0
    %3788 = vmatpush1.msra.mxu0 0.0
    %3789 = vmatprep.subr.mxu0 0.0
    %3790 = vmatpush1.msra.mxu0 0.0
    %3791 = vmatprep.subr.mxu0 0.0
    %3792 = vmatpush1.msra.mxu0 0.0
    %3793 = vmatprep.subr.mxu0 0.0
    %3794 = vmatpush1.msra.mxu0 0.0
    %3795 = vmatprep.subr.mxu0 0.0
    %3796 = vmatpush1.msra.mxu0 0.0
    %3797 = vmatprep.mubr.f32.mxu0 0.0
    %3798 = vmatmul.mubr.f32.gmra.mrb[0].mxu0 %v3731
    %v3799 = vpop.f32.mrb[0].mxu0
    %v3800 = vadd.f32 0.0, %v3799
    %v3801 = vpop.f32.mrb[0].mxu0
    %3802 = vdwg.mxu0
    %v3804 = vsel %vm2045, %v3417, 0
    %3806 = vmatprep.subr.mxu0 0.0
    %3807 = vmatpush1.msra.mxu0 %v1906
    %3808 = vmatprep.subr.mxu0 0.0
    %3809 = vmatpush1.msra.mxu0 0.0
    %3810 = vmatprep.subr.mxu0 0.0
    %3811 = vmatpush1.msra.mxu0 0.0
    %3812 = vmatprep.subr.mxu0 0.0
    %3813 = vmatpush1.msra.mxu0 0.0
    %3814 = vmatprep.subr.mxu0 0.0
    %3815 = vmatpush1.msra.mxu0 0.0
    %3816 = vmatprep.subr.mxu0 0.0
    %3817 = vmatpush1.msra.mxu0 0.0
    %3818 = vmatprep.subr.mxu0 0.0
    %3819 = vmatpush1.msra.mxu0 0.0
    %3820 = vmatprep.subr.mxu0 0.0
    %3821 = vmatpush1.msra.mxu0 0.0
    %3822 = vmatprep.subr.mxu0 0.0
    %3823 = vmatpush1.msra.mxu0 0.0
    %3824 = vmatprep.subr.mxu0 0.0
    %3825 = vmatpush1.msra.mxu0 0.0
    %3826 = vmatprep.subr.mxu0 0.0
    %3827 = vmatpush1.msra.mxu0 0.0
    %3828 = vmatprep.subr.mxu0 0.0
    %3829 = vmatpush1.msra.mxu0 0.0
    %3830 = vmatprep.subr.mxu0 0.0
    %3831 = vmatpush1.msra.mxu0 0.0
    %3832 = vmatprep.subr.mxu0 0.0
    %3833 = vmatpush1.msra.mxu0 0.0
    %3834 = vmatprep.subr.mxu0 0.0
    %3835 = vmatpush1.msra.mxu0 0.0
    %3836 = vmatprep.subr.mxu0 0.0
    %3837 = vmatpush1.msra.mxu0 0.0
    %3838 = vmatprep.subr.mxu0 0.0
    %3839 = vmatpush1.msra.mxu0 0.0
    %3840 = vmatprep.subr.mxu0 0.0
    %3841 = vmatpush1.msra.mxu0 0.0
    %3842 = vmatprep.subr.mxu0 0.0
    %3843 = vmatpush1.msra.mxu0 0.0
    %3844 = vmatprep.subr.mxu0 0.0
    %3845 = vmatpush1.msra.mxu0 0.0
    %3846 = vmatprep.subr.mxu0 0.0
    %3847 = vmatpush1.msra.mxu0 0.0
    %3848 = vmatprep.subr.mxu0 0.0
    %3849 = vmatpush1.msra.mxu0 0.0
    %3850 = vmatprep.subr.mxu0 0.0
    %3851 = vmatpush1.msra.mxu0 0.0
    %3852 = vmatprep.subr.mxu0 0.0
    %3853 = vmatpush1.msra.mxu0 0.0
    %3854 = vmatprep.subr.mxu0 0.0
    %3855 = vmatpush1.msra.mxu0 0.0
    %3856 = vmatprep.subr.mxu0 0.0
    %3857 = vmatpush1.msra.mxu0 0.0
    %3858 = vmatprep.subr.mxu0 0.0
    %3859 = vmatpush1.msra.mxu0 0.0
    %3860 = vmatprep.subr.mxu0 0.0
    %3861 = vmatpush1.msra.mxu0 0.0
    %3862 = vmatprep.subr.mxu0 0.0
    %3863 = vmatpush1.msra.mxu0 0.0
    %3864 = vmatprep.subr.mxu0 0.0
    %3865 = vmatpush1.msra.mxu0 0.0
    %3866 = vmatprep.subr.mxu0 0.0
    %3867 = vmatpush1.msra.mxu0 0.0
    %3868 = vmatprep.subr.mxu0 0.0
    %3869 = vmatpush1.msra.mxu0 0.0
    %3870 = vmatprep.mubr.f32.mxu0 0.0
    %3871 = vmatmul.mubr.f32.gmra.mrb[0].mxu0 %v3804
    %v3872 = vpop.f32.mrb[0].mxu0
    %v3873 = vadd.f32 0.0, %v3872
    %v3874 = vpop.f32.mrb[0].mxu0
    %3875 = vdwg.mxu0
    %v3877 = vsel %vm2045, %v3419, 0
    %3879 = vmatprep.subr.mxu0 0.0
    %3880 = vmatpush1.msra.mxu0 %v1907
    %3881 = vmatprep.subr.mxu0 0.0
    %3882 = vmatpush1.msra.mxu0 0.0
    %3883 = vmatprep.subr.mxu0 0.0
    %3884 = vmatpush1.msra.mxu0 0.0
    %3885 = vmatprep.subr.mxu0 0.0
    %3886 = vmatpush1.msra.mxu0 0.0
    %3887 = vmatprep.subr.mxu0 0.0
    %3888 = vmatpush1.msra.mxu0 0.0
    %3889 = vmatprep.subr.mxu0 0.0
    %3890 = vmatpush1.msra.mxu0 0.0
    %3891 = vmatprep.subr.mxu0 0.0
    %3892 = vmatpush1.msra.mxu0 0.0
    %3893 = vmatprep.subr.mxu0 0.0
    %3894 = vmatpush1.msra.mxu0 0.0
    %3895 = vmatprep.subr.mxu0 0.0
    %3896 = vmatpush1.msra.mxu0 0.0
    %3897 = vmatprep.subr.mxu0 0.0
    %3898 = vmatpush1.msra.mxu0 0.0
    %3899 = vmatprep.subr.mxu0 0.0
    %3900 = vmatpush1.msra.mxu0 0.0
    %3901 = vmatprep.subr.mxu0 0.0
    %3902 = vmatpush1.msra.mxu0 0.0
    %3903 = vmatprep.subr.mxu0 0.0
    %3904 = vmatpush1.msra.mxu0 0.0
    %3905 = vmatprep.subr.mxu0 0.0
    %3906 = vmatpush1.msra.mxu0 0.0
    %3907 = vmatprep.subr.mxu0 0.0
    %3908 = vmatpush1.msra.mxu0 0.0
    %3909 = vmatprep.subr.mxu0 0.0
    %3910 = vmatpush1.msra.mxu0 0.0
    %3911 = vmatprep.subr.mxu0 0.0
    %3912 = vmatpush1.msra.mxu0 0.0
    %3913 = vmatprep.subr.mxu0 0.0
    %3914 = vmatpush1.msra.mxu0 0.0
    %3915 = vmatprep.subr.mxu0 0.0
    %3916 = vmatpush1.msra.mxu0 0.0
    %3917 = vmatprep.subr.mxu0 0.0
    %3918 = vmatpush1.msra.mxu0 0.0
    %3919 = vmatprep.subr.mxu0 0.0
    %3920 = vmatpush1.msra.mxu0 0.0
    %3921 = vmatprep.subr.mxu0 0.0
    %3922 = vmatpush1.msra.mxu0 0.0
    %3923 = vmatprep.subr.mxu0 0.0
    %3924 = vmatpush1.msra.mxu0 0.0
    %3925 = vmatprep.subr.mxu0 0.0
    %3926 = vmatpush1.msra.mxu0 0.0
    %3927 = vmatprep.subr.mxu0 0.0
    %3928 = vmatpush1.msra.mxu0 0.0
    %3929 = vmatprep.subr.mxu0 0.0
    %3930 = vmatpush1.msra.mxu0 0.0
    %3931 = vmatprep.subr.mxu0 0.0
    %3932 = vmatpush1.msra.mxu0 0.0
    %3933 = vmatprep.subr.mxu0 0.0
    %3934 = vmatpush1.msra.mxu0 0.0
    %3935 = vmatprep.subr.mxu0 0.0
    %3936 = vmatpush1.msra.mxu0 0.0
    %3937 = vmatprep.subr.mxu0 0.0
    %3938 = vmatpush1.msra.mxu0 0.0
    %3939 = vmatprep.subr.mxu0 0.0
    %3940 = vmatpush1.msra.mxu0 0.0
    %3941 = vmatprep.subr.mxu0 0.0
    %3942 = vmatpush1.msra.mxu0 0.0
    %3943 = vmatprep.mubr.f32.mxu0 0.0
    %3944 = vmatmul.mubr.f32.gmra.mrb[0].mxu0 %v3877
    %v3945 = vpop.f32.mrb[0].mxu0
    %v3946 = vadd.f32 0.0, %v3945
    %v3947 = vpop.f32.mrb[0].mxu0
    %3948 = vdwg.mxu0
    %v3950 = vsel %vm2045, %v3421, 0
    %3952 = vmatprep.subr.mxu0 0.0
    %3953 = vmatpush1.msra.mxu0 %v1908
    %3954 = vmatprep.subr.mxu0 0.0
    %3955 = vmatpush1.msra.mxu0 0.0
    %3956 = vmatprep.subr.mxu0 0.0
    %3957 = vmatpush1.msra.mxu0 0.0
    %3958 = vmatprep.subr.mxu0 0.0
    %3959 = vmatpush1.msra.mxu0 0.0
    %3960 = vmatprep.subr.mxu0 0.0
    %3961 = vmatpush1.msra.mxu0 0.0
    %3962 = vmatprep.subr.mxu0 0.0
    %3963 = vmatpush1.msra.mxu0 0.0
    %3964 = vmatprep.subr.mxu0 0.0
    %3965 = vmatpush1.msra.mxu0 0.0
    %3966 = vmatprep.subr.mxu0 0.0
    %3967 = vmatpush1.msra.mxu0 0.0
    %3968 = vmatprep.subr.mxu0 0.0
    %3969 = vmatpush1.msra.mxu0 0.0
    %3970 = vmatprep.subr.mxu0 0.0
    %3971 = vmatpush1.msra.mxu0 0.0
    %3972 = vmatprep.subr.mxu0 0.0
    %3973 = vmatpush1.msra.mxu0 0.0
    %3974 = vmatprep.subr.mxu0 0.0
    %3975 = vmatpush1.msra.mxu0 0.0
    %3976 = vmatprep.subr.mxu0 0.0
    %3977 = vmatpush1.msra.mxu0 0.0
    %3978 = vmatprep.subr.mxu0 0.0
    %3979 = vmatpush1.msra.mxu0 0.0
    %3980 = vmatprep.subr.mxu0 0.0
    %3981 = vmatpush1.msra.mxu0 0.0
    %3982 = vmatprep.subr.mxu0 0.0
    %3983 = vmatpush1.msra.mxu0 0.0
    %3984 = vmatprep.subr.mxu0 0.0
    %3985 = vmatpush1.msra.mxu0 0.0
    %3986 = vmatprep.subr.mxu0 0.0
    %3987 = vmatpush1.msra.mxu0 0.0
    %3988 = vmatprep.subr.mxu0 0.0
    %3989 = vmatpush1.msra.mxu0 0.0
    %3990 = vmatprep.subr.mxu0 0.0
    %3991 = vmatpush1.msra.mxu0 0.0
    %3992 = vmatprep.subr.mxu0 0.0
    %3993 = vmatpush1.msra.mxu0 0.0
    %3994 = vmatprep.subr.mxu0 0.0
    %3995 = vmatpush1.msra.mxu0 0.0
    %3996 = vmatprep.subr.mxu0 0.0
    %3997 = vmatpush1.msra.mxu0 0.0
    %3998 = vmatprep.subr.mxu0 0.0
    %3999 = vmatpush1.msra.mxu0 0.0
    %4000 = vmatprep.subr.mxu0 0.0
    %4001 = vmatpush1.msra.mxu0 0.0
    %4002 = vmatprep.subr.mxu0 0.0
    %4003 = vmatpush1.msra.mxu0 0.0
    %4004 = vmatprep.subr.mxu0 0.0
    %4005 = vmatpush1.msra.mxu0 0.0
    %4006 = vmatprep.subr.mxu0 0.0
    %4007 = vmatpush1.msra.mxu0 0.0
    %4008 = vmatprep.subr.mxu0 0.0
    %4009 = vmatpush1.msra.mxu0 0.0
    %4010 = vmatprep.subr.mxu0 0.0
    %4011 = vmatpush1.msra.mxu0 0.0
    %4012 = vmatprep.subr.mxu0 0.0
    %4013 = vmatpush1.msra.mxu0 0.0
    %4014 = vmatprep.subr.mxu0 0.0
    %4015 = vmatpush1.msra.mxu0 0.0
    %4016 = vmatprep.mubr.f32.mxu0 0.0
    %4017 = vmatmul.mubr.f32.gmra.mrb[0].mxu0 %v3950
    %v4018 = vpop.f32.mrb[0].mxu0
    %v4019 = vadd.f32 0.0, %v4018
    %v4020 = vpop.f32.mrb[0].mxu0
    %4021 = vdwg.mxu0
    %v4023 = vsel %vm2045, %v3423, 0
    %4025 = vmatprep.subr.mxu0 0.0
    %4026 = vmatpush1.msra.mxu0 %v2037
    %4027 = vmatprep.subr.mxu0 0.0
    %4028 = vmatpush1.msra.mxu0 0.0
    %4029 = vmatprep.subr.mxu0 0.0
    %4030 = vmatpush1.msra.mxu0 0.0
    %4031 = vmatprep.subr.mxu0 0.0
    %4032 = vmatpush1.msra.mxu0 0.0
    %4033 = vmatprep.subr.mxu0 0.0
    %4034 = vmatpush1.msra.mxu0 0.0
    %4035 = vmatprep.subr.mxu0 0.0
    %4036 = vmatpush1.msra.mxu0 0.0
    %4037 = vmatprep.subr.mxu0 0.0
    %4038 = vmatpush1.msra.mxu0 0.0
    %4039 = vmatprep.subr.mxu0 0.0
    %4040 = vmatpush1.msra.mxu0 0.0
    %4041 = vmatprep.subr.mxu0 0.0
    %4042 = vmatpush1.msra.mxu0 0.0
    %4043 = vmatprep.subr.mxu0 0.0
    %4044 = vmatpush1.msra.mxu0 0.0
    %4045 = vmatprep.subr.mxu0 0.0
    %4046 = vmatpush1.msra.mxu0 0.0
    %4047 = vmatprep.subr.mxu0 0.0
    %4048 = vmatpush1.msra.mxu0 0.0
    %4049 = vmatprep.subr.mxu0 0.0
    %4050 = vmatpush1.msra.mxu0 0.0
    %4051 = vmatprep.subr.mxu0 0.0
    %4052 = vmatpush1.msra.mxu0 0.0
    %4053 = vmatprep.subr.mxu0 0.0
    %4054 = vmatpush1.msra.mxu0 0.0
    %4055 = vmatprep.subr.mxu0 0.0
    %4056 = vmatpush1.msra.mxu0 0.0
    %4057 = vmatprep.subr.mxu0 0.0
    %4058 = vmatpush1.msra.mxu0 0.0
    %4059 = vmatprep.subr.mxu0 0.0
    %4060 = vmatpush1.msra.mxu0 0.0
    %4061 = vmatprep.subr.mxu0 0.0
    %4062 = vmatpush1.msra.mxu0 0.0
    %4063 = vmatprep.subr.mxu0 0.0
    %4064 = vmatpush1.msra.mxu0 0.0
    %4065 = vmatprep.subr.mxu0 0.0
    %4066 = vmatpush1.msra.mxu0 0.0
    %4067 = vmatprep.subr.mxu0 0.0
    %4068 = vmatpush1.msra.mxu0 0.0
    %4069 = vmatprep.subr.mxu0 0.0
    %4070 = vmatpush1.msra.mxu0 0.0
    %4071 = vmatprep.subr.mxu0 0.0
    %4072 = vmatpush1.msra.mxu0 0.0
    %4073 = vmatprep.subr.mxu0 0.0
    %4074 = vmatpush1.msra.mxu0 0.0
    %4075 = vmatprep.subr.mxu0 0.0
    %4076 = vmatpush1.msra.mxu0 0.0
    %4077 = vmatprep.subr.mxu0 0.0
    %4078 = vmatpush1.msra.mxu0 0.0
    %4079 = vmatprep.subr.mxu0 0.0
    %4080 = vmatpush1.msra.mxu0 0.0
    %4081 = vmatprep.subr.mxu0 0.0
    %4082 = vmatpush1.msra.mxu0 0.0
    %4083 = vmatprep.subr.mxu0 0.0
    %4084 = vmatpush1.msra.mxu0 0.0
    %4085 = vmatprep.subr.mxu0 0.0
    %4086 = vmatpush1.msra.mxu0 0.0
    %4087 = vmatprep.subr.mxu0 0.0
    %4088 = vmatpush1.msra.mxu0 0.0
    %4089 = vmatprep.mubr.f32.mxu0 0.0
    %4090 = vmatmul.mubr.f32.gmra.mrb[0].mxu0 %v4023
    %v4091 = vpop.f32.mrb[0].mxu0
    %v4092 = vadd.f32 0.0, %v4091
    %v4093 = vpop.f32.mrb[0].mxu0
    %4094 = vdwg.mxu0
    %v4096 = vsel %vm2045, %v3425, 0
    %4098 = vmatprep.subr.mxu0 0.0
    %4099 = vmatpush1.msra.mxu0 %v2038
    %4100 = vmatprep.subr.mxu0 0.0
    %4101 = vmatpush1.msra.mxu0 0.0
    %4102 = vmatprep.subr.mxu0 0.0
    %4103 = vmatpush1.msra.mxu0 0.0
    %4104 = vmatprep.subr.mxu0 0.0
    %4105 = vmatpush1.msra.mxu0 0.0
    %4106 = vmatprep.subr.mxu0 0.0
    %4107 = vmatpush1.msra.mxu0 0.0
    %4108 = vmatprep.subr.mxu0 0.0
    %4109 = vmatpush1.msra.mxu0 0.0
    %4110 = vmatprep.subr.mxu0 0.0
    %4111 = vmatpush1.msra.mxu0 0.0
    %4112 = vmatprep.subr.mxu0 0.0
    %4113 = vmatpush1.msra.mxu0 0.0
    %4114 = vmatprep.subr.mxu0 0.0
    %4115 = vmatpush1.msra.mxu0 0.0
    %4116 = vmatprep.subr.mxu0 0.0
    %4117 = vmatpush1.msra.mxu0 0.0
    %4118 = vmatprep.subr.mxu0 0.0
    %4119 = vmatpush1.msra.mxu0 0.0
    %4120 = vmatprep.subr.mxu0 0.0
    %4121 = vmatpush1.msra.mxu0 0.0
    %4122 = vmatprep.subr.mxu0 0.0
    %4123 = vmatpush1.msra.mxu0 0.0
    %4124 = vmatprep.subr.mxu0 0.0
    %4125 = vmatpush1.msra.mxu0 0.0
    %4126 = vmatprep.subr.mxu0 0.0
    %4127 = vmatpush1.msra.mxu0 0.0
    %4128 = vmatprep.subr.mxu0 0.0
    %4129 = vmatpush1.msra.mxu0 0.0
    %4130 = vmatprep.subr.mxu0 0.0
    %4131 = vmatpush1.msra.mxu0 0.0
    %4132 = vmatprep.subr.mxu0 0.0
    %4133 = vmatpush1.msra.mxu0 0.0
    %4134 = vmatprep.subr.mxu0 0.0
    %4135 = vmatpush1.msra.mxu0 0.0
    %4136 = vmatprep.subr.mxu0 0.0
    %4137 = vmatpush1.msra.mxu0 0.0
    %4138 = vmatprep.subr.mxu0 0.0
    %4139 = vmatpush1.msra.mxu0 0.0
    %4140 = vmatprep.subr.mxu0 0.0
    %4141 = vmatpush1.msra.mxu0 0.0
    %4142 = vmatprep.subr.mxu0 0.0
    %4143 = vmatpush1.msra.mxu0 0.0
    %4144 = vmatprep.subr.mxu0 0.0
    %4145 = vmatpush1.msra.mxu0 0.0
    %4146 = vmatprep.subr.mxu0 0.0
    %4147 = vmatpush1.msra.mxu0 0.0
    %4148 = vmatprep.subr.mxu0 0.0
    %4149 = vmatpush1.msra.mxu0 0.0
    %4150 = vmatprep.subr.mxu0 0.0
    %4151 = vmatpush1.msra.mxu0 0.0
    %4152 = vmatprep.subr.mxu0 0.0
    %4153 = vmatpush1.msra.mxu0 0.0
    %4154 = vmatprep.subr.mxu0 0.0
    %4155 = vmatpush1.msra.mxu0 0.0
    %4156 = vmatprep.subr.mxu0 0.0
    %4157 = vmatpush1.msra.mxu0 0.0
    %4158 = vmatprep.subr.mxu0 0.0
    %4159 = vmatpush1.msra.mxu0 0.0
    %4160 = vmatprep.subr.mxu0 0.0
    %4161 = vmatpush1.msra.mxu0 0.0
    %4162 = vmatprep.mubr.f32.mxu0 0.0
    %4163 = vmatmul.mubr.f32.gmra.mrb[0].mxu0 %v4096
    %v4164 = vpop.f32.mrb[0].mxu0
    %v4165 = vadd.f32 0.0, %v4164
    %v4166 = vpop.f32.mrb[0].mxu0
    %4167 = vdwg.mxu0
    %v4169 = vsel %vm2045, %v3427, 0
    %4171 = vmatprep.subr.mxu0 0.0
    %4172 = vmatpush1.msra.mxu0 %v2039
    %4173 = vmatprep.subr.mxu0 0.0
    %4174 = vmatpush1.msra.mxu0 0.0
    %4175 = vmatprep.subr.mxu0 0.0
    %4176 = vmatpush1.msra.mxu0 0.0
    %4177 = vmatprep.subr.mxu0 0.0
    %4178 = vmatpush1.msra.mxu0 0.0
    %4179 = vmatprep.subr.mxu0 0.0
    %4180 = vmatpush1.msra.mxu0 0.0
    %4181 = vmatprep.subr.mxu0 0.0
    %4182 = vmatpush1.msra.mxu0 0.0
    %4183 = vmatprep.subr.mxu0 0.0
    %4184 = vmatpush1.msra.mxu0 0.0
    %4185 = vmatprep.subr.mxu0 0.0
    %4186 = vmatpush1.msra.mxu0 0.0
    %4187 = vmatprep.subr.mxu0 0.0
    %4188 = vmatpush1.msra.mxu0 0.0
    %4189 = vmatprep.subr.mxu0 0.0
    %4190 = vmatpush1.msra.mxu0 0.0
    %4191 = vmatprep.subr.mxu0 0.0
    %4192 = vmatpush1.msra.mxu0 0.0
    %4193 = vmatprep.subr.mxu0 0.0
    %4194 = vmatpush1.msra.mxu0 0.0
    %4195 = vmatprep.subr.mxu0 0.0
    %4196 = vmatpush1.msra.mxu0 0.0
    %4197 = vmatprep.subr.mxu0 0.0
    %4198 = vmatpush1.msra.mxu0 0.0
    %4199 = vmatprep.subr.mxu0 0.0
    %4200 = vmatpush1.msra.mxu0 0.0
    %4201 = vmatprep.subr.mxu0 0.0
    %4202 = vmatpush1.msra.mxu0 0.0
    %4203 = vmatprep.subr.mxu0 0.0
    %4204 = vmatpush1.msra.mxu0 0.0
    %4205 = vmatprep.subr.mxu0 0.0
    %4206 = vmatpush1.msra.mxu0 0.0
    %4207 = vmatprep.subr.mxu0 0.0
    %4208 = vmatpush1.msra.mxu0 0.0
    %4209 = vmatprep.subr.mxu0 0.0
    %4210 = vmatpush1.msra.mxu0 0.0
    %4211 = vmatprep.subr.mxu0 0.0
    %4212 = vmatpush1.msra.mxu0 0.0
    %4213 = vmatprep.subr.mxu0 0.0
    %4214 = vmatpush1.msra.mxu0 0.0
    %4215 = vmatprep.subr.mxu0 0.0
    %4216 = vmatpush1.msra.mxu0 0.0
    %4217 = vmatprep.subr.mxu0 0.0
    %4218 = vmatpush1.msra.mxu0 0.0
    %4219 = vmatprep.subr.mxu0 0.0
    %4220 = vmatpush1.msra.mxu0 0.0
    %4221 = vmatprep.subr.mxu0 0.0
    %4222 = vmatpush1.msra.mxu0 0.0
    %4223 = vmatprep.subr.mxu0 0.0
    %4224 = vmatpush1.msra.mxu0 0.0
    %4225 = vmatprep.subr.mxu0 0.0
    %4226 = vmatpush1.msra.mxu0 0.0
    %4227 = vmatprep.subr.mxu0 0.0
    %4228 = vmatpush1.msra.mxu0 0.0
    %4229 = vmatprep.subr.mxu0 0.0
    %4230 = vmatpush1.msra.mxu0 0.0
    %4231 = vmatprep.subr.mxu0 0.0
    %4232 = vmatpush1.msra.mxu0 0.0
    %4233 = vmatprep.subr.mxu0 0.0
    %4234 = vmatpush1.msra.mxu0 0.0
    %4235 = vmatprep.mubr.f32.mxu0 0.0
    %4236 = vmatmul.mubr.f32.gmra.mrb[0].mxu0 %v4169
    %v4237 = vpop.f32.mrb[0].mxu0
    %v4238 = vadd.f32 0.0, %v4237
    %v4239 = vpop.f32.mrb[0].mxu0
    %4240 = vdwg.mxu0
    %v4242 = vsel %vm2045, %v3429, 0
    %4244 = vmatprep.subr.mxu0 0.0
    %4245 = vmatpush1.msra.mxu0 %v2040
    %4246 = vmatprep.subr.mxu0 0.0
    %4247 = vmatpush1.msra.mxu0 0.0
    %4248 = vmatprep.subr.mxu0 0.0
    %4249 = vmatpush1.msra.mxu0 0.0
    %4250 = vmatprep.subr.mxu0 0.0
    %4251 = vmatpush1.msra.mxu0 0.0
    %4252 = vmatprep.subr.mxu0 0.0
    %4253 = vmatpush1.msra.mxu0 0.0
    %4254 = vmatprep.subr.mxu0 0.0
    %4255 = vmatpush1.msra.mxu0 0.0
    %4256 = vmatprep.subr.mxu0 0.0
    %4257 = vmatpush1.msra.mxu0 0.0
    %4258 = vmatprep.subr.mxu0 0.0
    %4259 = vmatpush1.msra.mxu0 0.0
    %4260 = vmatprep.subr.mxu0 0.0
    %4261 = vmatpush1.msra.mxu0 0.0
    %4262 = vmatprep.subr.mxu0 0.0
    %4263 = vmatpush1.msra.mxu0 0.0
    %4264 = vmatprep.subr.mxu0 0.0
    %4265 = vmatpush1.msra.mxu0 0.0
    %4266 = vmatprep.subr.mxu0 0.0
    %4267 = vmatpush1.msra.mxu0 0.0
    %4268 = vmatprep.subr.mxu0 0.0
    %4269 = vmatpush1.msra.mxu0 0.0
    %4270 = vmatprep.subr.mxu0 0.0
    %4271 = vmatpush1.msra.mxu0 0.0
    %4272 = vmatprep.subr.mxu0 0.0
    %4273 = vmatpush1.msra.mxu0 0.0
    %4274 = vmatprep.subr.mxu0 0.0
    %4275 = vmatpush1.msra.mxu0 0.0
    %4276 = vmatprep.subr.mxu0 0.0
    %4277 = vmatpush1.msra.mxu0 0.0
    %4278 = vmatprep.subr.mxu0 0.0
    %4279 = vmatpush1.msra.mxu0 0.0
    %4280 = vmatprep.subr.mxu0 0.0
    %4281 = vmatpush1.msra.mxu0 0.0
    %4282 = vmatprep.subr.mxu0 0.0
    %4283 = vmatpush1.msra.mxu0 0.0
    %4284 = vmatprep.subr.mxu0 0.0
    %4285 = vmatpush1.msra.mxu0 0.0
    %4286 = vmatprep.subr.mxu0 0.0
    %4287 = vmatpush1.msra.mxu0 0.0
    %4288 = vmatprep.subr.mxu0 0.0
    %4289 = vmatpush1.msra.mxu0 0.0
    %4290 = vmatprep.subr.mxu0 0.0
    %4291 = vmatpush1.msra.mxu0 0.0
    %4292 = vmatprep.subr.mxu0 0.0
    %4293 = vmatpush1.msra.mxu0 0.0
    %4294 = vmatprep.subr.mxu0 0.0
    %4295 = vmatpush1.msra.mxu0 0.0
    %4296 = vmatprep.subr.mxu0 0.0
    %4297 = vmatpush1.msra.mxu0 0.0
    %4298 = vmatprep.subr.mxu0 0.0
    %4299 = vmatpush1.msra.mxu0 0.0
    %4300 = vmatprep.subr.mxu0 0.0
    %4301 = vmatpush1.msra.mxu0 0.0
    %4302 = vmatprep.subr.mxu0 0.0
    %4303 = vmatpush1.msra.mxu0 0.0
    %4304 = vmatprep.subr.mxu0 0.0
    %4305 = vmatpush1.msra.mxu0 0.0
    %4306 = vmatprep.subr.mxu0 0.0
    %4307 = vmatpush1.msra.mxu0 0.0
    %4308 = vmatprep.mubr.f32.mxu0 0.0
    %4309 = vmatmul.mubr.f32.gmra.mrb[0].mxu0 %v4242
    %v4310 = vpop.f32.mrb[0].mxu0
    %v4311 = vadd.f32 0.0, %v4310
    %v4312 = vpop.f32.mrb[0].mxu0
    %4313 = vdwg.mxu0
    %v4315 = vsel %vm2045, %v3431, 0
    %4317 = vmatprep.subr.mxu0 0.0
    %4318 = vmatpush1.msra.mxu0 %v2041
    %4319 = vmatprep.subr.mxu0 0.0
    %4320 = vmatpush1.msra.mxu0 0.0
    %4321 = vmatprep.subr.mxu0 0.0
    %4322 = vmatpush1.msra.mxu0 0.0
    %4323 = vmatprep.subr.mxu0 0.0
    %4324 = vmatpush1.msra.mxu0 0.0
    %4325 = vmatprep.subr.mxu0 0.0
    %4326 = vmatpush1.msra.mxu0 0.0
    %4327 = vmatprep.subr.mxu0 0.0
    %4328 = vmatpush1.msra.mxu0 0.0
    %4329 = vmatprep.subr.mxu0 0.0
    %4330 = vmatpush1.msra.mxu0 0.0
    %4331 = vmatprep.subr.mxu0 0.0
    %4332 = vmatpush1.msra.mxu0 0.0
    %4333 = vmatprep.subr.mxu0 0.0
    %4334 = vmatpush1.msra.mxu0 0.0
    %4335 = vmatprep.subr.mxu0 0.0
    %4336 = vmatpush1.msra.mxu0 0.0
    %4337 = vmatprep.subr.mxu0 0.0
    %4338 = vmatpush1.msra.mxu0 0.0
    %4339 = vmatprep.subr.mxu0 0.0
    %4340 = vmatpush1.msra.mxu0 0.0
    %4341 = vmatprep.subr.mxu0 0.0
    %4342 = vmatpush1.msra.mxu0 0.0
    %4343 = vmatprep.subr.mxu0 0.0
    %4344 = vmatpush1.msra.mxu0 0.0
    %4345 = vmatprep.subr.mxu0 0.0
    %4346 = vmatpush1.msra.mxu0 0.0
    %4347 = vmatprep.subr.mxu0 0.0
    %4348 = vmatpush1.msra.mxu0 0.0
    %4349 = vmatprep.subr.mxu0 0.0
    %4350 = vmatpush1.msra.mxu0 0.0
    %4351 = vmatprep.subr.mxu0 0.0
    %4352 = vmatpush1.msra.mxu0 0.0
    %4353 = vmatprep.subr.mxu0 0.0
    %4354 = vmatpush1.msra.mxu0 0.0
    %4355 = vmatprep.subr.mxu0 0.0
    %4356 = vmatpush1.msra.mxu0 0.0
    %4357 = vmatprep.subr.mxu0 0.0
    %4358 = vmatpush1.msra.mxu0 0.0
    %4359 = vmatprep.subr.mxu0 0.0
    %4360 = vmatpush1.msra.mxu0 0.0
    %4361 = vmatprep.subr.mxu0 0.0
    %4362 = vmatpush1.msra.mxu0 0.0
    %4363 = vmatprep.subr.mxu0 0.0
    %4364 = vmatpush1.msra.mxu0 0.0
    %4365 = vmatprep.subr.mxu0 0.0
    %4366 = vmatpush1.msra.mxu0 0.0
    %4367 = vmatprep.subr.mxu0 0.0
    %4368 = vmatpush1.msra.mxu0 0.0
    %4369 = vmatprep.subr.mxu0 0.0
    %4370 = vmatpush1.msra.mxu0 0.0
    %4371 = vmatprep.subr.mxu0 0.0
    %4372 = vmatpush1.msra.mxu0 0.0
    %4373 = vmatprep.subr.mxu0 0.0
    %4374 = vmatpush1.msra.mxu0 0.0
    %4375 = vmatprep.subr.mxu0 0.0
    %4376 = vmatpush1.msra.mxu0 0.0
    %4377 = vmatprep.subr.mxu0 0.0
    %4378 = vmatpush1.msra.mxu0 0.0
    %4379 = vmatprep.subr.mxu0 0.0
    %4380 = vmatpush1.msra.mxu0 0.0
    %4381 = vmatprep.mubr.f32.mxu0 0.0
    %4382 = vmatmul.mubr.f32.gmra.mrb[0].mxu0 %v4315
    %v4383 = vpop.f32.mrb[0].mxu0
    %v4384 = vadd.f32 0.0, %v4383
    %v4385 = vpop.f32.mrb[0].mxu0
    %4386 = vdwg.mxu0
    %v4388 = vsel %vm2045, %v3433, 0
    %4390 = vmatprep.subr.mxu0 0.0
    %4391 = vmatpush1.msra.mxu0 %v2042
    %4392 = vmatprep.subr.mxu0 0.0
    %4393 = vmatpush1.msra.mxu0 0.0
    %4394 = vmatprep.subr.mxu0 0.0
    %4395 = vmatpush1.msra.mxu0 0.0
    %4396 = vmatprep.subr.mxu0 0.0
    %4397 = vmatpush1.msra.mxu0 0.0
    %4398 = vmatprep.subr.mxu0 0.0
    %4399 = vmatpush1.msra.mxu0 0.0
    %4400 = vmatprep.subr.mxu0 0.0
    %4401 = vmatpush1.msra.mxu0 0.0
    %4402 = vmatprep.subr.mxu0 0.0
    %4403 = vmatpush1.msra.mxu0 0.0
    %4404 = vmatprep.subr.mxu0 0.0
    %4405 = vmatpush1.msra.mxu0 0.0
    %4406 = vmatprep.subr.mxu0 0.0
    %4407 = vmatpush1.msra.mxu0 0.0
    %4408 = vmatprep.subr.mxu0 0.0
    %4409 = vmatpush1.msra.mxu0 0.0
    %4410 = vmatprep.subr.mxu0 0.0
    %4411 = vmatpush1.msra.mxu0 0.0
    %4412 = vmatprep.subr.mxu0 0.0
    %4413 = vmatpush1.msra.mxu0 0.0
    %4414 = vmatprep.subr.mxu0 0.0
    %4415 = vmatpush1.msra.mxu0 0.0
    %4416 = vmatprep.subr.mxu0 0.0
    %4417 = vmatpush1.msra.mxu0 0.0
    %4418 = vmatprep.subr.mxu0 0.0
    %4419 = vmatpush1.msra.mxu0 0.0
    %4420 = vmatprep.subr.mxu0 0.0
    %4421 = vmatpush1.msra.mxu0 0.0
    %4422 = vmatprep.subr.mxu0 0.0
    %4423 = vmatpush1.msra.mxu0 0.0
    %4424 = vmatprep.subr.mxu0 0.0
    %4425 = vmatpush1.msra.mxu0 0.0
    %4426 = vmatprep.subr.mxu0 0.0
    %4427 = vmatpush1.msra.mxu0 0.0
    %4428 = vmatprep.subr.mxu0 0.0
    %4429 = vmatpush1.msra.mxu0 0.0
    %4430 = vmatprep.subr.mxu0 0.0
    %4431 = vmatpush1.msra.mxu0 0.0
    %4432 = vmatprep.subr.mxu0 0.0
    %4433 = vmatpush1.msra.mxu0 0.0
    %4434 = vmatprep.subr.mxu0 0.0
    %4435 = vmatpush1.msra.mxu0 0.0
    %4436 = vmatprep.subr.mxu0 0.0
    %4437 = vmatpush1.msra.mxu0 0.0
    %4438 = vmatprep.subr.mxu0 0.0
    %4439 = vmatpush1.msra.mxu0 0.0
    %4440 = vmatprep.subr.mxu0 0.0
    %4441 = vmatpush1.msra.mxu0 0.0
    %4442 = vmatprep.subr.mxu0 0.0
    %4443 = vmatpush1.msra.mxu0 0.0
    %4444 = vmatprep.subr.mxu0 0.0
    %4445 = vmatpush1.msra.mxu0 0.0
    %4446 = vmatprep.subr.mxu0 0.0
    %4447 = vmatpush1.msra.mxu0 0.0
    %4448 = vmatprep.subr.mxu0 0.0
    %4449 = vmatpush1.msra.mxu0 0.0
    %4450 = vmatprep.subr.mxu0 0.0
    %4451 = vmatpush1.msra.mxu0 0.0
    %4452 = vmatprep.subr.mxu0 0.0
    %4453 = vmatpush1.msra.mxu0 0.0
    %4454 = vmatprep.mubr.f32.mxu0 0.0
    %4455 = vmatmul.mubr.f32.gmra.mrb[0].mxu0 %v4388
    %v4456 = vpop.f32.mrb[0].mxu0
    %v4457 = vadd.f32 0.0, %v4456
    %v4458 = vpop.f32.mrb[0].mxu0
    %4459 = vdwg.mxu0
    %v4461 = vsel %vm2045, %v3435, 0
    %4463 = vmatprep.subr.mxu0 0.0
    %4464 = vmatpush1.msra.mxu0 %v2043
    %4465 = vmatprep.subr.mxu0 0.0
    %4466 = vmatpush1.msra.mxu0 0.0
    %4467 = vmatprep.subr.mxu0 0.0
    %4468 = vmatpush1.msra.mxu0 0.0
    %4469 = vmatprep.subr.mxu0 0.0
    %4470 = vmatpush1.msra.mxu0 0.0
    %4471 = vmatprep.subr.mxu0 0.0
    %4472 = vmatpush1.msra.mxu0 0.0
    %4473 = vmatprep.subr.mxu0 0.0
    %4474 = vmatpush1.msra.mxu0 0.0
    %4475 = vmatprep.subr.mxu0 0.0
    %4476 = vmatpush1.msra.mxu0 0.0
    %4477 = vmatprep.subr.mxu0 0.0
    %4478 = vmatpush1.msra.mxu0 0.0
    %4479 = vmatprep.subr.mxu0 0.0
    %4480 = vmatpush1.msra.mxu0 0.0
    %4481 = vmatprep.subr.mxu0 0.0
    %4482 = vmatpush1.msra.mxu0 0.0
    %4483 = vmatprep.subr.mxu0 0.0
    %4484 = vmatpush1.msra.mxu0 0.0
    %4485 = vmatprep.subr.mxu0 0.0
    %4486 = vmatpush1.msra.mxu0 0.0
    %4487 = vmatprep.subr.mxu0 0.0
    %4488 = vmatpush1.msra.mxu0 0.0
    %4489 = vmatprep.subr.mxu0 0.0
    %4490 = vmatpush1.msra.mxu0 0.0
    %4491 = vmatprep.subr.mxu0 0.0
    %4492 = vmatpush1.msra.mxu0 0.0
    %4493 = vmatprep.subr.mxu0 0.0
    %4494 = vmatpush1.msra.mxu0 0.0
    %4495 = vmatprep.subr.mxu0 0.0
    %4496 = vmatpush1.msra.mxu0 0.0
    %4497 = vmatprep.subr.mxu0 0.0
    %4498 = vmatpush1.msra.mxu0 0.0
    %4499 = vmatprep.subr.mxu0 0.0
    %4500 = vmatpush1.msra.mxu0 0.0
    %4501 = vmatprep.subr.mxu0 0.0
    %4502 = vmatpush1.msra.mxu0 0.0
    %4503 = vmatprep.subr.mxu0 0.0
    %4504 = vmatpush1.msra.mxu0 0.0
    %4505 = vmatprep.subr.mxu0 0.0
    %4506 = vmatpush1.msra.mxu0 0.0
    %4507 = vmatprep.subr.mxu0 0.0
    %4508 = vmatpush1.msra.mxu0 0.0
    %4509 = vmatprep.subr.mxu0 0.0
    %4510 = vmatpush1.msra.mxu0 0.0
    %4511 = vmatprep.subr.mxu0 0.0
    %4512 = vmatpush1.msra.mxu0 0.0
    %4513 = vmatprep.subr.mxu0 0.0
    %4514 = vmatpush1.msra.mxu0 0.0
    %4515 = vmatprep.subr.mxu0 0.0
    %4516 = vmatpush1.msra.mxu0 0.0
    %4517 = vmatprep.subr.mxu0 0.0
    %4518 = vmatpush1.msra.mxu0 0.0
    %4519 = vmatprep.subr.mxu0 0.0
    %4520 = vmatpush1.msra.mxu0 0.0
    %4521 = vmatprep.subr.mxu0 0.0
    %4522 = vmatpush1.msra.mxu0 0.0
    %4523 = vmatprep.subr.mxu0 0.0
    %4524 = vmatpush1.msra.mxu0 0.0
    %4525 = vmatprep.subr.mxu0 0.0
    %4526 = vmatpush1.msra.mxu0 0.0
    %4527 = vmatprep.mubr.f32.mxu0 0.0
    %4528 = vmatmul.mubr.f32.gmra.mrb[0].mxu0 %v4461
    %v4529 = vpop.f32.mrb[0].mxu0
    %v4530 = vadd.f32 0.0, %v4529
    %v4531 = vpop.f32.mrb[0].mxu0
    %4532 = vdwg.mxu0
    %v4534 = vsel %vm2045, %v3437, 0
    %4536 = vmatprep.subr.mxu0 0.0
    %4537 = vmatpush1.msra.mxu0 %v2044
    %4538 = vmatprep.subr.mxu0 0.0
    %4539 = vmatpush1.msra.mxu0 0.0
    %4540 = vmatprep.subr.mxu0 0.0
    %4541 = vmatpush1.msra.mxu0 0.0
    %4542 = vmatprep.subr.mxu0 0.0
    %4543 = vmatpush1.msra.mxu0 0.0
    %4544 = vmatprep.subr.mxu0 0.0
    %4545 = vmatpush1.msra.mxu0 0.0
    %4546 = vmatprep.subr.mxu0 0.0
    %4547 = vmatpush1.msra.mxu0 0.0
    %4548 = vmatprep.subr.mxu0 0.0
    %4549 = vmatpush1.msra.mxu0 0.0
    %4550 = vmatprep.subr.mxu0 0.0
    %4551 = vmatpush1.msra.mxu0 0.0
    %4552 = vmatprep.subr.mxu0 0.0
    %4553 = vmatpush1.msra.mxu0 0.0
    %4554 = vmatprep.subr.mxu0 0.0
    %4555 = vmatpush1.msra.mxu0 0.0
    %4556 = vmatprep.subr.mxu0 0.0
    %4557 = vmatpush1.msra.mxu0 0.0
    %4558 = vmatprep.subr.mxu0 0.0
    %4559 = vmatpush1.msra.mxu0 0.0
    %4560 = vmatprep.subr.mxu0 0.0
    %4561 = vmatpush1.msra.mxu0 0.0
    %4562 = vmatprep.subr.mxu0 0.0
    %4563 = vmatpush1.msra.mxu0 0.0
    %4564 = vmatprep.subr.mxu0 0.0
    %4565 = vmatpush1.msra.mxu0 0.0
    %4566 = vmatprep.subr.mxu0 0.0
    %4567 = vmatpush1.msra.mxu0 0.0
    %4568 = vmatprep.subr.mxu0 0.0
    %4569 = vmatpush1.msra.mxu0 0.0
    %4570 = vmatprep.subr.mxu0 0.0
    %4571 = vmatpush1.msra.mxu0 0.0
    %4572 = vmatprep.subr.mxu0 0.0
    %4573 = vmatpush1.msra.mxu0 0.0
    %4574 = vmatprep.subr.mxu0 0.0
    %4575 = vmatpush1.msra.mxu0 0.0
    %4576 = vmatprep.subr.mxu0 0.0
    %4577 = vmatpush1.msra.mxu0 0.0
    %4578 = vmatprep.subr.mxu0 0.0
    %4579 = vmatpush1.msra.mxu0 0.0
    %4580 = vmatprep.subr.mxu0 0.0
    %4581 = vmatpush1.msra.mxu0 0.0
    %4582 = vmatprep.subr.mxu0 0.0
    %4583 = vmatpush1.msra.mxu0 0.0
    %4584 = vmatprep.subr.mxu0 0.0
    %4585 = vmatpush1.msra.mxu0 0.0
    %4586 = vmatprep.subr.mxu0 0.0
    %4587 = vmatpush1.msra.mxu0 0.0
    %4588 = vmatprep.subr.mxu0 0.0
    %4589 = vmatpush1.msra.mxu0 0.0
    %4590 = vmatprep.subr.mxu0 0.0
    %4591 = vmatpush1.msra.mxu0 0.0
    %4592 = vmatprep.subr.mxu0 0.0
    %4593 = vmatpush1.msra.mxu0 0.0
    %4594 = vmatprep.subr.mxu0 0.0
    %4595 = vmatpush1.msra.mxu0 0.0
    %4596 = vmatprep.subr.mxu0 0.0
    %4597 = vmatpush1.msra.mxu0 0.0
    %4598 = vmatprep.subr.mxu0 0.0
    %4599 = vmatpush1.msra.mxu0 0.0
    %4600 = vmatprep.mubr.f32.mxu0 0.0
    %4601 = vmatmul.mubr.f32.gmra.mrb[0].mxu0 %v4534
    %v4602 = vpop.f32.mrb[0].mxu0
    %v4603 = vadd.f32 0.0, %v4602
    %v4604 = vpop.f32.mrb[0].mxu0
    %4605 = vdwg.mxu0
    %v4606 = vcombine.low %v3508, %v3654
    %v4607 = vcombine.high %v3508, %v3654
    %v4609 = vunpack.c.l.s4 1983009808
    %v4610 = vunpack.c.0.s8 %v4609
    %v4611 = vlaneseq
    %v4612 = vshrl.u32 %v4611, 7
    %v4613 = vsub.s32 %v4610, %v4612
    %v4614 = vrot.slane %v4606, %v4613
    %v4616 = vunpack.c.l.s4 1983009808
    %v4617 = vunpack.c.0.s8 %v4616
    %v4618 = vlaneseq
    %v4619 = vshrl.u32 %v4618, 7
    %v4620 = vsub.s32 %v4617, %v4619
    %v4621 = vrot.slane %v4607, %v4620
    %v4622 = vcombine.low %v3581, %v3727
    %v4623 = vcombine.high %v3581, %v3727
    %v4625 = vunpack.c.l.s4 1983009808
    %v4626 = vunpack.c.0.s8 %v4625
    %v4627 = vlaneseq
    %v4628 = vshrl.u32 %v4627, 7
    %v4629 = vsub.s32 %v4626, %v4628
    %v4630 = vrot.slane %v4622, %v4629
    %v4632 = vunpack.c.l.s4 1983009808
    %v4633 = vunpack.c.0.s8 %v4632
    %v4634 = vlaneseq
    %v4635 = vshrl.u32 %v4634, 7
    %v4636 = vsub.s32 %v4633, %v4635
    %v4637 = vrot.slane %v4623, %v4636
    %v4638 = vcombine.low %v3800, %v3946
    %v4639 = vcombine.high %v3800, %v3946
    %v4641 = vunpack.c.l.s4 1983009808
    %v4642 = vunpack.c.0.s8 %v4641
    %v4643 = vlaneseq
    %v4644 = vshrl.u32 %v4643, 7
    %v4645 = vsub.s32 %v4642, %v4644
    %v4646 = vrot.slane %v4638, %v4645
    %v4648 = vunpack.c.l.s4 1983009808
    %v4649 = vunpack.c.0.s8 %v4648
    %v4650 = vlaneseq
    %v4651 = vshrl.u32 %v4650, 7
    %v4652 = vsub.s32 %v4649, %v4651
    %v4653 = vrot.slane %v4639, %v4652
    %v4654 = vcombine.low %v3873, %v4019
    %v4655 = vcombine.high %v3873, %v4019
    %v4657 = vunpack.c.l.s4 1983009808
    %v4658 = vunpack.c.0.s8 %v4657
    %v4659 = vlaneseq
    %v4660 = vshrl.u32 %v4659, 7
    %v4661 = vsub.s32 %v4658, %v4660
    %v4662 = vrot.slane %v4654, %v4661
    %v4664 = vunpack.c.l.s4 1983009808
    %v4665 = vunpack.c.0.s8 %v4664
    %v4666 = vlaneseq
    %v4667 = vshrl.u32 %v4666, 7
    %v4668 = vsub.s32 %v4665, %v4667
    %v4669 = vrot.slane %v4655, %v4668
    %v4670 = vcombine.low %v4614, %v4630
    %v4671 = vcombine.high %v4614, %v4630
    %v4673 = vunpack.c.l.s4 1934713408
    %v4674 = vunpack.c.0.s8 %v4673
    %v4675 = vlaneseq
    %v4676 = vshrl.u32 %v4675, 7
    %v4677 = vsub.s32 %v4674, %v4676
    %v4678 = vrot.slane %v4670, %v4677
    %v4680 = vunpack.c.l.s4 1934713408
    %v4681 = vunpack.c.0.s8 %v4680
    %v4682 = vlaneseq
    %v4683 = vshrl.u32 %v4682, 7
    %v4684 = vsub.s32 %v4681, %v4683
    %v4685 = vrot.slane %v4671, %v4684
    %v4686 = vcombine.low %v4621, %v4637
    %v4687 = vcombine.high %v4621, %v4637
    %v4689 = vunpack.c.l.s4 1934713408
    %v4690 = vunpack.c.0.s8 %v4689
    %v4691 = vlaneseq
    %v4692 = vshrl.u32 %v4691, 7
    %v4693 = vsub.s32 %v4690, %v4692
    %v4694 = vrot.slane %v4686, %v4693
    %v4696 = vunpack.c.l.s4 1934713408
    %v4697 = vunpack.c.0.s8 %v4696
    %v4698 = vlaneseq
    %v4699 = vshrl.u32 %v4698, 7
    %v4700 = vsub.s32 %v4697, %v4699
    %v4701 = vrot.slane %v4687, %v4700
    %v4702 = vcombine.low %v4646, %v4662
    %v4703 = vcombine.high %v4646, %v4662
    %v4705 = vunpack.c.l.s4 1934713408
    %v4706 = vunpack.c.0.s8 %v4705
    %v4707 = vlaneseq
    %v4708 = vshrl.u32 %v4707, 7
    %v4709 = vsub.s32 %v4706, %v4708
    %v4710 = vrot.slane %v4702, %v4709
    %v4712 = vunpack.c.l.s4 1934713408
    %v4713 = vunpack.c.0.s8 %v4712
    %v4714 = vlaneseq
    %v4715 = vshrl.u32 %v4714, 7
    %v4716 = vsub.s32 %v4713, %v4715
    %v4717 = vrot.slane %v4703, %v4716
    %v4718 = vcombine.low %v4653, %v4669
    %v4719 = vcombine.high %v4653, %v4669
    %v4721 = vunpack.c.l.s4 1934713408
    %v4722 = vunpack.c.0.s8 %v4721
    %v4723 = vlaneseq
    %v4724 = vshrl.u32 %v4723, 7
    %v4725 = vsub.s32 %v4722, %v4724
    %v4726 = vrot.slane %v4718, %v4725
    %v4728 = vunpack.c.l.s4 1934713408
    %v4729 = vunpack.c.0.s8 %v4728
    %v4730 = vlaneseq
    %v4731 = vshrl.u32 %v4730, 7
    %v4732 = vsub.s32 %v4729, %v4731
    %v4733 = vrot.slane %v4719, %v4732
    %v4734 = vcombine.low %v4678, %v4710
    %v4735 = vcombine.high %v4678, %v4710
    %v4736 = vcombine.low %v4685, %v4717
    %v4737 = vcombine.high %v4685, %v4717
    %v4738 = vcombine.low %v4694, %v4726
    %v4739 = vcombine.high %v4694, %v4726
    %v4740 = vcombine.low %v4701, %v4733
    %v4741 = vcombine.high %v4701, %v4733
    %v4742 = vcombine.low %v4092, %v4238
    %v4743 = vcombine.high %v4092, %v4238
    %v4745 = vunpack.c.l.s4 1983009808
    %v4746 = vunpack.c.0.s8 %v4745
    %v4747 = vlaneseq
    %v4748 = vshrl.u32 %v4747, 7
    %v4749 = vsub.s32 %v4746, %v4748
    %v4750 = vrot.slane %v4742, %v4749
    %v4752 = vunpack.c.l.s4 1983009808
    %v4753 = vunpack.c.0.s8 %v4752
    %v4754 = vlaneseq
    %v4755 = vshrl.u32 %v4754, 7
    %v4756 = vsub.s32 %v4753, %v4755
    %v4757 = vrot.slane %v4743, %v4756
    %v4758 = vcombine.low %v4165, %v4311
    %v4759 = vcombine.high %v4165, %v4311
    %v4761 = vunpack.c.l.s4 1983009808
    %v4762 = vunpack.c.0.s8 %v4761
    %v4763 = vlaneseq
    %v4764 = vshrl.u32 %v4763, 7
    %v4765 = vsub.s32 %v4762, %v4764
    %v4766 = vrot.slane %v4758, %v4765
    %v4768 = vunpack.c.l.s4 1983009808
    %v4769 = vunpack.c.0.s8 %v4768
    %v4770 = vlaneseq
    %v4771 = vshrl.u32 %v4770, 7
    %v4772 = vsub.s32 %v4769, %v4771
    %v4773 = vrot.slane %v4759, %v4772
    %v4774 = vcombine.low %v4384, %v4530
    %v4775 = vcombine.high %v4384, %v4530
    %v4777 = vunpack.c.l.s4 1983009808
    %v4778 = vunpack.c.0.s8 %v4777
    %v4779 = vlaneseq
    %v4780 = vshrl.u32 %v4779, 7
    %v4781 = vsub.s32 %v4778, %v4780
    %v4782 = vrot.slane %v4774, %v4781
    %v4784 = vunpack.c.l.s4 1983009808
    %v4785 = vunpack.c.0.s8 %v4784
    %v4786 = vlaneseq
    %v4787 = vshrl.u32 %v4786, 7
    %v4788 = vsub.s32 %v4785, %v4787
    %v4789 = vrot.slane %v4775, %v4788
    %v4790 = vcombine.low %v4457, %v4603
    %v4791 = vcombine.high %v4457, %v4603
    %v4793 = vunpack.c.l.s4 1983009808
    %v4794 = vunpack.c.0.s8 %v4793
    %v4795 = vlaneseq
    %v4796 = vshrl.u32 %v4795, 7
    %v4797 = vsub.s32 %v4794, %v4796
    %v4798 = vrot.slane %v4790, %v4797
    %v4800 = vunpack.c.l.s4 1983009808
    %v4801 = vunpack.c.0.s8 %v4800
    %v4802 = vlaneseq
    %v4803 = vshrl.u32 %v4802, 7
    %v4804 = vsub.s32 %v4801, %v4803
    %v4805 = vrot.slane %v4791, %v4804
    %v4806 = vcombine.low %v4750, %v4766
    %v4807 = vcombine.high %v4750, %v4766
    %v4809 = vunpack.c.l.s4 1934713408
    %v4810 = vunpack.c.0.s8 %v4809
    %v4811 = vlaneseq
    %v4812 = vshrl.u32 %v4811, 7
    %v4813 = vsub.s32 %v4810, %v4812
    %v4814 = vrot.slane %v4806, %v4813
    %v4816 = vunpack.c.l.s4 1934713408
    %v4817 = vunpack.c.0.s8 %v4816
    %v4818 = vlaneseq
    %v4819 = vshrl.u32 %v4818, 7
    %v4820 = vsub.s32 %v4817, %v4819
    %v4821 = vrot.slane %v4807, %v4820
    %v4822 = vcombine.low %v4757, %v4773
    %v4823 = vcombine.high %v4757, %v4773
    %v4825 = vunpack.c.l.s4 1934713408
    %v4826 = vunpack.c.0.s8 %v4825
    %v4827 = vlaneseq
    %v4828 = vshrl.u32 %v4827, 7
    %v4829 = vsub.s32 %v4826, %v4828
    %v4830 = vrot.slane %v4822, %v4829
    %v4832 = vunpack.c.l.s4 1934713408
    %v4833 = vunpack.c.0.s8 %v4832
    %v4834 = vlaneseq
    %v4835 = vshrl.u32 %v4834, 7
    %v4836 = vsub.s32 %v4833, %v4835
    %v4837 = vrot.slane %v4823, %v4836
    %v4838 = vcombine.low %v4782, %v4798
    %v4839 = vcombine.high %v4782, %v4798
    %v4841 = vunpack.c.l.s4 1934713408
    %v4842 = vunpack.c.0.s8 %v4841
    %v4843 = vlaneseq
    %v4844 = vshrl.u32 %v4843, 7
    %v4845 = vsub.s32 %v4842, %v4844
    %v4846 = vrot.slane %v4838, %v4845
    %v4848 = vunpack.c.l.s4 1934713408
    %v4849 = vunpack.c.0.s8 %v4848
    %v4850 = vlaneseq
    %v4851 = vshrl.u32 %v4850, 7
    %v4852 = vsub.s32 %v4849, %v4851
    %v4853 = vrot.slane %v4839, %v4852
    %v4854 = vcombine.low %v4789, %v4805
    %v4855 = vcombine.high %v4789, %v4805
    %v4857 = vunpack.c.l.s4 1934713408
    %v4858 = vunpack.c.0.s8 %v4857
    %v4859 = vlaneseq
    %v4860 = vshrl.u32 %v4859, 7
    %v4861 = vsub.s32 %v4858, %v4860
    %v4862 = vrot.slane %v4854, %v4861
    %v4864 = vunpack.c.l.s4 1934713408
    %v4865 = vunpack.c.0.s8 %v4864
    %v4866 = vlaneseq
    %v4867 = vshrl.u32 %v4866, 7
    %v4868 = vsub.s32 %v4865, %v4867
    %v4869 = vrot.slane %v4855, %v4868
    %v4870 = vcombine.low %v4814, %v4846
    %v4871 = vcombine.high %v4814, %v4846
    %v4872 = vcombine.low %v4821, %v4853
    %v4873 = vcombine.high %v4821, %v4853
    %v4874 = vcombine.low %v4830, %v4862
    %v4875 = vcombine.high %v4830, %v4862
    %v4876 = vcombine.low %v4837, %v4869
    %v4877 = vcombine.high %v4837, %v4869
    %v4878 = vcombine.low %v4734, %v4736
    %v4879 = vcombine.high %v4734, %v4736
    %v4881 = vunpack.c.l.s4 1983009808
    %v4882 = vunpack.c.0.s8 %v4881
    %v4883 = vlaneseq
    %v4884 = vshrl.u32 %v4883, 7
    %v4885 = vsub.s32 %v4882, %v4884
    %v4886 = vrot.slane %v4878, %v4885
    %v4888 = vunpack.c.l.s4 1983009808
    %v4889 = vunpack.c.0.s8 %v4888
    %v4890 = vlaneseq
    %v4891 = vshrl.u32 %v4890, 7
    %v4892 = vsub.s32 %v4889, %v4891
    %v4893 = vrot.slane %v4879, %v4892
    %v4894 = vcombine.low %v4735, %v4737
    %v4895 = vcombine.high %v4735, %v4737
    %v4897 = vunpack.c.l.s4 1983009808
    %v4898 = vunpack.c.0.s8 %v4897
    %v4899 = vlaneseq
    %v4900 = vshrl.u32 %v4899, 7
    %v4901 = vsub.s32 %v4898, %v4900
    %v4902 = vrot.slane %v4894, %v4901
    %v4904 = vunpack.c.l.s4 1983009808
    %v4905 = vunpack.c.0.s8 %v4904
    %v4906 = vlaneseq
    %v4907 = vshrl.u32 %v4906, 7
    %v4908 = vsub.s32 %v4905, %v4907
    %v4909 = vrot.slane %v4895, %v4908
    %v4910 = vcombine.low %v4738, %v4740
    %v4911 = vcombine.high %v4738, %v4740
    %v4913 = vunpack.c.l.s4 1983009808
    %v4914 = vunpack.c.0.s8 %v4913
    %v4915 = vlaneseq
    %v4916 = vshrl.u32 %v4915, 7
    %v4917 = vsub.s32 %v4914, %v4916
    %v4918 = vrot.slane %v4910, %v4917
    %v4920 = vunpack.c.l.s4 1983009808
    %v4921 = vunpack.c.0.s8 %v4920
    %v4922 = vlaneseq
    %v4923 = vshrl.u32 %v4922, 7
    %v4924 = vsub.s32 %v4921, %v4923
    %v4925 = vrot.slane %v4911, %v4924
    %v4926 = vcombine.low %v4739, %v4741
    %v4927 = vcombine.high %v4739, %v4741
    %v4929 = vunpack.c.l.s4 1983009808
    %v4930 = vunpack.c.0.s8 %v4929
    %v4931 = vlaneseq
    %v4932 = vshrl.u32 %v4931, 7
    %v4933 = vsub.s32 %v4930, %v4932
    %v4934 = vrot.slane %v4926, %v4933
    %v4936 = vunpack.c.l.s4 1983009808
    %v4937 = vunpack.c.0.s8 %v4936
    %v4938 = vlaneseq
    %v4939 = vshrl.u32 %v4938, 7
    %v4940 = vsub.s32 %v4937, %v4939
    %v4941 = vrot.slane %v4927, %v4940
    %v4942 = vcombine.low %v4886, %v4902
    %v4943 = vcombine.high %v4886, %v4902
    %v4945 = vunpack.c.l.s4 1934713408
    %v4946 = vunpack.c.0.s8 %v4945
    %v4947 = vlaneseq
    %v4948 = vshrl.u32 %v4947, 7
    %v4949 = vsub.s32 %v4946, %v4948
    %v4950 = vrot.slane %v4942, %v4949
    %v4952 = vunpack.c.l.s4 1934713408
    %v4953 = vunpack.c.0.s8 %v4952
    %v4954 = vlaneseq
    %v4955 = vshrl.u32 %v4954, 7
    %v4956 = vsub.s32 %v4953, %v4955
    %v4957 = vrot.slane %v4943, %v4956
    %v4958 = vcombine.low %v4893, %v4909
    %v4959 = vcombine.high %v4893, %v4909
    %v4961 = vunpack.c.l.s4 1934713408
    %v4962 = vunpack.c.0.s8 %v4961
    %v4963 = vlaneseq
    %v4964 = vshrl.u32 %v4963, 7
    %v4965 = vsub.s32 %v4962, %v4964
    %v4966 = vrot.slane %v4958, %v4965
    %v4968 = vunpack.c.l.s4 1934713408
    %v4969 = vunpack.c.0.s8 %v4968
    %v4970 = vlaneseq
    %v4971 = vshrl.u32 %v4970, 7
    %v4972 = vsub.s32 %v4969, %v4971
    %v4973 = vrot.slane %v4959, %v4972
    %v4974 = vcombine.low %v4918, %v4934
    %v4975 = vcombine.high %v4918, %v4934
    %v4977 = vunpack.c.l.s4 1934713408
    %v4978 = vunpack.c.0.s8 %v4977
    %v4979 = vlaneseq
    %v4980 = vshrl.u32 %v4979, 7
    %v4981 = vsub.s32 %v4978, %v4980
    %v4982 = vrot.slane %v4974, %v4981
    %v4984 = vunpack.c.l.s4 1934713408
    %v4985 = vunpack.c.0.s8 %v4984
    %v4986 = vlaneseq
    %v4987 = vshrl.u32 %v4986, 7
    %v4988 = vsub.s32 %v4985, %v4987
    %v4989 = vrot.slane %v4975, %v4988
    %v4990 = vcombine.low %v4925, %v4941
    %v4991 = vcombine.high %v4925, %v4941
    %v4993 = vunpack.c.l.s4 1934713408
    %v4994 = vunpack.c.0.s8 %v4993
    %v4995 = vlaneseq
    %v4996 = vshrl.u32 %v4995, 7
    %v4997 = vsub.s32 %v4994, %v4996
    %v4998 = vrot.slane %v4990, %v4997
    %v5000 = vunpack.c.l.s4 1934713408
    %v5001 = vunpack.c.0.s8 %v5000
    %v5002 = vlaneseq
    %v5003 = vshrl.u32 %v5002, 7
    %v5004 = vsub.s32 %v5001, %v5003
    %v5005 = vrot.slane %v4991, %v5004
    %v5006 = vcombine.low %v4950, %v4982
    %v5007 = vcombine.high %v4950, %v4982
    %v5008 = vcombine.low %v4957, %v4989
    %v5009 = vcombine.high %v4957, %v4989
    %v5010 = vcombine.low %v4966, %v4998
    %v5011 = vcombine.high %v4966, %v4998
    %v5012 = vcombine.low %v4973, %v5005
    %v5013 = vcombine.high %v4973, %v5005
    %v5014 = vcombine.low %v4870, %v4872
    %v5015 = vcombine.high %v4870, %v4872
    %v5017 = vunpack.c.l.s4 1983009808
    %v5018 = vunpack.c.0.s8 %v5017
    %v5019 = vlaneseq
    %v5020 = vshrl.u32 %v5019, 7
    %v5021 = vsub.s32 %v5018, %v5020
    %v5022 = vrot.slane %v5014, %v5021
    %v5024 = vunpack.c.l.s4 1983009808
    %v5025 = vunpack.c.0.s8 %v5024
    %v5026 = vlaneseq
    %v5027 = vshrl.u32 %v5026, 7
    %v5028 = vsub.s32 %v5025, %v5027
    %v5029 = vrot.slane %v5015, %v5028
    %v5030 = vcombine.low %v4871, %v4873
    %v5031 = vcombine.high %v4871, %v4873
    %v5033 = vunpack.c.l.s4 1983009808
    %v5034 = vunpack.c.0.s8 %v5033
    %v5035 = vlaneseq
    %v5036 = vshrl.u32 %v5035, 7
    %v5037 = vsub.s32 %v5034, %v5036
    %v5038 = vrot.slane %v5030, %v5037
    %v5040 = vunpack.c.l.s4 1983009808
    %v5041 = vunpack.c.0.s8 %v5040
    %v5042 = vlaneseq
    %v5043 = vshrl.u32 %v5042, 7
    %v5044 = vsub.s32 %v5041, %v5043
    %v5045 = vrot.slane %v5031, %v5044
    %v5046 = vcombine.low %v4874, %v4876
    %v5047 = vcombine.high %v4874, %v4876
    %v5049 = vunpack.c.l.s4 1983009808
    %v5050 = vunpack.c.0.s8 %v5049
    %v5051 = vlaneseq
    %v5052 = vshrl.u32 %v5051, 7
    %v5053 = vsub.s32 %v5050, %v5052
    %v5054 = vrot.slane %v5046, %v5053
    %v5056 = vunpack.c.l.s4 1983009808
    %v5057 = vunpack.c.0.s8 %v5056
    %v5058 = vlaneseq
    %v5059 = vshrl.u32 %v5058, 7
    %v5060 = vsub.s32 %v5057, %v5059
    %v5061 = vrot.slane %v5047, %v5060
    %v5062 = vcombine.low %v4875, %v4877
    %v5063 = vcombine.high %v4875, %v4877
    %v5065 = vunpack.c.l.s4 1983009808
    %v5066 = vunpack.c.0.s8 %v5065
    %v5067 = vlaneseq
    %v5068 = vshrl.u32 %v5067, 7
    %v5069 = vsub.s32 %v5066, %v5068
    %v5070 = vrot.slane %v5062, %v5069
    %v5072 = vunpack.c.l.s4 1983009808
    %v5073 = vunpack.c.0.s8 %v5072
    %v5074 = vlaneseq
    %v5075 = vshrl.u32 %v5074, 7
    %v5076 = vsub.s32 %v5073, %v5075
    %v5077 = vrot.slane %v5063, %v5076
    %v5078 = vcombine.low %v5022, %v5038
    %v5079 = vcombine.high %v5022, %v5038
    %v5081 = vunpack.c.l.s4 1934713408
    %v5082 = vunpack.c.0.s8 %v5081
    %v5083 = vlaneseq
    %v5084 = vshrl.u32 %v5083, 7
    %v5085 = vsub.s32 %v5082, %v5084
    %v5086 = vrot.slane %v5078, %v5085
    %v5088 = vunpack.c.l.s4 1934713408
    %v5089 = vunpack.c.0.s8 %v5088
    %v5090 = vlaneseq
    %v5091 = vshrl.u32 %v5090, 7
    %v5092 = vsub.s32 %v5089, %v5091
    %v5093 = vrot.slane %v5079, %v5092
    %v5094 = vcombine.low %v5029, %v5045
    %v5095 = vcombine.high %v5029, %v5045
    %v5097 = vunpack.c.l.s4 1934713408
    %v5098 = vunpack.c.0.s8 %v5097
    %v5099 = vlaneseq
    %v5100 = vshrl.u32 %v5099, 7
    %v5101 = vsub.s32 %v5098, %v5100
    %v5102 = vrot.slane %v5094, %v5101
    %v5104 = vunpack.c.l.s4 1934713408
    %v5105 = vunpack.c.0.s8 %v5104
    %v5106 = vlaneseq
    %v5107 = vshrl.u32 %v5106, 7
    %v5108 = vsub.s32 %v5105, %v5107
    %v5109 = vrot.slane %v5095, %v5108
    %v5110 = vcombine.low %v5054, %v5070
    %v5111 = vcombine.high %v5054, %v5070
    %v5113 = vunpack.c.l.s4 1934713408
    %v5114 = vunpack.c.0.s8 %v5113
    %v5115 = vlaneseq
    %v5116 = vshrl.u32 %v5115, 7
    %v5117 = vsub.s32 %v5114, %v5116
    %v5118 = vrot.slane %v5110, %v5117
    %v5120 = vunpack.c.l.s4 1934713408
    %v5121 = vunpack.c.0.s8 %v5120
    %v5122 = vlaneseq
    %v5123 = vshrl.u32 %v5122, 7
    %v5124 = vsub.s32 %v5121, %v5123
    %v5125 = vrot.slane %v5111, %v5124
    %v5126 = vcombine.low %v5061, %v5077
    %v5127 = vcombine.high %v5061, %v5077
    %v5129 = vunpack.c.l.s4 1934713408
    %v5130 = vunpack.c.0.s8 %v5129
    %v5131 = vlaneseq
    %v5132 = vshrl.u32 %v5131, 7
    %v5133 = vsub.s32 %v5130, %v5132
    %v5134 = vrot.slane %v5126, %v5133
    %v5136 = vunpack.c.l.s4 1934713408
    %v5137 = vunpack.c.0.s8 %v5136
    %v5138 = vlaneseq
    %v5139 = vshrl.u32 %v5138, 7
    %v5140 = vsub.s32 %v5137, %v5139
    %v5141 = vrot.slane %v5127, %v5140
    %v5142 = vcombine.low %v5086, %v5118
    %v5143 = vcombine.high %v5086, %v5118
    %v5144 = vcombine.low %v5093, %v5125
    %v5145 = vcombine.high %v5093, %v5125
    %v5146 = vcombine.low %v5102, %v5134
    %v5147 = vcombine.high %v5102, %v5134
    %v5148 = vcombine.low %v5109, %v5141
    %v5149 = vcombine.high %v5109, %v5141
    %5152 = vrot.lane.b32.xlu0 %v5007, 8
    %v5153 = vpop.permute.xlu0 %5152
    %5154 = vrot.lane.b32.xlu0 %v5143, 8
    %v5155 = vpop.permute.xlu0 %5154
    %5160 = vrot.lane.b32.xlu0 %v5008, 16
    %v5161 = vpop.permute.xlu0 %5160
    %5162 = vrot.lane.b32.xlu0 %v5144, 16
    %v5163 = vpop.permute.xlu0 %5162
    %5168 = vrot.lane.b32.xlu0 %v5009, 24
    %v5169 = vpop.permute.xlu0 %5168
    %5170 = vrot.lane.b32.xlu0 %v5145, 24
    %v5171 = vpop.permute.xlu0 %5170
    %5176 = vrot.lane.b32.xlu0 %v5010, 32
    %v5177 = vpop.permute.xlu0 %5176
    %5178 = vrot.lane.b32.xlu0 %v5146, 32
    %v5179 = vpop.permute.xlu0 %5178
    %5184 = vrot.lane.b32.xlu0 %v5011, 40
    %v5185 = vpop.permute.xlu0 %5184
    %5186 = vrot.lane.b32.xlu0 %v5147, 40
    %v5187 = vpop.permute.xlu0 %5186
    %5192 = vrot.lane.b32.xlu0 %v5012, 48
    %v5193 = vpop.permute.xlu0 %5192
    %5194 = vrot.lane.b32.xlu0 %v5148, 48
    %v5195 = vpop.permute.xlu0 %5194
    %5200 = vrot.lane.b32.xlu0 %v5013, 56
    %v5201 = vpop.permute.xlu0 %5200
    %5202 = vrot.lane.b32.xlu0 %v5149, 56
    %v5203 = vpop.permute.xlu0 %5202
    %v5206 = vsel %vm2045, %v5006, %v5153
    %v5207 = vsel %vm2045, %v5142, %v5155
    %v5208 = vsel %vm78, %v5206, %v5161
    %v5209 = vsel %vm78, %v5207, %v5163
    %vm5210 = vcmask 195584
    %v5211 = vsel %vm5210, %v5208, %v5169
    %v5212 = vsel %vm5210, %v5209, %v5171
    %vm5213 = vcmask 261120
    %v5214 = vsel %vm5213, %v5211, %v5177
    %v5215 = vsel %vm5213, %v5212, %v5179
    %vm5216 = vcmask 326656
    %v5217 = vsel %vm5216, %v5214, %v5185
    %v5218 = vsel %vm5216, %v5215, %v5187
    %vm5219 = vcmask 392192
    %v5220 = vsel %vm5219, %v5217, %v5193
    %v5221 = vsel %vm5219, %v5218, %v5195
    %vm5222 = vcmask 457728
    %v5223 = vsel %vm5222, %v5220, %v5201
    %v5224 = vsel %vm5222, %v5221, %v5203
    %v5225 = vld [vmem:[%s6] sm:$0xff]
    %v5226 = vld [vmem:[%s6 + $0x8] sm:$0xff]
    %v5227 = vld [vmem:[%s6 + $0x10] sm:$0xff]
    %v5228 = vld [vmem:[%s6 + $0x18] sm:$0xff]
    %v5229 = vld [vmem:[%s6 + $0x20] sm:$0xff]
    %v5230 = vld [vmem:[%s6 + $0x28] sm:$0xff]
    %v5231 = vld [vmem:[%s6 + $0x30] sm:$0xff]
    %v5232 = vld [vmem:[%s6 + $0x38] sm:$0xff]
    %v5233 = vld [vmem:[%s7] sm:$0x1]
    %v5235 = vlaneseq
    %v5236 = vshrl.u32 %v5235, 7
    %v5237 = vsub.s32 0, %v5236
    %v5238 = vrot.slane %v5233, %v5237
    %v5241 = vsel %vm193, %v5223, 0
    %v5244 = vsel %vm193, %v5224, 0
    %5246 = vmatprep.subr.mxu0 0.0
    %5247 = vmatpush1.msra.mxu0 %v5225
    %5248 = vmatprep.subr.mxu0 0.0
    %5249 = vmatpush1.msra.mxu0 %v5226
    %5250 = vmatprep.subr.mxu0 0.0
    %5251 = vmatpush1.msra.mxu0 %v5227
    %5252 = vmatprep.subr.mxu0 0.0
    %5253 = vmatpush1.msra.mxu0 %v5228
    %5254 = vmatprep.subr.mxu0 0.0
    %5255 = vmatpush1.msra.mxu0 %v5229
    %5256 = vmatprep.subr.mxu0 0.0
    %5257 = vmatpush1.msra.mxu0 %v5230
    %5258 = vmatprep.subr.mxu0 0.0
    %5259 = vmatpush1.msra.mxu0 %v5231
    %5260 = vmatprep.subr.mxu0 0.0
    %5261 = vmatpush1.msra.mxu0 %v5232
    %5262 = vmatprep.subr.mxu0 0.0
    %5263 = vmatpush1.msra.mxu0 0.0
    %5264 = vmatprep.subr.mxu0 0.0
    %5265 = vmatpush1.msra.mxu0 0.0
    %5266 = vmatprep.subr.mxu0 0.0
    %5267 = vmatpush1.msra.mxu0 0.0
    %5268 = vmatprep.subr.mxu0 0.0
    %5269 = vmatpush1.msra.mxu0 0.0
    %5270 = vmatprep.subr.mxu0 0.0
    %5271 = vmatpush1.msra.mxu0 0.0
    %5272 = vmatprep.subr.mxu0 0.0
    %5273 = vmatpush1.msra.mxu0 0.0
    %5274 = vmatprep.subr.mxu0 0.0
    %5275 = vmatpush1.msra.mxu0 0.0
    %5276 = vmatprep.subr.mxu0 0.0
    %5277 = vmatpush1.msra.mxu0 0.0
    %5278 = vmatprep.subr.mxu0 0.0
    %5279 = vmatpush1.msra.mxu0 0.0
    %5280 = vmatprep.subr.mxu0 0.0
    %5281 = vmatpush1.msra.mxu0 0.0
    %5282 = vmatprep.subr.mxu0 0.0
    %5283 = vmatpush1.msra.mxu0 0.0
    %5284 = vmatprep.subr.mxu0 0.0
    %5285 = vmatpush1.msra.mxu0 0.0
    %5286 = vmatprep.subr.mxu0 0.0
    %5287 = vmatpush1.msra.mxu0 0.0
    %5288 = vmatprep.subr.mxu0 0.0
    %5289 = vmatpush1.msra.mxu0 0.0
    %5290 = vmatprep.subr.mxu0 0.0
    %5291 = vmatpush1.msra.mxu0 0.0
    %5292 = vmatprep.subr.mxu0 0.0
    %5293 = vmatpush1.msra.mxu0 0.0
    %5294 = vmatprep.subr.mxu0 0.0
    %5295 = vmatpush1.msra.mxu0 0.0
    %5296 = vmatprep.subr.mxu0 0.0
    %5297 = vmatpush1.msra.mxu0 0.0
    %5298 = vmatprep.subr.mxu0 0.0
    %5299 = vmatpush1.msra.mxu0 0.0
    %5300 = vmatprep.subr.mxu0 0.0
    %5301 = vmatpush1.msra.mxu0 0.0
    %5302 = vmatprep.subr.mxu0 0.0
    %5303 = vmatpush1.msra.mxu0 0.0
    %5304 = vmatprep.subr.mxu0 0.0
    %5305 = vmatpush1.msra.mxu0 0.0
    %5306 = vmatprep.subr.mxu0 0.0
    %5307 = vmatpush1.msra.mxu0 0.0
    %5308 = vmatprep.subr.mxu0 0.0
    %5309 = vmatpush1.msra.mxu0 0.0
    %5310 = vmatprep.mubr.f32.mxu0 0.0
    %5311 = vmatmul.mubr.f32.gmra.mrb[0].mxu0 %v5241
    %v5312 = vpop.f32.mrb[0].mxu0
    %v5313 = vadd.f32 %v5238, %v5312
    %v5314 = vpop.f32.mrb[0].mxu0
    %5315 = vmatprep.mubr.f32.mxu0 0.0
    %5316 = vmatmul.mubr.f32.gmra.mrb[0].mxu0 %v5244
    %v5317 = vpop.f32.mrb[0].mxu0
    %v5318 = vadd.f32 %v5238, %v5317
    %v5319 = vpop.f32.mrb[0].mxu0
    %5320 = vdwg.mxu0
    %v5321 = vadd.f32 %v163, %v5313
    %v5322 = vadd.f32 %v164, %v5318
    %v5323 = vld [vmem:[%s8] sm:$0x1]
    %v5324 = vld [vmem:[%s9] sm:$0x1]
    %v5325 = vsel %vm193, %v5321, 0.0
    %5326 = vadd.xlane.f32.xlu0 %v5325
    %v5327 = vpop.xlane.xlu0 %5326
    %v5328 = vsel %vm193, %v5322, 0.0
    %5329 = vadd.xlane.f32.xlu0 %v5328
    %v5330 = vpop.xlane.xlu0 %5329
    %v5331 = vrcp.pop 64.0
    %v5332 = vmul.f32 %v5327, %v5331
    %v5333 = vmul.f32 %v5330, %v5331
    %v5334 = vsub.f32 %v5321, %v5332
    %v5335 = vsub.f32 %v5322, %v5333
    %v5336 = vmul.f32 %v5334, %v5334
    %v5337 = vmul.f32 %v5335, %v5335
    %v5338 = vsel %vm193, %v5336, 0.0
    %5339 = vadd.xlane.f32.xlu0 %v5338
    %v5340 = vpop.xlane.xlu0 %5339
    %v5341 = vsel %vm193, %v5337, 0.0
    %5342 = vadd.xlane.f32.xlu0 %v5341
    %v5343 = vpop.xlane.xlu0 %5342
    %v5344 = vmul.f32 %v5340, %v5331
    %v5345 = vmul.f32 %v5343, %v5331
    %v5346 = vadd.f32 %v5344, 1e-05
    %v5347 = vadd.f32 %v5345, 1e-05
    %v5348 = vrsqrt.pop %v5346
    %v5349 = vrsqrt.pop %v5347
    %v5350 = vmul.f32 %v5334, %v5348
    %v5351 = vmul.f32 %v5335, %v5349
    %v5353 = vlaneseq
    %v5354 = vshrl.u32 %v5353, 7
    %v5355 = vsub.s32 0, %v5354
    %v5356 = vrot.slane %v5323, %v5355
    %v5358 = vmul.f32 %v5350, %v5356
    %v5359 = vmul.f32 %v5351, %v5356
    %v5361 = vlaneseq
    %v5362 = vshrl.u32 %v5361, 7
    %v5363 = vsub.s32 0, %v5362
    %v5364 = vrot.slane %v5324, %v5363
    %v5366 = vadd.f32 %v5358, %v5364
    %v5367 = vadd.f32 %v5359, %v5364
    %v5368 = vld [vmem:[#allocation2] sm:$0xff]
    %v5369 = vld [vmem:[#allocation2 + $0x8] sm:$0xff]
    %v5370 = vld [vmem:[#allocation2 + $0x10] sm:$0xff]
    %v5371 = vld [vmem:[#allocation2 + $0x18] sm:$0xff]
    %v5372 = vld [vmem:[#allocation2 + $0x20] sm:$0xff]
    %v5373 = vld [vmem:[#allocation2 + $0x28] sm:$0xff]
    %v5374 = vld [vmem:[#allocation2 + $0x30] sm:$0xff]
    %v5375 = vld [vmem:[#allocation2 + $0x38] sm:$0xff]
    %v5376 = vld [vmem:[%s13] sm:$0x1]
    %v5378 = vlaneseq
    %v5379 = vshrl.u32 %v5378, 7
    %v5380 = vsub.s32 0, %v5379
    %v5381 = vrot.slane %v5376, %v5380
    %v5384 = vsel %vm193, %v5366, 0
    %v5387 = vsel %vm193, %v5367, 0
    %5389 = vmatprep.subr.mxu0 0.0
    %5390 = vmatpush1.msra.mxu0 %v5368
    %5391 = vmatprep.subr.mxu0 0.0
    %5392 = vmatpush1.msra.mxu0 %v5369
    %5393 = vmatprep.subr.mxu0 0.0
    %5394 = vmatpush1.msra.mxu0 %v5370
    %5395 = vmatprep.subr.mxu0 0.0
    %5396 = vmatpush1.msra.mxu0 %v5371
    %5397 = vmatprep.subr.mxu0 0.0
    %5398 = vmatpush1.msra.mxu0 %v5372
    %5399 = vmatprep.subr.mxu0 0.0
    %5400 = vmatpush1.msra.mxu0 %v5373
    %5401 = vmatprep.subr.mxu0 0.0
    %5402 = vmatpush1.msra.mxu0 %v5374
    %5403 = vmatprep.subr.mxu0 0.0
    %5404 = vmatpush1.msra.mxu0 %v5375
    %5405 = vmatprep.subr.mxu0 0.0
    %5406 = vmatpush1.msra.mxu0 0.0
    %5407 = vmatprep.subr.mxu0 0.0
    %5408 = vmatpush1.msra.mxu0 0.0
    %5409 = vmatprep.subr.mxu0 0.0
    %5410 = vmatpush1.msra.mxu0 0.0
    %5411 = vmatprep.subr.mxu0 0.0
    %5412 = vmatpush1.msra.mxu0 0.0
    %5413 = vmatprep.subr.mxu0 0.0
    %5414 = vmatpush1.msra.mxu0 0.0
    %5415 = vmatprep.subr.mxu0 0.0
    %5416 = vmatpush1.msra.mxu0 0.0
    %5417 = vmatprep.subr.mxu0 0.0
    %5418 = vmatpush1.msra.mxu0 0.0
    %5419 = vmatprep.subr.mxu0 0.0
    %5420 = vmatpush1.msra.mxu0 0.0
    %5421 = vmatprep.subr.mxu0 0.0
    %5422 = vmatpush1.msra.mxu0 0.0
    %5423 = vmatprep.subr.mxu0 0.0
    %5424 = vmatpush1.msra.mxu0 0.0
    %5425 = vmatprep.subr.mxu0 0.0
    %5426 = vmatpush1.msra.mxu0 0.0
    %5427 = vmatprep.subr.mxu0 0.0
    %5428 = vmatpush1.msra.mxu0 0.0
    %5429 = vmatprep.subr.mxu0 0.0
    %5430 = vmatpush1.msra.mxu0 0.0
    %5431 = vmatprep.subr.mxu0 0.0
    %5432 = vmatpush1.msra.mxu0 0.0
    %5433 = vmatprep.subr.mxu0 0.0
    %5434 = vmatpush1.msra.mxu0 0.0
    %5435 = vmatprep.subr.mxu0 0.0
    %5436 = vmatpush1.msra.mxu0 0.0
    %5437 = vmatprep.subr.mxu0 0.0
    %5438 = vmatpush1.msra.mxu0 0.0
    %5439 = vmatprep.subr.mxu0 0.0
    %5440 = vmatpush1.msra.mxu0 0.0
    %5441 = vmatprep.subr.mxu0 0.0
    %5442 = vmatpush1.msra.mxu0 0.0
    %5443 = vmatprep.subr.mxu0 0.0
    %5444 = vmatpush1.msra.mxu0 0.0
    %5445 = vmatprep.subr.mxu0 0.0
    %5446 = vmatpush1.msra.mxu0 0.0
    %5447 = vmatprep.subr.mxu0 0.0
    %5448 = vmatpush1.msra.mxu0 0.0
    %5449 = vmatprep.subr.mxu0 0.0
    %5450 = vmatpush1.msra.mxu0 0.0
    %5451 = vmatprep.subr.mxu0 0.0
    %5452 = vmatpush1.msra.mxu0 0.0
    %5453 = vmatprep.mubr.f32.mxu0 0.0
    %5454 = vmatmul.mubr.f32.gmra.mrb[0].mxu0 %v5384
    %v5455 = vpop.f32.mrb[0].mxu0
    %v5456 = vadd.f32 %v5381, %v5455
    %v5457 = vpop.f32.mrb[0].mxu0
    %5458 = vmatprep.mubr.f32.mxu0 0.0
    %5459 = vmatmul.mubr.f32.gmra.mrb[0].mxu0 %v5387
    %v5460 = vpop.f32.mrb[0].mxu0
    %v5461 = vadd.f32 %v5381, %v5460
    %v5462 = vpop.f32.mrb[0].mxu0
    %5463 = vdwg.mxu0
    %v5464 = vmax.f32 %v5456, 0.0
    %v5465 = vmax.f32 %v5461, 0.0
    %v5466 = vld [vmem:[%s14] sm:$0xff]
    %v5467 = vld [vmem:[%s14 + $0x8] sm:$0xff]
    %v5468 = vld [vmem:[%s14 + $0x10] sm:$0xff]
    %v5469 = vld [vmem:[%s14 + $0x18] sm:$0xff]
    %v5470 = vld [vmem:[%s14 + $0x20] sm:$0xff]
    %v5471 = vld [vmem:[%s14 + $0x28] sm:$0xff]
    %v5472 = vld [vmem:[%s14 + $0x30] sm:$0xff]
    %v5473 = vld [vmem:[%s14 + $0x38] sm:$0xff]
    %v5474 = vld [vmem:[%s14 + $0x40] sm:$0xff]
    %v5475 = vld [vmem:[%s14 + $0x48] sm:$0xff]
    %v5476 = vld [vmem:[%s14 + $0x50] sm:$0xff]
    %v5477 = vld [vmem:[%s14 + $0x58] sm:$0xff]
    %v5478 = vld [vmem:[%s14 + $0x60] sm:$0xff]
    %v5479 = vld [vmem:[%s14 + $0x68] sm:$0xff]
    %v5480 = vld [vmem:[%s14 + $0x70] sm:$0xff]
    %v5481 = vld [vmem:[%s14 + $0x78] sm:$0xff]
    %v5482 = vld [vmem:[%s15] sm:$0x1]
    %v5484 = vlaneseq
    %v5485 = vshrl.u32 %v5484, 7
    %v5486 = vsub.s32 0, %v5485
    %v5487 = vrot.slane %v5482, %v5486
    %5489 = vmatprep.subr.mxu0 0.0
    %5490 = vmatpush1.msra.mxu0 %v5466
    %5491 = vmatprep.subr.mxu0 0.0
    %5492 = vmatpush1.msra.mxu0 %v5467
    %5493 = vmatprep.subr.mxu0 0.0
    %5494 = vmatpush1.msra.mxu0 %v5468
    %5495 = vmatprep.subr.mxu0 0.0
    %5496 = vmatpush1.msra.mxu0 %v5469
    %5497 = vmatprep.subr.mxu0 0.0
    %5498 = vmatpush1.msra.mxu0 %v5470
    %5499 = vmatprep.subr.mxu0 0.0
    %5500 = vmatpush1.msra.mxu0 %v5471
    %5501 = vmatprep.subr.mxu0 0.0
    %5502 = vmatpush1.msra.mxu0 %v5472
    %5503 = vmatprep.subr.mxu0 0.0
    %5504 = vmatpush1.msra.mxu0 %v5473
    %5505 = vmatprep.subr.mxu0 0.0
    %5506 = vmatpush1.msra.mxu0 %v5474
    %5507 = vmatprep.subr.mxu0 0.0
    %5508 = vmatpush1.msra.mxu0 %v5475
    %5509 = vmatprep.subr.mxu0 0.0
    %5510 = vmatpush1.msra.mxu0 %v5476
    %5511 = vmatprep.subr.mxu0 0.0
    %5512 = vmatpush1.msra.mxu0 %v5477
    %5513 = vmatprep.subr.mxu0 0.0
    %5514 = vmatpush1.msra.mxu0 %v5478
    %5515 = vmatprep.subr.mxu0 0.0
    %5516 = vmatpush1.msra.mxu0 %v5479
    %5517 = vmatprep.subr.mxu0 0.0
    %5518 = vmatpush1.msra.mxu0 %v5480
    %5519 = vmatprep.subr.mxu0 0.0
    %5520 = vmatpush1.msra.mxu0 %v5481
    %5521 = vmatprep.subr.mxu0 0.0
    %5522 = vmatpush1.msra.mxu0 0.0
    %5523 = vmatprep.subr.mxu0 0.0
    %5524 = vmatpush1.msra.mxu0 0.0
    %5525 = vmatprep.subr.mxu0 0.0
    %5526 = vmatpush1.msra.mxu0 0.0
    %5527 = vmatprep.subr.mxu0 0.0
    %5528 = vmatpush1.msra.mxu0 0.0
    %5529 = vmatprep.subr.mxu0 0.0
    %5530 = vmatpush1.msra.mxu0 0.0
    %5531 = vmatprep.subr.mxu0 0.0
    %5532 = vmatpush1.msra.mxu0 0.0
    %5533 = vmatprep.subr.mxu0 0.0
    %5534 = vmatpush1.msra.mxu0 0.0
    %5535 = vmatprep.subr.mxu0 0.0
    %5536 = vmatpush1.msra.mxu0 0.0
    %5537 = vmatprep.subr.mxu0 0.0
    %5538 = vmatpush1.msra.mxu0 0.0
    %5539 = vmatprep.subr.mxu0 0.0
    %5540 = vmatpush1.msra.mxu0 0.0
    %5541 = vmatprep.subr.mxu0 0.0
    %5542 = vmatpush1.msra.mxu0 0.0
    %5543 = vmatprep.subr.mxu0 0.0
    %5544 = vmatpush1.msra.mxu0 0.0
    %5545 = vmatprep.subr.mxu0 0.0
    %5546 = vmatpush1.msra.mxu0 0.0
    %5547 = vmatprep.subr.mxu0 0.0
    %5548 = vmatpush1.msra.mxu0 0.0
    %5549 = vmatprep.subr.mxu0 0.0
    %5550 = vmatpush1.msra.mxu0 0.0
    %5551 = vmatprep.subr.mxu0 0.0
    %5552 = vmatpush1.msra.mxu0 0.0
    %5553 = vmatprep.mubr.f32.mxu0 0.0
    %5554 = vmatmul.mubr.f32.gmra.mrb[0].mxu0 %v5464
    %v5555 = vpop.f32.mrb[0].mxu0
    %v5556 = vadd.f32 %v5487, %v5555
    %v5557 = vpop.f32.mrb[0].mxu0
    %5558 = vmatprep.mubr.f32.mxu0 0.0
    %5559 = vmatmul.mubr.f32.gmra.mrb[0].mxu0 %v5465
    %v5560 = vpop.f32.mrb[0].mxu0
    %v5561 = vadd.f32 %v5487, %v5560
    %v5562 = vpop.f32.mrb[0].mxu0
    %5563 = vdwg.mxu0
    %v5564 = vadd.f32 %v5366, %v5556
    %v5565 = vadd.f32 %v5367, %v5561
    %v5566 = vld [vmem:[%s10] sm:$0x1]
    %v5567 = vld [vmem:[%s11] sm:$0x1]
    %v5568 = vsel %vm193, %v5564, 0.0
    %5569 = vadd.xlane.f32.xlu0 %v5568
    %v5570 = vpop.xlane.xlu0 %5569
    %v5571 = vsel %vm193, %v5565, 0.0
    %5572 = vadd.xlane.f32.xlu0 %v5571
    %v5573 = vpop.xlane.xlu0 %5572
    %v5574 = vmul.f32 %v5570, %v5331
    %v5575 = vmul.f32 %v5573, %v5331
    %v5576 = vsub.f32 %v5564, %v5574
    %v5577 = vsub.f32 %v5565, %v5575
    %v5578 = vmul.f32 %v5576, %v5576
    %v5579 = vmul.f32 %v5577, %v5577
    %v5580 = vsel %vm193, %v5578, 0.0
    %5581 = vadd.xlane.f32.xlu0 %v5580
    %v5582 = vpop.xlane.xlu0 %5581
    %v5583 = vsel %vm193, %v5579, 0.0
    %5584 = vadd.xlane.f32.xlu0 %v5583
    %v5585 = vpop.xlane.xlu0 %5584
    %v5586 = vmul.f32 %v5582, %v5331
    %v5587 = vmul.f32 %v5585, %v5331
    %v5588 = vadd.f32 %v5586, 1e-05
    %v5589 = vadd.f32 %v5587, 1e-05
    %v5590 = vrsqrt.pop %v5588
    %v5591 = vrsqrt.pop %v5589
    %v5592 = vmul.f32 %v5576, %v5590
    %v5593 = vmul.f32 %v5577, %v5591
    %v5595 = vlaneseq
    %v5596 = vshrl.u32 %v5595, 7
    %v5597 = vsub.s32 0, %v5596
    %v5598 = vrot.slane %v5566, %v5597
    %v5600 = vmul.f32 %v5592, %v5598
    %v5601 = vmul.f32 %v5593, %v5598
    %v5603 = vlaneseq
    %v5604 = vshrl.u32 %v5603, 7
    %v5605 = vsub.s32 0, %v5604
    %v5606 = vrot.slane %v5567, %v5605
    %v5608 = vadd.f32 %v5600, %v5606
    %v5609 = vadd.f32 %v5601, %v5606
    %s5610 = scalar_lea.vmem %s4, 128
    %v5611 = vld [vmem:[%s5610] sm:$0xff]
    %v5612 = vld [vmem:[%s5610 + $0x8] sm:$0xff]
    %v5613 = vld [vmem:[%s5610 + $0x10] sm:$0xff]
    %v5614 = vld [vmem:[%s5610 + $0x18] sm:$0xff]
    %v5615 = vld [vmem:[%s5610 + $0x20] sm:$0xff]
    %v5616 = vld [vmem:[%s5610 + $0x28] sm:$0xff]
    %v5617 = vld [vmem:[%s5610 + $0x30] sm:$0xff]
    %v5618 = vld [vmem:[%s5610 + $0x38] sm:$0xff]
    %v5619 = vld [vmem:[%s5610 + $0x40] sm:$0xff]
    %v5620 = vld [vmem:[%s5610 + $0x48] sm:$0xff]
    %v5621 = vld [vmem:[%s5610 + $0x50] sm:$0xff]
    %v5622 = vld [vmem:[%s5610 + $0x58] sm:$0xff]
    %v5623 = vld [vmem:[%s5610 + $0x60] sm:$0xff]
    %v5624 = vld [vmem:[%s5610 + $0x68] sm:$0xff]
    %v5625 = vld [vmem:[%s5610 + $0x70] sm:$0xff]
    %v5626 = vld [vmem:[%s5610 + $0x78] sm:$0xff]
    %s5627 = scalar_lea.vmem %s5, 2
    %v5628 = vld [vmem:[%s5627] sm:$0x3]
    %v5630 = vlaneseq
    %v5631 = vshrl.u32 %v5630, 7
    %v5632 = vsub.s32 0, %v5631
    %v5633 = vrot.slane %v5628, %v5632
    %v5634 = vlaneseq
    %v5635 = vshrl.u32 %v5634, 7
    %v5636 = vsub.s32 1, %v5635
    %v5637 = vrot.slane %v5628, %v5636
    %v5641 = vsel %vm193, %v5608, 0
    %v5644 = vsel %vm193, %v5609, 0
    %5646 = vmatprep.subr.mxu0 %v5612
    %5647 = vmatpush1.msra.mxu0 %v5611
    %5648 = vmatprep.subr.mxu0 %v5614
    %5649 = vmatpush1.msra.mxu0 %v5613
    %5650 = vmatprep.subr.mxu0 %v5616
    %5651 = vmatpush1.msra.mxu0 %v5615
    %5652 = vmatprep.subr.mxu0 %v5618
    %5653 = vmatpush1.msra.mxu0 %v5617
    %5654 = vmatprep.subr.mxu0 %v5620
    %5655 = vmatpush1.msra.mxu0 %v5619
    %5656 = vmatprep.subr.mxu0 %v5622
    %5657 = vmatpush1.msra.mxu0 %v5621
    %5658 = vmatprep.subr.mxu0 %v5624
    %5659 = vmatpush1.msra.mxu0 %v5623
    %5660 = vmatprep.subr.mxu0 %v5626
    %5661 = vmatpush1.msra.mxu0 %v5625
    %5662 = vmatprep.subr.mxu0 0.0
    %5663 = vmatpush1.msra.mxu0 0.0
    %5664 = vmatprep.subr.mxu0 0.0
    %5665 = vmatpush1.msra.mxu0 0.0
    %5666 = vmatprep.subr.mxu0 0.0
    %5667 = vmatpush1.msra.mxu0 0.0
    %5668 = vmatprep.subr.mxu0 0.0
    %5669 = vmatpush1.msra.mxu0 0.0
    %5670 = vmatprep.subr.mxu0 0.0
    %5671 = vmatpush1.msra.mxu0 0.0
    %5672 = vmatprep.subr.mxu0 0.0
    %5673 = vmatpush1.msra.mxu0 0.0
    %5674 = vmatprep.subr.mxu0 0.0
    %5675 = vmatpush1.msra.mxu0 0.0
    %5676 = vmatprep.subr.mxu0 0.0
    %5677 = vmatpush1.msra.mxu0 0.0
    %5678 = vmatprep.subr.mxu0 0.0
    %5679 = vmatpush1.msra.mxu0 0.0
    %5680 = vmatprep.subr.mxu0 0.0
    %5681 = vmatpush1.msra.mxu0 0.0
    %5682 = vmatprep.subr.mxu0 0.0
    %5683 = vmatpush1.msra.mxu0 0.0
    %5684 = vmatprep.subr.mxu0 0.0
    %5685 = vmatpush1.msra.mxu0 0.0
    %5686 = vmatprep.subr.mxu0 0.0
    %5687 = vmatpush1.msra.mxu0 0.0
    %5688 = vmatprep.subr.mxu0 0.0
    %5689 = vmatpush1.msra.mxu0 0.0
    %5690 = vmatprep.subr.mxu0 0.0
    %5691 = vmatpush1.msra.mxu0 0.0
    %5692 = vmatprep.subr.mxu0 0.0
    %5693 = vmatpush1.msra.mxu0 0.0
    %5694 = vmatprep.subr.mxu0 0.0
    %5695 = vmatpush1.msra.mxu0 0.0
    %5696 = vmatprep.subr.mxu0 0.0
    %5697 = vmatpush1.msra.mxu0 0.0
    %5698 = vmatprep.subr.mxu0 0.0
    %5699 = vmatpush1.msra.mxu0 0.0
    %5700 = vmatprep.subr.mxu0 0.0
    %5701 = vmatpush1.msra.mxu0 0.0
    %5702 = vmatprep.subr.mxu0 0.0
    %5703 = vmatpush1.msra.mxu0 0.0
    %5704 = vmatprep.subr.mxu0 0.0
    %5705 = vmatpush1.msra.mxu0 0.0
    %5706 = vmatprep.subr.mxu0 0.0
    %5707 = vmatpush1.msra.mxu0 0.0
    %5708 = vmatprep.subr.mxu0 0.0
    %5709 = vmatpush1.msra.mxu0 0.0
    %5710 = vmatprep.mubr.f32.mxu0 0.0
    %5711 = vmatmul.mubr.f32.gmra.mrb[0].mxu0 %v5641
    %v5712 = vpop.f32.mrb[0].mxu0
    %v5713 = vadd.f32 %v5633, %v5712
    %v5714 = vpop.f32.mrb[0].mxu0
    %v5715 = vadd.f32 %v5637, %v5714
    %5716 = vmatprep.mubr.f32.mxu0 0.0
    %5717 = vmatmul.mubr.f32.gmra.mrb[0].mxu0 %v5644
    %v5718 = vpop.f32.mrb[0].mxu0
    %v5719 = vadd.f32 %v5633, %v5718
    %v5720 = vpop.f32.mrb[0].mxu0
    %v5721 = vadd.f32 %v5637, %v5720
    %5722 = vdwg.mxu0
    %5725 = vrot.lane.b32.xlu0 %v5713, 120
    %v5726 = vpop.permute.xlu0 %5725
    %5727 = vrot.lane.b32.xlu0 %v5719, 120
    %v5728 = vpop.permute.xlu0 %5727
    %5731 = vrot.lane.b32.xlu0 %v5713, 112
    %v5732 = vpop.permute.xlu0 %5731
    %5733 = vrot.lane.b32.xlu0 %v5719, 112
    %v5734 = vpop.permute.xlu0 %5733
    %5737 = vrot.lane.b32.xlu0 %v5713, 104
    %v5738 = vpop.permute.xlu0 %5737
    %5739 = vrot.lane.b32.xlu0 %v5719, 104
    %v5740 = vpop.permute.xlu0 %5739
    %5743 = vrot.lane.b32.xlu0 %v5713, 96
    %v5744 = vpop.permute.xlu0 %5743
    %5745 = vrot.lane.b32.xlu0 %v5719, 96
    %v5746 = vpop.permute.xlu0 %5745
    %5749 = vrot.lane.b32.xlu0 %v5713, 88
    %v5750 = vpop.permute.xlu0 %5749
    %5751 = vrot.lane.b32.xlu0 %v5719, 88
    %v5752 = vpop.permute.xlu0 %5751
    %5755 = vrot.lane.b32.xlu0 %v5713, 80
    %v5756 = vpop.permute.xlu0 %5755
    %5757 = vrot.lane.b32.xlu0 %v5719, 80
    %v5758 = vpop.permute.xlu0 %5757
    %5761 = vrot.lane.b32.xlu0 %v5713, 72
    %v5762 = vpop.permute.xlu0 %5761
    %5763 = vrot.lane.b32.xlu0 %v5719, 72
    %v5764 = vpop.permute.xlu0 %5763
    %v5767 = vcombine.low %v5713, %v5732
    %v5768 = vcombine.high %v5713, %v5732
    %v5770 = vunpack.c.l.s4 1983009808
    %v5771 = vunpack.c.0.s8 %v5770
    %v5772 = vlaneseq
    %v5773 = vshrl.u32 %v5772, 7
    %v5774 = vsub.s32 %v5771, %v5773
    %v5775 = vrot.slane %v5767, %v5774
    %v5777 = vunpack.c.l.s4 1983009808
    %v5778 = vunpack.c.0.s8 %v5777
    %v5779 = vlaneseq
    %v5780 = vshrl.u32 %v5779, 7
    %v5781 = vsub.s32 %v5778, %v5780
    %v5782 = vrot.slane %v5768, %v5781
    %v5783 = vcombine.low %v5726, %v5738
    %v5784 = vcombine.high %v5726, %v5738
    %v5786 = vunpack.c.l.s4 1983009808
    %v5787 = vunpack.c.0.s8 %v5786
    %v5788 = vlaneseq
    %v5789 = vshrl.u32 %v5788, 7
    %v5790 = vsub.s32 %v5787, %v5789
    %v5791 = vrot.slane %v5783, %v5790
    %v5793 = vunpack.c.l.s4 1983009808
    %v5794 = vunpack.c.0.s8 %v5793
    %v5795 = vlaneseq
    %v5796 = vshrl.u32 %v5795, 7
    %v5797 = vsub.s32 %v5794, %v5796
    %v5798 = vrot.slane %v5784, %v5797
    %v5799 = vcombine.low %v5744, %v5756
    %v5800 = vcombine.high %v5744, %v5756
    %v5802 = vunpack.c.l.s4 1983009808
    %v5803 = vunpack.c.0.s8 %v5802
    %v5804 = vlaneseq
    %v5805 = vshrl.u32 %v5804, 7
    %v5806 = vsub.s32 %v5803, %v5805
    %v5807 = vrot.slane %v5799, %v5806
    %v5809 = vunpack.c.l.s4 1983009808
    %v5810 = vunpack.c.0.s8 %v5809
    %v5811 = vlaneseq
    %v5812 = vshrl.u32 %v5811, 7
    %v5813 = vsub.s32 %v5810, %v5812
    %v5814 = vrot.slane %v5800, %v5813
    %v5815 = vcombine.low %v5750, %v5762
    %v5816 = vcombine.high %v5750, %v5762
    %v5818 = vunpack.c.l.s4 1983009808
    %v5819 = vunpack.c.0.s8 %v5818
    %v5820 = vlaneseq
    %v5821 = vshrl.u32 %v5820, 7
    %v5822 = vsub.s32 %v5819, %v5821
    %v5823 = vrot.slane %v5815, %v5822
    %v5825 = vunpack.c.l.s4 1983009808
    %v5826 = vunpack.c.0.s8 %v5825
    %v5827 = vlaneseq
    %v5828 = vshrl.u32 %v5827, 7
    %v5829 = vsub.s32 %v5826, %v5828
    %v5830 = vrot.slane %v5816, %v5829
    %v5831 = vcombine.low %v5775, %v5791
    %v5832 = vcombine.high %v5775, %v5791
    %v5834 = vunpack.c.l.s4 1934713408
    %v5835 = vunpack.c.0.s8 %v5834
    %v5836 = vlaneseq
    %v5837 = vshrl.u32 %v5836, 7
    %v5838 = vsub.s32 %v5835, %v5837
    %v5839 = vrot.slane %v5831, %v5838
    %v5841 = vunpack.c.l.s4 1934713408
    %v5842 = vunpack.c.0.s8 %v5841
    %v5843 = vlaneseq
    %v5844 = vshrl.u32 %v5843, 7
    %v5845 = vsub.s32 %v5842, %v5844
    %v5846 = vrot.slane %v5832, %v5845
    %v5847 = vcombine.low %v5782, %v5798
    %v5848 = vcombine.high %v5782, %v5798
    %v5850 = vunpack.c.l.s4 1934713408
    %v5851 = vunpack.c.0.s8 %v5850
    %v5852 = vlaneseq
    %v5853 = vshrl.u32 %v5852, 7
    %v5854 = vsub.s32 %v5851, %v5853
    %v5855 = vrot.slane %v5847, %v5854
    %v5857 = vunpack.c.l.s4 1934713408
    %v5858 = vunpack.c.0.s8 %v5857
    %v5859 = vlaneseq
    %v5860 = vshrl.u32 %v5859, 7
    %v5861 = vsub.s32 %v5858, %v5860
    %v5862 = vrot.slane %v5848, %v5861
    %v5863 = vcombine.low %v5807, %v5823
    %v5864 = vcombine.high %v5807, %v5823
    %v5866 = vunpack.c.l.s4 1934713408
    %v5867 = vunpack.c.0.s8 %v5866
    %v5868 = vlaneseq
    %v5869 = vshrl.u32 %v5868, 7
    %v5870 = vsub.s32 %v5867, %v5869
    %v5871 = vrot.slane %v5863, %v5870
    %v5873 = vunpack.c.l.s4 1934713408
    %v5874 = vunpack.c.0.s8 %v5873
    %v5875 = vlaneseq
    %v5876 = vshrl.u32 %v5875, 7
    %v5877 = vsub.s32 %v5874, %v5876
    %v5878 = vrot.slane %v5864, %v5877
    %v5879 = vcombine.low %v5814, %v5830
    %v5880 = vcombine.high %v5814, %v5830
    %v5882 = vunpack.c.l.s4 1934713408
    %v5883 = vunpack.c.0.s8 %v5882
    %v5884 = vlaneseq
    %v5885 = vshrl.u32 %v5884, 7
    %v5886 = vsub.s32 %v5883, %v5885
    %v5887 = vrot.slane %v5879, %v5886
    %v5889 = vunpack.c.l.s4 1934713408
    %v5890 = vunpack.c.0.s8 %v5889
    %v5891 = vlaneseq
    %v5892 = vshrl.u32 %v5891, 7
    %v5893 = vsub.s32 %v5890, %v5892
    %v5894 = vrot.slane %v5880, %v5893
    %v5895 = vcombine.low %v5839, %v5871
    %v5896 = vcombine.high %v5839, %v5871
    %v5897 = vcombine.low %v5846, %v5878
    %v5898 = vcombine.high %v5846, %v5878
    %v5899 = vcombine.low %v5855, %v5887
    %v5900 = vcombine.high %v5855, %v5887
    %v5901 = vcombine.low %v5862, %v5894
    %v5902 = vcombine.high %v5862, %v5894
    %v5903 = vcombine.low %v5719, %v5734
    %v5904 = vcombine.high %v5719, %v5734
    %v5906 = vunpack.c.l.s4 1983009808
    %v5907 = vunpack.c.0.s8 %v5906
    %v5908 = vlaneseq
    %v5909 = vshrl.u32 %v5908, 7
    %v5910 = vsub.s32 %v5907, %v5909
    %v5911 = vrot.slane %v5903, %v5910
    %v5913 = vunpack.c.l.s4 1983009808
    %v5914 = vunpack.c.0.s8 %v5913
    %v5915 = vlaneseq
    %v5916 = vshrl.u32 %v5915, 7
    %v5917 = vsub.s32 %v5914, %v5916
    %v5918 = vrot.slane %v5904, %v5917
    %v5919 = vcombine.low %v5728, %v5740
    %v5920 = vcombine.high %v5728, %v5740
    %v5922 = vunpack.c.l.s4 1983009808
    %v5923 = vunpack.c.0.s8 %v5922
    %v5924 = vlaneseq
    %v5925 = vshrl.u32 %v5924, 7
    %v5926 = vsub.s32 %v5923, %v5925
    %v5927 = vrot.slane %v5919, %v5926
    %v5929 = vunpack.c.l.s4 1983009808
    %v5930 = vunpack.c.0.s8 %v5929
    %v5931 = vlaneseq
    %v5932 = vshrl.u32 %v5931, 7
    %v5933 = vsub.s32 %v5930, %v5932
    %v5934 = vrot.slane %v5920, %v5933
    %v5935 = vcombine.low %v5746, %v5758
    %v5936 = vcombine.high %v5746, %v5758
    %v5938 = vunpack.c.l.s4 1983009808
    %v5939 = vunpack.c.0.s8 %v5938
    %v5940 = vlaneseq
    %v5941 = vshrl.u32 %v5940, 7
    %v5942 = vsub.s32 %v5939, %v5941
    %v5943 = vrot.slane %v5935, %v5942
    %v5945 = vunpack.c.l.s4 1983009808
    %v5946 = vunpack.c.0.s8 %v5945
    %v5947 = vlaneseq
    %v5948 = vshrl.u32 %v5947, 7
    %v5949 = vsub.s32 %v5946, %v5948
    %v5950 = vrot.slane %v5936, %v5949
    %v5951 = vcombine.low %v5752, %v5764
    %v5952 = vcombine.high %v5752, %v5764
    %v5954 = vunpack.c.l.s4 1983009808
    %v5955 = vunpack.c.0.s8 %v5954
    %v5956 = vlaneseq
    %v5957 = vshrl.u32 %v5956, 7
    %v5958 = vsub.s32 %v5955, %v5957
    %v5959 = vrot.slane %v5951, %v5958
    %v5961 = vunpack.c.l.s4 1983009808
    %v5962 = vunpack.c.0.s8 %v5961
    %v5963 = vlaneseq
    %v5964 = vshrl.u32 %v5963, 7
    %v5965 = vsub.s32 %v5962, %v5964
    %v5966 = vrot.slane %v5952, %v5965
    %v5967 = vcombine.low %v5911, %v5927
    %v5968 = vcombine.high %v5911, %v5927
    %v5970 = vunpack.c.l.s4 1934713408
    %v5971 = vunpack.c.0.s8 %v5970
    %v5972 = vlaneseq
    %v5973 = vshrl.u32 %v5972, 7
    %v5974 = vsub.s32 %v5971, %v5973
    %v5975 = vrot.slane %v5967, %v5974
    %v5977 = vunpack.c.l.s4 1934713408
    %v5978 = vunpack.c.0.s8 %v5977
    %v5979 = vlaneseq
    %v5980 = vshrl.u32 %v5979, 7
    %v5981 = vsub.s32 %v5978, %v5980
    %v5982 = vrot.slane %v5968, %v5981
    %v5983 = vcombine.low %v5918, %v5934
    %v5984 = vcombine.high %v5918, %v5934
    %v5986 = vunpack.c.l.s4 1934713408
    %v5987 = vunpack.c.0.s8 %v5986
    %v5988 = vlaneseq
    %v5989 = vshrl.u32 %v5988, 7
    %v5990 = vsub.s32 %v5987, %v5989
    %v5991 = vrot.slane %v5983, %v5990
    %v5993 = vunpack.c.l.s4 1934713408
    %v5994 = vunpack.c.0.s8 %v5993
    %v5995 = vlaneseq
    %v5996 = vshrl.u32 %v5995, 7
    %v5997 = vsub.s32 %v5994, %v5996
    %v5998 = vrot.slane %v5984, %v5997
    %v5999 = vcombine.low %v5943, %v5959
    %v6000 = vcombine.high %v5943, %v5959
    %v6002 = vunpack.c.l.s4 1934713408
    %v6003 = vunpack.c.0.s8 %v6002
    %v6004 = vlaneseq
    %v6005 = vshrl.u32 %v6004, 7
    %v6006 = vsub.s32 %v6003, %v6005
    %v6007 = vrot.slane %v5999, %v6006
    %v6009 = vunpack.c.l.s4 1934713408
    %v6010 = vunpack.c.0.s8 %v6009
    %v6011 = vlaneseq
    %v6012 = vshrl.u32 %v6011, 7
    %v6013 = vsub.s32 %v6010, %v6012
    %v6014 = vrot.slane %v6000, %v6013
    %v6015 = vcombine.low %v5950, %v5966
    %v6016 = vcombine.high %v5950, %v5966
    %v6018 = vunpack.c.l.s4 1934713408
    %v6019 = vunpack.c.0.s8 %v6018
    %v6020 = vlaneseq
    %v6021 = vshrl.u32 %v6020, 7
    %v6022 = vsub.s32 %v6019, %v6021
    %v6023 = vrot.slane %v6015, %v6022
    %v6025 = vunpack.c.l.s4 1934713408
    %v6026 = vunpack.c.0.s8 %v6025
    %v6027 = vlaneseq
    %v6028 = vshrl.u32 %v6027, 7
    %v6029 = vsub.s32 %v6026, %v6028
    %v6030 = vrot.slane %v6016, %v6029
    %v6031 = vcombine.low %v5975, %v6007
    %v6032 = vcombine.high %v5975, %v6007
    %v6033 = vcombine.low %v5982, %v6014
    %v6034 = vcombine.high %v5982, %v6014
    %v6035 = vcombine.low %v5991, %v6023
    %v6036 = vcombine.high %v5991, %v6023
    %v6037 = vcombine.low %v5998, %v6030
    %v6038 = vcombine.high %v5998, %v6030
    %v6039 = vcombine.low %v5895, %v5897
    %v6040 = vcombine.high %v5895, %v5897
    %v6042 = vunpack.c.l.s4 1983009808
    %v6043 = vunpack.c.0.s8 %v6042
    %v6044 = vlaneseq
    %v6045 = vshrl.u32 %v6044, 7
    %v6046 = vsub.s32 %v6043, %v6045
    %v6047 = vrot.slane %v6039, %v6046
    %v6049 = vunpack.c.l.s4 1983009808
    %v6050 = vunpack.c.0.s8 %v6049
    %v6051 = vlaneseq
    %v6052 = vshrl.u32 %v6051, 7
    %v6053 = vsub.s32 %v6050, %v6052
    %v6054 = vrot.slane %v6040, %v6053
    %v6055 = vcombine.low %v5896, %v5898
    %v6056 = vcombine.high %v5896, %v5898
    %v6058 = vunpack.c.l.s4 1983009808
    %v6059 = vunpack.c.0.s8 %v6058
    %v6060 = vlaneseq
    %v6061 = vshrl.u32 %v6060, 7
    %v6062 = vsub.s32 %v6059, %v6061
    %v6063 = vrot.slane %v6055, %v6062
    %v6065 = vunpack.c.l.s4 1983009808
    %v6066 = vunpack.c.0.s8 %v6065
    %v6067 = vlaneseq
    %v6068 = vshrl.u32 %v6067, 7
    %v6069 = vsub.s32 %v6066, %v6068
    %v6070 = vrot.slane %v6056, %v6069
    %v6071 = vcombine.low %v5899, %v5901
    %v6072 = vcombine.high %v5899, %v5901
    %v6074 = vunpack.c.l.s4 1983009808
    %v6075 = vunpack.c.0.s8 %v6074
    %v6076 = vlaneseq
    %v6077 = vshrl.u32 %v6076, 7
    %v6078 = vsub.s32 %v6075, %v6077
    %v6079 = vrot.slane %v6071, %v6078
    %v6081 = vunpack.c.l.s4 1983009808
    %v6082 = vunpack.c.0.s8 %v6081
    %v6083 = vlaneseq
    %v6084 = vshrl.u32 %v6083, 7
    %v6085 = vsub.s32 %v6082, %v6084
    %v6086 = vrot.slane %v6072, %v6085
    %v6087 = vcombine.low %v5900, %v5902
    %v6088 = vcombine.high %v5900, %v5902
    %v6090 = vunpack.c.l.s4 1983009808
    %v6091 = vunpack.c.0.s8 %v6090
    %v6092 = vlaneseq
    %v6093 = vshrl.u32 %v6092, 7
    %v6094 = vsub.s32 %v6091, %v6093
    %v6095 = vrot.slane %v6087, %v6094
    %v6097 = vunpack.c.l.s4 1983009808
    %v6098 = vunpack.c.0.s8 %v6097
    %v6099 = vlaneseq
    %v6100 = vshrl.u32 %v6099, 7
    %v6101 = vsub.s32 %v6098, %v6100
    %v6102 = vrot.slane %v6088, %v6101
    %v6103 = vcombine.low %v6047, %v6063
    %v6104 = vcombine.high %v6047, %v6063
    %v6106 = vunpack.c.l.s4 1934713408
    %v6107 = vunpack.c.0.s8 %v6106
    %v6108 = vlaneseq
    %v6109 = vshrl.u32 %v6108, 7
    %v6110 = vsub.s32 %v6107, %v6109
    %v6111 = vrot.slane %v6103, %v6110
    %v6113 = vunpack.c.l.s4 1934713408
    %v6114 = vunpack.c.0.s8 %v6113
    %v6115 = vlaneseq
    %v6116 = vshrl.u32 %v6115, 7
    %v6117 = vsub.s32 %v6114, %v6116
    %v6118 = vrot.slane %v6104, %v6117
    %v6119 = vcombine.low %v6054, %v6070
    %v6120 = vcombine.high %v6054, %v6070
    %v6122 = vunpack.c.l.s4 1934713408
    %v6123 = vunpack.c.0.s8 %v6122
    %v6124 = vlaneseq
    %v6125 = vshrl.u32 %v6124, 7
    %v6126 = vsub.s32 %v6123, %v6125
    %v6127 = vrot.slane %v6119, %v6126
    %v6129 = vunpack.c.l.s4 1934713408
    %v6130 = vunpack.c.0.s8 %v6129
    %v6131 = vlaneseq
    %v6132 = vshrl.u32 %v6131, 7
    %v6133 = vsub.s32 %v6130, %v6132
    %v6134 = vrot.slane %v6120, %v6133
    %v6135 = vcombine.low %v6079, %v6095
    %v6136 = vcombine.high %v6079, %v6095
    %v6138 = vunpack.c.l.s4 1934713408
    %v6139 = vunpack.c.0.s8 %v6138
    %v6140 = vlaneseq
    %v6141 = vshrl.u32 %v6140, 7
    %v6142 = vsub.s32 %v6139, %v6141
    %v6143 = vrot.slane %v6135, %v6142
    %v6145 = vunpack.c.l.s4 1934713408
    %v6146 = vunpack.c.0.s8 %v6145
    %v6147 = vlaneseq
    %v6148 = vshrl.u32 %v6147, 7
    %v6149 = vsub.s32 %v6146, %v6148
    %v6150 = vrot.slane %v6136, %v6149
    %v6151 = vcombine.low %v6086, %v6102
    %v6152 = vcombine.high %v6086, %v6102
    %v6154 = vunpack.c.l.s4 1934713408
    %v6155 = vunpack.c.0.s8 %v6154
    %v6156 = vlaneseq
    %v6157 = vshrl.u32 %v6156, 7
    %v6158 = vsub.s32 %v6155, %v6157
    %v6159 = vrot.slane %v6151, %v6158
    %v6161 = vunpack.c.l.s4 1934713408
    %v6162 = vunpack.c.0.s8 %v6161
    %v6163 = vlaneseq
    %v6164 = vshrl.u32 %v6163, 7
    %v6165 = vsub.s32 %v6162, %v6164
    %v6166 = vrot.slane %v6152, %v6165
    %v6167 = vcombine.low %v6111, %v6143
    %v6168 = vcombine.high %v6111, %v6143
    %v6169 = vcombine.low %v6118, %v6150
    %v6170 = vcombine.high %v6118, %v6150
    %v6171 = vcombine.low %v6127, %v6159
    %v6172 = vcombine.high %v6127, %v6159
    %v6173 = vcombine.low %v6134, %v6166
    %v6174 = vcombine.high %v6134, %v6166
    %v6175 = vcombine.low %v6031, %v6033
    %v6176 = vcombine.high %v6031, %v6033
    %v6178 = vunpack.c.l.s4 1983009808
    %v6179 = vunpack.c.0.s8 %v6178
    %v6180 = vlaneseq
    %v6181 = vshrl.u32 %v6180, 7
    %v6182 = vsub.s32 %v6179, %v6181
    %v6183 = vrot.slane %v6175, %v6182
    %v6185 = vunpack.c.l.s4 1983009808
    %v6186 = vunpack.c.0.s8 %v6185
    %v6187 = vlaneseq
    %v6188 = vshrl.u32 %v6187, 7
    %v6189 = vsub.s32 %v6186, %v6188
    %v6190 = vrot.slane %v6176, %v6189
    %v6191 = vcombine.low %v6032, %v6034
    %v6192 = vcombine.high %v6032, %v6034
    %v6194 = vunpack.c.l.s4 1983009808
    %v6195 = vunpack.c.0.s8 %v6194
    %v6196 = vlaneseq
    %v6197 = vshrl.u32 %v6196, 7
    %v6198 = vsub.s32 %v6195, %v6197
    %v6199 = vrot.slane %v6191, %v6198
    %v6201 = vunpack.c.l.s4 1983009808
    %v6202 = vunpack.c.0.s8 %v6201
    %v6203 = vlaneseq
    %v6204 = vshrl.u32 %v6203, 7
    %v6205 = vsub.s32 %v6202, %v6204
    %v6206 = vrot.slane %v6192, %v6205
    %v6207 = vcombine.low %v6035, %v6037
    %v6208 = vcombine.high %v6035, %v6037
    %v6210 = vunpack.c.l.s4 1983009808
    %v6211 = vunpack.c.0.s8 %v6210
    %v6212 = vlaneseq
    %v6213 = vshrl.u32 %v6212, 7
    %v6214 = vsub.s32 %v6211, %v6213
    %v6215 = vrot.slane %v6207, %v6214
    %v6217 = vunpack.c.l.s4 1983009808
    %v6218 = vunpack.c.0.s8 %v6217
    %v6219 = vlaneseq
    %v6220 = vshrl.u32 %v6219, 7
    %v6221 = vsub.s32 %v6218, %v6220
    %v6222 = vrot.slane %v6208, %v6221
    %v6223 = vcombine.low %v6036, %v6038
    %v6224 = vcombine.high %v6036, %v6038
    %v6226 = vunpack.c.l.s4 1983009808
    %v6227 = vunpack.c.0.s8 %v6226
    %v6228 = vlaneseq
    %v6229 = vshrl.u32 %v6228, 7
    %v6230 = vsub.s32 %v6227, %v6229
    %v6231 = vrot.slane %v6223, %v6230
    %v6233 = vunpack.c.l.s4 1983009808
    %v6234 = vunpack.c.0.s8 %v6233
    %v6235 = vlaneseq
    %v6236 = vshrl.u32 %v6235, 7
    %v6237 = vsub.s32 %v6234, %v6236
    %v6238 = vrot.slane %v6224, %v6237
    %v6239 = vcombine.low %v6183, %v6199
    %v6240 = vcombine.high %v6183, %v6199
    %v6242 = vunpack.c.l.s4 1934713408
    %v6243 = vunpack.c.0.s8 %v6242
    %v6244 = vlaneseq
    %v6245 = vshrl.u32 %v6244, 7
    %v6246 = vsub.s32 %v6243, %v6245
    %v6247 = vrot.slane %v6239, %v6246
    %v6249 = vunpack.c.l.s4 1934713408
    %v6250 = vunpack.c.0.s8 %v6249
    %v6251 = vlaneseq
    %v6252 = vshrl.u32 %v6251, 7
    %v6253 = vsub.s32 %v6250, %v6252
    %v6254 = vrot.slane %v6240, %v6253
    %v6255 = vcombine.low %v6190, %v6206
    %v6256 = vcombine.high %v6190, %v6206
    %v6258 = vunpack.c.l.s4 1934713408
    %v6259 = vunpack.c.0.s8 %v6258
    %v6260 = vlaneseq
    %v6261 = vshrl.u32 %v6260, 7
    %v6262 = vsub.s32 %v6259, %v6261
    %v6263 = vrot.slane %v6255, %v6262
    %v6265 = vunpack.c.l.s4 1934713408
    %v6266 = vunpack.c.0.s8 %v6265
    %v6267 = vlaneseq
    %v6268 = vshrl.u32 %v6267, 7
    %v6269 = vsub.s32 %v6266, %v6268
    %v6270 = vrot.slane %v6256, %v6269
    %v6271 = vcombine.low %v6215, %v6231
    %v6272 = vcombine.high %v6215, %v6231
    %v6274 = vunpack.c.l.s4 1934713408
    %v6275 = vunpack.c.0.s8 %v6274
    %v6276 = vlaneseq
    %v6277 = vshrl.u32 %v6276, 7
    %v6278 = vsub.s32 %v6275, %v6277
    %v6279 = vrot.slane %v6271, %v6278
    %v6281 = vunpack.c.l.s4 1934713408
    %v6282 = vunpack.c.0.s8 %v6281
    %v6283 = vlaneseq
    %v6284 = vshrl.u32 %v6283, 7
    %v6285 = vsub.s32 %v6282, %v6284
    %v6286 = vrot.slane %v6272, %v6285
    %v6287 = vcombine.low %v6222, %v6238
    %v6288 = vcombine.high %v6222, %v6238
    %v6290 = vunpack.c.l.s4 1934713408
    %v6291 = vunpack.c.0.s8 %v6290
    %v6292 = vlaneseq
    %v6293 = vshrl.u32 %v6292, 7
    %v6294 = vsub.s32 %v6291, %v6293
    %v6295 = vrot.slane %v6287, %v6294
    %v6297 = vunpack.c.l.s4 1934713408
    %v6298 = vunpack.c.0.s8 %v6297
    %v6299 = vlaneseq
    %v6300 = vshrl.u32 %v6299, 7
    %v6301 = vsub.s32 %v6298, %v6300
    %v6302 = vrot.slane %v6288, %v6301
    %v6303 = vcombine.low %v6247, %v6279
    %v6304 = vcombine.high %v6247, %v6279
    %v6305 = vcombine.low %v6254, %v6286
    %v6306 = vcombine.high %v6254, %v6286
    %v6307 = vcombine.low %v6263, %v6295
    %v6308 = vcombine.high %v6263, %v6295
    %v6309 = vcombine.low %v6270, %v6302
    %v6310 = vcombine.high %v6270, %v6302
    %6311 = vrot.lane.b32.xlu0 %v5713, 64
    %v6312 = vpop.permute.xlu0 %6311
    %6313 = vrot.lane.b32.xlu0 %v5719, 64
    %v6314 = vpop.permute.xlu0 %6313
    %6315 = vrot.lane.b32.xlu0 %v5726, 64
    %v6316 = vpop.permute.xlu0 %6315
    %6317 = vrot.lane.b32.xlu0 %v5728, 64
    %v6318 = vpop.permute.xlu0 %6317
    %6319 = vrot.lane.b32.xlu0 %v5732, 64
    %v6320 = vpop.permute.xlu0 %6319
    %6321 = vrot.lane.b32.xlu0 %v5734, 64
    %v6322 = vpop.permute.xlu0 %6321
    %6323 = vrot.lane.b32.xlu0 %v5738, 64
    %v6324 = vpop.permute.xlu0 %6323
    %6325 = vrot.lane.b32.xlu0 %v5740, 64
    %v6326 = vpop.permute.xlu0 %6325
    %6327 = vrot.lane.b32.xlu0 %v5744, 64
    %v6328 = vpop.permute.xlu0 %6327
    %6329 = vrot.lane.b32.xlu0 %v5746, 64
    %v6330 = vpop.permute.xlu0 %6329
    %6331 = vrot.lane.b32.xlu0 %v5750, 64
    %v6332 = vpop.permute.xlu0 %6331
    %6333 = vrot.lane.b32.xlu0 %v5752, 64
    %v6334 = vpop.permute.xlu0 %6333
    %6335 = vrot.lane.b32.xlu0 %v5756, 64
    %v6336 = vpop.permute.xlu0 %6335
    %6337 = vrot.lane.b32.xlu0 %v5758, 64
    %v6338 = vpop.permute.xlu0 %6337
    %6339 = vrot.lane.b32.xlu0 %v5762, 64
    %v6340 = vpop.permute.xlu0 %6339
    %6341 = vrot.lane.b32.xlu0 %v5764, 64
    %v6342 = vpop.permute.xlu0 %6341
    %v6359 = vcombine.low %v6312, %v6320
    %v6360 = vcombine.high %v6312, %v6320
    %v6362 = vunpack.c.l.s4 1983009808
    %v6363 = vunpack.c.0.s8 %v6362
    %v6364 = vlaneseq
    %v6365 = vshrl.u32 %v6364, 7
    %v6366 = vsub.s32 %v6363, %v6365
    %v6367 = vrot.slane %v6359, %v6366
    %v6369 = vunpack.c.l.s4 1983009808
    %v6370 = vunpack.c.0.s8 %v6369
    %v6371 = vlaneseq
    %v6372 = vshrl.u32 %v6371, 7
    %v6373 = vsub.s32 %v6370, %v6372
    %v6374 = vrot.slane %v6360, %v6373
    %v6375 = vcombine.low %v6316, %v6324
    %v6376 = vcombine.high %v6316, %v6324
    %v6378 = vunpack.c.l.s4 1983009808
    %v6379 = vunpack.c.0.s8 %v6378
    %v6380 = vlaneseq
    %v6381 = vshrl.u32 %v6380, 7
    %v6382 = vsub.s32 %v6379, %v6381
    %v6383 = vrot.slane %v6375, %v6382
    %v6385 = vunpack.c.l.s4 1983009808
    %v6386 = vunpack.c.0.s8 %v6385
    %v6387 = vlaneseq
    %v6388 = vshrl.u32 %v6387, 7
    %v6389 = vsub.s32 %v6386, %v6388
    %v6390 = vrot.slane %v6376, %v6389
    %v6391 = vcombine.low %v6328, %v6336
    %v6392 = vcombine.high %v6328, %v6336
    %v6394 = vunpack.c.l.s4 1983009808
    %v6395 = vunpack.c.0.s8 %v6394
    %v6396 = vlaneseq
    %v6397 = vshrl.u32 %v6396, 7
    %v6398 = vsub.s32 %v6395, %v6397
    %v6399 = vrot.slane %v6391, %v6398
    %v6401 = vunpack.c.l.s4 1983009808
    %v6402 = vunpack.c.0.s8 %v6401
    %v6403 = vlaneseq
    %v6404 = vshrl.u32 %v6403, 7
    %v6405 = vsub.s32 %v6402, %v6404
    %v6406 = vrot.slane %v6392, %v6405
    %v6407 = vcombine.low %v6332, %v6340
    %v6408 = vcombine.high %v6332, %v6340
    %v6410 = vunpack.c.l.s4 1983009808
    %v6411 = vunpack.c.0.s8 %v6410
    %v6412 = vlaneseq
    %v6413 = vshrl.u32 %v6412, 7
    %v6414 = vsub.s32 %v6411, %v6413
    %v6415 = vrot.slane %v6407, %v6414
    %v6417 = vunpack.c.l.s4 1983009808
    %v6418 = vunpack.c.0.s8 %v6417
    %v6419 = vlaneseq
    %v6420 = vshrl.u32 %v6419, 7
    %v6421 = vsub.s32 %v6418, %v6420
    %v6422 = vrot.slane %v6408, %v6421
    %v6423 = vcombine.low %v6367, %v6383
    %v6424 = vcombine.high %v6367, %v6383
    %v6426 = vunpack.c.l.s4 1934713408
    %v6427 = vunpack.c.0.s8 %v6426
    %v6428 = vlaneseq
    %v6429 = vshrl.u32 %v6428, 7
    %v6430 = vsub.s32 %v6427, %v6429
    %v6431 = vrot.slane %v6423, %v6430
    %v6433 = vunpack.c.l.s4 1934713408
    %v6434 = vunpack.c.0.s8 %v6433
    %v6435 = vlaneseq
    %v6436 = vshrl.u32 %v6435, 7
    %v6437 = vsub.s32 %v6434, %v6436
    %v6438 = vrot.slane %v6424, %v6437
    %v6439 = vcombine.low %v6374, %v6390
    %v6440 = vcombine.high %v6374, %v6390
    %v6442 = vunpack.c.l.s4 1934713408
    %v6443 = vunpack.c.0.s8 %v6442
    %v6444 = vlaneseq
    %v6445 = vshrl.u32 %v6444, 7
    %v6446 = vsub.s32 %v6443, %v6445
    %v6447 = vrot.slane %v6439, %v6446
    %v6449 = vunpack.c.l.s4 1934713408
    %v6450 = vunpack.c.0.s8 %v6449
    %v6451 = vlaneseq
    %v6452 = vshrl.u32 %v6451, 7
    %v6453 = vsub.s32 %v6450, %v6452
    %v6454 = vrot.slane %v6440, %v6453
    %v6455 = vcombine.low %v6399, %v6415
    %v6456 = vcombine.high %v6399, %v6415
    %v6458 = vunpack.c.l.s4 1934713408
    %v6459 = vunpack.c.0.s8 %v6458
    %v6460 = vlaneseq
    %v6461 = vshrl.u32 %v6460, 7
    %v6462 = vsub.s32 %v6459, %v6461
    %v6463 = vrot.slane %v6455, %v6462
    %v6465 = vunpack.c.l.s4 1934713408
    %v6466 = vunpack.c.0.s8 %v6465
    %v6467 = vlaneseq
    %v6468 = vshrl.u32 %v6467, 7
    %v6469 = vsub.s32 %v6466, %v6468
    %v6470 = vrot.slane %v6456, %v6469
    %v6471 = vcombine.low %v6406, %v6422
    %v6472 = vcombine.high %v6406, %v6422
    %v6474 = vunpack.c.l.s4 1934713408
    %v6475 = vunpack.c.0.s8 %v6474
    %v6476 = vlaneseq
    %v6477 = vshrl.u32 %v6476, 7
    %v6478 = vsub.s32 %v6475, %v6477
    %v6479 = vrot.slane %v6471, %v6478
    %v6481 = vunpack.c.l.s4 1934713408
    %v6482 = vunpack.c.0.s8 %v6481
    %v6483 = vlaneseq
    %v6484 = vshrl.u32 %v6483, 7
    %v6485 = vsub.s32 %v6482, %v6484
    %v6486 = vrot.slane %v6472, %v6485
    %v6487 = vcombine.low %v6431, %v6463
    %v6488 = vcombine.high %v6431, %v6463
    %v6489 = vcombine.low %v6438, %v6470
    %v6490 = vcombine.high %v6438, %v6470
    %v6491 = vcombine.low %v6447, %v6479
    %v6492 = vcombine.high %v6447, %v6479
    %v6493 = vcombine.low %v6454, %v6486
    %v6494 = vcombine.high %v6454, %v6486
    %v6495 = vcombine.low %v6314, %v6322
    %v6496 = vcombine.high %v6314, %v6322
    %v6498 = vunpack.c.l.s4 1983009808
    %v6499 = vunpack.c.0.s8 %v6498
    %v6500 = vlaneseq
    %v6501 = vshrl.u32 %v6500, 7
    %v6502 = vsub.s32 %v6499, %v6501
    %v6503 = vrot.slane %v6495, %v6502
    %v6505 = vunpack.c.l.s4 1983009808
    %v6506 = vunpack.c.0.s8 %v6505
    %v6507 = vlaneseq
    %v6508 = vshrl.u32 %v6507, 7
    %v6509 = vsub.s32 %v6506, %v6508
    %v6510 = vrot.slane %v6496, %v6509
    %v6511 = vcombine.low %v6318, %v6326
    %v6512 = vcombine.high %v6318, %v6326
    %v6514 = vunpack.c.l.s4 1983009808
    %v6515 = vunpack.c.0.s8 %v6514
    %v6516 = vlaneseq
    %v6517 = vshrl.u32 %v6516, 7
    %v6518 = vsub.s32 %v6515, %v6517
    %v6519 = vrot.slane %v6511, %v6518
    %v6521 = vunpack.c.l.s4 1983009808
    %v6522 = vunpack.c.0.s8 %v6521
    %v6523 = vlaneseq
    %v6524 = vshrl.u32 %v6523, 7
    %v6525 = vsub.s32 %v6522, %v6524
    %v6526 = vrot.slane %v6512, %v6525
    %v6527 = vcombine.low %v6330, %v6338
    %v6528 = vcombine.high %v6330, %v6338
    %v6530 = vunpack.c.l.s4 1983009808
    %v6531 = vunpack.c.0.s8 %v6530
    %v6532 = vlaneseq
    %v6533 = vshrl.u32 %v6532, 7
    %v6534 = vsub.s32 %v6531, %v6533
    %v6535 = vrot.slane %v6527, %v6534
    %v6537 = vunpack.c.l.s4 1983009808
    %v6538 = vunpack.c.0.s8 %v6537
    %v6539 = vlaneseq
    %v6540 = vshrl.u32 %v6539, 7
    %v6541 = vsub.s32 %v6538, %v6540
    %v6542 = vrot.slane %v6528, %v6541
    %v6543 = vcombine.low %v6334, %v6342
    %v6544 = vcombine.high %v6334, %v6342
    %v6546 = vunpack.c.l.s4 1983009808
    %v6547 = vunpack.c.0.s8 %v6546
    %v6548 = vlaneseq
    %v6549 = vshrl.u32 %v6548, 7
    %v6550 = vsub.s32 %v6547, %v6549
    %v6551 = vrot.slane %v6543, %v6550
    %v6553 = vunpack.c.l.s4 1983009808
    %v6554 = vunpack.c.0.s8 %v6553
    %v6555 = vlaneseq
    %v6556 = vshrl.u32 %v6555, 7
    %v6557 = vsub.s32 %v6554, %v6556
    %v6558 = vrot.slane %v6544, %v6557
    %v6559 = vcombine.low %v6503, %v6519
    %v6560 = vcombine.high %v6503, %v6519
    %v6562 = vunpack.c.l.s4 1934713408
    %v6563 = vunpack.c.0.s8 %v6562
    %v6564 = vlaneseq
    %v6565 = vshrl.u32 %v6564, 7
    %v6566 = vsub.s32 %v6563, %v6565
    %v6567 = vrot.slane %v6559, %v6566
    %v6569 = vunpack.c.l.s4 1934713408
    %v6570 = vunpack.c.0.s8 %v6569
    %v6571 = vlaneseq
    %v6572 = vshrl.u32 %v6571, 7
    %v6573 = vsub.s32 %v6570, %v6572
    %v6574 = vrot.slane %v6560, %v6573
    %v6575 = vcombine.low %v6510, %v6526
    %v6576 = vcombine.high %v6510, %v6526
    %v6578 = vunpack.c.l.s4 1934713408
    %v6579 = vunpack.c.0.s8 %v6578
    %v6580 = vlaneseq
    %v6581 = vshrl.u32 %v6580, 7
    %v6582 = vsub.s32 %v6579, %v6581
    %v6583 = vrot.slane %v6575, %v6582
    %v6585 = vunpack.c.l.s4 1934713408
    %v6586 = vunpack.c.0.s8 %v6585
    %v6587 = vlaneseq
    %v6588 = vshrl.u32 %v6587, 7
    %v6589 = vsub.s32 %v6586, %v6588
    %v6590 = vrot.slane %v6576, %v6589
    %v6591 = vcombine.low %v6535, %v6551
    %v6592 = vcombine.high %v6535, %v6551
    %v6594 = vunpack.c.l.s4 1934713408
    %v6595 = vunpack.c.0.s8 %v6594
    %v6596 = vlaneseq
    %v6597 = vshrl.u32 %v6596, 7
    %v6598 = vsub.s32 %v6595, %v6597
    %v6599 = vrot.slane %v6591, %v6598
    %v6601 = vunpack.c.l.s4 1934713408
    %v6602 = vunpack.c.0.s8 %v6601
    %v6603 = vlaneseq
    %v6604 = vshrl.u32 %v6603, 7
    %v6605 = vsub.s32 %v6602, %v6604
    %v6606 = vrot.slane %v6592, %v6605
    %v6607 = vcombine.low %v6542, %v6558
    %v6608 = vcombine.high %v6542, %v6558
    %v6610 = vunpack.c.l.s4 1934713408
    %v6611 = vunpack.c.0.s8 %v6610
    %v6612 = vlaneseq
    %v6613 = vshrl.u32 %v6612, 7
    %v6614 = vsub.s32 %v6611, %v6613
    %v6615 = vrot.slane %v6607, %v6614
    %v6617 = vunpack.c.l.s4 1934713408
    %v6618 = vunpack.c.0.s8 %v6617
    %v6619 = vlaneseq
    %v6620 = vshrl.u32 %v6619, 7
    %v6621 = vsub.s32 %v6618, %v6620
    %v6622 = vrot.slane %v6608, %v6621
    %v6623 = vcombine.low %v6567, %v6599
    %v6624 = vcombine.high %v6567, %v6599
    %v6625 = vcombine.low %v6574, %v6606
    %v6626 = vcombine.high %v6574, %v6606
    %v6627 = vcombine.low %v6583, %v6615
    %v6628 = vcombine.high %v6583, %v6615
    %v6629 = vcombine.low %v6590, %v6622
    %v6630 = vcombine.high %v6590, %v6622
    %v6631 = vcombine.low %v6487, %v6489
    %v6632 = vcombine.high %v6487, %v6489
    %v6634 = vunpack.c.l.s4 1983009808
    %v6635 = vunpack.c.0.s8 %v6634
    %v6636 = vlaneseq
    %v6637 = vshrl.u32 %v6636, 7
    %v6638 = vsub.s32 %v6635, %v6637
    %v6639 = vrot.slane %v6631, %v6638
    %v6641 = vunpack.c.l.s4 1983009808
    %v6642 = vunpack.c.0.s8 %v6641
    %v6643 = vlaneseq
    %v6644 = vshrl.u32 %v6643, 7
    %v6645 = vsub.s32 %v6642, %v6644
    %v6646 = vrot.slane %v6632, %v6645
    %v6647 = vcombine.low %v6488, %v6490
    %v6648 = vcombine.high %v6488, %v6490
    %v6650 = vunpack.c.l.s4 1983009808
    %v6651 = vunpack.c.0.s8 %v6650
    %v6652 = vlaneseq
    %v6653 = vshrl.u32 %v6652, 7
    %v6654 = vsub.s32 %v6651, %v6653
    %v6655 = vrot.slane %v6647, %v6654
    %v6657 = vunpack.c.l.s4 1983009808
    %v6658 = vunpack.c.0.s8 %v6657
    %v6659 = vlaneseq
    %v6660 = vshrl.u32 %v6659, 7
    %v6661 = vsub.s32 %v6658, %v6660
    %v6662 = vrot.slane %v6648, %v6661
    %v6663 = vcombine.low %v6491, %v6493
    %v6664 = vcombine.high %v6491, %v6493
    %v6666 = vunpack.c.l.s4 1983009808
    %v6667 = vunpack.c.0.s8 %v6666
    %v6668 = vlaneseq
    %v6669 = vshrl.u32 %v6668, 7
    %v6670 = vsub.s32 %v6667, %v6669
    %v6671 = vrot.slane %v6663, %v6670
    %v6673 = vunpack.c.l.s4 1983009808
    %v6674 = vunpack.c.0.s8 %v6673
    %v6675 = vlaneseq
    %v6676 = vshrl.u32 %v6675, 7
    %v6677 = vsub.s32 %v6674, %v6676
    %v6678 = vrot.slane %v6664, %v6677
    %v6679 = vcombine.low %v6492, %v6494
    %v6680 = vcombine.high %v6492, %v6494
    %v6682 = vunpack.c.l.s4 1983009808
    %v6683 = vunpack.c.0.s8 %v6682
    %v6684 = vlaneseq
    %v6685 = vshrl.u32 %v6684, 7
    %v6686 = vsub.s32 %v6683, %v6685
    %v6687 = vrot.slane %v6679, %v6686
    %v6689 = vunpack.c.l.s4 1983009808
    %v6690 = vunpack.c.0.s8 %v6689
    %v6691 = vlaneseq
    %v6692 = vshrl.u32 %v6691, 7
    %v6693 = vsub.s32 %v6690, %v6692
    %v6694 = vrot.slane %v6680, %v6693
    %v6695 = vcombine.low %v6639, %v6655
    %v6696 = vcombine.high %v6639, %v6655
    %v6698 = vunpack.c.l.s4 1934713408
    %v6699 = vunpack.c.0.s8 %v6698
    %v6700 = vlaneseq
    %v6701 = vshrl.u32 %v6700, 7
    %v6702 = vsub.s32 %v6699, %v6701
    %v6703 = vrot.slane %v6695, %v6702
    %v6705 = vunpack.c.l.s4 1934713408
    %v6706 = vunpack.c.0.s8 %v6705
    %v6707 = vlaneseq
    %v6708 = vshrl.u32 %v6707, 7
    %v6709 = vsub.s32 %v6706, %v6708
    %v6710 = vrot.slane %v6696, %v6709
    %v6711 = vcombine.low %v6646, %v6662
    %v6712 = vcombine.high %v6646, %v6662
    %v6714 = vunpack.c.l.s4 1934713408
    %v6715 = vunpack.c.0.s8 %v6714
    %v6716 = vlaneseq
    %v6717 = vshrl.u32 %v6716, 7
    %v6718 = vsub.s32 %v6715, %v6717
    %v6719 = vrot.slane %v6711, %v6718
    %v6721 = vunpack.c.l.s4 1934713408
    %v6722 = vunpack.c.0.s8 %v6721
    %v6723 = vlaneseq
    %v6724 = vshrl.u32 %v6723, 7
    %v6725 = vsub.s32 %v6722, %v6724
    %v6726 = vrot.slane %v6712, %v6725
    %v6727 = vcombine.low %v6671, %v6687
    %v6728 = vcombine.high %v6671, %v6687
    %v6730 = vunpack.c.l.s4 1934713408
    %v6731 = vunpack.c.0.s8 %v6730
    %v6732 = vlaneseq
    %v6733 = vshrl.u32 %v6732, 7
    %v6734 = vsub.s32 %v6731, %v6733
    %v6735 = vrot.slane %v6727, %v6734
    %v6737 = vunpack.c.l.s4 1934713408
    %v6738 = vunpack.c.0.s8 %v6737
    %v6739 = vlaneseq
    %v6740 = vshrl.u32 %v6739, 7
    %v6741 = vsub.s32 %v6738, %v6740
    %v6742 = vrot.slane %v6728, %v6741
    %v6743 = vcombine.low %v6678, %v6694
    %v6744 = vcombine.high %v6678, %v6694
    %v6746 = vunpack.c.l.s4 1934713408
    %v6747 = vunpack.c.0.s8 %v6746
    %v6748 = vlaneseq
    %v6749 = vshrl.u32 %v6748, 7
    %v6750 = vsub.s32 %v6747, %v6749
    %v6751 = vrot.slane %v6743, %v6750
    %v6753 = vunpack.c.l.s4 1934713408
    %v6754 = vunpack.c.0.s8 %v6753
    %v6755 = vlaneseq
    %v6756 = vshrl.u32 %v6755, 7
    %v6757 = vsub.s32 %v6754, %v6756
    %v6758 = vrot.slane %v6744, %v6757
    %v6759 = vcombine.low %v6703, %v6735
    %v6760 = vcombine.high %v6703, %v6735
    %v6761 = vcombine.low %v6710, %v6742
    %v6762 = vcombine.high %v6710, %v6742
    %v6763 = vcombine.low %v6719, %v6751
    %v6764 = vcombine.high %v6719, %v6751
    %v6765 = vcombine.low %v6726, %v6758
    %v6766 = vcombine.high %v6726, %v6758
    %v6767 = vcombine.low %v6623, %v6625
    %v6768 = vcombine.high %v6623, %v6625
    %v6770 = vunpack.c.l.s4 1983009808
    %v6771 = vunpack.c.0.s8 %v6770
    %v6772 = vlaneseq
    %v6773 = vshrl.u32 %v6772, 7
    %v6774 = vsub.s32 %v6771, %v6773
    %v6775 = vrot.slane %v6767, %v6774
    %v6777 = vunpack.c.l.s4 1983009808
    %v6778 = vunpack.c.0.s8 %v6777
    %v6779 = vlaneseq
    %v6780 = vshrl.u32 %v6779, 7
    %v6781 = vsub.s32 %v6778, %v6780
    %v6782 = vrot.slane %v6768, %v6781
    %v6783 = vcombine.low %v6624, %v6626
    %v6784 = vcombine.high %v6624, %v6626
    %v6786 = vunpack.c.l.s4 1983009808
    %v6787 = vunpack.c.0.s8 %v6786
    %v6788 = vlaneseq
    %v6789 = vshrl.u32 %v6788, 7
    %v6790 = vsub.s32 %v6787, %v6789
    %v6791 = vrot.slane %v6783, %v6790
    %v6793 = vunpack.c.l.s4 1983009808
    %v6794 = vunpack.c.0.s8 %v6793
    %v6795 = vlaneseq
    %v6796 = vshrl.u32 %v6795, 7
    %v6797 = vsub.s32 %v6794, %v6796
    %v6798 = vrot.slane %v6784, %v6797
    %v6799 = vcombine.low %v6627, %v6629
    %v6800 = vcombine.high %v6627, %v6629
    %v6802 = vunpack.c.l.s4 1983009808
    %v6803 = vunpack.c.0.s8 %v6802
    %v6804 = vlaneseq
    %v6805 = vshrl.u32 %v6804, 7
    %v6806 = vsub.s32 %v6803, %v6805
    %v6807 = vrot.slane %v6799, %v6806
    %v6809 = vunpack.c.l.s4 1983009808
    %v6810 = vunpack.c.0.s8 %v6809
    %v6811 = vlaneseq
    %v6812 = vshrl.u32 %v6811, 7
    %v6813 = vsub.s32 %v6810, %v6812
    %v6814 = vrot.slane %v6800, %v6813
    %v6815 = vcombine.low %v6628, %v6630
    %v6816 = vcombine.high %v6628, %v6630
    %v6818 = vunpack.c.l.s4 1983009808
    %v6819 = vunpack.c.0.s8 %v6818
    %v6820 = vlaneseq
    %v6821 = vshrl.u32 %v6820, 7
    %v6822 = vsub.s32 %v6819, %v6821
    %v6823 = vrot.slane %v6815, %v6822
    %v6825 = vunpack.c.l.s4 1983009808
    %v6826 = vunpack.c.0.s8 %v6825
    %v6827 = vlaneseq
    %v6828 = vshrl.u32 %v6827, 7
    %v6829 = vsub.s32 %v6826, %v6828
    %v6830 = vrot.slane %v6816, %v6829
    %v6831 = vcombine.low %v6775, %v6791
    %v6832 = vcombine.high %v6775, %v6791
    %v6834 = vunpack.c.l.s4 1934713408
    %v6835 = vunpack.c.0.s8 %v6834
    %v6836 = vlaneseq
    %v6837 = vshrl.u32 %v6836, 7
    %v6838 = vsub.s32 %v6835, %v6837
    %v6839 = vrot.slane %v6831, %v6838
    %v6841 = vunpack.c.l.s4 1934713408
    %v6842 = vunpack.c.0.s8 %v6841
    %v6843 = vlaneseq
    %v6844 = vshrl.u32 %v6843, 7
    %v6845 = vsub.s32 %v6842, %v6844
    %v6846 = vrot.slane %v6832, %v6845
    %v6847 = vcombine.low %v6782, %v6798
    %v6848 = vcombine.high %v6782, %v6798
    %v6850 = vunpack.c.l.s4 1934713408
    %v6851 = vunpack.c.0.s8 %v6850
    %v6852 = vlaneseq
    %v6853 = vshrl.u32 %v6852, 7
    %v6854 = vsub.s32 %v6851, %v6853
    %v6855 = vrot.slane %v6847, %v6854
    %v6857 = vunpack.c.l.s4 1934713408
    %v6858 = vunpack.c.0.s8 %v6857
    %v6859 = vlaneseq
    %v6860 = vshrl.u32 %v6859, 7
    %v6861 = vsub.s32 %v6858, %v6860
    %v6862 = vrot.slane %v6848, %v6861
    %v6863 = vcombine.low %v6807, %v6823
    %v6864 = vcombine.high %v6807, %v6823
    %v6866 = vunpack.c.l.s4 1934713408
    %v6867 = vunpack.c.0.s8 %v6866
    %v6868 = vlaneseq
    %v6869 = vshrl.u32 %v6868, 7
    %v6870 = vsub.s32 %v6867, %v6869
    %v6871 = vrot.slane %v6863, %v6870
    %v6873 = vunpack.c.l.s4 1934713408
    %v6874 = vunpack.c.0.s8 %v6873
    %v6875 = vlaneseq
    %v6876 = vshrl.u32 %v6875, 7
    %v6877 = vsub.s32 %v6874, %v6876
    %v6878 = vrot.slane %v6864, %v6877
    %v6879 = vcombine.low %v6814, %v6830
    %v6880 = vcombine.high %v6814, %v6830
    %v6882 = vunpack.c.l.s4 1934713408
    %v6883 = vunpack.c.0.s8 %v6882
    %v6884 = vlaneseq
    %v6885 = vshrl.u32 %v6884, 7
    %v6886 = vsub.s32 %v6883, %v6885
    %v6887 = vrot.slane %v6879, %v6886
    %v6889 = vunpack.c.l.s4 1934713408
    %v6890 = vunpack.c.0.s8 %v6889
    %v6891 = vlaneseq
    %v6892 = vshrl.u32 %v6891, 7
    %v6893 = vsub.s32 %v6890, %v6892
    %v6894 = vrot.slane %v6880, %v6893
    %v6895 = vcombine.low %v6839, %v6871
    %v6896 = vcombine.high %v6839, %v6871
    %v6897 = vcombine.low %v6846, %v6878
    %v6898 = vcombine.high %v6846, %v6878
    %v6899 = vcombine.low %v6855, %v6887
    %v6900 = vcombine.high %v6855, %v6887
    %v6901 = vcombine.low %v6862, %v6894
    %v6902 = vcombine.high %v6862, %v6894
    %6905 = vrot.lane.b32.xlu0 %v5715, 120
    %v6906 = vpop.permute.xlu0 %6905
    %6907 = vrot.lane.b32.xlu0 %v5721, 120
    %v6908 = vpop.permute.xlu0 %6907
    %6911 = vrot.lane.b32.xlu0 %v5715, 112
    %v6912 = vpop.permute.xlu0 %6911
    %6913 = vrot.lane.b32.xlu0 %v5721, 112
    %v6914 = vpop.permute.xlu0 %6913
    %6917 = vrot.lane.b32.xlu0 %v5715, 104
    %v6918 = vpop.permute.xlu0 %6917
    %6919 = vrot.lane.b32.xlu0 %v5721, 104
    %v6920 = vpop.permute.xlu0 %6919
    %6923 = vrot.lane.b32.xlu0 %v5715, 96
    %v6924 = vpop.permute.xlu0 %6923
    %6925 = vrot.lane.b32.xlu0 %v5721, 96
    %v6926 = vpop.permute.xlu0 %6925
    %6929 = vrot.lane.b32.xlu0 %v5715, 88
    %v6930 = vpop.permute.xlu0 %6929
    %6931 = vrot.lane.b32.xlu0 %v5721, 88
    %v6932 = vpop.permute.xlu0 %6931
    %6935 = vrot.lane.b32.xlu0 %v5715, 80
    %v6936 = vpop.permute.xlu0 %6935
    %6937 = vrot.lane.b32.xlu0 %v5721, 80
    %v6938 = vpop.permute.xlu0 %6937
    %6941 = vrot.lane.b32.xlu0 %v5715, 72
    %v6942 = vpop.permute.xlu0 %6941
    %6943 = vrot.lane.b32.xlu0 %v5721, 72
    %v6944 = vpop.permute.xlu0 %6943
    %v6947 = vcombine.low %v5715, %v6912
    %v6948 = vcombine.high %v5715, %v6912
    %v6950 = vunpack.c.l.s4 1983009808
    %v6951 = vunpack.c.0.s8 %v6950
    %v6952 = vlaneseq
    %v6953 = vshrl.u32 %v6952, 7
    %v6954 = vsub.s32 %v6951, %v6953
    %v6955 = vrot.slane %v6947, %v6954
    %v6957 = vunpack.c.l.s4 1983009808
    %v6958 = vunpack.c.0.s8 %v6957
    %v6959 = vlaneseq
    %v6960 = vshrl.u32 %v6959, 7
    %v6961 = vsub.s32 %v6958, %v6960
    %v6962 = vrot.slane %v6948, %v6961
    %v6963 = vcombine.low %v6906, %v6918
    %v6964 = vcombine.high %v6906, %v6918
    %v6966 = vunpack.c.l.s4 1983009808
    %v6967 = vunpack.c.0.s8 %v6966
    %v6968 = vlaneseq
    %v6969 = vshrl.u32 %v6968, 7
    %v6970 = vsub.s32 %v6967, %v6969
    %v6971 = vrot.slane %v6963, %v6970
    %v6973 = vunpack.c.l.s4 1983009808
    %v6974 = vunpack.c.0.s8 %v6973
    %v6975 = vlaneseq
    %v6976 = vshrl.u32 %v6975, 7
    %v6977 = vsub.s32 %v6974, %v6976
    %v6978 = vrot.slane %v6964, %v6977
    %v6979 = vcombine.low %v6924, %v6936
    %v6980 = vcombine.high %v6924, %v6936
    %v6982 = vunpack.c.l.s4 1983009808
    %v6983 = vunpack.c.0.s8 %v6982
    %v6984 = vlaneseq
    %v6985 = vshrl.u32 %v6984, 7
    %v6986 = vsub.s32 %v6983, %v6985
    %v6987 = vrot.slane %v6979, %v6986
    %v6989 = vunpack.c.l.s4 1983009808
    %v6990 = vunpack.c.0.s8 %v6989
    %v6991 = vlaneseq
    %v6992 = vshrl.u32 %v6991, 7
    %v6993 = vsub.s32 %v6990, %v6992
    %v6994 = vrot.slane %v6980, %v6993
    %v6995 = vcombine.low %v6930, %v6942
    %v6996 = vcombine.high %v6930, %v6942
    %v6998 = vunpack.c.l.s4 1983009808
    %v6999 = vunpack.c.0.s8 %v6998
    %v7000 = vlaneseq
    %v7001 = vshrl.u32 %v7000, 7
    %v7002 = vsub.s32 %v6999, %v7001
    %v7003 = vrot.slane %v6995, %v7002
    %v7005 = vunpack.c.l.s4 1983009808
    %v7006 = vunpack.c.0.s8 %v7005
    %v7007 = vlaneseq
    %v7008 = vshrl.u32 %v7007, 7
    %v7009 = vsub.s32 %v7006, %v7008
    %v7010 = vrot.slane %v6996, %v7009
    %v7011 = vcombine.low %v6955, %v6971
    %v7012 = vcombine.high %v6955, %v6971
    %v7014 = vunpack.c.l.s4 1934713408
    %v7015 = vunpack.c.0.s8 %v7014
    %v7016 = vlaneseq
    %v7017 = vshrl.u32 %v7016, 7
    %v7018 = vsub.s32 %v7015, %v7017
    %v7019 = vrot.slane %v7011, %v7018
    %v7021 = vunpack.c.l.s4 1934713408
    %v7022 = vunpack.c.0.s8 %v7021
    %v7023 = vlaneseq
    %v7024 = vshrl.u32 %v7023, 7
    %v7025 = vsub.s32 %v7022, %v7024
    %v7026 = vrot.slane %v7012, %v7025
    %v7027 = vcombine.low %v6962, %v6978
    %v7028 = vcombine.high %v6962, %v6978
    %v7030 = vunpack.c.l.s4 1934713408
    %v7031 = vunpack.c.0.s8 %v7030
    %v7032 = vlaneseq
    %v7033 = vshrl.u32 %v7032, 7
    %v7034 = vsub.s32 %v7031, %v7033
    %v7035 = vrot.slane %v7027, %v7034
    %v7037 = vunpack.c.l.s4 1934713408
    %v7038 = vunpack.c.0.s8 %v7037
    %v7039 = vlaneseq
    %v7040 = vshrl.u32 %v7039, 7
    %v7041 = vsub.s32 %v7038, %v7040
    %v7042 = vrot.slane %v7028, %v7041
    %v7043 = vcombine.low %v6987, %v7003
    %v7044 = vcombine.high %v6987, %v7003
    %v7046 = vunpack.c.l.s4 1934713408
    %v7047 = vunpack.c.0.s8 %v7046
    %v7048 = vlaneseq
    %v7049 = vshrl.u32 %v7048, 7
    %v7050 = vsub.s32 %v7047, %v7049
    %v7051 = vrot.slane %v7043, %v7050
    %v7053 = vunpack.c.l.s4 1934713408
    %v7054 = vunpack.c.0.s8 %v7053
    %v7055 = vlaneseq
    %v7056 = vshrl.u32 %v7055, 7
    %v7057 = vsub.s32 %v7054, %v7056
    %v7058 = vrot.slane %v7044, %v7057
    %v7059 = vcombine.low %v6994, %v7010
    %v7060 = vcombine.high %v6994, %v7010
    %v7062 = vunpack.c.l.s4 1934713408
    %v7063 = vunpack.c.0.s8 %v7062
    %v7064 = vlaneseq
    %v7065 = vshrl.u32 %v7064, 7
    %v7066 = vsub.s32 %v7063, %v7065
    %v7067 = vrot.slane %v7059, %v7066
    %v7069 = vunpack.c.l.s4 1934713408
    %v7070 = vunpack.c.0.s8 %v7069
    %v7071 = vlaneseq
    %v7072 = vshrl.u32 %v7071, 7
    %v7073 = vsub.s32 %v7070, %v7072
    %v7074 = vrot.slane %v7060, %v7073
    %v7075 = vcombine.low %v7019, %v7051
    %v7076 = vcombine.high %v7019, %v7051
    %v7077 = vcombine.low %v7026, %v7058
    %v7078 = vcombine.high %v7026, %v7058
    %v7079 = vcombine.low %v7035, %v7067
    %v7080 = vcombine.high %v7035, %v7067
    %v7081 = vcombine.low %v7042, %v7074
    %v7082 = vcombine.high %v7042, %v7074
    %v7083 = vcombine.low %v5721, %v6914
    %v7084 = vcombine.high %v5721, %v6914
    %v7086 = vunpack.c.l.s4 1983009808
    %v7087 = vunpack.c.0.s8 %v7086
    %v7088 = vlaneseq
    %v7089 = vshrl.u32 %v7088, 7
    %v7090 = vsub.s32 %v7087, %v7089
    %v7091 = vrot.slane %v7083, %v7090
    %v7093 = vunpack.c.l.s4 1983009808
    %v7094 = vunpack.c.0.s8 %v7093
    %v7095 = vlaneseq
    %v7096 = vshrl.u32 %v7095, 7
    %v7097 = vsub.s32 %v7094, %v7096
    %v7098 = vrot.slane %v7084, %v7097
    %v7099 = vcombine.low %v6908, %v6920
    %v7100 = vcombine.high %v6908, %v6920
    %v7102 = vunpack.c.l.s4 1983009808
    %v7103 = vunpack.c.0.s8 %v7102
    %v7104 = vlaneseq
    %v7105 = vshrl.u32 %v7104, 7
    %v7106 = vsub.s32 %v7103, %v7105
    %v7107 = vrot.slane %v7099, %v7106
    %v7109 = vunpack.c.l.s4 1983009808
    %v7110 = vunpack.c.0.s8 %v7109
    %v7111 = vlaneseq
    %v7112 = vshrl.u32 %v7111, 7
    %v7113 = vsub.s32 %v7110, %v7112
    %v7114 = vrot.slane %v7100, %v7113
    %v7115 = vcombine.low %v6926, %v6938
    %v7116 = vcombine.high %v6926, %v6938
    %v7118 = vunpack.c.l.s4 1983009808
    %v7119 = vunpack.c.0.s8 %v7118
    %v7120 = vlaneseq
    %v7121 = vshrl.u32 %v7120, 7
    %v7122 = vsub.s32 %v7119, %v7121
    %v7123 = vrot.slane %v7115, %v7122
    %v7125 = vunpack.c.l.s4 1983009808
    %v7126 = vunpack.c.0.s8 %v7125
    %v7127 = vlaneseq
    %v7128 = vshrl.u32 %v7127, 7
    %v7129 = vsub.s32 %v7126, %v7128
    %v7130 = vrot.slane %v7116, %v7129
    %v7131 = vcombine.low %v6932, %v6944
    %v7132 = vcombine.high %v6932, %v6944
    %v7134 = vunpack.c.l.s4 1983009808
    %v7135 = vunpack.c.0.s8 %v7134
    %v7136 = vlaneseq
    %v7137 = vshrl.u32 %v7136, 7
    %v7138 = vsub.s32 %v7135, %v7137
    %v7139 = vrot.slane %v7131, %v7138
    %v7141 = vunpack.c.l.s4 1983009808
    %v7142 = vunpack.c.0.s8 %v7141
    %v7143 = vlaneseq
    %v7144 = vshrl.u32 %v7143, 7
    %v7145 = vsub.s32 %v7142, %v7144
    %v7146 = vrot.slane %v7132, %v7145
    %v7147 = vcombine.low %v7091, %v7107
    %v7148 = vcombine.high %v7091, %v7107
    %v7150 = vunpack.c.l.s4 1934713408
    %v7151 = vunpack.c.0.s8 %v7150
    %v7152 = vlaneseq
    %v7153 = vshrl.u32 %v7152, 7
    %v7154 = vsub.s32 %v7151, %v7153
    %v7155 = vrot.slane %v7147, %v7154
    %v7157 = vunpack.c.l.s4 1934713408
    %v7158 = vunpack.c.0.s8 %v7157
    %v7159 = vlaneseq
    %v7160 = vshrl.u32 %v7159, 7
    %v7161 = vsub.s32 %v7158, %v7160
    %v7162 = vrot.slane %v7148, %v7161
    %v7163 = vcombine.low %v7098, %v7114
    %v7164 = vcombine.high %v7098, %v7114
    %v7166 = vunpack.c.l.s4 1934713408
    %v7167 = vunpack.c.0.s8 %v7166
    %v7168 = vlaneseq
    %v7169 = vshrl.u32 %v7168, 7
    %v7170 = vsub.s32 %v7167, %v7169
    %v7171 = vrot.slane %v7163, %v7170
    %v7173 = vunpack.c.l.s4 1934713408
    %v7174 = vunpack.c.0.s8 %v7173
    %v7175 = vlaneseq
    %v7176 = vshrl.u32 %v7175, 7
    %v7177 = vsub.s32 %v7174, %v7176
    %v7178 = vrot.slane %v7164, %v7177
    %v7179 = vcombine.low %v7123, %v7139
    %v7180 = vcombine.high %v7123, %v7139
    %v7182 = vunpack.c.l.s4 1934713408
    %v7183 = vunpack.c.0.s8 %v7182
    %v7184 = vlaneseq
    %v7185 = vshrl.u32 %v7184, 7
    %v7186 = vsub.s32 %v7183, %v7185
    %v7187 = vrot.slane %v7179, %v7186
    %v7189 = vunpack.c.l.s4 1934713408
    %v7190 = vunpack.c.0.s8 %v7189
    %v7191 = vlaneseq
    %v7192 = vshrl.u32 %v7191, 7
    %v7193 = vsub.s32 %v7190, %v7192
    %v7194 = vrot.slane %v7180, %v7193
    %v7195 = vcombine.low %v7130, %v7146
    %v7196 = vcombine.high %v7130, %v7146
    %v7198 = vunpack.c.l.s4 1934713408
    %v7199 = vunpack.c.0.s8 %v7198
    %v7200 = vlaneseq
    %v7201 = vshrl.u32 %v7200, 7
    %v7202 = vsub.s32 %v7199, %v7201
    %v7203 = vrot.slane %v7195, %v7202
    %v7205 = vunpack.c.l.s4 1934713408
    %v7206 = vunpack.c.0.s8 %v7205
    %v7207 = vlaneseq
    %v7208 = vshrl.u32 %v7207, 7
    %v7209 = vsub.s32 %v7206, %v7208
    %v7210 = vrot.slane %v7196, %v7209
    %v7211 = vcombine.low %v7155, %v7187
    %v7212 = vcombine.high %v7155, %v7187
    %v7213 = vcombine.low %v7162, %v7194
    %v7214 = vcombine.high %v7162, %v7194
    %v7215 = vcombine.low %v7171, %v7203
    %v7216 = vcombine.high %v7171, %v7203
    %v7217 = vcombine.low %v7178, %v7210
    %v7218 = vcombine.high %v7178, %v7210
    %v7219 = vcombine.low %v7075, %v7077
    %v7220 = vcombine.high %v7075, %v7077
    %v7222 = vunpack.c.l.s4 1983009808
    %v7223 = vunpack.c.0.s8 %v7222
    %v7224 = vlaneseq
    %v7225 = vshrl.u32 %v7224, 7
    %v7226 = vsub.s32 %v7223, %v7225
    %v7227 = vrot.slane %v7219, %v7226
    %v7229 = vunpack.c.l.s4 1983009808
    %v7230 = vunpack.c.0.s8 %v7229
    %v7231 = vlaneseq
    %v7232 = vshrl.u32 %v7231, 7
    %v7233 = vsub.s32 %v7230, %v7232
    %v7234 = vrot.slane %v7220, %v7233
    %v7235 = vcombine.low %v7076, %v7078
    %v7236 = vcombine.high %v7076, %v7078
    %v7238 = vunpack.c.l.s4 1983009808
    %v7239 = vunpack.c.0.s8 %v7238
    %v7240 = vlaneseq
    %v7241 = vshrl.u32 %v7240, 7
    %v7242 = vsub.s32 %v7239, %v7241
    %v7243 = vrot.slane %v7235, %v7242
    %v7245 = vunpack.c.l.s4 1983009808
    %v7246 = vunpack.c.0.s8 %v7245
    %v7247 = vlaneseq
    %v7248 = vshrl.u32 %v7247, 7
    %v7249 = vsub.s32 %v7246, %v7248
    %v7250 = vrot.slane %v7236, %v7249
    %v7251 = vcombine.low %v7079, %v7081
    %v7252 = vcombine.high %v7079, %v7081
    %v7254 = vunpack.c.l.s4 1983009808
    %v7255 = vunpack.c.0.s8 %v7254
    %v7256 = vlaneseq
    %v7257 = vshrl.u32 %v7256, 7
    %v7258 = vsub.s32 %v7255, %v7257
    %v7259 = vrot.slane %v7251, %v7258
    %v7261 = vunpack.c.l.s4 1983009808
    %v7262 = vunpack.c.0.s8 %v7261
    %v7263 = vlaneseq
    %v7264 = vshrl.u32 %v7263, 7
    %v7265 = vsub.s32 %v7262, %v7264
    %v7266 = vrot.slane %v7252, %v7265
    %v7267 = vcombine.low %v7080, %v7082
    %v7268 = vcombine.high %v7080, %v7082
    %v7270 = vunpack.c.l.s4 1983009808
    %v7271 = vunpack.c.0.s8 %v7270
    %v7272 = vlaneseq
    %v7273 = vshrl.u32 %v7272, 7
    %v7274 = vsub.s32 %v7271, %v7273
    %v7275 = vrot.slane %v7267, %v7274
    %v7277 = vunpack.c.l.s4 1983009808
    %v7278 = vunpack.c.0.s8 %v7277
    %v7279 = vlaneseq
    %v7280 = vshrl.u32 %v7279, 7
    %v7281 = vsub.s32 %v7278, %v7280
    %v7282 = vrot.slane %v7268, %v7281
    %v7283 = vcombine.low %v7227, %v7243
    %v7284 = vcombine.high %v7227, %v7243
    %v7286 = vunpack.c.l.s4 1934713408
    %v7287 = vunpack.c.0.s8 %v7286
    %v7288 = vlaneseq
    %v7289 = vshrl.u32 %v7288, 7
    %v7290 = vsub.s32 %v7287, %v7289
    %v7291 = vrot.slane %v7283, %v7290
    %v7293 = vunpack.c.l.s4 1934713408
    %v7294 = vunpack.c.0.s8 %v7293
    %v7295 = vlaneseq
    %v7296 = vshrl.u32 %v7295, 7
    %v7297 = vsub.s32 %v7294, %v7296
    %v7298 = vrot.slane %v7284, %v7297
    %v7299 = vcombine.low %v7234, %v7250
    %v7300 = vcombine.high %v7234, %v7250
    %v7302 = vunpack.c.l.s4 1934713408
    %v7303 = vunpack.c.0.s8 %v7302
    %v7304 = vlaneseq
    %v7305 = vshrl.u32 %v7304, 7
    %v7306 = vsub.s32 %v7303, %v7305
    %v7307 = vrot.slane %v7299, %v7306
    %v7309 = vunpack.c.l.s4 1934713408
    %v7310 = vunpack.c.0.s8 %v7309
    %v7311 = vlaneseq
    %v7312 = vshrl.u32 %v7311, 7
    %v7313 = vsub.s32 %v7310, %v7312
    %v7314 = vrot.slane %v7300, %v7313
    %v7315 = vcombine.low %v7259, %v7275
    %v7316 = vcombine.high %v7259, %v7275
    %v7318 = vunpack.c.l.s4 1934713408
    %v7319 = vunpack.c.0.s8 %v7318
    %v7320 = vlaneseq
    %v7321 = vshrl.u32 %v7320, 7
    %v7322 = vsub.s32 %v7319, %v7321
    %v7323 = vrot.slane %v7315, %v7322
    %v7325 = vunpack.c.l.s4 1934713408
    %v7326 = vunpack.c.0.s8 %v7325
    %v7327 = vlaneseq
    %v7328 = vshrl.u32 %v7327, 7
    %v7329 = vsub.s32 %v7326, %v7328
    %v7330 = vrot.slane %v7316, %v7329
    %v7331 = vcombine.low %v7266, %v7282
    %v7332 = vcombine.high %v7266, %v7282
    %v7334 = vunpack.c.l.s4 1934713408
    %v7335 = vunpack.c.0.s8 %v7334
    %v7336 = vlaneseq
    %v7337 = vshrl.u32 %v7336, 7
    %v7338 = vsub.s32 %v7335, %v7337
    %v7339 = vrot.slane %v7331, %v7338
    %v7341 = vunpack.c.l.s4 1934713408
    %v7342 = vunpack.c.0.s8 %v7341
    %v7343 = vlaneseq
    %v7344 = vshrl.u32 %v7343, 7
    %v7345 = vsub.s32 %v7342, %v7344
    %v7346 = vrot.slane %v7332, %v7345
    %v7347 = vcombine.low %v7291, %v7323
    %v7348 = vcombine.high %v7291, %v7323
    %v7349 = vcombine.low %v7298, %v7330
    %v7350 = vcombine.high %v7298, %v7330
    %v7351 = vcombine.low %v7307, %v7339
    %v7352 = vcombine.high %v7307, %v7339
    %v7353 = vcombine.low %v7314, %v7346
    %v7354 = vcombine.high %v7314, %v7346
    %v7355 = vcombine.low %v7211, %v7213
    %v7356 = vcombine.high %v7211, %v7213
    %v7358 = vunpack.c.l.s4 1983009808
    %v7359 = vunpack.c.0.s8 %v7358
    %v7360 = vlaneseq
    %v7361 = vshrl.u32 %v7360, 7
    %v7362 = vsub.s32 %v7359, %v7361
    %v7363 = vrot.slane %v7355, %v7362
    %v7365 = vunpack.c.l.s4 1983009808
    %v7366 = vunpack.c.0.s8 %v7365
    %v7367 = vlaneseq
    %v7368 = vshrl.u32 %v7367, 7
    %v7369 = vsub.s32 %v7366, %v7368
    %v7370 = vrot.slane %v7356, %v7369
    %v7371 = vcombine.low %v7212, %v7214
    %v7372 = vcombine.high %v7212, %v7214
    %v7374 = vunpack.c.l.s4 1983009808
    %v7375 = vunpack.c.0.s8 %v7374
    %v7376 = vlaneseq
    %v7377 = vshrl.u32 %v7376, 7
    %v7378 = vsub.s32 %v7375, %v7377
    %v7379 = vrot.slane %v7371, %v7378
    %v7381 = vunpack.c.l.s4 1983009808
    %v7382 = vunpack.c.0.s8 %v7381
    %v7383 = vlaneseq
    %v7384 = vshrl.u32 %v7383, 7
    %v7385 = vsub.s32 %v7382, %v7384
    %v7386 = vrot.slane %v7372, %v7385
    %v7387 = vcombine.low %v7215, %v7217
    %v7388 = vcombine.high %v7215, %v7217
    %v7390 = vunpack.c.l.s4 1983009808
    %v7391 = vunpack.c.0.s8 %v7390
    %v7392 = vlaneseq
    %v7393 = vshrl.u32 %v7392, 7
    %v7394 = vsub.s32 %v7391, %v7393
    %v7395 = vrot.slane %v7387, %v7394
    %v7397 = vunpack.c.l.s4 1983009808
    %v7398 = vunpack.c.0.s8 %v7397
    %v7399 = vlaneseq
    %v7400 = vshrl.u32 %v7399, 7
    %v7401 = vsub.s32 %v7398, %v7400
    %v7402 = vrot.slane %v7388, %v7401
    %v7403 = vcombine.low %v7216, %v7218
    %v7404 = vcombine.high %v7216, %v7218
    %v7406 = vunpack.c.l.s4 1983009808
    %v7407 = vunpack.c.0.s8 %v7406
    %v7408 = vlaneseq
    %v7409 = vshrl.u32 %v7408, 7
    %v7410 = vsub.s32 %v7407, %v7409
    %v7411 = vrot.slane %v7403, %v7410
    %v7413 = vunpack.c.l.s4 1983009808
    %v7414 = vunpack.c.0.s8 %v7413
    %v7415 = vlaneseq
    %v7416 = vshrl.u32 %v7415, 7
    %v7417 = vsub.s32 %v7414, %v7416
    %v7418 = vrot.slane %v7404, %v7417
    %v7419 = vcombine.low %v7363, %v7379
    %v7420 = vcombine.high %v7363, %v7379
    %v7422 = vunpack.c.l.s4 1934713408
    %v7423 = vunpack.c.0.s8 %v7422
    %v7424 = vlaneseq
    %v7425 = vshrl.u32 %v7424, 7
    %v7426 = vsub.s32 %v7423, %v7425
    %v7427 = vrot.slane %v7419, %v7426
    %v7429 = vunpack.c.l.s4 1934713408
    %v7430 = vunpack.c.0.s8 %v7429
    %v7431 = vlaneseq
    %v7432 = vshrl.u32 %v7431, 7
    %v7433 = vsub.s32 %v7430, %v7432
    %v7434 = vrot.slane %v7420, %v7433
    %v7435 = vcombine.low %v7370, %v7386
    %v7436 = vcombine.high %v7370, %v7386
    %v7438 = vunpack.c.l.s4 1934713408
    %v7439 = vunpack.c.0.s8 %v7438
    %v7440 = vlaneseq
    %v7441 = vshrl.u32 %v7440, 7
    %v7442 = vsub.s32 %v7439, %v7441
    %v7443 = vrot.slane %v7435, %v7442
    %v7445 = vunpack.c.l.s4 1934713408
    %v7446 = vunpack.c.0.s8 %v7445
    %v7447 = vlaneseq
    %v7448 = vshrl.u32 %v7447, 7
    %v7449 = vsub.s32 %v7446, %v7448
    %v7450 = vrot.slane %v7436, %v7449
    %v7451 = vcombine.low %v7395, %v7411
    %v7452 = vcombine.high %v7395, %v7411
    %v7454 = vunpack.c.l.s4 1934713408
    %v7455 = vunpack.c.0.s8 %v7454
    %v7456 = vlaneseq
    %v7457 = vshrl.u32 %v7456, 7
    %v7458 = vsub.s32 %v7455, %v7457
    %v7459 = vrot.slane %v7451, %v7458
    %v7461 = vunpack.c.l.s4 1934713408
    %v7462 = vunpack.c.0.s8 %v7461
    %v7463 = vlaneseq
    %v7464 = vshrl.u32 %v7463, 7
    %v7465 = vsub.s32 %v7462, %v7464
    %v7466 = vrot.slane %v7452, %v7465
    %v7467 = vcombine.low %v7402, %v7418
    %v7468 = vcombine.high %v7402, %v7418
    %v7470 = vunpack.c.l.s4 1934713408
    %v7471 = vunpack.c.0.s8 %v7470
    %v7472 = vlaneseq
    %v7473 = vshrl.u32 %v7472, 7
    %v7474 = vsub.s32 %v7471, %v7473
    %v7475 = vrot.slane %v7467, %v7474
    %v7477 = vunpack.c.l.s4 1934713408
    %v7478 = vunpack.c.0.s8 %v7477
    %v7479 = vlaneseq
    %v7480 = vshrl.u32 %v7479, 7
    %v7481 = vsub.s32 %v7478, %v7480
    %v7482 = vrot.slane %v7468, %v7481
    %v7483 = vcombine.low %v7427, %v7459
    %v7484 = vcombine.high %v7427, %v7459
    %v7485 = vcombine.low %v7434, %v7466
    %v7486 = vcombine.high %v7434, %v7466
    %v7487 = vcombine.low %v7443, %v7475
    %v7488 = vcombine.high %v7443, %v7475
    %v7489 = vcombine.low %v7450, %v7482
    %v7490 = vcombine.high %v7450, %v7482
    %v7492 = vsel %vm2045, %v6167, 0
    %v7495 = vsel %vm2045, %v6759, 0
    %7497 = vmatprep.subr.mxu0 0.0
    %7498 = vmatpush1.xpose.msra.mxu0 %v7495
    %7499 = vmatprep.subr.mxu0 0.0
    %7500 = vmatpush1.xpose.msra.mxu0 0.0
    %7501 = vmatprep.subr.mxu0 0.0
    %7502 = vmatpush1.xpose.msra.mxu0 0.0
    %7503 = vmatprep.subr.mxu0 0.0
    %7504 = vmatpush1.xpose.msra.mxu0 0.0
    %7505 = vmatprep.subr.mxu0 0.0
    %7506 = vmatpush1.xpose.msra.mxu0 0.0
    %7507 = vmatprep.subr.mxu0 0.0
    %7508 = vmatpush1.xpose.msra.mxu0 0.0
    %7509 = vmatprep.subr.mxu0 0.0
    %7510 = vmatpush1.xpose.msra.mxu0 0.0
    %7511 = vmatprep.subr.mxu0 0.0
    %7512 = vmatpush1.xpose.msra.mxu0 0.0
    %7513 = vmatprep.subr.mxu0 0.0
    %7514 = vmatpush1.xpose.msra.mxu0 0.0
    %7515 = vmatprep.subr.mxu0 0.0
    %7516 = vmatpush1.xpose.msra.mxu0 0.0
    %7517 = vmatprep.subr.mxu0 0.0
    %7518 = vmatpush1.xpose.msra.mxu0 0.0
    %7519 = vmatprep.subr.mxu0 0.0
    %7520 = vmatpush1.xpose.msra.mxu0 0.0
    %7521 = vmatprep.subr.mxu0 0.0
    %7522 = vmatpush1.xpose.msra.mxu0 0.0
    %7523 = vmatprep.subr.mxu0 0.0
    %7524 = vmatpush1.xpose.msra.mxu0 0.0
    %7525 = vmatprep.subr.mxu0 0.0
    %7526 = vmatpush1.xpose.msra.mxu0 0.0
    %7527 = vmatprep.subr.mxu0 0.0
    %7528 = vmatpush1.xpose.msra.mxu0 0.0
    %7529 = vmatprep.subr.mxu0 0.0
    %7530 = vmatpush1.xpose.msra.mxu0 0.0
    %7531 = vmatprep.subr.mxu0 0.0
    %7532 = vmatpush1.xpose.msra.mxu0 0.0
    %7533 = vmatprep.subr.mxu0 0.0
    %7534 = vmatpush1.xpose.msra.mxu0 0.0
    %7535 = vmatprep.subr.mxu0 0.0
    %7536 = vmatpush1.xpose.msra.mxu0 0.0
    %7537 = vmatprep.subr.mxu0 0.0
    %7538 = vmatpush1.xpose.msra.mxu0 0.0
    %7539 = vmatprep.subr.mxu0 0.0
    %7540 = vmatpush1.xpose.msra.mxu0 0.0
    %7541 = vmatprep.subr.mxu0 0.0
    %7542 = vmatpush1.xpose.msra.mxu0 0.0
    %7543 = vmatprep.subr.mxu0 0.0
    %7544 = vmatpush1.xpose.msra.mxu0 0.0
    %7545 = vmatprep.subr.mxu0 0.0
    %7546 = vmatpush1.xpose.msra.mxu0 0.0
    %7547 = vmatprep.subr.mxu0 0.0
    %7548 = vmatpush1.xpose.msra.mxu0 0.0
    %7549 = vmatprep.subr.mxu0 0.0
    %7550 = vmatpush1.xpose.msra.mxu0 0.0
    %7551 = vmatprep.subr.mxu0 0.0
    %7552 = vmatpush1.xpose.msra.mxu0 0.0
    %7553 = vmatprep.subr.mxu0 0.0
    %7554 = vmatpush1.xpose.msra.mxu0 0.0
    %7555 = vmatprep.subr.mxu0 0.0
    %7556 = vmatpush1.xpose.msra.mxu0 0.0
    %7557 = vmatprep.subr.mxu0 0.0
    %7558 = vmatpush1.xpose.msra.mxu0 0.0
    %7559 = vmatprep.subr.mxu0 0.0
    %7560 = vmatpush1.xpose.msra.mxu0 0.0
    %7561 = vmatprep.mubr.f32.mxu0 0.0
    %7562 = vmatmul.mubr.f32.gmra.mrb[0].mxu0 %v7492
    %v7563 = vpop.f32.mrb[0].mxu0
    %v7564 = vadd.f32 0.0, %v7563
    %v7565 = vpop.f32.mrb[0].mxu0
    %7566 = vdwg.mxu0
    %v7568 = vsel %vm2045, %v6168, 0
    %v7571 = vsel %vm2045, %v6760, 0
    %7573 = vmatprep.subr.mxu0 0.0
    %7574 = vmatpush1.xpose.msra.mxu0 %v7571
    %7575 = vmatprep.subr.mxu0 0.0
    %7576 = vmatpush1.xpose.msra.mxu0 0.0
    %7577 = vmatprep.subr.mxu0 0.0
    %7578 = vmatpush1.xpose.msra.mxu0 0.0
    %7579 = vmatprep.subr.mxu0 0.0
    %7580 = vmatpush1.xpose.msra.mxu0 0.0
    %7581 = vmatprep.subr.mxu0 0.0
    %7582 = vmatpush1.xpose.msra.mxu0 0.0
    %7583 = vmatprep.subr.mxu0 0.0
    %7584 = vmatpush1.xpose.msra.mxu0 0.0
    %7585 = vmatprep.subr.mxu0 0.0
    %7586 = vmatpush1.xpose.msra.mxu0 0.0
    %7587 = vmatprep.subr.mxu0 0.0
    %7588 = vmatpush1.xpose.msra.mxu0 0.0
    %7589 = vmatprep.subr.mxu0 0.0
    %7590 = vmatpush1.xpose.msra.mxu0 0.0
    %7591 = vmatprep.subr.mxu0 0.0
    %7592 = vmatpush1.xpose.msra.mxu0 0.0
    %7593 = vmatprep.subr.mxu0 0.0
    %7594 = vmatpush1.xpose.msra.mxu0 0.0
    %7595 = vmatprep.subr.mxu0 0.0
    %7596 = vmatpush1.xpose.msra.mxu0 0.0
    %7597 = vmatprep.subr.mxu0 0.0
    %7598 = vmatpush1.xpose.msra.mxu0 0.0
    %7599 = vmatprep.subr.mxu0 0.0
    %7600 = vmatpush1.xpose.msra.mxu0 0.0
    %7601 = vmatprep.subr.mxu0 0.0
    %7602 = vmatpush1.xpose.msra.mxu0 0.0
    %7603 = vmatprep.subr.mxu0 0.0
    %7604 = vmatpush1.xpose.msra.mxu0 0.0
    %7605 = vmatprep.subr.mxu0 0.0
    %7606 = vmatpush1.xpose.msra.mxu0 0.0
    %7607 = vmatprep.subr.mxu0 0.0
    %7608 = vmatpush1.xpose.msra.mxu0 0.0
    %7609 = vmatprep.subr.mxu0 0.0
    %7610 = vmatpush1.xpose.msra.mxu0 0.0
    %7611 = vmatprep.subr.mxu0 0.0
    %7612 = vmatpush1.xpose.msra.mxu0 0.0
    %7613 = vmatprep.subr.mxu0 0.0
    %7614 = vmatpush1.xpose.msra.mxu0 0.0
    %7615 = vmatprep.subr.mxu0 0.0
    %7616 = vmatpush1.xpose.msra.mxu0 0.0
    %7617 = vmatprep.subr.mxu0 0.0
    %7618 = vmatpush1.xpose.msra.mxu0 0.0
    %7619 = vmatprep.subr.mxu0 0.0
    %7620 = vmatpush1.xpose.msra.mxu0 0.0
    %7621 = vmatprep.subr.mxu0 0.0
    %7622 = vmatpush1.xpose.msra.mxu0 0.0
    %7623 = vmatprep.subr.mxu0 0.0
    %7624 = vmatpush1.xpose.msra.mxu0 0.0
    %7625 = vmatprep.subr.mxu0 0.0
    %7626 = vmatpush1.xpose.msra.mxu0 0.0
    %7627 = vmatprep.subr.mxu0 0.0
    %7628 = vmatpush1.xpose.msra.mxu0 0.0
    %7629 = vmatprep.subr.mxu0 0.0
    %7630 = vmatpush1.xpose.msra.mxu0 0.0
    %7631 = vmatprep.subr.mxu0 0.0
    %7632 = vmatpush1.xpose.msra.mxu0 0.0
    %7633 = vmatprep.subr.mxu0 0.0
    %7634 = vmatpush1.xpose.msra.mxu0 0.0
    %7635 = vmatprep.subr.mxu0 0.0
    %7636 = vmatpush1.xpose.msra.mxu0 0.0
    %7637 = vmatprep.mubr.f32.mxu0 0.0
    %7638 = vmatmul.mubr.f32.gmra.mrb[0].mxu0 %v7568
    %v7639 = vpop.f32.mrb[0].mxu0
    %v7640 = vadd.f32 0.0, %v7639
    %v7641 = vpop.f32.mrb[0].mxu0
    %7642 = vdwg.mxu0
    %v7644 = vsel %vm2045, %v6169, 0
    %v7647 = vsel %vm2045, %v6761, 0
    %7649 = vmatprep.subr.mxu0 0.0
    %7650 = vmatpush1.xpose.msra.mxu0 %v7647
    %7651 = vmatprep.subr.mxu0 0.0
    %7652 = vmatpush1.xpose.msra.mxu0 0.0
    %7653 = vmatprep.subr.mxu0 0.0
    %7654 = vmatpush1.xpose.msra.mxu0 0.0
    %7655 = vmatprep.subr.mxu0 0.0
    %7656 = vmatpush1.xpose.msra.mxu0 0.0
    %7657 = vmatprep.subr.mxu0 0.0
    %7658 = vmatpush1.xpose.msra.mxu0 0.0
    %7659 = vmatprep.subr.mxu0 0.0
    %7660 = vmatpush1.xpose.msra.mxu0 0.0
    %7661 = vmatprep.subr.mxu0 0.0
    %7662 = vmatpush1.xpose.msra.mxu0 0.0
    %7663 = vmatprep.subr.mxu0 0.0
    %7664 = vmatpush1.xpose.msra.mxu0 0.0
    %7665 = vmatprep.subr.mxu0 0.0
    %7666 = vmatpush1.xpose.msra.mxu0 0.0
    %7667 = vmatprep.subr.mxu0 0.0
    %7668 = vmatpush1.xpose.msra.mxu0 0.0
    %7669 = vmatprep.subr.mxu0 0.0
    %7670 = vmatpush1.xpose.msra.mxu0 0.0
    %7671 = vmatprep.subr.mxu0 0.0
    %7672 = vmatpush1.xpose.msra.mxu0 0.0
    %7673 = vmatprep.subr.mxu0 0.0
    %7674 = vmatpush1.xpose.msra.mxu0 0.0
    %7675 = vmatprep.subr.mxu0 0.0
    %7676 = vmatpush1.xpose.msra.mxu0 0.0
    %7677 = vmatprep.subr.mxu0 0.0
    %7678 = vmatpush1.xpose.msra.mxu0 0.0
    %7679 = vmatprep.subr.mxu0 0.0
    %7680 = vmatpush1.xpose.msra.mxu0 0.0
    %7681 = vmatprep.subr.mxu0 0.0
    %7682 = vmatpush1.xpose.msra.mxu0 0.0
    %7683 = vmatprep.subr.mxu0 0.0
    %7684 = vmatpush1.xpose.msra.mxu0 0.0
    %7685 = vmatprep.subr.mxu0 0.0
    %7686 = vmatpush1.xpose.msra.mxu0 0.0
    %7687 = vmatprep.subr.mxu0 0.0
    %7688 = vmatpush1.xpose.msra.mxu0 0.0
    %7689 = vmatprep.subr.mxu0 0.0
    %7690 = vmatpush1.xpose.msra.mxu0 0.0
    %7691 = vmatprep.subr.mxu0 0.0
    %7692 = vmatpush1.xpose.msra.mxu0 0.0
    %7693 = vmatprep.subr.mxu0 0.0
    %7694 = vmatpush1.xpose.msra.mxu0 0.0
    %7695 = vmatprep.subr.mxu0 0.0
    %7696 = vmatpush1.xpose.msra.mxu0 0.0
    %7697 = vmatprep.subr.mxu0 0.0
    %7698 = vmatpush1.xpose.msra.mxu0 0.0
    %7699 = vmatprep.subr.mxu0 0.0
    %7700 = vmatpush1.xpose.msra.mxu0 0.0
    %7701 = vmatprep.subr.mxu0 0.0
    %7702 = vmatpush1.xpose.msra.mxu0 0.0
    %7703 = vmatprep.subr.mxu0 0.0
    %7704 = vmatpush1.xpose.msra.mxu0 0.0
    %7705 = vmatprep.subr.mxu0 0.0
    %7706 = vmatpush1.xpose.msra.mxu0 0.0
    %7707 = vmatprep.subr.mxu0 0.0
    %7708 = vmatpush1.xpose.msra.mxu0 0.0
    %7709 = vmatprep.subr.mxu0 0.0
    %7710 = vmatpush1.xpose.msra.mxu0 0.0
    %7711 = vmatprep.subr.mxu0 0.0
    %7712 = vmatpush1.xpose.msra.mxu0 0.0
    %7713 = vmatprep.mubr.f32.mxu0 0.0
    %7714 = vmatmul.mubr.f32.gmra.mrb[0].mxu0 %v7644
    %v7715 = vpop.f32.mrb[0].mxu0
    %v7716 = vadd.f32 0.0, %v7715
    %v7717 = vpop.f32.mrb[0].mxu0
    %7718 = vdwg.mxu0
    %v7720 = vsel %vm2045, %v6170, 0
    %v7723 = vsel %vm2045, %v6762, 0
    %7725 = vmatprep.subr.mxu0 0.0
    %7726 = vmatpush1.xpose.msra.mxu0 %v7723
    %7727 = vmatprep.subr.mxu0 0.0
    %7728 = vmatpush1.xpose.msra.mxu0 0.0
    %7729 = vmatprep.subr.mxu0 0.0
    %7730 = vmatpush1.xpose.msra.mxu0 0.0
    %7731 = vmatprep.subr.mxu0 0.0
    %7732 = vmatpush1.xpose.msra.mxu0 0.0
    %7733 = vmatprep.subr.mxu0 0.0
    %7734 = vmatpush1.xpose.msra.mxu0 0.0
    %7735 = vmatprep.subr.mxu0 0.0
    %7736 = vmatpush1.xpose.msra.mxu0 0.0
    %7737 = vmatprep.subr.mxu0 0.0
    %7738 = vmatpush1.xpose.msra.mxu0 0.0
    %7739 = vmatprep.subr.mxu0 0.0
    %7740 = vmatpush1.xpose.msra.mxu0 0.0
    %7741 = vmatprep.subr.mxu0 0.0
    %7742 = vmatpush1.xpose.msra.mxu0 0.0
    %7743 = vmatprep.subr.mxu0 0.0
    %7744 = vmatpush1.xpose.msra.mxu0 0.0
    %7745 = vmatprep.subr.mxu0 0.0
    %7746 = vmatpush1.xpose.msra.mxu0 0.0
    %7747 = vmatprep.subr.mxu0 0.0
    %7748 = vmatpush1.xpose.msra.mxu0 0.0
    %7749 = vmatprep.subr.mxu0 0.0
    %7750 = vmatpush1.xpose.msra.mxu0 0.0
    %7751 = vmatprep.subr.mxu0 0.0
    %7752 = vmatpush1.xpose.msra.mxu0 0.0
    %7753 = vmatprep.subr.mxu0 0.0
    %7754 = vmatpush1.xpose.msra.mxu0 0.0
    %7755 = vmatprep.subr.mxu0 0.0
    %7756 = vmatpush1.xpose.msra.mxu0 0.0
    %7757 = vmatprep.subr.mxu0 0.0
    %7758 = vmatpush1.xpose.msra.mxu0 0.0
    %7759 = vmatprep.subr.mxu0 0.0
    %7760 = vmatpush1.xpose.msra.mxu0 0.0
    %7761 = vmatprep.subr.mxu0 0.0
    %7762 = vmatpush1.xpose.msra.mxu0 0.0
    %7763 = vmatprep.subr.mxu0 0.0
    %7764 = vmatpush1.xpose.msra.mxu0 0.0
    %7765 = vmatprep.subr.mxu0 0.0
    %7766 = vmatpush1.xpose.msra.mxu0 0.0
    %7767 = vmatprep.subr.mxu0 0.0
    %7768 = vmatpush1.xpose.msra.mxu0 0.0
    %7769 = vmatprep.subr.mxu0 0.0
    %7770 = vmatpush1.xpose.msra.mxu0 0.0
    %7771 = vmatprep.subr.mxu0 0.0
    %7772 = vmatpush1.xpose.msra.mxu0 0.0
    %7773 = vmatprep.subr.mxu0 0.0
    %7774 = vmatpush1.xpose.msra.mxu0 0.0
    %7775 = vmatprep.subr.mxu0 0.0
    %7776 = vmatpush1.xpose.msra.mxu0 0.0
    %7777 = vmatprep.subr.mxu0 0.0
    %7778 = vmatpush1.xpose.msra.mxu0 0.0
    %7779 = vmatprep.subr.mxu0 0.0
    %7780 = vmatpush1.xpose.msra.mxu0 0.0
    %7781 = vmatprep.subr.mxu0 0.0
    %7782 = vmatpush1.xpose.msra.mxu0 0.0
    %7783 = vmatprep.subr.mxu0 0.0
    %7784 = vmatpush1.xpose.msra.mxu0 0.0
    %7785 = vmatprep.subr.mxu0 0.0
    %7786 = vmatpush1.xpose.msra.mxu0 0.0
    %7787 = vmatprep.subr.mxu0 0.0
    %7788 = vmatpush1.xpose.msra.mxu0 0.0
    %7789 = vmatprep.mubr.f32.mxu0 0.0
    %7790 = vmatmul.mubr.f32.gmra.mrb[0].mxu0 %v7720
    %v7791 = vpop.f32.mrb[0].mxu0
    %v7792 = vadd.f32 0.0, %v7791
    %v7793 = vpop.f32.mrb[0].mxu0
    %7794 = vdwg.mxu0
    %v7796 = vsel %vm2045, %v6171, 0
    %v7799 = vsel %vm2045, %v6763, 0
    %7801 = vmatprep.subr.mxu0 0.0
    %7802 = vmatpush1.xpose.msra.mxu0 %v7799
    %7803 = vmatprep.subr.mxu0 0.0
    %7804 = vmatpush1.xpose.msra.mxu0 0.0
    %7805 = vmatprep.subr.mxu0 0.0
    %7806 = vmatpush1.xpose.msra.mxu0 0.0
    %7807 = vmatprep.subr.mxu0 0.0
    %7808 = vmatpush1.xpose.msra.mxu0 0.0
    %7809 = vmatprep.subr.mxu0 0.0
    %7810 = vmatpush1.xpose.msra.mxu0 0.0
    %7811 = vmatprep.subr.mxu0 0.0
    %7812 = vmatpush1.xpose.msra.mxu0 0.0
    %7813 = vmatprep.subr.mxu0 0.0
    %7814 = vmatpush1.xpose.msra.mxu0 0.0
    %7815 = vmatprep.subr.mxu0 0.0
    %7816 = vmatpush1.xpose.msra.mxu0 0.0
    %7817 = vmatprep.subr.mxu0 0.0
    %7818 = vmatpush1.xpose.msra.mxu0 0.0
    %7819 = vmatprep.subr.mxu0 0.0
    %7820 = vmatpush1.xpose.msra.mxu0 0.0
    %7821 = vmatprep.subr.mxu0 0.0
    %7822 = vmatpush1.xpose.msra.mxu0 0.0
    %7823 = vmatprep.subr.mxu0 0.0
    %7824 = vmatpush1.xpose.msra.mxu0 0.0
    %7825 = vmatprep.subr.mxu0 0.0
    %7826 = vmatpush1.xpose.msra.mxu0 0.0
    %7827 = vmatprep.subr.mxu0 0.0
    %7828 = vmatpush1.xpose.msra.mxu0 0.0
    %7829 = vmatprep.subr.mxu0 0.0
    %7830 = vmatpush1.xpose.msra.mxu0 0.0
    %7831 = vmatprep.subr.mxu0 0.0
    %7832 = vmatpush1.xpose.msra.mxu0 0.0
    %7833 = vmatprep.subr.mxu0 0.0
    %7834 = vmatpush1.xpose.msra.mxu0 0.0
    %7835 = vmatprep.subr.mxu0 0.0
    %7836 = vmatpush1.xpose.msra.mxu0 0.0
    %7837 = vmatprep.subr.mxu0 0.0
    %7838 = vmatpush1.xpose.msra.mxu0 0.0
    %7839 = vmatprep.subr.mxu0 0.0
    %7840 = vmatpush1.xpose.msra.mxu0 0.0
    %7841 = vmatprep.subr.mxu0 0.0
    %7842 = vmatpush1.xpose.msra.mxu0 0.0
    %7843 = vmatprep.subr.mxu0 0.0
    %7844 = vmatpush1.xpose.msra.mxu0 0.0
    %7845 = vmatprep.subr.mxu0 0.0
    %7846 = vmatpush1.xpose.msra.mxu0 0.0
    %7847 = vmatprep.subr.mxu0 0.0
    %7848 = vmatpush1.xpose.msra.mxu0 0.0
    %7849 = vmatprep.subr.mxu0 0.0
    %7850 = vmatpush1.xpose.msra.mxu0 0.0
    %7851 = vmatprep.subr.mxu0 0.0
    %7852 = vmatpush1.xpose.msra.mxu0 0.0
    %7853 = vmatprep.subr.mxu0 0.0
    %7854 = vmatpush1.xpose.msra.mxu0 0.0
    %7855 = vmatprep.subr.mxu0 0.0
    %7856 = vmatpush1.xpose.msra.mxu0 0.0
    %7857 = vmatprep.subr.mxu0 0.0
    %7858 = vmatpush1.xpose.msra.mxu0 0.0
    %7859 = vmatprep.subr.mxu0 0.0
    %7860 = vmatpush1.xpose.msra.mxu0 0.0
    %7861 = vmatprep.subr.mxu0 0.0
    %7862 = vmatpush1.xpose.msra.mxu0 0.0
    %7863 = vmatprep.subr.mxu0 0.0
    %7864 = vmatpush1.xpose.msra.mxu0 0.0
    %7865 = vmatprep.mubr.f32.mxu0 0.0
    %7866 = vmatmul.mubr.f32.gmra.mrb[0].mxu0 %v7796
    %v7867 = vpop.f32.mrb[0].mxu0
    %v7868 = vadd.f32 0.0, %v7867
    %v7869 = vpop.f32.mrb[0].mxu0
    %7870 = vdwg.mxu0
    %v7872 = vsel %vm2045, %v6172, 0
    %v7875 = vsel %vm2045, %v6764, 0
    %7877 = vmatprep.subr.mxu0 0.0
    %7878 = vmatpush1.xpose.msra.mxu0 %v7875
    %7879 = vmatprep.subr.mxu0 0.0
    %7880 = vmatpush1.xpose.msra.mxu0 0.0
    %7881 = vmatprep.subr.mxu0 0.0
    %7882 = vmatpush1.xpose.msra.mxu0 0.0
    %7883 = vmatprep.subr.mxu0 0.0
    %7884 = vmatpush1.xpose.msra.mxu0 0.0
    %7885 = vmatprep.subr.mxu0 0.0
    %7886 = vmatpush1.xpose.msra.mxu0 0.0
    %7887 = vmatprep.subr.mxu0 0.0
    %7888 = vmatpush1.xpose.msra.mxu0 0.0
    %7889 = vmatprep.subr.mxu0 0.0
    %7890 = vmatpush1.xpose.msra.mxu0 0.0
    %7891 = vmatprep.subr.mxu0 0.0
    %7892 = vmatpush1.xpose.msra.mxu0 0.0
    %7893 = vmatprep.subr.mxu0 0.0
    %7894 = vmatpush1.xpose.msra.mxu0 0.0
    %7895 = vmatprep.subr.mxu0 0.0
    %7896 = vmatpush1.xpose.msra.mxu0 0.0
    %7897 = vmatprep.subr.mxu0 0.0
    %7898 = vmatpush1.xpose.msra.mxu0 0.0
    %7899 = vmatprep.subr.mxu0 0.0
    %7900 = vmatpush1.xpose.msra.mxu0 0.0
    %7901 = vmatprep.subr.mxu0 0.0
    %7902 = vmatpush1.xpose.msra.mxu0 0.0
    %7903 = vmatprep.subr.mxu0 0.0
    %7904 = vmatpush1.xpose.msra.mxu0 0.0
    %7905 = vmatprep.subr.mxu0 0.0
    %7906 = vmatpush1.xpose.msra.mxu0 0.0
    %7907 = vmatprep.subr.mxu0 0.0
    %7908 = vmatpush1.xpose.msra.mxu0 0.0
    %7909 = vmatprep.subr.mxu0 0.0
    %7910 = vmatpush1.xpose.msra.mxu0 0.0
    %7911 = vmatprep.subr.mxu0 0.0
    %7912 = vmatpush1.xpose.msra.mxu0 0.0
    %7913 = vmatprep.subr.mxu0 0.0
    %7914 = vmatpush1.xpose.msra.mxu0 0.0
    %7915 = vmatprep.subr.mxu0 0.0
    %7916 = vmatpush1.xpose.msra.mxu0 0.0
    %7917 = vmatprep.subr.mxu0 0.0
    %7918 = vmatpush1.xpose.msra.mxu0 0.0
    %7919 = vmatprep.subr.mxu0 0.0
    %7920 = vmatpush1.xpose.msra.mxu0 0.0
    %7921 = vmatprep.subr.mxu0 0.0
    %7922 = vmatpush1.xpose.msra.mxu0 0.0
    %7923 = vmatprep.subr.mxu0 0.0
    %7924 = vmatpush1.xpose.msra.mxu0 0.0
    %7925 = vmatprep.subr.mxu0 0.0
    %7926 = vmatpush1.xpose.msra.mxu0 0.0
    %7927 = vmatprep.subr.mxu0 0.0
    %7928 = vmatpush1.xpose.msra.mxu0 0.0
    %7929 = vmatprep.subr.mxu0 0.0
    %7930 = vmatpush1.xpose.msra.mxu0 0.0
    %7931 = vmatprep.subr.mxu0 0.0
    %7932 = vmatpush1.xpose.msra.mxu0 0.0
    %7933 = vmatprep.subr.mxu0 0.0
    %7934 = vmatpush1.xpose.msra.mxu0 0.0
    %7935 = vmatprep.subr.mxu0 0.0
    %7936 = vmatpush1.xpose.msra.mxu0 0.0
    %7937 = vmatprep.subr.mxu0 0.0
    %7938 = vmatpush1.xpose.msra.mxu0 0.0
    %7939 = vmatprep.subr.mxu0 0.0
    %7940 = vmatpush1.xpose.msra.mxu0 0.0
    %7941 = vmatprep.mubr.f32.mxu0 0.0
    %7942 = vmatmul.mubr.f32.gmra.mrb[0].mxu0 %v7872
    %v7943 = vpop.f32.mrb[0].mxu0
    %v7944 = vadd.f32 0.0, %v7943
    %v7945 = vpop.f32.mrb[0].mxu0
    %7946 = vdwg.mxu0
    %v7948 = vsel %vm2045, %v6173, 0
    %v7951 = vsel %vm2045, %v6765, 0
    %7953 = vmatprep.subr.mxu0 0.0
    %7954 = vmatpush1.xpose.msra.mxu0 %v7951
    %7955 = vmatprep.subr.mxu0 0.0
    %7956 = vmatpush1.xpose.msra.mxu0 0.0
    %7957 = vmatprep.subr.mxu0 0.0
    %7958 = vmatpush1.xpose.msra.mxu0 0.0
    %7959 = vmatprep.subr.mxu0 0.0
    %7960 = vmatpush1.xpose.msra.mxu0 0.0
    %7961 = vmatprep.subr.mxu0 0.0
    %7962 = vmatpush1.xpose.msra.mxu0 0.0
    %7963 = vmatprep.subr.mxu0 0.0
    %7964 = vmatpush1.xpose.msra.mxu0 0.0
    %7965 = vmatprep.subr.mxu0 0.0
    %7966 = vmatpush1.xpose.msra.mxu0 0.0
    %7967 = vmatprep.subr.mxu0 0.0
    %7968 = vmatpush1.xpose.msra.mxu0 0.0
    %7969 = vmatprep.subr.mxu0 0.0
    %7970 = vmatpush1.xpose.msra.mxu0 0.0
    %7971 = vmatprep.subr.mxu0 0.0
    %7972 = vmatpush1.xpose.msra.mxu0 0.0
    %7973 = vmatprep.subr.mxu0 0.0
    %7974 = vmatpush1.xpose.msra.mxu0 0.0
    %7975 = vmatprep.subr.mxu0 0.0
    %7976 = vmatpush1.xpose.msra.mxu0 0.0
    %7977 = vmatprep.subr.mxu0 0.0
    %7978 = vmatpush1.xpose.msra.mxu0 0.0
    %7979 = vmatprep.subr.mxu0 0.0
    %7980 = vmatpush1.xpose.msra.mxu0 0.0
    %7981 = vmatprep.subr.mxu0 0.0
    %7982 = vmatpush1.xpose.msra.mxu0 0.0
    %7983 = vmatprep.subr.mxu0 0.0
    %7984 = vmatpush1.xpose.msra.mxu0 0.0
    %7985 = vmatprep.subr.mxu0 0.0
    %7986 = vmatpush1.xpose.msra.mxu0 0.0
    %7987 = vmatprep.subr.mxu0 0.0
    %7988 = vmatpush1.xpose.msra.mxu0 0.0
    %7989 = vmatprep.subr.mxu0 0.0
    %7990 = vmatpush1.xpose.msra.mxu0 0.0
    %7991 = vmatprep.subr.mxu0 0.0
    %7992 = vmatpush1.xpose.msra.mxu0 0.0
    %7993 = vmatprep.subr.mxu0 0.0
    %7994 = vmatpush1.xpose.msra.mxu0 0.0
    %7995 = vmatprep.subr.mxu0 0.0
    %7996 = vmatpush1.xpose.msra.mxu0 0.0
    %7997 = vmatprep.subr.mxu0 0.0
    %7998 = vmatpush1.xpose.msra.mxu0 0.0
    %7999 = vmatprep.subr.mxu0 0.0
    %8000 = vmatpush1.xpose.msra.mxu0 0.0
    %8001 = vmatprep.subr.mxu0 0.0
    %8002 = vmatpush1.xpose.msra.mxu0 0.0
    %8003 = vmatprep.subr.mxu0 0.0
    %8004 = vmatpush1.xpose.msra.mxu0 0.0
    %8005 = vmatprep.subr.mxu0 0.0
    %8006 = vmatpush1.xpose.msra.mxu0 0.0
    %8007 = vmatprep.subr.mxu0 0.0
    %8008 = vmatpush1.xpose.msra.mxu0 0.0
    %8009 = vmatprep.subr.mxu0 0.0
    %8010 = vmatpush1.xpose.msra.mxu0 0.0
    %8011 = vmatprep.subr.mxu0 0.0
    %8012 = vmatpush1.xpose.msra.mxu0 0.0
    %8013 = vmatprep.subr.mxu0 0.0
    %8014 = vmatpush1.xpose.msra.mxu0 0.0
    %8015 = vmatprep.subr.mxu0 0.0
    %8016 = vmatpush1.xpose.msra.mxu0 0.0
    %8017 = vmatprep.mubr.f32.mxu0 0.0
    %8018 = vmatmul.mubr.f32.gmra.mrb[0].mxu0 %v7948
    %v8019 = vpop.f32.mrb[0].mxu0
    %v8020 = vadd.f32 0.0, %v8019
    %v8021 = vpop.f32.mrb[0].mxu0
    %8022 = vdwg.mxu0
    %v8024 = vsel %vm2045, %v6174, 0
    %v8027 = vsel %vm2045, %v6766, 0
    %8029 = vmatprep.subr.mxu0 0.0
    %8030 = vmatpush1.xpose.msra.mxu0 %v8027
    %8031 = vmatprep.subr.mxu0 0.0
    %8032 = vmatpush1.xpose.msra.mxu0 0.0
    %8033 = vmatprep.subr.mxu0 0.0
    %8034 = vmatpush1.xpose.msra.mxu0 0.0
    %8035 = vmatprep.subr.mxu0 0.0
    %8036 = vmatpush1.xpose.msra.mxu0 0.0
    %8037 = vmatprep.subr.mxu0 0.0
    %8038 = vmatpush1.xpose.msra.mxu0 0.0
    %8039 = vmatprep.subr.mxu0 0.0
    %8040 = vmatpush1.xpose.msra.mxu0 0.0
    %8041 = vmatprep.subr.mxu0 0.0
    %8042 = vmatpush1.xpose.msra.mxu0 0.0
    %8043 = vmatprep.subr.mxu0 0.0
    %8044 = vmatpush1.xpose.msra.mxu0 0.0
    %8045 = vmatprep.subr.mxu0 0.0
    %8046 = vmatpush1.xpose.msra.mxu0 0.0
    %8047 = vmatprep.subr.mxu0 0.0
    %8048 = vmatpush1.xpose.msra.mxu0 0.0
    %8049 = vmatprep.subr.mxu0 0.0
    %8050 = vmatpush1.xpose.msra.mxu0 0.0
    %8051 = vmatprep.subr.mxu0 0.0
    %8052 = vmatpush1.xpose.msra.mxu0 0.0
    %8053 = vmatprep.subr.mxu0 0.0
    %8054 = vmatpush1.xpose.msra.mxu0 0.0
    %8055 = vmatprep.subr.mxu0 0.0
    %8056 = vmatpush1.xpose.msra.mxu0 0.0
    %8057 = vmatprep.subr.mxu0 0.0
    %8058 = vmatpush1.xpose.msra.mxu0 0.0
    %8059 = vmatprep.subr.mxu0 0.0
    %8060 = vmatpush1.xpose.msra.mxu0 0.0
    %8061 = vmatprep.subr.mxu0 0.0
    %8062 = vmatpush1.xpose.msra.mxu0 0.0
    %8063 = vmatprep.subr.mxu0 0.0
    %8064 = vmatpush1.xpose.msra.mxu0 0.0
    %8065 = vmatprep.subr.mxu0 0.0
    %8066 = vmatpush1.xpose.msra.mxu0 0.0
    %8067 = vmatprep.subr.mxu0 0.0
    %8068 = vmatpush1.xpose.msra.mxu0 0.0
    %8069 = vmatprep.subr.mxu0 0.0
    %8070 = vmatpush1.xpose.msra.mxu0 0.0
    %8071 = vmatprep.subr.mxu0 0.0
    %8072 = vmatpush1.xpose.msra.mxu0 0.0
    %8073 = vmatprep.subr.mxu0 0.0
    %8074 = vmatpush1.xpose.msra.mxu0 0.0
    %8075 = vmatprep.subr.mxu0 0.0
    %8076 = vmatpush1.xpose.msra.mxu0 0.0
    %8077 = vmatprep.subr.mxu0 0.0
    %8078 = vmatpush1.xpose.msra.mxu0 0.0
    %8079 = vmatprep.subr.mxu0 0.0
    %8080 = vmatpush1.xpose.msra.mxu0 0.0
    %8081 = vmatprep.subr.mxu0 0.0
    %8082 = vmatpush1.xpose.msra.mxu0 0.0
    %8083 = vmatprep.subr.mxu0 0.0
    %8084 = vmatpush1.xpose.msra.mxu0 0.0
    %8085 = vmatprep.subr.mxu0 0.0
    %8086 = vmatpush1.xpose.msra.mxu0 0.0
    %8087 = vmatprep.subr.mxu0 0.0
    %8088 = vmatpush1.xpose.msra.mxu0 0.0
    %8089 = vmatprep.subr.mxu0 0.0
    %8090 = vmatpush1.xpose.msra.mxu0 0.0
    %8091 = vmatprep.subr.mxu0 0.0
    %8092 = vmatpush1.xpose.msra.mxu0 0.0
    %8093 = vmatprep.mubr.f32.mxu0 0.0
    %8094 = vmatmul.mubr.f32.gmra.mrb[0].mxu0 %v8024
    %v8095 = vpop.f32.mrb[0].mxu0
    %v8096 = vadd.f32 0.0, %v8095
    %v8097 = vpop.f32.mrb[0].mxu0
    %8098 = vdwg.mxu0
    %v8100 = vsel %vm2045, %v6303, 0
    %v8103 = vsel %vm2045, %v6895, 0
    %8105 = vmatprep.subr.mxu0 0.0
    %8106 = vmatpush1.xpose.msra.mxu0 %v8103
    %8107 = vmatprep.subr.mxu0 0.0
    %8108 = vmatpush1.xpose.msra.mxu0 0.0
    %8109 = vmatprep.subr.mxu0 0.0
    %8110 = vmatpush1.xpose.msra.mxu0 0.0
    %8111 = vmatprep.subr.mxu0 0.0
    %8112 = vmatpush1.xpose.msra.mxu0 0.0
    %8113 = vmatprep.subr.mxu0 0.0
    %8114 = vmatpush1.xpose.msra.mxu0 0.0
    %8115 = vmatprep.subr.mxu0 0.0
    %8116 = vmatpush1.xpose.msra.mxu0 0.0
    %8117 = vmatprep.subr.mxu0 0.0
    %8118 = vmatpush1.xpose.msra.mxu0 0.0
    %8119 = vmatprep.subr.mxu0 0.0
    %8120 = vmatpush1.xpose.msra.mxu0 0.0
    %8121 = vmatprep.subr.mxu0 0.0
    %8122 = vmatpush1.xpose.msra.mxu0 0.0
    %8123 = vmatprep.subr.mxu0 0.0
    %8124 = vmatpush1.xpose.msra.mxu0 0.0
    %8125 = vmatprep.subr.mxu0 0.0
    %8126 = vmatpush1.xpose.msra.mxu0 0.0
    %8127 = vmatprep.subr.mxu0 0.0
    %8128 = vmatpush1.xpose.msra.mxu0 0.0
    %8129 = vmatprep.subr.mxu0 0.0
    %8130 = vmatpush1.xpose.msra.mxu0 0.0
    %8131 = vmatprep.subr.mxu0 0.0
    %8132 = vmatpush1.xpose.msra.mxu0 0.0
    %8133 = vmatprep.subr.mxu0 0.0
    %8134 = vmatpush1.xpose.msra.mxu0 0.0
    %8135 = vmatprep.subr.mxu0 0.0
    %8136 = vmatpush1.xpose.msra.mxu0 0.0
    %8137 = vmatprep.subr.mxu0 0.0
    %8138 = vmatpush1.xpose.msra.mxu0 0.0
    %8139 = vmatprep.subr.mxu0 0.0
    %8140 = vmatpush1.xpose.msra.mxu0 0.0
    %8141 = vmatprep.subr.mxu0 0.0
    %8142 = vmatpush1.xpose.msra.mxu0 0.0
    %8143 = vmatprep.subr.mxu0 0.0
    %8144 = vmatpush1.xpose.msra.mxu0 0.0
    %8145 = vmatprep.subr.mxu0 0.0
    %8146 = vmatpush1.xpose.msra.mxu0 0.0
    %8147 = vmatprep.subr.mxu0 0.0
    %8148 = vmatpush1.xpose.msra.mxu0 0.0
    %8149 = vmatprep.subr.mxu0 0.0
    %8150 = vmatpush1.xpose.msra.mxu0 0.0
    %8151 = vmatprep.subr.mxu0 0.0
    %8152 = vmatpush1.xpose.msra.mxu0 0.0
    %8153 = vmatprep.subr.mxu0 0.0
    %8154 = vmatpush1.xpose.msra.mxu0 0.0
    %8155 = vmatprep.subr.mxu0 0.0
    %8156 = vmatpush1.xpose.msra.mxu0 0.0
    %8157 = vmatprep.subr.mxu0 0.0
    %8158 = vmatpush1.xpose.msra.mxu0 0.0
    %8159 = vmatprep.subr.mxu0 0.0
    %8160 = vmatpush1.xpose.msra.mxu0 0.0
    %8161 = vmatprep.subr.mxu0 0.0
    %8162 = vmatpush1.xpose.msra.mxu0 0.0
    %8163 = vmatprep.subr.mxu0 0.0
    %8164 = vmatpush1.xpose.msra.mxu0 0.0
    %8165 = vmatprep.subr.mxu0 0.0
    %8166 = vmatpush1.xpose.msra.mxu0 0.0
    %8167 = vmatprep.subr.mxu0 0.0
    %8168 = vmatpush1.xpose.msra.mxu0 0.0
    %8169 = vmatprep.mubr.f32.mxu0 0.0
    %8170 = vmatmul.mubr.f32.gmra.mrb[0].mxu0 %v8100
    %v8171 = vpop.f32.mrb[0].mxu0
    %v8172 = vadd.f32 0.0, %v8171
    %v8173 = vpop.f32.mrb[0].mxu0
    %8174 = vdwg.mxu0
    %v8176 = vsel %vm2045, %v6304, 0
    %v8179 = vsel %vm2045, %v6896, 0
    %8181 = vmatprep.subr.mxu0 0.0
    %8182 = vmatpush1.xpose.msra.mxu0 %v8179
    %8183 = vmatprep.subr.mxu0 0.0
    %8184 = vmatpush1.xpose.msra.mxu0 0.0
    %8185 = vmatprep.subr.mxu0 0.0
    %8186 = vmatpush1.xpose.msra.mxu0 0.0
    %8187 = vmatprep.subr.mxu0 0.0
    %8188 = vmatpush1.xpose.msra.mxu0 0.0
    %8189 = vmatprep.subr.mxu0 0.0
    %8190 = vmatpush1.xpose.msra.mxu0 0.0
    %8191 = vmatprep.subr.mxu0 0.0
    %8192 = vmatpush1.xpose.msra.mxu0 0.0
    %8193 = vmatprep.subr.mxu0 0.0
    %8194 = vmatpush1.xpose.msra.mxu0 0.0
    %8195 = vmatprep.subr.mxu0 0.0
    %8196 = vmatpush1.xpose.msra.mxu0 0.0
    %8197 = vmatprep.subr.mxu0 0.0
    %8198 = vmatpush1.xpose.msra.mxu0 0.0
    %8199 = vmatprep.subr.mxu0 0.0
    %8200 = vmatpush1.xpose.msra.mxu0 0.0
    %8201 = vmatprep.subr.mxu0 0.0
    %8202 = vmatpush1.xpose.msra.mxu0 0.0
    %8203 = vmatprep.subr.mxu0 0.0
    %8204 = vmatpush1.xpose.msra.mxu0 0.0
    %8205 = vmatprep.subr.mxu0 0.0
    %8206 = vmatpush1.xpose.msra.mxu0 0.0
    %8207 = vmatprep.subr.mxu0 0.0
    %8208 = vmatpush1.xpose.msra.mxu0 0.0
    %8209 = vmatprep.subr.mxu0 0.0
    %8210 = vmatpush1.xpose.msra.mxu0 0.0
    %8211 = vmatprep.subr.mxu0 0.0
    %8212 = vmatpush1.xpose.msra.mxu0 0.0
    %8213 = vmatprep.subr.mxu0 0.0
    %8214 = vmatpush1.xpose.msra.mxu0 0.0
    %8215 = vmatprep.subr.mxu0 0.0
    %8216 = vmatpush1.xpose.msra.mxu0 0.0
    %8217 = vmatprep.subr.mxu0 0.0
    %8218 = vmatpush1.xpose.msra.mxu0 0.0
    %8219 = vmatprep.subr.mxu0 0.0
    %8220 = vmatpush1.xpose.msra.mxu0 0.0
    %8221 = vmatprep.subr.mxu0 0.0
    %8222 = vmatpush1.xpose.msra.mxu0 0.0
    %8223 = vmatprep.subr.mxu0 0.0
    %8224 = vmatpush1.xpose.msra.mxu0 0.0
    %8225 = vmatprep.subr.mxu0 0.0
    %8226 = vmatpush1.xpose.msra.mxu0 0.0
    %8227 = vmatprep.subr.mxu0 0.0
    %8228 = vmatpush1.xpose.msra.mxu0 0.0
    %8229 = vmatprep.subr.mxu0 0.0
    %8230 = vmatpush1.xpose.msra.mxu0 0.0
    %8231 = vmatprep.subr.mxu0 0.0
    %8232 = vmatpush1.xpose.msra.mxu0 0.0
    %8233 = vmatprep.subr.mxu0 0.0
    %8234 = vmatpush1.xpose.msra.mxu0 0.0
    %8235 = vmatprep.subr.mxu0 0.0
    %8236 = vmatpush1.xpose.msra.mxu0 0.0
    %8237 = vmatprep.subr.mxu0 0.0
    %8238 = vmatpush1.xpose.msra.mxu0 0.0
    %8239 = vmatprep.subr.mxu0 0.0
    %8240 = vmatpush1.xpose.msra.mxu0 0.0
    %8241 = vmatprep.subr.mxu0 0.0
    %8242 = vmatpush1.xpose.msra.mxu0 0.0
    %8243 = vmatprep.subr.mxu0 0.0
    %8244 = vmatpush1.xpose.msra.mxu0 0.0
    %8245 = vmatprep.mubr.f32.mxu0 0.0
    %8246 = vmatmul.mubr.f32.gmra.mrb[0].mxu0 %v8176
    %v8247 = vpop.f32.mrb[0].mxu0
    %v8248 = vadd.f32 0.0, %v8247
    %v8249 = vpop.f32.mrb[0].mxu0
    %8250 = vdwg.mxu0
    %v8252 = vsel %vm2045, %v6305, 0
    %v8255 = vsel %vm2045, %v6897, 0
    %8257 = vmatprep.subr.mxu0 0.0
    %8258 = vmatpush1.xpose.msra.mxu0 %v8255
    %8259 = vmatprep.subr.mxu0 0.0
    %8260 = vmatpush1.xpose.msra.mxu0 0.0
    %8261 = vmatprep.subr.mxu0 0.0
    %8262 = vmatpush1.xpose.msra.mxu0 0.0
    %8263 = vmatprep.subr.mxu0 0.0
    %8264 = vmatpush1.xpose.msra.mxu0 0.0
    %8265 = vmatprep.subr.mxu0 0.0
    %8266 = vmatpush1.xpose.msra.mxu0 0.0
    %8267 = vmatprep.subr.mxu0 0.0
    %8268 = vmatpush1.xpose.msra.mxu0 0.0
    %8269 = vmatprep.subr.mxu0 0.0
    %8270 = vmatpush1.xpose.msra.mxu0 0.0
    %8271 = vmatprep.subr.mxu0 0.0
    %8272 = vmatpush1.xpose.msra.mxu0 0.0
    %8273 = vmatprep.subr.mxu0 0.0
    %8274 = vmatpush1.xpose.msra.mxu0 0.0
    %8275 = vmatprep.subr.mxu0 0.0
    %8276 = vmatpush1.xpose.msra.mxu0 0.0
    %8277 = vmatprep.subr.mxu0 0.0
    %8278 = vmatpush1.xpose.msra.mxu0 0.0
    %8279 = vmatprep.subr.mxu0 0.0
    %8280 = vmatpush1.xpose.msra.mxu0 0.0
    %8281 = vmatprep.subr.mxu0 0.0
    %8282 = vmatpush1.xpose.msra.mxu0 0.0
    %8283 = vmatprep.subr.mxu0 0.0
    %8284 = vmatpush1.xpose.msra.mxu0 0.0
    %8285 = vmatprep.subr.mxu0 0.0
    %8286 = vmatpush1.xpose.msra.mxu0 0.0
    %8287 = vmatprep.subr.mxu0 0.0
    %8288 = vmatpush1.xpose.msra.mxu0 0.0
    %8289 = vmatprep.subr.mxu0 0.0
    %8290 = vmatpush1.xpose.msra.mxu0 0.0
    %8291 = vmatprep.subr.mxu0 0.0
    %8292 = vmatpush1.xpose.msra.mxu0 0.0
    %8293 = vmatprep.subr.mxu0 0.0
    %8294 = vmatpush1.xpose.msra.mxu0 0.0
    %8295 = vmatprep.subr.mxu0 0.0
    %8296 = vmatpush1.xpose.msra.mxu0 0.0
    %8297 = vmatprep.subr.mxu0 0.0
    %8298 = vmatpush1.xpose.msra.mxu0 0.0
    %8299 = vmatprep.subr.mxu0 0.0
    %8300 = vmatpush1.xpose.msra.mxu0 0.0
    %8301 = vmatprep.subr.mxu0 0.0
    %8302 = vmatpush1.xpose.msra.mxu0 0.0
    %8303 = vmatprep.subr.mxu0 0.0
    %8304 = vmatpush1.xpose.msra.mxu0 0.0
    %8305 = vmatprep.subr.mxu0 0.0
    %8306 = vmatpush1.xpose.msra.mxu0 0.0
    %8307 = vmatprep.subr.mxu0 0.0
    %8308 = vmatpush1.xpose.msra.mxu0 0.0
    %8309 = vmatprep.subr.mxu0 0.0
    %8310 = vmatpush1.xpose.msra.mxu0 0.0
    %8311 = vmatprep.subr.mxu0 0.0
    %8312 = vmatpush1.xpose.msra.mxu0 0.0
    %8313 = vmatprep.subr.mxu0 0.0
    %8314 = vmatpush1.xpose.msra.mxu0 0.0
    %8315 = vmatprep.subr.mxu0 0.0
    %8316 = vmatpush1.xpose.msra.mxu0 0.0
    %8317 = vmatprep.subr.mxu0 0.0
    %8318 = vmatpush1.xpose.msra.mxu0 0.0
    %8319 = vmatprep.subr.mxu0 0.0
    %8320 = vmatpush1.xpose.msra.mxu0 0.0
    %8321 = vmatprep.mubr.f32.mxu0 0.0
    %8322 = vmatmul.mubr.f32.gmra.mrb[0].mxu0 %v8252
    %v8323 = vpop.f32.mrb[0].mxu0
    %v8324 = vadd.f32 0.0, %v8323
    %v8325 = vpop.f32.mrb[0].mxu0
    %8326 = vdwg.mxu0
    %v8328 = vsel %vm2045, %v6306, 0
    %v8331 = vsel %vm2045, %v6898, 0
    %8333 = vmatprep.subr.mxu0 0.0
    %8334 = vmatpush1.xpose.msra.mxu0 %v8331
    %8335 = vmatprep.subr.mxu0 0.0
    %8336 = vmatpush1.xpose.msra.mxu0 0.0
    %8337 = vmatprep.subr.mxu0 0.0
    %8338 = vmatpush1.xpose.msra.mxu0 0.0
    %8339 = vmatprep.subr.mxu0 0.0
    %8340 = vmatpush1.xpose.msra.mxu0 0.0
    %8341 = vmatprep.subr.mxu0 0.0
    %8342 = vmatpush1.xpose.msra.mxu0 0.0
    %8343 = vmatprep.subr.mxu0 0.0
    %8344 = vmatpush1.xpose.msra.mxu0 0.0
    %8345 = vmatprep.subr.mxu0 0.0
    %8346 = vmatpush1.xpose.msra.mxu0 0.0
    %8347 = vmatprep.subr.mxu0 0.0
    %8348 = vmatpush1.xpose.msra.mxu0 0.0
    %8349 = vmatprep.subr.mxu0 0.0
    %8350 = vmatpush1.xpose.msra.mxu0 0.0
    %8351 = vmatprep.subr.mxu0 0.0
    %8352 = vmatpush1.xpose.msra.mxu0 0.0
    %8353 = vmatprep.subr.mxu0 0.0
    %8354 = vmatpush1.xpose.msra.mxu0 0.0
    %8355 = vmatprep.subr.mxu0 0.0
    %8356 = vmatpush1.xpose.msra.mxu0 0.0
    %8357 = vmatprep.subr.mxu0 0.0
    %8358 = vmatpush1.xpose.msra.mxu0 0.0
    %8359 = vmatprep.subr.mxu0 0.0
    %8360 = vmatpush1.xpose.msra.mxu0 0.0
    %8361 = vmatprep.subr.mxu0 0.0
    %8362 = vmatpush1.xpose.msra.mxu0 0.0
    %8363 = vmatprep.subr.mxu0 0.0
    %8364 = vmatpush1.xpose.msra.mxu0 0.0
    %8365 = vmatprep.subr.mxu0 0.0
    %8366 = vmatpush1.xpose.msra.mxu0 0.0
    %8367 = vmatprep.subr.mxu0 0.0
    %8368 = vmatpush1.xpose.msra.mxu0 0.0
    %8369 = vmatprep.subr.mxu0 0.0
    %8370 = vmatpush1.xpose.msra.mxu0 0.0
    %8371 = vmatprep.subr.mxu0 0.0
    %8372 = vmatpush1.xpose.msra.mxu0 0.0
    %8373 = vmatprep.subr.mxu0 0.0
    %8374 = vmatpush1.xpose.msra.mxu0 0.0
    %8375 = vmatprep.subr.mxu0 0.0
    %8376 = vmatpush1.xpose.msra.mxu0 0.0
    %8377 = vmatprep.subr.mxu0 0.0
    %8378 = vmatpush1.xpose.msra.mxu0 0.0
    %8379 = vmatprep.subr.mxu0 0.0
    %8380 = vmatpush1.xpose.msra.mxu0 0.0
    %8381 = vmatprep.subr.mxu0 0.0
    %8382 = vmatpush1.xpose.msra.mxu0 0.0
    %8383 = vmatprep.subr.mxu0 0.0
    %8384 = vmatpush1.xpose.msra.mxu0 0.0
    %8385 = vmatprep.subr.mxu0 0.0
    %8386 = vmatpush1.xpose.msra.mxu0 0.0
    %8387 = vmatprep.subr.mxu0 0.0
    %8388 = vmatpush1.xpose.msra.mxu0 0.0
    %8389 = vmatprep.subr.mxu0 0.0
    %8390 = vmatpush1.xpose.msra.mxu0 0.0
    %8391 = vmatprep.subr.mxu0 0.0
    %8392 = vmatpush1.xpose.msra.mxu0 0.0
    %8393 = vmatprep.subr.mxu0 0.0
    %8394 = vmatpush1.xpose.msra.mxu0 0.0
    %8395 = vmatprep.subr.mxu0 0.0
    %8396 = vmatpush1.xpose.msra.mxu0 0.0
    %8397 = vmatprep.mubr.f32.mxu0 0.0
    %8398 = vmatmul.mubr.f32.gmra.mrb[0].mxu0 %v8328
    %v8399 = vpop.f32.mrb[0].mxu0
    %v8400 = vadd.f32 0.0, %v8399
    %v8401 = vpop.f32.mrb[0].mxu0
    %8402 = vdwg.mxu0
    %v8404 = vsel %vm2045, %v6307, 0
    %v8407 = vsel %vm2045, %v6899, 0
    %8409 = vmatprep.subr.mxu0 0.0
    %8410 = vmatpush1.xpose.msra.mxu0 %v8407
    %8411 = vmatprep.subr.mxu0 0.0
    %8412 = vmatpush1.xpose.msra.mxu0 0.0
    %8413 = vmatprep.subr.mxu0 0.0
    %8414 = vmatpush1.xpose.msra.mxu0 0.0
    %8415 = vmatprep.subr.mxu0 0.0
    %8416 = vmatpush1.xpose.msra.mxu0 0.0
    %8417 = vmatprep.subr.mxu0 0.0
    %8418 = vmatpush1.xpose.msra.mxu0 0.0
    %8419 = vmatprep.subr.mxu0 0.0
    %8420 = vmatpush1.xpose.msra.mxu0 0.0
    %8421 = vmatprep.subr.mxu0 0.0
    %8422 = vmatpush1.xpose.msra.mxu0 0.0
    %8423 = vmatprep.subr.mxu0 0.0
    %8424 = vmatpush1.xpose.msra.mxu0 0.0
    %8425 = vmatprep.subr.mxu0 0.0
    %8426 = vmatpush1.xpose.msra.mxu0 0.0
    %8427 = vmatprep.subr.mxu0 0.0
    %8428 = vmatpush1.xpose.msra.mxu0 0.0
    %8429 = vmatprep.subr.mxu0 0.0
    %8430 = vmatpush1.xpose.msra.mxu0 0.0
    %8431 = vmatprep.subr.mxu0 0.0
    %8432 = vmatpush1.xpose.msra.mxu0 0.0
    %8433 = vmatprep.subr.mxu0 0.0
    %8434 = vmatpush1.xpose.msra.mxu0 0.0
    %8435 = vmatprep.subr.mxu0 0.0
    %8436 = vmatpush1.xpose.msra.mxu0 0.0
    %8437 = vmatprep.subr.mxu0 0.0
    %8438 = vmatpush1.xpose.msra.mxu0 0.0
    %8439 = vmatprep.subr.mxu0 0.0
    %8440 = vmatpush1.xpose.msra.mxu0 0.0
    %8441 = vmatprep.subr.mxu0 0.0
    %8442 = vmatpush1.xpose.msra.mxu0 0.0
    %8443 = vmatprep.subr.mxu0 0.0
    %8444 = vmatpush1.xpose.msra.mxu0 0.0
    %8445 = vmatprep.subr.mxu0 0.0
    %8446 = vmatpush1.xpose.msra.mxu0 0.0
    %8447 = vmatprep.subr.mxu0 0.0
    %8448 = vmatpush1.xpose.msra.mxu0 0.0
    %8449 = vmatprep.subr.mxu0 0.0
    %8450 = vmatpush1.xpose.msra.mxu0 0.0
    %8451 = vmatprep.subr.mxu0 0.0
    %8452 = vmatpush1.xpose.msra.mxu0 0.0
    %8453 = vmatprep.subr.mxu0 0.0
    %8454 = vmatpush1.xpose.msra.mxu0 0.0
    %8455 = vmatprep.subr.mxu0 0.0
    %8456 = vmatpush1.xpose.msra.mxu0 0.0
    %8457 = vmatprep.subr.mxu0 0.0
    %8458 = vmatpush1.xpose.msra.mxu0 0.0
    %8459 = vmatprep.subr.mxu0 0.0
    %8460 = vmatpush1.xpose.msra.mxu0 0.0
    %8461 = vmatprep.subr.mxu0 0.0
    %8462 = vmatpush1.xpose.msra.mxu0 0.0
    %8463 = vmatprep.subr.mxu0 0.0
    %8464 = vmatpush1.xpose.msra.mxu0 0.0
    %8465 = vmatprep.subr.mxu0 0.0
    %8466 = vmatpush1.xpose.msra.mxu0 0.0
    %8467 = vmatprep.subr.mxu0 0.0
    %8468 = vmatpush1.xpose.msra.mxu0 0.0
    %8469 = vmatprep.subr.mxu0 0.0
    %8470 = vmatpush1.xpose.msra.mxu0 0.0
    %8471 = vmatprep.subr.mxu0 0.0
    %8472 = vmatpush1.xpose.msra.mxu0 0.0
    %8473 = vmatprep.mubr.f32.mxu0 0.0
    %8474 = vmatmul.mubr.f32.gmra.mrb[0].mxu0 %v8404
    %v8475 = vpop.f32.mrb[0].mxu0
    %v8476 = vadd.f32 0.0, %v8475
    %v8477 = vpop.f32.mrb[0].mxu0
    %8478 = vdwg.mxu0
    %v8480 = vsel %vm2045, %v6308, 0
    %v8483 = vsel %vm2045, %v6900, 0
    %8485 = vmatprep.subr.mxu0 0.0
    %8486 = vmatpush1.xpose.msra.mxu0 %v8483
    %8487 = vmatprep.subr.mxu0 0.0
    %8488 = vmatpush1.xpose.msra.mxu0 0.0
    %8489 = vmatprep.subr.mxu0 0.0
    %8490 = vmatpush1.xpose.msra.mxu0 0.0
    %8491 = vmatprep.subr.mxu0 0.0
    %8492 = vmatpush1.xpose.msra.mxu0 0.0
    %8493 = vmatprep.subr.mxu0 0.0
    %8494 = vmatpush1.xpose.msra.mxu0 0.0
    %8495 = vmatprep.subr.mxu0 0.0
    %8496 = vmatpush1.xpose.msra.mxu0 0.0
    %8497 = vmatprep.subr.mxu0 0.0
    %8498 = vmatpush1.xpose.msra.mxu0 0.0
    %8499 = vmatprep.subr.mxu0 0.0
    %8500 = vmatpush1.xpose.msra.mxu0 0.0
    %8501 = vmatprep.subr.mxu0 0.0
    %8502 = vmatpush1.xpose.msra.mxu0 0.0
    %8503 = vmatprep.subr.mxu0 0.0
    %8504 = vmatpush1.xpose.msra.mxu0 0.0
    %8505 = vmatprep.subr.mxu0 0.0
    %8506 = vmatpush1.xpose.msra.mxu0 0.0
    %8507 = vmatprep.subr.mxu0 0.0
    %8508 = vmatpush1.xpose.msra.mxu0 0.0
    %8509 = vmatprep.subr.mxu0 0.0
    %8510 = vmatpush1.xpose.msra.mxu0 0.0
    %8511 = vmatprep.subr.mxu0 0.0
    %8512 = vmatpush1.xpose.msra.mxu0 0.0
    %8513 = vmatprep.subr.mxu0 0.0
    %8514 = vmatpush1.xpose.msra.mxu0 0.0
    %8515 = vmatprep.subr.mxu0 0.0
    %8516 = vmatpush1.xpose.msra.mxu0 0.0
    %8517 = vmatprep.subr.mxu0 0.0
    %8518 = vmatpush1.xpose.msra.mxu0 0.0
    %8519 = vmatprep.subr.mxu0 0.0
    %8520 = vmatpush1.xpose.msra.mxu0 0.0
    %8521 = vmatprep.subr.mxu0 0.0
    %8522 = vmatpush1.xpose.msra.mxu0 0.0
    %8523 = vmatprep.subr.mxu0 0.0
    %8524 = vmatpush1.xpose.msra.mxu0 0.0
    %8525 = vmatprep.subr.mxu0 0.0
    %8526 = vmatpush1.xpose.msra.mxu0 0.0
    %8527 = vmatprep.subr.mxu0 0.0
    %8528 = vmatpush1.xpose.msra.mxu0 0.0
    %8529 = vmatprep.subr.mxu0 0.0
    %8530 = vmatpush1.xpose.msra.mxu0 0.0
    %8531 = vmatprep.subr.mxu0 0.0
    %8532 = vmatpush1.xpose.msra.mxu0 0.0
    %8533 = vmatprep.subr.mxu0 0.0
    %8534 = vmatpush1.xpose.msra.mxu0 0.0
    %8535 = vmatprep.subr.mxu0 0.0
    %8536 = vmatpush1.xpose.msra.mxu0 0.0
    %8537 = vmatprep.subr.mxu0 0.0
    %8538 = vmatpush1.xpose.msra.mxu0 0.0
    %8539 = vmatprep.subr.mxu0 0.0
    %8540 = vmatpush1.xpose.msra.mxu0 0.0
    %8541 = vmatprep.subr.mxu0 0.0
    %8542 = vmatpush1.xpose.msra.mxu0 0.0
    %8543 = vmatprep.subr.mxu0 0.0
    %8544 = vmatpush1.xpose.msra.mxu0 0.0
    %8545 = vmatprep.subr.mxu0 0.0
    %8546 = vmatpush1.xpose.msra.mxu0 0.0
    %8547 = vmatprep.subr.mxu0 0.0
    %8548 = vmatpush1.xpose.msra.mxu0 0.0
    %8549 = vmatprep.mubr.f32.mxu0 0.0
    %8550 = vmatmul.mubr.f32.gmra.mrb[0].mxu0 %v8480
    %v8551 = vpop.f32.mrb[0].mxu0
    %v8552 = vadd.f32 0.0, %v8551
    %v8553 = vpop.f32.mrb[0].mxu0
    %8554 = vdwg.mxu0
    %v8556 = vsel %vm2045, %v6309, 0
    %v8559 = vsel %vm2045, %v6901, 0
    %8561 = vmatprep.subr.mxu0 0.0
    %8562 = vmatpush1.xpose.msra.mxu0 %v8559
    %8563 = vmatprep.subr.mxu0 0.0
    %8564 = vmatpush1.xpose.msra.mxu0 0.0
    %8565 = vmatprep.subr.mxu0 0.0
    %8566 = vmatpush1.xpose.msra.mxu0 0.0
    %8567 = vmatprep.subr.mxu0 0.0
    %8568 = vmatpush1.xpose.msra.mxu0 0.0
    %8569 = vmatprep.subr.mxu0 0.0
    %8570 = vmatpush1.xpose.msra.mxu0 0.0
    %8571 = vmatprep.subr.mxu0 0.0
    %8572 = vmatpush1.xpose.msra.mxu0 0.0
    %8573 = vmatprep.subr.mxu0 0.0
    %8574 = vmatpush1.xpose.msra.mxu0 0.0
    %8575 = vmatprep.subr.mxu0 0.0
    %8576 = vmatpush1.xpose.msra.mxu0 0.0
    %8577 = vmatprep.subr.mxu0 0.0
    %8578 = vmatpush1.xpose.msra.mxu0 0.0
    %8579 = vmatprep.subr.mxu0 0.0
    %8580 = vmatpush1.xpose.msra.mxu0 0.0
    %8581 = vmatprep.subr.mxu0 0.0
    %8582 = vmatpush1.xpose.msra.mxu0 0.0
    %8583 = vmatprep.subr.mxu0 0.0
    %8584 = vmatpush1.xpose.msra.mxu0 0.0
    %8585 = vmatprep.subr.mxu0 0.0
    %8586 = vmatpush1.xpose.msra.mxu0 0.0
    %8587 = vmatprep.subr.mxu0 0.0
    %8588 = vmatpush1.xpose.msra.mxu0 0.0
    %8589 = vmatprep.subr.mxu0 0.0
    %8590 = vmatpush1.xpose.msra.mxu0 0.0
    %8591 = vmatprep.subr.mxu0 0.0
    %8592 = vmatpush1.xpose.msra.mxu0 0.0
    %8593 = vmatprep.subr.mxu0 0.0
    %8594 = vmatpush1.xpose.msra.mxu0 0.0
    %8595 = vmatprep.subr.mxu0 0.0
    %8596 = vmatpush1.xpose.msra.mxu0 0.0
    %8597 = vmatprep.subr.mxu0 0.0
    %8598 = vmatpush1.xpose.msra.mxu0 0.0
    %8599 = vmatprep.subr.mxu0 0.0
    %8600 = vmatpush1.xpose.msra.mxu0 0.0
    %8601 = vmatprep.subr.mxu0 0.0
    %8602 = vmatpush1.xpose.msra.mxu0 0.0
    %8603 = vmatprep.subr.mxu0 0.0
    %8604 = vmatpush1.xpose.msra.mxu0 0.0
    %8605 = vmatprep.subr.mxu0 0.0
    %8606 = vmatpush1.xpose.msra.mxu0 0.0
    %8607 = vmatprep.subr.mxu0 0.0
    %8608 = vmatpush1.xpose.msra.mxu0 0.0
    %8609 = vmatprep.subr.mxu0 0.0
    %8610 = vmatpush1.xpose.msra.mxu0 0.0
    %8611 = vmatprep.subr.mxu0 0.0
    %8612 = vmatpush1.xpose.msra.mxu0 0.0
    %8613 = vmatprep.subr.mxu0 0.0
    %8614 = vmatpush1.xpose.msra.mxu0 0.0
    %8615 = vmatprep.subr.mxu0 0.0
    %8616 = vmatpush1.xpose.msra.mxu0 0.0
    %8617 = vmatprep.subr.mxu0 0.0
    %8618 = vmatpush1.xpose.msra.mxu0 0.0
    %8619 = vmatprep.subr.mxu0 0.0
    %8620 = vmatpush1.xpose.msra.mxu0 0.0
    %8621 = vmatprep.subr.mxu0 0.0
    %8622 = vmatpush1.xpose.msra.mxu0 0.0
    %8623 = vmatprep.subr.mxu0 0.0
    %8624 = vmatpush1.xpose.msra.mxu0 0.0
    %8625 = vmatprep.mubr.f32.mxu0 0.0
    %8626 = vmatmul.mubr.f32.gmra.mrb[0].mxu0 %v8556
    %v8627 = vpop.f32.mrb[0].mxu0
    %v8628 = vadd.f32 0.0, %v8627
    %v8629 = vpop.f32.mrb[0].mxu0
    %8630 = vdwg.mxu0
    %v8632 = vsel %vm2045, %v6310, 0
    %v8635 = vsel %vm2045, %v6902, 0
    %8637 = vmatprep.subr.mxu0 0.0
    %8638 = vmatpush1.xpose.msra.mxu0 %v8635
    %8639 = vmatprep.subr.mxu0 0.0
    %8640 = vmatpush1.xpose.msra.mxu0 0.0
    %8641 = vmatprep.subr.mxu0 0.0
    %8642 = vmatpush1.xpose.msra.mxu0 0.0
    %8643 = vmatprep.subr.mxu0 0.0
    %8644 = vmatpush1.xpose.msra.mxu0 0.0
    %8645 = vmatprep.subr.mxu0 0.0
    %8646 = vmatpush1.xpose.msra.mxu0 0.0
    %8647 = vmatprep.subr.mxu0 0.0
    %8648 = vmatpush1.xpose.msra.mxu0 0.0
    %8649 = vmatprep.subr.mxu0 0.0
    %8650 = vmatpush1.xpose.msra.mxu0 0.0
    %8651 = vmatprep.subr.mxu0 0.0
    %8652 = vmatpush1.xpose.msra.mxu0 0.0
    %8653 = vmatprep.subr.mxu0 0.0
    %8654 = vmatpush1.xpose.msra.mxu0 0.0
    %8655 = vmatprep.subr.mxu0 0.0
    %8656 = vmatpush1.xpose.msra.mxu0 0.0
    %8657 = vmatprep.subr.mxu0 0.0
    %8658 = vmatpush1.xpose.msra.mxu0 0.0
    %8659 = vmatprep.subr.mxu0 0.0
    %8660 = vmatpush1.xpose.msra.mxu0 0.0
    %8661 = vmatprep.subr.mxu0 0.0
    %8662 = vmatpush1.xpose.msra.mxu0 0.0
    %8663 = vmatprep.subr.mxu0 0.0
    %8664 = vmatpush1.xpose.msra.mxu0 0.0
    %8665 = vmatprep.subr.mxu0 0.0
    %8666 = vmatpush1.xpose.msra.mxu0 0.0
    %8667 = vmatprep.subr.mxu0 0.0
    %8668 = vmatpush1.xpose.msra.mxu0 0.0
    %8669 = vmatprep.subr.mxu0 0.0
    %8670 = vmatpush1.xpose.msra.mxu0 0.0
    %8671 = vmatprep.subr.mxu0 0.0
    %8672 = vmatpush1.xpose.msra.mxu0 0.0
    %8673 = vmatprep.subr.mxu0 0.0
    %8674 = vmatpush1.xpose.msra.mxu0 0.0
    %8675 = vmatprep.subr.mxu0 0.0
    %8676 = vmatpush1.xpose.msra.mxu0 0.0
    %8677 = vmatprep.subr.mxu0 0.0
    %8678 = vmatpush1.xpose.msra.mxu0 0.0
    %8679 = vmatprep.subr.mxu0 0.0
    %8680 = vmatpush1.xpose.msra.mxu0 0.0
    %8681 = vmatprep.subr.mxu0 0.0
    %8682 = vmatpush1.xpose.msra.mxu0 0.0
    %8683 = vmatprep.subr.mxu0 0.0
    %8684 = vmatpush1.xpose.msra.mxu0 0.0
    %8685 = vmatprep.subr.mxu0 0.0
    %8686 = vmatpush1.xpose.msra.mxu0 0.0
    %8687 = vmatprep.subr.mxu0 0.0
    %8688 = vmatpush1.xpose.msra.mxu0 0.0
    %8689 = vmatprep.subr.mxu0 0.0
    %8690 = vmatpush1.xpose.msra.mxu0 0.0
    %8691 = vmatprep.subr.mxu0 0.0
    %8692 = vmatpush1.xpose.msra.mxu0 0.0
    %8693 = vmatprep.subr.mxu0 0.0
    %8694 = vmatpush1.xpose.msra.mxu0 0.0
    %8695 = vmatprep.subr.mxu0 0.0
    %8696 = vmatpush1.xpose.msra.mxu0 0.0
    %8697 = vmatprep.subr.mxu0 0.0
    %8698 = vmatpush1.xpose.msra.mxu0 0.0
    %8699 = vmatprep.subr.mxu0 0.0
    %8700 = vmatpush1.xpose.msra.mxu0 0.0
    %8701 = vmatprep.mubr.f32.mxu0 0.0
    %8702 = vmatmul.mubr.f32.gmra.mrb[0].mxu0 %v8632
    %v8703 = vpop.f32.mrb[0].mxu0
    %v8704 = vadd.f32 0.0, %v8703
    %v8705 = vpop.f32.mrb[0].mxu0
    %8706 = vdwg.mxu0
    %v8707 = vsel %vm2045, %v7564, -inf
    %8708 = vmax.xlane.f32.xlu0 %v8707
    %v8709 = vpop.xlane.xlu0 %8708
    %v8710 = vsel %vm2045, %v7640, -inf
    %8711 = vmax.xlane.f32.xlu0 %v8710
    %v8712 = vpop.xlane.xlu0 %8711
    %v8713 = vsel %vm2045, %v7716, -inf
    %8714 = vmax.xlane.f32.xlu0 %v8713
    %v8715 = vpop.xlane.xlu0 %8714
    %v8716 = vsel %vm2045, %v7792, -inf
    %8717 = vmax.xlane.f32.xlu0 %v8716
    %v8718 = vpop.xlane.xlu0 %8717
    %v8719 = vsel %vm2045, %v7868, -inf
    %8720 = vmax.xlane.f32.xlu0 %v8719
    %v8721 = vpop.xlane.xlu0 %8720
    %v8722 = vsel %vm2045, %v7944, -inf
    %8723 = vmax.xlane.f32.xlu0 %v8722
    %v8724 = vpop.xlane.xlu0 %8723
    %v8725 = vsel %vm2045, %v8020, -inf
    %8726 = vmax.xlane.f32.xlu0 %v8725
    %v8727 = vpop.xlane.xlu0 %8726
    %v8728 = vsel %vm2045, %v8096, -inf
    %8729 = vmax.xlane.f32.xlu0 %v8728
    %v8730 = vpop.xlane.xlu0 %8729
    %v8731 = vsel %vm2045, %v8172, -inf
    %8732 = vmax.xlane.f32.xlu0 %v8731
    %v8733 = vpop.xlane.xlu0 %8732
    %v8734 = vsel %vm2045, %v8248, -inf
    %8735 = vmax.xlane.f32.xlu0 %v8734
    %v8736 = vpop.xlane.xlu0 %8735
    %v8737 = vsel %vm2045, %v8324, -inf
    %8738 = vmax.xlane.f32.xlu0 %v8737
    %v8739 = vpop.xlane.xlu0 %8738
    %v8740 = vsel %vm2045, %v8400, -inf
    %8741 = vmax.xlane.f32.xlu0 %v8740
    %v8742 = vpop.xlane.xlu0 %8741
    %v8743 = vsel %vm2045, %v8476, -inf
    %8744 = vmax.xlane.f32.xlu0 %v8743
    %v8745 = vpop.xlane.xlu0 %8744
    %v8746 = vsel %vm2045, %v8552, -inf
    %8747 = vmax.xlane.f32.xlu0 %v8746
    %v8748 = vpop.xlane.xlu0 %8747
    %v8749 = vsel %vm2045, %v8628, -inf
    %8750 = vmax.xlane.f32.xlu0 %v8749
    %v8751 = vpop.xlane.xlu0 %8750
    %v8752 = vsel %vm2045, %v8704, -inf
    %8753 = vmax.xlane.f32.xlu0 %v8752
    %v8754 = vpop.xlane.xlu0 %8753
    %v8755 = vsub.f32 %v7564, %v8709
    %v8756 = vsub.f32 %v7640, %v8712
    %v8757 = vsub.f32 %v7716, %v8715
    %v8758 = vsub.f32 %v7792, %v8718
    %v8759 = vsub.f32 %v7868, %v8721
    %v8760 = vsub.f32 %v7944, %v8724
    %v8761 = vsub.f32 %v8020, %v8727
    %v8762 = vsub.f32 %v8096, %v8730
    %v8763 = vsub.f32 %v8172, %v8733
    %v8764 = vsub.f32 %v8248, %v8736
    %v8765 = vsub.f32 %v8324, %v8739
    %v8766 = vsub.f32 %v8400, %v8742
    %v8767 = vsub.f32 %v8476, %v8745
    %v8768 = vsub.f32 %v8552, %v8748
    %v8769 = vsub.f32 %v8628, %v8751
    %v8770 = vsub.f32 %v8704, %v8754
    %v8771 = vmul.f32 %v8755, 1.442695
    %v8772 = vpow.pop %v8771
    %v8773 = vmul.f32 %v8756, 1.442695
    %v8774 = vpow.pop %v8773
    %v8775 = vmul.f32 %v8757, 1.442695
    %v8776 = vpow.pop %v8775
    %v8777 = vmul.f32 %v8758, 1.442695
    %v8778 = vpow.pop %v8777
    %v8779 = vmul.f32 %v8759, 1.442695
    %v8780 = vpow.pop %v8779
    %v8781 = vmul.f32 %v8760, 1.442695
    %v8782 = vpow.pop %v8781
    %v8783 = vmul.f32 %v8761, 1.442695
    %v8784 = vpow.pop %v8783
    %v8785 = vmul.f32 %v8762, 1.442695
    %v8786 = vpow.pop %v8785
    %v8787 = vmul.f32 %v8763, 1.442695
    %v8788 = vpow.pop %v8787
    %v8789 = vmul.f32 %v8764, 1.442695
    %v8790 = vpow.pop %v8789
    %v8791 = vmul.f32 %v8765, 1.442695
    %v8792 = vpow.pop %v8791
    %v8793 = vmul.f32 %v8766, 1.442695
    %v8794 = vpow.pop %v8793
    %v8795 = vmul.f32 %v8767, 1.442695
    %v8796 = vpow.pop %v8795
    %v8797 = vmul.f32 %v8768, 1.442695
    %v8798 = vpow.pop %v8797
    %v8799 = vmul.f32 %v8769, 1.442695
    %v8800 = vpow.pop %v8799
    %v8801 = vmul.f32 %v8770, 1.442695
    %v8802 = vpow.pop %v8801
    %v8803 = vsel %vm2045, %v8772, 0.0
    %8804 = vadd.xlane.f32.xlu0 %v8803
    %v8805 = vpop.xlane.xlu0 %8804
    %v8806 = vsel %vm2045, %v8774, 0.0
    %8807 = vadd.xlane.f32.xlu0 %v8806
    %v8808 = vpop.xlane.xlu0 %8807
    %v8809 = vsel %vm2045, %v8776, 0.0
    %8810 = vadd.xlane.f32.xlu0 %v8809
    %v8811 = vpop.xlane.xlu0 %8810
    %v8812 = vsel %vm2045, %v8778, 0.0
    %8813 = vadd.xlane.f32.xlu0 %v8812
    %v8814 = vpop.xlane.xlu0 %8813
    %v8815 = vsel %vm2045, %v8780, 0.0
    %8816 = vadd.xlane.f32.xlu0 %v8815
    %v8817 = vpop.xlane.xlu0 %8816
    %v8818 = vsel %vm2045, %v8782, 0.0
    %8819 = vadd.xlane.f32.xlu0 %v8818
    %v8820 = vpop.xlane.xlu0 %8819
    %v8821 = vsel %vm2045, %v8784, 0.0
    %8822 = vadd.xlane.f32.xlu0 %v8821
    %v8823 = vpop.xlane.xlu0 %8822
    %v8824 = vsel %vm2045, %v8786, 0.0
    %8825 = vadd.xlane.f32.xlu0 %v8824
    %v8826 = vpop.xlane.xlu0 %8825
    %v8827 = vsel %vm2045, %v8788, 0.0
    %8828 = vadd.xlane.f32.xlu0 %v8827
    %v8829 = vpop.xlane.xlu0 %8828
    %v8830 = vsel %vm2045, %v8790, 0.0
    %8831 = vadd.xlane.f32.xlu0 %v8830
    %v8832 = vpop.xlane.xlu0 %8831
    %v8833 = vsel %vm2045, %v8792, 0.0
    %8834 = vadd.xlane.f32.xlu0 %v8833
    %v8835 = vpop.xlane.xlu0 %8834
    %v8836 = vsel %vm2045, %v8794, 0.0
    %8837 = vadd.xlane.f32.xlu0 %v8836
    %v8838 = vpop.xlane.xlu0 %8837
    %v8839 = vsel %vm2045, %v8796, 0.0
    %8840 = vadd.xlane.f32.xlu0 %v8839
    %v8841 = vpop.xlane.xlu0 %8840
    %v8842 = vsel %vm2045, %v8798, 0.0
    %8843 = vadd.xlane.f32.xlu0 %v8842
    %v8844 = vpop.xlane.xlu0 %8843
    %v8845 = vsel %vm2045, %v8800, 0.0
    %8846 = vadd.xlane.f32.xlu0 %v8845
    %v8847 = vpop.xlane.xlu0 %8846
    %v8848 = vsel %vm2045, %v8802, 0.0
    %8849 = vadd.xlane.f32.xlu0 %v8848
    %v8850 = vpop.xlane.xlu0 %8849
    %v8851 = vrcp.pop %v8805
    %v8852 = vmul.f32 %v8772, %v8851
    %v8853 = vrcp.pop %v8808
    %v8854 = vmul.f32 %v8774, %v8853
    %v8855 = vrcp.pop %v8811
    %v8856 = vmul.f32 %v8776, %v8855
    %v8857 = vrcp.pop %v8814
    %v8858 = vmul.f32 %v8778, %v8857
    %v8859 = vrcp.pop %v8817
    %v8860 = vmul.f32 %v8780, %v8859
    %v8861 = vrcp.pop %v8820
    %v8862 = vmul.f32 %v8782, %v8861
    %v8863 = vrcp.pop %v8823
    %v8864 = vmul.f32 %v8784, %v8863
    %v8865 = vrcp.pop %v8826
    %v8866 = vmul.f32 %v8786, %v8865
    %v8867 = vrcp.pop %v8829
    %v8868 = vmul.f32 %v8788, %v8867
    %v8869 = vrcp.pop %v8832
    %v8870 = vmul.f32 %v8790, %v8869
    %v8871 = vrcp.pop %v8835
    %v8872 = vmul.f32 %v8792, %v8871
    %v8873 = vrcp.pop %v8838
    %v8874 = vmul.f32 %v8794, %v8873
    %v8875 = vrcp.pop %v8841
    %v8876 = vmul.f32 %v8796, %v8875
    %v8877 = vrcp.pop %v8844
    %v8878 = vmul.f32 %v8798, %v8877
    %v8879 = vrcp.pop %v8847
    %v8880 = vmul.f32 %v8800, %v8879
    %v8881 = vrcp.pop %v8850
    %v8882 = vmul.f32 %v8802, %v8881
    %v8884 = vsel %vm2045, %v8852, 0
    %8886 = vmatprep.subr.mxu0 0.0
    %8887 = vmatpush1.msra.mxu0 %v7347
    %8888 = vmatprep.subr.mxu0 0.0
    %8889 = vmatpush1.msra.mxu0 0.0
    %8890 = vmatprep.subr.mxu0 0.0
    %8891 = vmatpush1.msra.mxu0 0.0
    %8892 = vmatprep.subr.mxu0 0.0
    %8893 = vmatpush1.msra.mxu0 0.0
    %8894 = vmatprep.subr.mxu0 0.0
    %8895 = vmatpush1.msra.mxu0 0.0
    %8896 = vmatprep.subr.mxu0 0.0
    %8897 = vmatpush1.msra.mxu0 0.0
    %8898 = vmatprep.subr.mxu0 0.0
    %8899 = vmatpush1.msra.mxu0 0.0
    %8900 = vmatprep.subr.mxu0 0.0
    %8901 = vmatpush1.msra.mxu0 0.0
    %8902 = vmatprep.subr.mxu0 0.0
    %8903 = vmatpush1.msra.mxu0 0.0
    %8904 = vmatprep.subr.mxu0 0.0
    %8905 = vmatpush1.msra.mxu0 0.0
    %8906 = vmatprep.subr.mxu0 0.0
    %8907 = vmatpush1.msra.mxu0 0.0
    %8908 = vmatprep.subr.mxu0 0.0
    %8909 = vmatpush1.msra.mxu0 0.0
    %8910 = vmatprep.subr.mxu0 0.0
    %8911 = vmatpush1.msra.mxu0 0.0
    %8912 = vmatprep.subr.mxu0 0.0
    %8913 = vmatpush1.msra.mxu0 0.0
    %8914 = vmatprep.subr.mxu0 0.0
    %8915 = vmatpush1.msra.mxu0 0.0
    %8916 = vmatprep.subr.mxu0 0.0
    %8917 = vmatpush1.msra.mxu0 0.0
    %8918 = vmatprep.subr.mxu0 0.0
    %8919 = vmatpush1.msra.mxu0 0.0
    %8920 = vmatprep.subr.mxu0 0.0
    %8921 = vmatpush1.msra.mxu0 0.0
    %8922 = vmatprep.subr.mxu0 0.0
    %8923 = vmatpush1.msra.mxu0 0.0
    %8924 = vmatprep.subr.mxu0 0.0
    %8925 = vmatpush1.msra.mxu0 0.0
    %8926 = vmatprep.subr.mxu0 0.0
    %8927 = vmatpush1.msra.mxu0 0.0
    %8928 = vmatprep.subr.mxu0 0.0
    %8929 = vmatpush1.msra.mxu0 0.0
    %8930 = vmatprep.subr.mxu0 0.0
    %8931 = vmatpush1.msra.mxu0 0.0
    %8932 = vmatprep.subr.mxu0 0.0
    %8933 = vmatpush1.msra.mxu0 0.0
    %8934 = vmatprep.subr.mxu0 0.0
    %8935 = vmatpush1.msra.mxu0 0.0
    %8936 = vmatprep.subr.mxu0 0.0
    %8937 = vmatpush1.msra.mxu0 0.0
    %8938 = vmatprep.subr.mxu0 0.0
    %8939 = vmatpush1.msra.mxu0 0.0
    %8940 = vmatprep.subr.mxu0 0.0
    %8941 = vmatpush1.msra.mxu0 0.0
    %8942 = vmatprep.subr.mxu0 0.0
    %8943 = vmatpush1.msra.mxu0 0.0
    %8944 = vmatprep.subr.mxu0 0.0
    %8945 = vmatpush1.msra.mxu0 0.0
    %8946 = vmatprep.subr.mxu0 0.0
    %8947 = vmatpush1.msra.mxu0 0.0
    %8948 = vmatprep.subr.mxu0 0.0
    %8949 = vmatpush1.msra.mxu0 0.0
    %8950 = vmatprep.mubr.f32.mxu0 0.0
    %8951 = vmatmul.mubr.f32.gmra.mrb[0].mxu0 %v8884
    %v8952 = vpop.f32.mrb[0].mxu0
    %v8953 = vadd.f32 0.0, %v8952
    %v8954 = vpop.f32.mrb[0].mxu0
    %8955 = vdwg.mxu0
    %v8957 = vsel %vm2045, %v8854, 0
    %8959 = vmatprep.subr.mxu0 0.0
    %8960 = vmatpush1.msra.mxu0 %v7348
    %8961 = vmatprep.subr.mxu0 0.0
    %8962 = vmatpush1.msra.mxu0 0.0
    %8963 = vmatprep.subr.mxu0 0.0
    %8964 = vmatpush1.msra.mxu0 0.0
    %8965 = vmatprep.subr.mxu0 0.0
    %8966 = vmatpush1.msra.mxu0 0.0
    %8967 = vmatprep.subr.mxu0 0.0
    %8968 = vmatpush1.msra.mxu0 0.0
    %8969 = vmatprep.subr.mxu0 0.0
    %8970 = vmatpush1.msra.mxu0 0.0
    %8971 = vmatprep.subr.mxu0 0.0
    %8972 = vmatpush1.msra.mxu0 0.0
    %8973 = vmatprep.subr.mxu0 0.0
    %8974 = vmatpush1.msra.mxu0 0.0
    %8975 = vmatprep.subr.mxu0 0.0
    %8976 = vmatpush1.msra.mxu0 0.0
    %8977 = vmatprep.subr.mxu0 0.0
    %8978 = vmatpush1.msra.mxu0 0.0
    %8979 = vmatprep.subr.mxu0 0.0
    %8980 = vmatpush1.msra.mxu0 0.0
    %8981 = vmatprep.subr.mxu0 0.0
    %8982 = vmatpush1.msra.mxu0 0.0
    %8983 = vmatprep.subr.mxu0 0.0
    %8984 = vmatpush1.msra.mxu0 0.0
    %8985 = vmatprep.subr.mxu0 0.0
    %8986 = vmatpush1.msra.mxu0 0.0
    %8987 = vmatprep.subr.mxu0 0.0
    %8988 = vmatpush1.msra.mxu0 0.0
    %8989 = vmatprep.subr.mxu0 0.0
    %8990 = vmatpush1.msra.mxu0 0.0
    %8991 = vmatprep.subr.mxu0 0.0
    %8992 = vmatpush1.msra.mxu0 0.0
    %8993 = vmatprep.subr.mxu0 0.0
    %8994 = vmatpush1.msra.mxu0 0.0
    %8995 = vmatprep.subr.mxu0 0.0
    %8996 = vmatpush1.msra.mxu0 0.0
    %8997 = vmatprep.subr.mxu0 0.0
    %8998 = vmatpush1.msra.mxu0 0.0
    %8999 = vmatprep.subr.mxu0 0.0
    %9000 = vmatpush1.msra.mxu0 0.0
    %9001 = vmatprep.subr.mxu0 0.0
    %9002 = vmatpush1.msra.mxu0 0.0
    %9003 = vmatprep.subr.mxu0 0.0
    %9004 = vmatpush1.msra.mxu0 0.0
    %9005 = vmatprep.subr.mxu0 0.0
    %9006 = vmatpush1.msra.mxu0 0.0
    %9007 = vmatprep.subr.mxu0 0.0
    %9008 = vmatpush1.msra.mxu0 0.0
    %9009 = vmatprep.subr.mxu0 0.0
    %9010 = vmatpush1.msra.mxu0 0.0
    %9011 = vmatprep.subr.mxu0 0.0
    %9012 = vmatpush1.msra.mxu0 0.0
    %9013 = vmatprep.subr.mxu0 0.0
    %9014 = vmatpush1.msra.mxu0 0.0
    %9015 = vmatprep.subr.mxu0 0.0
    %9016 = vmatpush1.msra.mxu0 0.0
    %9017 = vmatprep.subr.mxu0 0.0
    %9018 = vmatpush1.msra.mxu0 0.0
    %9019 = vmatprep.subr.mxu0 0.0
    %9020 = vmatpush1.msra.mxu0 0.0
    %9021 = vmatprep.subr.mxu0 0.0
    %9022 = vmatpush1.msra.mxu0 0.0
    %9023 = vmatprep.mubr.f32.mxu0 0.0
    %9024 = vmatmul.mubr.f32.gmra.mrb[0].mxu0 %v8957
    %v9025 = vpop.f32.mrb[0].mxu0
    %v9026 = vadd.f32 0.0, %v9025
    %v9027 = vpop.f32.mrb[0].mxu0
    %9028 = vdwg.mxu0
    %v9030 = vsel %vm2045, %v8856, 0
    %9032 = vmatprep.subr.mxu0 0.0
    %9033 = vmatpush1.msra.mxu0 %v7349
    %9034 = vmatprep.subr.mxu0 0.0
    %9035 = vmatpush1.msra.mxu0 0.0
    %9036 = vmatprep.subr.mxu0 0.0
    %9037 = vmatpush1.msra.mxu0 0.0
    %9038 = vmatprep.subr.mxu0 0.0
    %9039 = vmatpush1.msra.mxu0 0.0
    %9040 = vmatprep.subr.mxu0 0.0
    %9041 = vmatpush1.msra.mxu0 0.0
    %9042 = vmatprep.subr.mxu0 0.0
    %9043 = vmatpush1.msra.mxu0 0.0
    %9044 = vmatprep.subr.mxu0 0.0
    %9045 = vmatpush1.msra.mxu0 0.0
    %9046 = vmatprep.subr.mxu0 0.0
    %9047 = vmatpush1.msra.mxu0 0.0
    %9048 = vmatprep.subr.mxu0 0.0
    %9049 = vmatpush1.msra.mxu0 0.0
    %9050 = vmatprep.subr.mxu0 0.0
    %9051 = vmatpush1.msra.mxu0 0.0
    %9052 = vmatprep.subr.mxu0 0.0
    %9053 = vmatpush1.msra.mxu0 0.0
    %9054 = vmatprep.subr.mxu0 0.0
    %9055 = vmatpush1.msra.mxu0 0.0
    %9056 = vmatprep.subr.mxu0 0.0
    %9057 = vmatpush1.msra.mxu0 0.0
    %9058 = vmatprep.subr.mxu0 0.0
    %9059 = vmatpush1.msra.mxu0 0.0
    %9060 = vmatprep.subr.mxu0 0.0
    %9061 = vmatpush1.msra.mxu0 0.0
    %9062 = vmatprep.subr.mxu0 0.0
    %9063 = vmatpush1.msra.mxu0 0.0
    %9064 = vmatprep.subr.mxu0 0.0
    %9065 = vmatpush1.msra.mxu0 0.0
    %9066 = vmatprep.subr.mxu0 0.0
    %9067 = vmatpush1.msra.mxu0 0.0
    %9068 = vmatprep.subr.mxu0 0.0
    %9069 = vmatpush1.msra.mxu0 0.0
    %9070 = vmatprep.subr.mxu0 0.0
    %9071 = vmatpush1.msra.mxu0 0.0
    %9072 = vmatprep.subr.mxu0 0.0
    %9073 = vmatpush1.msra.mxu0 0.0
    %9074 = vmatprep.subr.mxu0 0.0
    %9075 = vmatpush1.msra.mxu0 0.0
    %9076 = vmatprep.subr.mxu0 0.0
    %9077 = vmatpush1.msra.mxu0 0.0
    %9078 = vmatprep.subr.mxu0 0.0
    %9079 = vmatpush1.msra.mxu0 0.0
    %9080 = vmatprep.subr.mxu0 0.0
    %9081 = vmatpush1.msra.mxu0 0.0
    %9082 = vmatprep.subr.mxu0 0.0
    %9083 = vmatpush1.msra.mxu0 0.0
    %9084 = vmatprep.subr.mxu0 0.0
    %9085 = vmatpush1.msra.mxu0 0.0
    %9086 = vmatprep.subr.mxu0 0.0
    %9087 = vmatpush1.msra.mxu0 0.0
    %9088 = vmatprep.subr.mxu0 0.0
    %9089 = vmatpush1.msra.mxu0 0.0
    %9090 = vmatprep.subr.mxu0 0.0
    %9091 = vmatpush1.msra.mxu0 0.0
    %9092 = vmatprep.subr.mxu0 0.0
    %9093 = vmatpush1.msra.mxu0 0.0
    %9094 = vmatprep.subr.mxu0 0.0
    %9095 = vmatpush1.msra.mxu0 0.0
    %9096 = vmatprep.mubr.f32.mxu0 0.0
    %9097 = vmatmul.mubr.f32.gmra.mrb[0].mxu0 %v9030
    %v9098 = vpop.f32.mrb[0].mxu0
    %v9099 = vadd.f32 0.0, %v9098
    %v9100 = vpop.f32.mrb[0].mxu0
    %9101 = vdwg.mxu0
    %v9103 = vsel %vm2045, %v8858, 0
    %9105 = vmatprep.subr.mxu0 0.0
    %9106 = vmatpush1.msra.mxu0 %v7350
    %9107 = vmatprep.subr.mxu0 0.0
    %9108 = vmatpush1.msra.mxu0 0.0
    %9109 = vmatprep.subr.mxu0 0.0
    %9110 = vmatpush1.msra.mxu0 0.0
    %9111 = vmatprep.subr.mxu0 0.0
    %9112 = vmatpush1.msra.mxu0 0.0
    %9113 = vmatprep.subr.mxu0 0.0
    %9114 = vmatpush1.msra.mxu0 0.0
    %9115 = vmatprep.subr.mxu0 0.0
    %9116 = vmatpush1.msra.mxu0 0.0
    %9117 = vmatprep.subr.mxu0 0.0
    %9118 = vmatpush1.msra.mxu0 0.0
    %9119 = vmatprep.subr.mxu0 0.0
    %9120 = vmatpush1.msra.mxu0 0.0
    %9121 = vmatprep.subr.mxu0 0.0
    %9122 = vmatpush1.msra.mxu0 0.0
    %9123 = vmatprep.subr.mxu0 0.0
    %9124 = vmatpush1.msra.mxu0 0.0
    %9125 = vmatprep.subr.mxu0 0.0
    %9126 = vmatpush1.msra.mxu0 0.0
    %9127 = vmatprep.subr.mxu0 0.0
    %9128 = vmatpush1.msra.mxu0 0.0
    %9129 = vmatprep.subr.mxu0 0.0
    %9130 = vmatpush1.msra.mxu0 0.0
    %9131 = vmatprep.subr.mxu0 0.0
    %9132 = vmatpush1.msra.mxu0 0.0
    %9133 = vmatprep.subr.mxu0 0.0
    %9134 = vmatpush1.msra.mxu0 0.0
    %9135 = vmatprep.subr.mxu0 0.0
    %9136 = vmatpush1.msra.mxu0 0.0
    %9137 = vmatprep.subr.mxu0 0.0
    %9138 = vmatpush1.msra.mxu0 0.0
    %9139 = vmatprep.subr.mxu0 0.0
    %9140 = vmatpush1.msra.mxu0 0.0
    %9141 = vmatprep.subr.mxu0 0.0
    %9142 = vmatpush1.msra.mxu0 0.0
    %9143 = vmatprep.subr.mxu0 0.0
    %9144 = vmatpush1.msra.mxu0 0.0
    %9145 = vmatprep.subr.mxu0 0.0
    %9146 = vmatpush1.msra.mxu0 0.0
    %9147 = vmatprep.subr.mxu0 0.0
    %9148 = vmatpush1.msra.mxu0 0.0
    %9149 = vmatprep.subr.mxu0 0.0
    %9150 = vmatpush1.msra.mxu0 0.0
    %9151 = vmatprep.subr.mxu0 0.0
    %9152 = vmatpush1.msra.mxu0 0.0
    %9153 = vmatprep.subr.mxu0 0.0
    %9154 = vmatpush1.msra.mxu0 0.0
    %9155 = vmatprep.subr.mxu0 0.0
    %9156 = vmatpush1.msra.mxu0 0.0
    %9157 = vmatprep.subr.mxu0 0.0
    %9158 = vmatpush1.msra.mxu0 0.0
    %9159 = vmatprep.subr.mxu0 0.0
    %9160 = vmatpush1.msra.mxu0 0.0
    %9161 = vmatprep.subr.mxu0 0.0
    %9162 = vmatpush1.msra.mxu0 0.0
    %9163 = vmatprep.subr.mxu0 0.0
    %9164 = vmatpush1.msra.mxu0 0.0
    %9165 = vmatprep.subr.mxu0 0.0
    %9166 = vmatpush1.msra.mxu0 0.0
    %9167 = vmatprep.subr.mxu0 0.0
    %9168 = vmatpush1.msra.mxu0 0.0
    %9169 = vmatprep.mubr.f32.mxu0 0.0
    %9170 = vmatmul.mubr.f32.gmra.mrb[0].mxu0 %v9103
    %v9171 = vpop.f32.mrb[0].mxu0
    %v9172 = vadd.f32 0.0, %v9171
    %v9173 = vpop.f32.mrb[0].mxu0
    %9174 = vdwg.mxu0
    %v9176 = vsel %vm2045, %v8860, 0
    %9178 = vmatprep.subr.mxu0 0.0
    %9179 = vmatpush1.msra.mxu0 %v7351
    %9180 = vmatprep.subr.mxu0 0.0
    %9181 = vmatpush1.msra.mxu0 0.0
    %9182 = vmatprep.subr.mxu0 0.0
    %9183 = vmatpush1.msra.mxu0 0.0
    %9184 = vmatprep.subr.mxu0 0.0
    %9185 = vmatpush1.msra.mxu0 0.0
    %9186 = vmatprep.subr.mxu0 0.0
    %9187 = vmatpush1.msra.mxu0 0.0
    %9188 = vmatprep.subr.mxu0 0.0
    %9189 = vmatpush1.msra.mxu0 0.0
    %9190 = vmatprep.subr.mxu0 0.0
    %9191 = vmatpush1.msra.mxu0 0.0
    %9192 = vmatprep.subr.mxu0 0.0
    %9193 = vmatpush1.msra.mxu0 0.0
    %9194 = vmatprep.subr.mxu0 0.0
    %9195 = vmatpush1.msra.mxu0 0.0
    %9196 = vmatprep.subr.mxu0 0.0
    %9197 = vmatpush1.msra.mxu0 0.0
    %9198 = vmatprep.subr.mxu0 0.0
    %9199 = vmatpush1.msra.mxu0 0.0
    %9200 = vmatprep.subr.mxu0 0.0
    %9201 = vmatpush1.msra.mxu0 0.0
    %9202 = vmatprep.subr.mxu0 0.0
    %9203 = vmatpush1.msra.mxu0 0.0
    %9204 = vmatprep.subr.mxu0 0.0
    %9205 = vmatpush1.msra.mxu0 0.0
    %9206 = vmatprep.subr.mxu0 0.0
    %9207 = vmatpush1.msra.mxu0 0.0
    %9208 = vmatprep.subr.mxu0 0.0
    %9209 = vmatpush1.msra.mxu0 0.0
    %9210 = vmatprep.subr.mxu0 0.0
    %9211 = vmatpush1.msra.mxu0 0.0
    %9212 = vmatprep.subr.mxu0 0.0
    %9213 = vmatpush1.msra.mxu0 0.0
    %9214 = vmatprep.subr.mxu0 0.0
    %9215 = vmatpush1.msra.mxu0 0.0
    %9216 = vmatprep.subr.mxu0 0.0
    %9217 = vmatpush1.msra.mxu0 0.0
    %9218 = vmatprep.subr.mxu0 0.0
    %9219 = vmatpush1.msra.mxu0 0.0
    %9220 = vmatprep.subr.mxu0 0.0
    %9221 = vmatpush1.msra.mxu0 0.0
    %9222 = vmatprep.subr.mxu0 0.0
    %9223 = vmatpush1.msra.mxu0 0.0
    %9224 = vmatprep.subr.mxu0 0.0
    %9225 = vmatpush1.msra.mxu0 0.0
    %9226 = vmatprep.subr.mxu0 0.0
    %9227 = vmatpush1.msra.mxu0 0.0
    %9228 = vmatprep.subr.mxu0 0.0
    %9229 = vmatpush1.msra.mxu0 0.0
    %9230 = vmatprep.subr.mxu0 0.0
    %9231 = vmatpush1.msra.mxu0 0.0
    %9232 = vmatprep.subr.mxu0 0.0
    %9233 = vmatpush1.msra.mxu0 0.0
    %9234 = vmatprep.subr.mxu0 0.0
    %9235 = vmatpush1.msra.mxu0 0.0
    %9236 = vmatprep.subr.mxu0 0.0
    %9237 = vmatpush1.msra.mxu0 0.0
    %9238 = vmatprep.subr.mxu0 0.0
    %9239 = vmatpush1.msra.mxu0 0.0
    %9240 = vmatprep.subr.mxu0 0.0
    %9241 = vmatpush1.msra.mxu0 0.0
    %9242 = vmatprep.mubr.f32.mxu0 0.0
    %9243 = vmatmul.mubr.f32.gmra.mrb[0].mxu0 %v9176
    %v9244 = vpop.f32.mrb[0].mxu0
    %v9245 = vadd.f32 0.0, %v9244
    %v9246 = vpop.f32.mrb[0].mxu0
    %9247 = vdwg.mxu0
    %v9249 = vsel %vm2045, %v8862, 0
    %9251 = vmatprep.subr.mxu0 0.0
    %9252 = vmatpush1.msra.mxu0 %v7352
    %9253 = vmatprep.subr.mxu0 0.0
    %9254 = vmatpush1.msra.mxu0 0.0
    %9255 = vmatprep.subr.mxu0 0.0
    %9256 = vmatpush1.msra.mxu0 0.0
    %9257 = vmatprep.subr.mxu0 0.0
    %9258 = vmatpush1.msra.mxu0 0.0
    %9259 = vmatprep.subr.mxu0 0.0
    %9260 = vmatpush1.msra.mxu0 0.0
    %9261 = vmatprep.subr.mxu0 0.0
    %9262 = vmatpush1.msra.mxu0 0.0
    %9263 = vmatprep.subr.mxu0 0.0
    %9264 = vmatpush1.msra.mxu0 0.0
    %9265 = vmatprep.subr.mxu0 0.0
    %9266 = vmatpush1.msra.mxu0 0.0
    %9267 = vmatprep.subr.mxu0 0.0
    %9268 = vmatpush1.msra.mxu0 0.0
    %9269 = vmatprep.subr.mxu0 0.0
    %9270 = vmatpush1.msra.mxu0 0.0
    %9271 = vmatprep.subr.mxu0 0.0
    %9272 = vmatpush1.msra.mxu0 0.0
    %9273 = vmatprep.subr.mxu0 0.0
    %9274 = vmatpush1.msra.mxu0 0.0
    %9275 = vmatprep.subr.mxu0 0.0
    %9276 = vmatpush1.msra.mxu0 0.0
    %9277 = vmatprep.subr.mxu0 0.0
    %9278 = vmatpush1.msra.mxu0 0.0
    %9279 = vmatprep.subr.mxu0 0.0
    %9280 = vmatpush1.msra.mxu0 0.0
    %9281 = vmatprep.subr.mxu0 0.0
    %9282 = vmatpush1.msra.mxu0 0.0
    %9283 = vmatprep.subr.mxu0 0.0
    %9284 = vmatpush1.msra.mxu0 0.0
    %9285 = vmatprep.subr.mxu0 0.0
    %9286 = vmatpush1.msra.mxu0 0.0
    %9287 = vmatprep.subr.mxu0 0.0
    %9288 = vmatpush1.msra.mxu0 0.0
    %9289 = vmatprep.subr.mxu0 0.0
    %9290 = vmatpush1.msra.mxu0 0.0
    %9291 = vmatprep.subr.mxu0 0.0
    %9292 = vmatpush1.msra.mxu0 0.0
    %9293 = vmatprep.subr.mxu0 0.0
    %9294 = vmatpush1.msra.mxu0 0.0
    %9295 = vmatprep.subr.mxu0 0.0
    %9296 = vmatpush1.msra.mxu0 0.0
    %9297 = vmatprep.subr.mxu0 0.0
    %9298 = vmatpush1.msra.mxu0 0.0
    %9299 = vmatprep.subr.mxu0 0.0
    %9300 = vmatpush1.msra.mxu0 0.0
    %9301 = vmatprep.subr.mxu0 0.0
    %9302 = vmatpush1.msra.mxu0 0.0
    %9303 = vmatprep.subr.mxu0 0.0
    %9304 = vmatpush1.msra.mxu0 0.0
    %9305 = vmatprep.subr.mxu0 0.0
    %9306 = vmatpush1.msra.mxu0 0.0
    %9307 = vmatprep.subr.mxu0 0.0
    %9308 = vmatpush1.msra.mxu0 0.0
    %9309 = vmatprep.subr.mxu0 0.0
    %9310 = vmatpush1.msra.mxu0 0.0
    %9311 = vmatprep.subr.mxu0 0.0
    %9312 = vmatpush1.msra.mxu0 0.0
    %9313 = vmatprep.subr.mxu0 0.0
    %9314 = vmatpush1.msra.mxu0 0.0
    %9315 = vmatprep.mubr.f32.mxu0 0.0
    %9316 = vmatmul.mubr.f32.gmra.mrb[0].mxu0 %v9249
    %v9317 = vpop.f32.mrb[0].mxu0
    %v9318 = vadd.f32 0.0, %v9317
    %v9319 = vpop.f32.mrb[0].mxu0
    %9320 = vdwg.mxu0
    %v9322 = vsel %vm2045, %v8864, 0
    %9324 = vmatprep.subr.mxu0 0.0
    %9325 = vmatpush1.msra.mxu0 %v7353
    %9326 = vmatprep.subr.mxu0 0.0
    %9327 = vmatpush1.msra.mxu0 0.0
    %9328 = vmatprep.subr.mxu0 0.0
    %9329 = vmatpush1.msra.mxu0 0.0
    %9330 = vmatprep.subr.mxu0 0.0
    %9331 = vmatpush1.msra.mxu0 0.0
    %9332 = vmatprep.subr.mxu0 0.0
    %9333 = vmatpush1.msra.mxu0 0.0
    %9334 = vmatprep.subr.mxu0 0.0
    %9335 = vmatpush1.msra.mxu0 0.0
    %9336 = vmatprep.subr.mxu0 0.0
    %9337 = vmatpush1.msra.mxu0 0.0
    %9338 = vmatprep.subr.mxu0 0.0
    %9339 = vmatpush1.msra.mxu0 0.0
    %9340 = vmatprep.subr.mxu0 0.0
    %9341 = vmatpush1.msra.mxu0 0.0
    %9342 = vmatprep.subr.mxu0 0.0
    %9343 = vmatpush1.msra.mxu0 0.0
    %9344 = vmatprep.subr.mxu0 0.0
    %9345 = vmatpush1.msra.mxu0 0.0
    %9346 = vmatprep.subr.mxu0 0.0
    %9347 = vmatpush1.msra.mxu0 0.0
    %9348 = vmatprep.subr.mxu0 0.0
    %9349 = vmatpush1.msra.mxu0 0.0
    %9350 = vmatprep.subr.mxu0 0.0
    %9351 = vmatpush1.msra.mxu0 0.0
    %9352 = vmatprep.subr.mxu0 0.0
    %9353 = vmatpush1.msra.mxu0 0.0
    %9354 = vmatprep.subr.mxu0 0.0
    %9355 = vmatpush1.msra.mxu0 0.0
    %9356 = vmatprep.subr.mxu0 0.0
    %9357 = vmatpush1.msra.mxu0 0.0
    %9358 = vmatprep.subr.mxu0 0.0
    %9359 = vmatpush1.msra.mxu0 0.0
    %9360 = vmatprep.subr.mxu0 0.0
    %9361 = vmatpush1.msra.mxu0 0.0
    %9362 = vmatprep.subr.mxu0 0.0
    %9363 = vmatpush1.msra.mxu0 0.0
    %9364 = vmatprep.subr.mxu0 0.0
    %9365 = vmatpush1.msra.mxu0 0.0
    %9366 = vmatprep.subr.mxu0 0.0
    %9367 = vmatpush1.msra.mxu0 0.0
    %9368 = vmatprep.subr.mxu0 0.0
    %9369 = vmatpush1.msra.mxu0 0.0
    %9370 = vmatprep.subr.mxu0 0.0
    %9371 = vmatpush1.msra.mxu0 0.0
    %9372 = vmatprep.subr.mxu0 0.0
    %9373 = vmatpush1.msra.mxu0 0.0
    %9374 = vmatprep.subr.mxu0 0.0
    %9375 = vmatpush1.msra.mxu0 0.0
    %9376 = vmatprep.subr.mxu0 0.0
    %9377 = vmatpush1.msra.mxu0 0.0
    %9378 = vmatprep.subr.mxu0 0.0
    %9379 = vmatpush1.msra.mxu0 0.0
    %9380 = vmatprep.subr.mxu0 0.0
    %9381 = vmatpush1.msra.mxu0 0.0
    %9382 = vmatprep.subr.mxu0 0.0
    %9383 = vmatpush1.msra.mxu0 0.0
    %9384 = vmatprep.subr.mxu0 0.0
    %9385 = vmatpush1.msra.mxu0 0.0
    %9386 = vmatprep.subr.mxu0 0.0
    %9387 = vmatpush1.msra.mxu0 0.0
    %9388 = vmatprep.mubr.f32.mxu0 0.0
    %9389 = vmatmul.mubr.f32.gmra.mrb[0].mxu0 %v9322
    %v9390 = vpop.f32.mrb[0].mxu0
    %v9391 = vadd.f32 0.0, %v9390
    %v9392 = vpop.f32.mrb[0].mxu0
    %9393 = vdwg.mxu0
    %v9395 = vsel %vm2045, %v8866, 0
    %9397 = vmatprep.subr.mxu0 0.0
    %9398 = vmatpush1.msra.mxu0 %v7354
    %9399 = vmatprep.subr.mxu0 0.0
    %9400 = vmatpush1.msra.mxu0 0.0
    %9401 = vmatprep.subr.mxu0 0.0
    %9402 = vmatpush1.msra.mxu0 0.0
    %9403 = vmatprep.subr.mxu0 0.0
    %9404 = vmatpush1.msra.mxu0 0.0
    %9405 = vmatprep.subr.mxu0 0.0
    %9406 = vmatpush1.msra.mxu0 0.0
    %9407 = vmatprep.subr.mxu0 0.0
    %9408 = vmatpush1.msra.mxu0 0.0
    %9409 = vmatprep.subr.mxu0 0.0
    %9410 = vmatpush1.msra.mxu0 0.0
    %9411 = vmatprep.subr.mxu0 0.0
    %9412 = vmatpush1.msra.mxu0 0.0
    %9413 = vmatprep.subr.mxu0 0.0
    %9414 = vmatpush1.msra.mxu0 0.0
    %9415 = vmatprep.subr.mxu0 0.0
    %9416 = vmatpush1.msra.mxu0 0.0
    %9417 = vmatprep.subr.mxu0 0.0
    %9418 = vmatpush1.msra.mxu0 0.0
    %9419 = vmatprep.subr.mxu0 0.0
    %9420 = vmatpush1.msra.mxu0 0.0
    %9421 = vmatprep.subr.mxu0 0.0
    %9422 = vmatpush1.msra.mxu0 0.0
    %9423 = vmatprep.subr.mxu0 0.0
    %9424 = vmatpush1.msra.mxu0 0.0
    %9425 = vmatprep.subr.mxu0 0.0
    %9426 = vmatpush1.msra.mxu0 0.0
    %9427 = vmatprep.subr.mxu0 0.0
    %9428 = vmatpush1.msra.mxu0 0.0
    %9429 = vmatprep.subr.mxu0 0.0
    %9430 = vmatpush1.msra.mxu0 0.0
    %9431 = vmatprep.subr.mxu0 0.0
    %9432 = vmatpush1.msra.mxu0 0.0
    %9433 = vmatprep.subr.mxu0 0.0
    %9434 = vmatpush1.msra.mxu0 0.0
    %9435 = vmatprep.subr.mxu0 0.0
    %9436 = vmatpush1.msra.mxu0 0.0
    %9437 = vmatprep.subr.mxu0 0.0
    %9438 = vmatpush1.msra.mxu0 0.0
    %9439 = vmatprep.subr.mxu0 0.0
    %9440 = vmatpush1.msra.mxu0 0.0
    %9441 = vmatprep.subr.mxu0 0.0
    %9442 = vmatpush1.msra.mxu0 0.0
    %9443 = vmatprep.subr.mxu0 0.0
    %9444 = vmatpush1.msra.mxu0 0.0
    %9445 = vmatprep.subr.mxu0 0.0
    %9446 = vmatpush1.msra.mxu0 0.0
    %9447 = vmatprep.subr.mxu0 0.0
    %9448 = vmatpush1.msra.mxu0 0.0
    %9449 = vmatprep.subr.mxu0 0.0
    %9450 = vmatpush1.msra.mxu0 0.0
    %9451 = vmatprep.subr.mxu0 0.0
    %9452 = vmatpush1.msra.mxu0 0.0
    %9453 = vmatprep.subr.mxu0 0.0
    %9454 = vmatpush1.msra.mxu0 0.0
    %9455 = vmatprep.subr.mxu0 0.0
    %9456 = vmatpush1.msra.mxu0 0.0
    %9457 = vmatprep.subr.mxu0 0.0
    %9458 = vmatpush1.msra.mxu0 0.0
    %9459 = vmatprep.subr.mxu0 0.0
    %9460 = vmatpush1.msra.mxu0 0.0
    %9461 = vmatprep.mubr.f32.mxu0 0.0
    %9462 = vmatmul.mubr.f32.gmra.mrb[0].mxu0 %v9395
    %v9463 = vpop.f32.mrb[0].mxu0
    %v9464 = vadd.f32 0.0, %v9463
    %v9465 = vpop.f32.mrb[0].mxu0
    %9466 = vdwg.mxu0
    %v9468 = vsel %vm2045, %v8868, 0
    %9470 = vmatprep.subr.mxu0 0.0
    %9471 = vmatpush1.msra.mxu0 %v7483
    %9472 = vmatprep.subr.mxu0 0.0
    %9473 = vmatpush1.msra.mxu0 0.0
    %9474 = vmatprep.subr.mxu0 0.0
    %9475 = vmatpush1.msra.mxu0 0.0
    %9476 = vmatprep.subr.mxu0 0.0
    %9477 = vmatpush1.msra.mxu0 0.0
    %9478 = vmatprep.subr.mxu0 0.0
    %9479 = vmatpush1.msra.mxu0 0.0
    %9480 = vmatprep.subr.mxu0 0.0
    %9481 = vmatpush1.msra.mxu0 0.0
    %9482 = vmatprep.subr.mxu0 0.0
    %9483 = vmatpush1.msra.mxu0 0.0
    %9484 = vmatprep.subr.mxu0 0.0
    %9485 = vmatpush1.msra.mxu0 0.0
    %9486 = vmatprep.subr.mxu0 0.0
    %9487 = vmatpush1.msra.mxu0 0.0
    %9488 = vmatprep.subr.mxu0 0.0
    %9489 = vmatpush1.msra.mxu0 0.0
    %9490 = vmatprep.subr.mxu0 0.0
    %9491 = vmatpush1.msra.mxu0 0.0
    %9492 = vmatprep.subr.mxu0 0.0
    %9493 = vmatpush1.msra.mxu0 0.0
    %9494 = vmatprep.subr.mxu0 0.0
    %9495 = vmatpush1.msra.mxu0 0.0
    %9496 = vmatprep.subr.mxu0 0.0
    %9497 = vmatpush1.msra.mxu0 0.0
    %9498 = vmatprep.subr.mxu0 0.0
    %9499 = vmatpush1.msra.mxu0 0.0
    %9500 = vmatprep.subr.mxu0 0.0
    %9501 = vmatpush1.msra.mxu0 0.0
    %9502 = vmatprep.subr.mxu0 0.0
    %9503 = vmatpush1.msra.mxu0 0.0
    %9504 = vmatprep.subr.mxu0 0.0
    %9505 = vmatpush1.msra.mxu0 0.0
    %9506 = vmatprep.subr.mxu0 0.0
    %9507 = vmatpush1.msra.mxu0 0.0
    %9508 = vmatprep.subr.mxu0 0.0
    %9509 = vmatpush1.msra.mxu0 0.0
    %9510 = vmatprep.subr.mxu0 0.0
    %9511 = vmatpush1.msra.mxu0 0.0
    %9512 = vmatprep.subr.mxu0 0.0
    %9513 = vmatpush1.msra.mxu0 0.0
    %9514 = vmatprep.subr.mxu0 0.0
    %9515 = vmatpush1.msra.mxu0 0.0
    %9516 = vmatprep.subr.mxu0 0.0
    %9517 = vmatpush1.msra.mxu0 0.0
    %9518 = vmatprep.subr.mxu0 0.0
    %9519 = vmatpush1.msra.mxu0 0.0
    %9520 = vmatprep.subr.mxu0 0.0
    %9521 = vmatpush1.msra.mxu0 0.0
    %9522 = vmatprep.subr.mxu0 0.0
    %9523 = vmatpush1.msra.mxu0 0.0
    %9524 = vmatprep.subr.mxu0 0.0
    %9525 = vmatpush1.msra.mxu0 0.0
    %9526 = vmatprep.subr.mxu0 0.0
    %9527 = vmatpush1.msra.mxu0 0.0
    %9528 = vmatprep.subr.mxu0 0.0
    %9529 = vmatpush1.msra.mxu0 0.0
    %9530 = vmatprep.subr.mxu0 0.0
    %9531 = vmatpush1.msra.mxu0 0.0
    %9532 = vmatprep.subr.mxu0 0.0
    %9533 = vmatpush1.msra.mxu0 0.0
    %9534 = vmatprep.mubr.f32.mxu0 0.0
    %9535 = vmatmul.mubr.f32.gmra.mrb[0].mxu0 %v9468
    %v9536 = vpop.f32.mrb[0].mxu0
    %v9537 = vadd.f32 0.0, %v9536
    %v9538 = vpop.f32.mrb[0].mxu0
    %9539 = vdwg.mxu0
    %v9541 = vsel %vm2045, %v8870, 0
    %9543 = vmatprep.subr.mxu0 0.0
    %9544 = vmatpush1.msra.mxu0 %v7484
    %9545 = vmatprep.subr.mxu0 0.0
    %9546 = vmatpush1.msra.mxu0 0.0
    %9547 = vmatprep.subr.mxu0 0.0
    %9548 = vmatpush1.msra.mxu0 0.0
    %9549 = vmatprep.subr.mxu0 0.0
    %9550 = vmatpush1.msra.mxu0 0.0
    %9551 = vmatprep.subr.mxu0 0.0
    %9552 = vmatpush1.msra.mxu0 0.0
    %9553 = vmatprep.subr.mxu0 0.0
    %9554 = vmatpush1.msra.mxu0 0.0
    %9555 = vmatprep.subr.mxu0 0.0
    %9556 = vmatpush1.msra.mxu0 0.0
    %9557 = vmatprep.subr.mxu0 0.0
    %9558 = vmatpush1.msra.mxu0 0.0
    %9559 = vmatprep.subr.mxu0 0.0
    %9560 = vmatpush1.msra.mxu0 0.0
    %9561 = vmatprep.subr.mxu0 0.0
    %9562 = vmatpush1.msra.mxu0 0.0
    %9563 = vmatprep.subr.mxu0 0.0
    %9564 = vmatpush1.msra.mxu0 0.0
    %9565 = vmatprep.subr.mxu0 0.0
    %9566 = vmatpush1.msra.mxu0 0.0
    %9567 = vmatprep.subr.mxu0 0.0
    %9568 = vmatpush1.msra.mxu0 0.0
    %9569 = vmatprep.subr.mxu0 0.0
    %9570 = vmatpush1.msra.mxu0 0.0
    %9571 = vmatprep.subr.mxu0 0.0
    %9572 = vmatpush1.msra.mxu0 0.0
    %9573 = vmatprep.subr.mxu0 0.0
    %9574 = vmatpush1.msra.mxu0 0.0
    %9575 = vmatprep.subr.mxu0 0.0
    %9576 = vmatpush1.msra.mxu0 0.0
    %9577 = vmatprep.subr.mxu0 0.0
    %9578 = vmatpush1.msra.mxu0 0.0
    %9579 = vmatprep.subr.mxu0 0.0
    %9580 = vmatpush1.msra.mxu0 0.0
    %9581 = vmatprep.subr.mxu0 0.0
    %9582 = vmatpush1.msra.mxu0 0.0
    %9583 = vmatprep.subr.mxu0 0.0
    %9584 = vmatpush1.msra.mxu0 0.0
    %9585 = vmatprep.subr.mxu0 0.0
    %9586 = vmatpush1.msra.mxu0 0.0
    %9587 = vmatprep.subr.mxu0 0.0
    %9588 = vmatpush1.msra.mxu0 0.0
    %9589 = vmatprep.subr.mxu0 0.0
    %9590 = vmatpush1.msra.mxu0 0.0
    %9591 = vmatprep.subr.mxu0 0.0
    %9592 = vmatpush1.msra.mxu0 0.0
    %9593 = vmatprep.subr.mxu0 0.0
    %9594 = vmatpush1.msra.mxu0 0.0
    %9595 = vmatprep.subr.mxu0 0.0
    %9596 = vmatpush1.msra.mxu0 0.0
    %9597 = vmatprep.subr.mxu0 0.0
    %9598 = vmatpush1.msra.mxu0 0.0
    %9599 = vmatprep.subr.mxu0 0.0
    %9600 = vmatpush1.msra.mxu0 0.0
    %9601 = vmatprep.subr.mxu0 0.0
    %9602 = vmatpush1.msra.mxu0 0.0
    %9603 = vmatprep.subr.mxu0 0.0
    %9604 = vmatpush1.msra.mxu0 0.0
    %9605 = vmatprep.subr.mxu0 0.0
    %9606 = vmatpush1.msra.mxu0 0.0
    %9607 = vmatprep.mubr.f32.mxu0 0.0
    %9608 = vmatmul.mubr.f32.gmra.mrb[0].mxu0 %v9541
    %v9609 = vpop.f32.mrb[0].mxu0
    %v9610 = vadd.f32 0.0, %v9609
    %v9611 = vpop.f32.mrb[0].mxu0
    %9612 = vdwg.mxu0
    %v9614 = vsel %vm2045, %v8872, 0
    %9616 = vmatprep.subr.mxu0 0.0
    %9617 = vmatpush1.msra.mxu0 %v7485
    %9618 = vmatprep.subr.mxu0 0.0
    %9619 = vmatpush1.msra.mxu0 0.0
    %9620 = vmatprep.subr.mxu0 0.0
    %9621 = vmatpush1.msra.mxu0 0.0
    %9622 = vmatprep.subr.mxu0 0.0
    %9623 = vmatpush1.msra.mxu0 0.0
    %9624 = vmatprep.subr.mxu0 0.0
    %9625 = vmatpush1.msra.mxu0 0.0
    %9626 = vmatprep.subr.mxu0 0.0
    %9627 = vmatpush1.msra.mxu0 0.0
    %9628 = vmatprep.subr.mxu0 0.0
    %9629 = vmatpush1.msra.mxu0 0.0
    %9630 = vmatprep.subr.mxu0 0.0
    %9631 = vmatpush1.msra.mxu0 0.0
    %9632 = vmatprep.subr.mxu0 0.0
    %9633 = vmatpush1.msra.mxu0 0.0
    %9634 = vmatprep.subr.mxu0 0.0
    %9635 = vmatpush1.msra.mxu0 0.0
    %9636 = vmatprep.subr.mxu0 0.0
    %9637 = vmatpush1.msra.mxu0 0.0
    %9638 = vmatprep.subr.mxu0 0.0
    %9639 = vmatpush1.msra.mxu0 0.0
    %9640 = vmatprep.subr.mxu0 0.0
    %9641 = vmatpush1.msra.mxu0 0.0
    %9642 = vmatprep.subr.mxu0 0.0
    %9643 = vmatpush1.msra.mxu0 0.0
    %9644 = vmatprep.subr.mxu0 0.0
    %9645 = vmatpush1.msra.mxu0 0.0
    %9646 = vmatprep.subr.mxu0 0.0
    %9647 = vmatpush1.msra.mxu0 0.0
    %9648 = vmatprep.subr.mxu0 0.0
    %9649 = vmatpush1.msra.mxu0 0.0
    %9650 = vmatprep.subr.mxu0 0.0
    %9651 = vmatpush1.msra.mxu0 0.0
    %9652 = vmatprep.subr.mxu0 0.0
    %9653 = vmatpush1.msra.mxu0 0.0
    %9654 = vmatprep.subr.mxu0 0.0
    %9655 = vmatpush1.msra.mxu0 0.0
    %9656 = vmatprep.subr.mxu0 0.0
    %9657 = vmatpush1.msra.mxu0 0.0
    %9658 = vmatprep.subr.mxu0 0.0
    %9659 = vmatpush1.msra.mxu0 0.0
    %9660 = vmatprep.subr.mxu0 0.0
    %9661 = vmatpush1.msra.mxu0 0.0
    %9662 = vmatprep.subr.mxu0 0.0
    %9663 = vmatpush1.msra.mxu0 0.0
    %9664 = vmatprep.subr.mxu0 0.0
    %9665 = vmatpush1.msra.mxu0 0.0
    %9666 = vmatprep.subr.mxu0 0.0
    %9667 = vmatpush1.msra.mxu0 0.0
    %9668 = vmatprep.subr.mxu0 0.0
    %9669 = vmatpush1.msra.mxu0 0.0
    %9670 = vmatprep.subr.mxu0 0.0
    %9671 = vmatpush1.msra.mxu0 0.0
    %9672 = vmatprep.subr.mxu0 0.0
    %9673 = vmatpush1.msra.mxu0 0.0
    %9674 = vmatprep.subr.mxu0 0.0
    %9675 = vmatpush1.msra.mxu0 0.0
    %9676 = vmatprep.subr.mxu0 0.0
    %9677 = vmatpush1.msra.mxu0 0.0
    %9678 = vmatprep.subr.mxu0 0.0
    %9679 = vmatpush1.msra.mxu0 0.0
    %9680 = vmatprep.mubr.f32.mxu0 0.0
    %9681 = vmatmul.mubr.f32.gmra.mrb[0].mxu0 %v9614
    %v9682 = vpop.f32.mrb[0].mxu0
    %v9683 = vadd.f32 0.0, %v9682
    %v9684 = vpop.f32.mrb[0].mxu0
    %9685 = vdwg.mxu0
    %v9687 = vsel %vm2045, %v8874, 0
    %9689 = vmatprep.subr.mxu0 0.0
    %9690 = vmatpush1.msra.mxu0 %v7486
    %9691 = vmatprep.subr.mxu0 0.0
    %9692 = vmatpush1.msra.mxu0 0.0
    %9693 = vmatprep.subr.mxu0 0.0
    %9694 = vmatpush1.msra.mxu0 0.0
    %9695 = vmatprep.subr.mxu0 0.0
    %9696 = vmatpush1.msra.mxu0 0.0
    %9697 = vmatprep.subr.mxu0 0.0
    %9698 = vmatpush1.msra.mxu0 0.0
    %9699 = vmatprep.subr.mxu0 0.0
    %9700 = vmatpush1.msra.mxu0 0.0
    %9701 = vmatprep.subr.mxu0 0.0
    %9702 = vmatpush1.msra.mxu0 0.0
    %9703 = vmatprep.subr.mxu0 0.0
    %9704 = vmatpush1.msra.mxu0 0.0
    %9705 = vmatprep.subr.mxu0 0.0
    %9706 = vmatpush1.msra.mxu0 0.0
    %9707 = vmatprep.subr.mxu0 0.0
    %9708 = vmatpush1.msra.mxu0 0.0
    %9709 = vmatprep.subr.mxu0 0.0
    %9710 = vmatpush1.msra.mxu0 0.0
    %9711 = vmatprep.subr.mxu0 0.0
    %9712 = vmatpush1.msra.mxu0 0.0
    %9713 = vmatprep.subr.mxu0 0.0
    %9714 = vmatpush1.msra.mxu0 0.0
    %9715 = vmatprep.subr.mxu0 0.0
    %9716 = vmatpush1.msra.mxu0 0.0
    %9717 = vmatprep.subr.mxu0 0.0
    %9718 = vmatpush1.msra.mxu0 0.0
    %9719 = vmatprep.subr.mxu0 0.0
    %9720 = vmatpush1.msra.mxu0 0.0
    %9721 = vmatprep.subr.mxu0 0.0
    %9722 = vmatpush1.msra.mxu0 0.0
    %9723 = vmatprep.subr.mxu0 0.0
    %9724 = vmatpush1.msra.mxu0 0.0
    %9725 = vmatprep.subr.mxu0 0.0
    %9726 = vmatpush1.msra.mxu0 0.0
    %9727 = vmatprep.subr.mxu0 0.0
    %9728 = vmatpush1.msra.mxu0 0.0
    %9729 = vmatprep.subr.mxu0 0.0
    %9730 = vmatpush1.msra.mxu0 0.0
    %9731 = vmatprep.subr.mxu0 0.0
    %9732 = vmatpush1.msra.mxu0 0.0
    %9733 = vmatprep.subr.mxu0 0.0
    %9734 = vmatpush1.msra.mxu0 0.0
    %9735 = vmatprep.subr.mxu0 0.0
    %9736 = vmatpush1.msra.mxu0 0.0
    %9737 = vmatprep.subr.mxu0 0.0
    %9738 = vmatpush1.msra.mxu0 0.0
    %9739 = vmatprep.subr.mxu0 0.0
    %9740 = vmatpush1.msra.mxu0 0.0
    %9741 = vmatprep.subr.mxu0 0.0
    %9742 = vmatpush1.msra.mxu0 0.0
    %9743 = vmatprep.subr.mxu0 0.0
    %9744 = vmatpush1.msra.mxu0 0.0
    %9745 = vmatprep.subr.mxu0 0.0
    %9746 = vmatpush1.msra.mxu0 0.0
    %9747 = vmatprep.subr.mxu0 0.0
    %9748 = vmatpush1.msra.mxu0 0.0
    %9749 = vmatprep.subr.mxu0 0.0
    %9750 = vmatpush1.msra.mxu0 0.0
    %9751 = vmatprep.subr.mxu0 0.0
    %9752 = vmatpush1.msra.mxu0 0.0
    %9753 = vmatprep.mubr.f32.mxu0 0.0
    %9754 = vmatmul.mubr.f32.gmra.mrb[0].mxu0 %v9687
    %v9755 = vpop.f32.mrb[0].mxu0
    %v9756 = vadd.f32 0.0, %v9755
    %v9757 = vpop.f32.mrb[0].mxu0
    %9758 = vdwg.mxu0
    %v9760 = vsel %vm2045, %v8876, 0
    %9762 = vmatprep.subr.mxu0 0.0
    %9763 = vmatpush1.msra.mxu0 %v7487
    %9764 = vmatprep.subr.mxu0 0.0
    %9765 = vmatpush1.msra.mxu0 0.0
    %9766 = vmatprep.subr.mxu0 0.0
    %9767 = vmatpush1.msra.mxu0 0.0
    %9768 = vmatprep.subr.mxu0 0.0
    %9769 = vmatpush1.msra.mxu0 0.0
    %9770 = vmatprep.subr.mxu0 0.0
    %9771 = vmatpush1.msra.mxu0 0.0
    %9772 = vmatprep.subr.mxu0 0.0
    %9773 = vmatpush1.msra.mxu0 0.0
    %9774 = vmatprep.subr.mxu0 0.0
    %9775 = vmatpush1.msra.mxu0 0.0
    %9776 = vmatprep.subr.mxu0 0.0
    %9777 = vmatpush1.msra.mxu0 0.0
    %9778 = vmatprep.subr.mxu0 0.0
    %9779 = vmatpush1.msra.mxu0 0.0
    %9780 = vmatprep.subr.mxu0 0.0
    %9781 = vmatpush1.msra.mxu0 0.0
    %9782 = vmatprep.subr.mxu0 0.0
    %9783 = vmatpush1.msra.mxu0 0.0
    %9784 = vmatprep.subr.mxu0 0.0
    %9785 = vmatpush1.msra.mxu0 0.0
    %9786 = vmatprep.subr.mxu0 0.0
    %9787 = vmatpush1.msra.mxu0 0.0
    %9788 = vmatprep.subr.mxu0 0.0
    %9789 = vmatpush1.msra.mxu0 0.0
    %9790 = vmatprep.subr.mxu0 0.0
    %9791 = vmatpush1.msra.mxu0 0.0
    %9792 = vmatprep.subr.mxu0 0.0
    %9793 = vmatpush1.msra.mxu0 0.0
    %9794 = vmatprep.subr.mxu0 0.0
    %9795 = vmatpush1.msra.mxu0 0.0
    %9796 = vmatprep.subr.mxu0 0.0
    %9797 = vmatpush1.msra.mxu0 0.0
    %9798 = vmatprep.subr.mxu0 0.0
    %9799 = vmatpush1.msra.mxu0 0.0
    %9800 = vmatprep.subr.mxu0 0.0
    %9801 = vmatpush1.msra.mxu0 0.0
    %9802 = vmatprep.subr.mxu0 0.0
    %9803 = vmatpush1.msra.mxu0 0.0
    %9804 = vmatprep.subr.mxu0 0.0
    %9805 = vmatpush1.msra.mxu0 0.0
    %9806 = vmatprep.subr.mxu0 0.0
    %9807 = vmatpush1.msra.mxu0 0.0
    %9808 = vmatprep.subr.mxu0 0.0
    %9809 = vmatpush1.msra.mxu0 0.0
    %9810 = vmatprep.subr.mxu0 0.0
    %9811 = vmatpush1.msra.mxu0 0.0
    %9812 = vmatprep.subr.mxu0 0.0
    %9813 = vmatpush1.msra.mxu0 0.0
    %9814 = vmatprep.subr.mxu0 0.0
    %9815 = vmatpush1.msra.mxu0 0.0
    %9816 = vmatprep.subr.mxu0 0.0
    %9817 = vmatpush1.msra.mxu0 0.0
    %9818 = vmatprep.subr.mxu0 0.0
    %9819 = vmatpush1.msra.mxu0 0.0
    %9820 = vmatprep.subr.mxu0 0.0
    %9821 = vmatpush1.msra.mxu0 0.0
    %9822 = vmatprep.subr.mxu0 0.0
    %9823 = vmatpush1.msra.mxu0 0.0
    %9824 = vmatprep.subr.mxu0 0.0
    %9825 = vmatpush1.msra.mxu0 0.0
    %9826 = vmatprep.mubr.f32.mxu0 0.0
    %9827 = vmatmul.mubr.f32.gmra.mrb[0].mxu0 %v9760
    %v9828 = vpop.f32.mrb[0].mxu0
    %v9829 = vadd.f32 0.0, %v9828
    %v9830 = vpop.f32.mrb[0].mxu0
    %9831 = vdwg.mxu0
    %v9833 = vsel %vm2045, %v8878, 0
    %9835 = vmatprep.subr.mxu0 0.0
    %9836 = vmatpush1.msra.mxu0 %v7488
    %9837 = vmatprep.subr.mxu0 0.0
    %9838 = vmatpush1.msra.mxu0 0.0
    %9839 = vmatprep.subr.mxu0 0.0
    %9840 = vmatpush1.msra.mxu0 0.0
    %9841 = vmatprep.subr.mxu0 0.0
    %9842 = vmatpush1.msra.mxu0 0.0
    %9843 = vmatprep.subr.mxu0 0.0
    %9844 = vmatpush1.msra.mxu0 0.0
    %9845 = vmatprep.subr.mxu0 0.0
    %9846 = vmatpush1.msra.mxu0 0.0
    %9847 = vmatprep.subr.mxu0 0.0
    %9848 = vmatpush1.msra.mxu0 0.0
    %9849 = vmatprep.subr.mxu0 0.0
    %9850 = vmatpush1.msra.mxu0 0.0
    %9851 = vmatprep.subr.mxu0 0.0
    %9852 = vmatpush1.msra.mxu0 0.0
    %9853 = vmatprep.subr.mxu0 0.0
    %9854 = vmatpush1.msra.mxu0 0.0
    %9855 = vmatprep.subr.mxu0 0.0
    %9856 = vmatpush1.msra.mxu0 0.0
    %9857 = vmatprep.subr.mxu0 0.0
    %9858 = vmatpush1.msra.mxu0 0.0
    %9859 = vmatprep.subr.mxu0 0.0
    %9860 = vmatpush1.msra.mxu0 0.0
    %9861 = vmatprep.subr.mxu0 0.0
    %9862 = vmatpush1.msra.mxu0 0.0
    %9863 = vmatprep.subr.mxu0 0.0
    %9864 = vmatpush1.msra.mxu0 0.0
    %9865 = vmatprep.subr.mxu0 0.0
    %9866 = vmatpush1.msra.mxu0 0.0
    %9867 = vmatprep.subr.mxu0 0.0
    %9868 = vmatpush1.msra.mxu0 0.0
    %9869 = vmatprep.subr.mxu0 0.0
    %9870 = vmatpush1.msra.mxu0 0.0
    %9871 = vmatprep.subr.mxu0 0.0
    %9872 = vmatpush1.msra.mxu0 0.0
    %9873 = vmatprep.subr.mxu0 0.0
    %9874 = vmatpush1.msra.mxu0 0.0
    %9875 = vmatprep.subr.mxu0 0.0
    %9876 = vmatpush1.msra.mxu0 0.0
    %9877 = vmatprep.subr.mxu0 0.0
    %9878 = vmatpush1.msra.mxu0 0.0
    %9879 = vmatprep.subr.mxu0 0.0
    %9880 = vmatpush1.msra.mxu0 0.0
    %9881 = vmatprep.subr.mxu0 0.0
    %9882 = vmatpush1.msra.mxu0 0.0
    %9883 = vmatprep.subr.mxu0 0.0
    %9884 = vmatpush1.msra.mxu0 0.0
    %9885 = vmatprep.subr.mxu0 0.0
    %9886 = vmatpush1.msra.mxu0 0.0
    %9887 = vmatprep.subr.mxu0 0.0
    %9888 = vmatpush1.msra.mxu0 0.0
    %9889 = vmatprep.subr.mxu0 0.0
    %9890 = vmatpush1.msra.mxu0 0.0
    %9891 = vmatprep.subr.mxu0 0.0
    %9892 = vmatpush1.msra.mxu0 0.0
    %9893 = vmatprep.subr.mxu0 0.0
    %9894 = vmatpush1.msra.mxu0 0.0
    %9895 = vmatprep.subr.mxu0 0.0
    %9896 = vmatpush1.msra.mxu0 0.0
    %9897 = vmatprep.subr.mxu0 0.0
    %9898 = vmatpush1.msra.mxu0 0.0
    %9899 = vmatprep.mubr.f32.mxu0 0.0
    %9900 = vmatmul.mubr.f32.gmra.mrb[0].mxu0 %v9833
    %v9901 = vpop.f32.mrb[0].mxu0
    %v9902 = vadd.f32 0.0, %v9901
    %v9903 = vpop.f32.mrb[0].mxu0
    %9904 = vdwg.mxu0
    %v9906 = vsel %vm2045, %v8880, 0
    %9908 = vmatprep.subr.mxu0 0.0
    %9909 = vmatpush1.msra.mxu0 %v7489
    %9910 = vmatprep.subr.mxu0 0.0
    %9911 = vmatpush1.msra.mxu0 0.0
    %9912 = vmatprep.subr.mxu0 0.0
    %9913 = vmatpush1.msra.mxu0 0.0
    %9914 = vmatprep.subr.mxu0 0.0
    %9915 = vmatpush1.msra.mxu0 0.0
    %9916 = vmatprep.subr.mxu0 0.0
    %9917 = vmatpush1.msra.mxu0 0.0
    %9918 = vmatprep.subr.mxu0 0.0
    %9919 = vmatpush1.msra.mxu0 0.0
    %9920 = vmatprep.subr.mxu0 0.0
    %9921 = vmatpush1.msra.mxu0 0.0
    %9922 = vmatprep.subr.mxu0 0.0
    %9923 = vmatpush1.msra.mxu0 0.0
    %9924 = vmatprep.subr.mxu0 0.0
    %9925 = vmatpush1.msra.mxu0 0.0
    %9926 = vmatprep.subr.mxu0 0.0
    %9927 = vmatpush1.msra.mxu0 0.0
    %9928 = vmatprep.subr.mxu0 0.0
    %9929 = vmatpush1.msra.mxu0 0.0
    %9930 = vmatprep.subr.mxu0 0.0
    %9931 = vmatpush1.msra.mxu0 0.0
    %9932 = vmatprep.subr.mxu0 0.0
    %9933 = vmatpush1.msra.mxu0 0.0
    %9934 = vmatprep.subr.mxu0 0.0
    %9935 = vmatpush1.msra.mxu0 0.0
    %9936 = vmatprep.subr.mxu0 0.0
    %9937 = vmatpush1.msra.mxu0 0.0
    %9938 = vmatprep.subr.mxu0 0.0
    %9939 = vmatpush1.msra.mxu0 0.0
    %9940 = vmatprep.subr.mxu0 0.0
    %9941 = vmatpush1.msra.mxu0 0.0
    %9942 = vmatprep.subr.mxu0 0.0
    %9943 = vmatpush1.msra.mxu0 0.0
    %9944 = vmatprep.subr.mxu0 0.0
    %9945 = vmatpush1.msra.mxu0 0.0
    %9946 = vmatprep.subr.mxu0 0.0
    %9947 = vmatpush1.msra.mxu0 0.0
    %9948 = vmatprep.subr.mxu0 0.0
    %9949 = vmatpush1.msra.mxu0 0.0
    %9950 = vmatprep.subr.mxu0 0.0
    %9951 = vmatpush1.msra.mxu0 0.0
    %9952 = vmatprep.subr.mxu0 0.0
    %9953 = vmatpush1.msra.mxu0 0.0
    %9954 = vmatprep.subr.mxu0 0.0
    %9955 = vmatpush1.msra.mxu0 0.0
    %9956 = vmatprep.subr.mxu0 0.0
    %9957 = vmatpush1.msra.mxu0 0.0
    %9958 = vmatprep.subr.mxu0 0.0
    %9959 = vmatpush1.msra.mxu0 0.0
    %9960 = vmatprep.subr.mxu0 0.0
    %9961 = vmatpush1.msra.mxu0 0.0
    %9962 = vmatprep.subr.mxu0 0.0
    %9963 = vmatpush1.msra.mxu0 0.0
    %9964 = vmatprep.subr.mxu0 0.0
    %9965 = vmatpush1.msra.mxu0 0.0
    %9966 = vmatprep.subr.mxu0 0.0
    %9967 = vmatpush1.msra.mxu0 0.0
    %9968 = vmatprep.subr.mxu0 0.0
    %9969 = vmatpush1.msra.mxu0 0.0
    %9970 = vmatprep.subr.mxu0 0.0
    %9971 = vmatpush1.msra.mxu0 0.0
    %9972 = vmatprep.mubr.f32.mxu0 0.0
    %9973 = vmatmul.mubr.f32.gmra.mrb[0].mxu0 %v9906
    %v9974 = vpop.f32.mrb[0].mxu0
    %v9975 = vadd.f32 0.0, %v9974
    %v9976 = vpop.f32.mrb[0].mxu0
    %9977 = vdwg.mxu0
    %v9979 = vsel %vm2045, %v8882, 0
    %9981 = vmatprep.subr.mxu0 0.0
    %9982 = vmatpush1.msra.mxu0 %v7490
    %9983 = vmatprep.subr.mxu0 0.0
    %9984 = vmatpush1.msra.mxu0 0.0
    %9985 = vmatprep.subr.mxu0 0.0
    %9986 = vmatpush1.msra.mxu0 0.0
    %9987 = vmatprep.subr.mxu0 0.0
    %9988 = vmatpush1.msra.mxu0 0.0
    %9989 = vmatprep.subr.mxu0 0.0
    %9990 = vmatpush1.msra.mxu0 0.0
    %9991 = vmatprep.subr.mxu0 0.0
    %9992 = vmatpush1.msra.mxu0 0.0
    %9993 = vmatprep.subr.mxu0 0.0
    %9994 = vmatpush1.msra.mxu0 0.0
    %9995 = vmatprep.subr.mxu0 0.0
    %9996 = vmatpush1.msra.mxu0 0.0
    %9997 = vmatprep.subr.mxu0 0.0
    %9998 = vmatpush1.msra.mxu0 0.0
    %9999 = vmatprep.subr.mxu0 0.0
    %10000 = vmatpush1.msra.mxu0 0.0
    %10001 = vmatprep.subr.mxu0 0.0
    %10002 = vmatpush1.msra.mxu0 0.0
    %10003 = vmatprep.subr.mxu0 0.0
    %10004 = vmatpush1.msra.mxu0 0.0
    %10005 = vmatprep.subr.mxu0 0.0
    %10006 = vmatpush1.msra.mxu0 0.0
    %10007 = vmatprep.subr.mxu0 0.0
    %10008 = vmatpush1.msra.mxu0 0.0
    %10009 = vmatprep.subr.mxu0 0.0
    %10010 = vmatpush1.msra.mxu0 0.0
    %10011 = vmatprep.subr.mxu0 0.0
    %10012 = vmatpush1.msra.mxu0 0.0
    %10013 = vmatprep.subr.mxu0 0.0
    %10014 = vmatpush1.msra.mxu0 0.0
    %10015 = vmatprep.subr.mxu0 0.0
    %10016 = vmatpush1.msra.mxu0 0.0
    %10017 = vmatprep.subr.mxu0 0.0
    %10018 = vmatpush1.msra.mxu0 0.0
    %10019 = vmatprep.subr.mxu0 0.0
    %10020 = vmatpush1.msra.mxu0 0.0
    %10021 = vmatprep.subr.mxu0 0.0
    %10022 = vmatpush1.msra.mxu0 0.0
    %10023 = vmatprep.subr.mxu0 0.0
    %10024 = vmatpush1.msra.mxu0 0.0
    %10025 = vmatprep.subr.mxu0 0.0
    %10026 = vmatpush1.msra.mxu0 0.0
    %10027 = vmatprep.subr.mxu0 0.0
    %10028 = vmatpush1.msra.mxu0 0.0
    %10029 = vmatprep.subr.mxu0 0.0
    %10030 = vmatpush1.msra.mxu0 0.0
    %10031 = vmatprep.subr.mxu0 0.0
    %10032 = vmatpush1.msra.mxu0 0.0
    %10033 = vmatprep.subr.mxu0 0.0
    %10034 = vmatpush1.msra.mxu0 0.0
    %10035 = vmatprep.subr.mxu0 0.0
    %10036 = vmatpush1.msra.mxu0 0.0
    %10037 = vmatprep.subr.mxu0 0.0
    %10038 = vmatpush1.msra.mxu0 0.0
    %10039 = vmatprep.subr.mxu0 0.0
    %10040 = vmatpush1.msra.mxu0 0.0
    %10041 = vmatprep.subr.mxu0 0.0
    %10042 = vmatpush1.msra.mxu0 0.0
    %10043 = vmatprep.subr.mxu0 0.0
    %10044 = vmatpush1.msra.mxu0 0.0
    %10045 = vmatprep.mubr.f32.mxu0 0.0
    %10046 = vmatmul.mubr.f32.gmra.mrb[0].mxu0 %v9979
    %v10047 = vpop.f32.mrb[0].mxu0
    %v10048 = vadd.f32 0.0, %v10047
    %v10049 = vpop.f32.mrb[0].mxu0
    %10050 = vdwg.mxu0
    %v10051 = vcombine.low %v8953, %v9099
    %v10052 = vcombine.high %v8953, %v9099
    %v10054 = vunpack.c.l.s4 1983009808
    %v10055 = vunpack.c.0.s8 %v10054
    %v10056 = vlaneseq
    %v10057 = vshrl.u32 %v10056, 7
    %v10058 = vsub.s32 %v10055, %v10057
    %v10059 = vrot.slane %v10051, %v10058
    %v10061 = vunpack.c.l.s4 1983009808
    %v10062 = vunpack.c.0.s8 %v10061
    %v10063 = vlaneseq
    %v10064 = vshrl.u32 %v10063, 7
    %v10065 = vsub.s32 %v10062, %v10064
    %v10066 = vrot.slane %v10052, %v10065
    %v10067 = vcombine.low %v9026, %v9172
    %v10068 = vcombine.high %v9026, %v9172
    %v10070 = vunpack.c.l.s4 1983009808
    %v10071 = vunpack.c.0.s8 %v10070
    %v10072 = vlaneseq
    %v10073 = vshrl.u32 %v10072, 7
    %v10074 = vsub.s32 %v10071, %v10073
    %v10075 = vrot.slane %v10067, %v10074
    %v10077 = vunpack.c.l.s4 1983009808
    %v10078 = vunpack.c.0.s8 %v10077
    %v10079 = vlaneseq
    %v10080 = vshrl.u32 %v10079, 7
    %v10081 = vsub.s32 %v10078, %v10080
    %v10082 = vrot.slane %v10068, %v10081
    %v10083 = vcombine.low %v9245, %v9391
    %v10084 = vcombine.high %v9245, %v9391
    %v10086 = vunpack.c.l.s4 1983009808
    %v10087 = vunpack.c.0.s8 %v10086
    %v10088 = vlaneseq
    %v10089 = vshrl.u32 %v10088, 7
    %v10090 = vsub.s32 %v10087, %v10089
    %v10091 = vrot.slane %v10083, %v10090
    %v10093 = vunpack.c.l.s4 1983009808
    %v10094 = vunpack.c.0.s8 %v10093
    %v10095 = vlaneseq
    %v10096 = vshrl.u32 %v10095, 7
    %v10097 = vsub.s32 %v10094, %v10096
    %v10098 = vrot.slane %v10084, %v10097
    %v10099 = vcombine.low %v9318, %v9464
    %v10100 = vcombine.high %v9318, %v9464
    %v10102 = vunpack.c.l.s4 1983009808
    %v10103 = vunpack.c.0.s8 %v10102
    %v10104 = vlaneseq
    %v10105 = vshrl.u32 %v10104, 7
    %v10106 = vsub.s32 %v10103, %v10105
    %v10107 = vrot.slane %v10099, %v10106
    %v10109 = vunpack.c.l.s4 1983009808
    %v10110 = vunpack.c.0.s8 %v10109
    %v10111 = vlaneseq
    %v10112 = vshrl.u32 %v10111, 7
    %v10113 = vsub.s32 %v10110, %v10112
    %v10114 = vrot.slane %v10100, %v10113
    %v10115 = vcombine.low %v10059, %v10075
    %v10116 = vcombine.high %v10059, %v10075
    %v10118 = vunpack.c.l.s4 1934713408
    %v10119 = vunpack.c.0.s8 %v10118
    %v10120 = vlaneseq
    %v10121 = vshrl.u32 %v10120, 7
    %v10122 = vsub.s32 %v10119, %v10121
    %v10123 = vrot.slane %v10115, %v10122
    %v10125 = vunpack.c.l.s4 1934713408
    %v10126 = vunpack.c.0.s8 %v10125
    %v10127 = vlaneseq
    %v10128 = vshrl.u32 %v10127, 7
    %v10129 = vsub.s32 %v10126, %v10128
    %v10130 = vrot.slane %v10116, %v10129
    %v10131 = vcombine.low %v10066, %v10082
    %v10132 = vcombine.high %v10066, %v10082
    %v10134 = vunpack.c.l.s4 1934713408
    %v10135 = vunpack.c.0.s8 %v10134
    %v10136 = vlaneseq
    %v10137 = vshrl.u32 %v10136, 7
    %v10138 = vsub.s32 %v10135, %v10137
    %v10139 = vrot.slane %v10131, %v10138
    %v10141 = vunpack.c.l.s4 1934713408
    %v10142 = vunpack.c.0.s8 %v10141
    %v10143 = vlaneseq
    %v10144 = vshrl.u32 %v10143, 7
    %v10145 = vsub.s32 %v10142, %v10144
    %v10146 = vrot.slane %v10132, %v10145
    %v10147 = vcombine.low %v10091, %v10107
    %v10148 = vcombine.high %v10091, %v10107
    %v10150 = vunpack.c.l.s4 1934713408
    %v10151 = vunpack.c.0.s8 %v10150
    %v10152 = vlaneseq
    %v10153 = vshrl.u32 %v10152, 7
    %v10154 = vsub.s32 %v10151, %v10153
    %v10155 = vrot.slane %v10147, %v10154
    %v10157 = vunpack.c.l.s4 1934713408
    %v10158 = vunpack.c.0.s8 %v10157
    %v10159 = vlaneseq
    %v10160 = vshrl.u32 %v10159, 7
    %v10161 = vsub.s32 %v10158, %v10160
    %v10162 = vrot.slane %v10148, %v10161
    %v10163 = vcombine.low %v10098, %v10114
    %v10164 = vcombine.high %v10098, %v10114
    %v10166 = vunpack.c.l.s4 1934713408
    %v10167 = vunpack.c.0.s8 %v10166
    %v10168 = vlaneseq
    %v10169 = vshrl.u32 %v10168, 7
    %v10170 = vsub.s32 %v10167, %v10169
    %v10171 = vrot.slane %v10163, %v10170
    %v10173 = vunpack.c.l.s4 1934713408
    %v10174 = vunpack.c.0.s8 %v10173
    %v10175 = vlaneseq
    %v10176 = vshrl.u32 %v10175, 7
    %v10177 = vsub.s32 %v10174, %v10176
    %v10178 = vrot.slane %v10164, %v10177
    %v10179 = vcombine.low %v10123, %v10155
    %v10180 = vcombine.high %v10123, %v10155
    %v10181 = vcombine.low %v10130, %v10162
    %v10182 = vcombine.high %v10130, %v10162
    %v10183 = vcombine.low %v10139, %v10171
    %v10184 = vcombine.high %v10139, %v10171
    %v10185 = vcombine.low %v10146, %v10178
    %v10186 = vcombine.high %v10146, %v10178
    %v10187 = vcombine.low %v9537, %v9683
    %v10188 = vcombine.high %v9537, %v9683
    %v10190 = vunpack.c.l.s4 1983009808
    %v10191 = vunpack.c.0.s8 %v10190
    %v10192 = vlaneseq
    %v10193 = vshrl.u32 %v10192, 7
    %v10194 = vsub.s32 %v10191, %v10193
    %v10195 = vrot.slane %v10187, %v10194
    %v10197 = vunpack.c.l.s4 1983009808
    %v10198 = vunpack.c.0.s8 %v10197
    %v10199 = vlaneseq
    %v10200 = vshrl.u32 %v10199, 7
    %v10201 = vsub.s32 %v10198, %v10200
    %v10202 = vrot.slane %v10188, %v10201
    %v10203 = vcombine.low %v9610, %v9756
    %v10204 = vcombine.high %v9610, %v9756
    %v10206 = vunpack.c.l.s4 1983009808
    %v10207 = vunpack.c.0.s8 %v10206
    %v10208 = vlaneseq
    %v10209 = vshrl.u32 %v10208, 7
    %v10210 = vsub.s32 %v10207, %v10209
    %v10211 = vrot.slane %v10203, %v10210
    %v10213 = vunpack.c.l.s4 1983009808
    %v10214 = vunpack.c.0.s8 %v10213
    %v10215 = vlaneseq
    %v10216 = vshrl.u32 %v10215, 7
    %v10217 = vsub.s32 %v10214, %v10216
    %v10218 = vrot.slane %v10204, %v10217
    %v10219 = vcombine.low %v9829, %v9975
    %v10220 = vcombine.high %v9829, %v9975
    %v10222 = vunpack.c.l.s4 1983009808
    %v10223 = vunpack.c.0.s8 %v10222
    %v10224 = vlaneseq
    %v10225 = vshrl.u32 %v10224, 7
    %v10226 = vsub.s32 %v10223, %v10225
    %v10227 = vrot.slane %v10219, %v10226
    %v10229 = vunpack.c.l.s4 1983009808
    %v10230 = vunpack.c.0.s8 %v10229
    %v10231 = vlaneseq
    %v10232 = vshrl.u32 %v10231, 7
    %v10233 = vsub.s32 %v10230, %v10232
    %v10234 = vrot.slane %v10220, %v10233
    %v10235 = vcombine.low %v9902, %v10048
    %v10236 = vcombine.high %v9902, %v10048
    %v10238 = vunpack.c.l.s4 1983009808
    %v10239 = vunpack.c.0.s8 %v10238
    %v10240 = vlaneseq
    %v10241 = vshrl.u32 %v10240, 7
    %v10242 = vsub.s32 %v10239, %v10241
    %v10243 = vrot.slane %v10235, %v10242
    %v10245 = vunpack.c.l.s4 1983009808
    %v10246 = vunpack.c.0.s8 %v10245
    %v10247 = vlaneseq
    %v10248 = vshrl.u32 %v10247, 7
    %v10249 = vsub.s32 %v10246, %v10248
    %v10250 = vrot.slane %v10236, %v10249
    %v10251 = vcombine.low %v10195, %v10211
    %v10252 = vcombine.high %v10195, %v10211
    %v10254 = vunpack.c.l.s4 1934713408
    %v10255 = vunpack.c.0.s8 %v10254
    %v10256 = vlaneseq
    %v10257 = vshrl.u32 %v10256, 7
    %v10258 = vsub.s32 %v10255, %v10257
    %v10259 = vrot.slane %v10251, %v10258
    %v10261 = vunpack.c.l.s4 1934713408
    %v10262 = vunpack.c.0.s8 %v10261
    %v10263 = vlaneseq
    %v10264 = vshrl.u32 %v10263, 7
    %v10265 = vsub.s32 %v10262, %v10264
    %v10266 = vrot.slane %v10252, %v10265
    %v10267 = vcombine.low %v10202, %v10218
    %v10268 = vcombine.high %v10202, %v10218
    %v10270 = vunpack.c.l.s4 1934713408
    %v10271 = vunpack.c.0.s8 %v10270
    %v10272 = vlaneseq
    %v10273 = vshrl.u32 %v10272, 7
    %v10274 = vsub.s32 %v10271, %v10273
    %v10275 = vrot.slane %v10267, %v10274
    %v10277 = vunpack.c.l.s4 1934713408
    %v10278 = vunpack.c.0.s8 %v10277
    %v10279 = vlaneseq
    %v10280 = vshrl.u32 %v10279, 7
    %v10281 = vsub.s32 %v10278, %v10280
    %v10282 = vrot.slane %v10268, %v10281
    %v10283 = vcombine.low %v10227, %v10243
    %v10284 = vcombine.high %v10227, %v10243
    %v10286 = vunpack.c.l.s4 1934713408
    %v10287 = vunpack.c.0.s8 %v10286
    %v10288 = vlaneseq
    %v10289 = vshrl.u32 %v10288, 7
    %v10290 = vsub.s32 %v10287, %v10289
    %v10291 = vrot.slane %v10283, %v10290
    %v10293 = vunpack.c.l.s4 1934713408
    %v10294 = vunpack.c.0.s8 %v10293
    %v10295 = vlaneseq
    %v10296 = vshrl.u32 %v10295, 7
    %v10297 = vsub.s32 %v10294, %v10296
    %v10298 = vrot.slane %v10284, %v10297
    %v10299 = vcombine.low %v10234, %v10250
    %v10300 = vcombine.high %v10234, %v10250
    %v10302 = vunpack.c.l.s4 1934713408
    %v10303 = vunpack.c.0.s8 %v10302
    %v10304 = vlaneseq
    %v10305 = vshrl.u32 %v10304, 7
    %v10306 = vsub.s32 %v10303, %v10305
    %v10307 = vrot.slane %v10299, %v10306
    %v10309 = vunpack.c.l.s4 1934713408
    %v10310 = vunpack.c.0.s8 %v10309
    %v10311 = vlaneseq
    %v10312 = vshrl.u32 %v10311, 7
    %v10313 = vsub.s32 %v10310, %v10312
    %v10314 = vrot.slane %v10300, %v10313
    %v10315 = vcombine.low %v10259, %v10291
    %v10316 = vcombine.high %v10259, %v10291
    %v10317 = vcombine.low %v10266, %v10298
    %v10318 = vcombine.high %v10266, %v10298
    %v10319 = vcombine.low %v10275, %v10307
    %v10320 = vcombine.high %v10275, %v10307
    %v10321 = vcombine.low %v10282, %v10314
    %v10322 = vcombine.high %v10282, %v10314
    %v10323 = vcombine.low %v10179, %v10181
    %v10324 = vcombine.high %v10179, %v10181
    %v10326 = vunpack.c.l.s4 1983009808
    %v10327 = vunpack.c.0.s8 %v10326
    %v10328 = vlaneseq
    %v10329 = vshrl.u32 %v10328, 7
    %v10330 = vsub.s32 %v10327, %v10329
    %v10331 = vrot.slane %v10323, %v10330
    %v10333 = vunpack.c.l.s4 1983009808
    %v10334 = vunpack.c.0.s8 %v10333
    %v10335 = vlaneseq
    %v10336 = vshrl.u32 %v10335, 7
    %v10337 = vsub.s32 %v10334, %v10336
    %v10338 = vrot.slane %v10324, %v10337
    %v10339 = vcombine.low %v10180, %v10182
    %v10340 = vcombine.high %v10180, %v10182
    %v10342 = vunpack.c.l.s4 1983009808
    %v10343 = vunpack.c.0.s8 %v10342
    %v10344 = vlaneseq
    %v10345 = vshrl.u32 %v10344, 7
    %v10346 = vsub.s32 %v10343, %v10345
    %v10347 = vrot.slane %v10339, %v10346
    %v10349 = vunpack.c.l.s4 1983009808
    %v10350 = vunpack.c.0.s8 %v10349
    %v10351 = vlaneseq
    %v10352 = vshrl.u32 %v10351, 7
    %v10353 = vsub.s32 %v10350, %v10352
    %v10354 = vrot.slane %v10340, %v10353
    %v10355 = vcombine.low %v10183, %v10185
    %v10356 = vcombine.high %v10183, %v10185
    %v10358 = vunpack.c.l.s4 1983009808
    %v10359 = vunpack.c.0.s8 %v10358
    %v10360 = vlaneseq
    %v10361 = vshrl.u32 %v10360, 7
    %v10362 = vsub.s32 %v10359, %v10361
    %v10363 = vrot.slane %v10355, %v10362
    %v10365 = vunpack.c.l.s4 1983009808
    %v10366 = vunpack.c.0.s8 %v10365
    %v10367 = vlaneseq
    %v10368 = vshrl.u32 %v10367, 7
    %v10369 = vsub.s32 %v10366, %v10368
    %v10370 = vrot.slane %v10356, %v10369
    %v10371 = vcombine.low %v10184, %v10186
    %v10372 = vcombine.high %v10184, %v10186
    %v10374 = vunpack.c.l.s4 1983009808
    %v10375 = vunpack.c.0.s8 %v10374
    %v10376 = vlaneseq
    %v10377 = vshrl.u32 %v10376, 7
    %v10378 = vsub.s32 %v10375, %v10377
    %v10379 = vrot.slane %v10371, %v10378
    %v10381 = vunpack.c.l.s4 1983009808
    %v10382 = vunpack.c.0.s8 %v10381
    %v10383 = vlaneseq
    %v10384 = vshrl.u32 %v10383, 7
    %v10385 = vsub.s32 %v10382, %v10384
    %v10386 = vrot.slane %v10372, %v10385
    %v10387 = vcombine.low %v10331, %v10347
    %v10388 = vcombine.high %v10331, %v10347
    %v10390 = vunpack.c.l.s4 1934713408
    %v10391 = vunpack.c.0.s8 %v10390
    %v10392 = vlaneseq
    %v10393 = vshrl.u32 %v10392, 7
    %v10394 = vsub.s32 %v10391, %v10393
    %v10395 = vrot.slane %v10387, %v10394
    %v10397 = vunpack.c.l.s4 1934713408
    %v10398 = vunpack.c.0.s8 %v10397
    %v10399 = vlaneseq
    %v10400 = vshrl.u32 %v10399, 7
    %v10401 = vsub.s32 %v10398, %v10400
    %v10402 = vrot.slane %v10388, %v10401
    %v10403 = vcombine.low %v10338, %v10354
    %v10404 = vcombine.high %v10338, %v10354
    %v10406 = vunpack.c.l.s4 1934713408
    %v10407 = vunpack.c.0.s8 %v10406
    %v10408 = vlaneseq
    %v10409 = vshrl.u32 %v10408, 7
    %v10410 = vsub.s32 %v10407, %v10409
    %v10411 = vrot.slane %v10403, %v10410
    %v10413 = vunpack.c.l.s4 1934713408
    %v10414 = vunpack.c.0.s8 %v10413
    %v10415 = vlaneseq
    %v10416 = vshrl.u32 %v10415, 7
    %v10417 = vsub.s32 %v10414, %v10416
    %v10418 = vrot.slane %v10404, %v10417
    %v10419 = vcombine.low %v10363, %v10379
    %v10420 = vcombine.high %v10363, %v10379
    %v10422 = vunpack.c.l.s4 1934713408
    %v10423 = vunpack.c.0.s8 %v10422
    %v10424 = vlaneseq
    %v10425 = vshrl.u32 %v10424, 7
    %v10426 = vsub.s32 %v10423, %v10425
    %v10427 = vrot.slane %v10419, %v10426
    %v10429 = vunpack.c.l.s4 1934713408
    %v10430 = vunpack.c.0.s8 %v10429
    %v10431 = vlaneseq
    %v10432 = vshrl.u32 %v10431, 7
    %v10433 = vsub.s32 %v10430, %v10432
    %v10434 = vrot.slane %v10420, %v10433
    %v10435 = vcombine.low %v10370, %v10386
    %v10436 = vcombine.high %v10370, %v10386
    %v10438 = vunpack.c.l.s4 1934713408
    %v10439 = vunpack.c.0.s8 %v10438
    %v10440 = vlaneseq
    %v10441 = vshrl.u32 %v10440, 7
    %v10442 = vsub.s32 %v10439, %v10441
    %v10443 = vrot.slane %v10435, %v10442
    %v10445 = vunpack.c.l.s4 1934713408
    %v10446 = vunpack.c.0.s8 %v10445
    %v10447 = vlaneseq
    %v10448 = vshrl.u32 %v10447, 7
    %v10449 = vsub.s32 %v10446, %v10448
    %v10450 = vrot.slane %v10436, %v10449
    %v10451 = vcombine.low %v10395, %v10427
    %v10452 = vcombine.high %v10395, %v10427
    %v10453 = vcombine.low %v10402, %v10434
    %v10454 = vcombine.high %v10402, %v10434
    %v10455 = vcombine.low %v10411, %v10443
    %v10456 = vcombine.high %v10411, %v10443
    %v10457 = vcombine.low %v10418, %v10450
    %v10458 = vcombine.high %v10418, %v10450
    %v10459 = vcombine.low %v10315, %v10317
    %v10460 = vcombine.high %v10315, %v10317
    %v10462 = vunpack.c.l.s4 1983009808
    %v10463 = vunpack.c.0.s8 %v10462
    %v10464 = vlaneseq
    %v10465 = vshrl.u32 %v10464, 7
    %v10466 = vsub.s32 %v10463, %v10465
    %v10467 = vrot.slane %v10459, %v10466
    %v10469 = vunpack.c.l.s4 1983009808
    %v10470 = vunpack.c.0.s8 %v10469
    %v10471 = vlaneseq
    %v10472 = vshrl.u32 %v10471, 7
    %v10473 = vsub.s32 %v10470, %v10472
    %v10474 = vrot.slane %v10460, %v10473
    %v10475 = vcombine.low %v10316, %v10318
    %v10476 = vcombine.high %v10316, %v10318
    %v10478 = vunpack.c.l.s4 1983009808
    %v10479 = vunpack.c.0.s8 %v10478
    %v10480 = vlaneseq
    %v10481 = vshrl.u32 %v10480, 7
    %v10482 = vsub.s32 %v10479, %v10481
    %v10483 = vrot.slane %v10475, %v10482
    %v10485 = vunpack.c.l.s4 1983009808
    %v10486 = vunpack.c.0.s8 %v10485
    %v10487 = vlaneseq
    %v10488 = vshrl.u32 %v10487, 7
    %v10489 = vsub.s32 %v10486, %v10488
    %v10490 = vrot.slane %v10476, %v10489
    %v10491 = vcombine.low %v10319, %v10321
    %v10492 = vcombine.high %v10319, %v10321
    %v10494 = vunpack.c.l.s4 1983009808
    %v10495 = vunpack.c.0.s8 %v10494
    %v10496 = vlaneseq
    %v10497 = vshrl.u32 %v10496, 7
    %v10498 = vsub.s32 %v10495, %v10497
    %v10499 = vrot.slane %v10491, %v10498
    %v10501 = vunpack.c.l.s4 1983009808
    %v10502 = vunpack.c.0.s8 %v10501
    %v10503 = vlaneseq
    %v10504 = vshrl.u32 %v10503, 7
    %v10505 = vsub.s32 %v10502, %v10504
    %v10506 = vrot.slane %v10492, %v10505
    %v10507 = vcombine.low %v10320, %v10322
    %v10508 = vcombine.high %v10320, %v10322
    %v10510 = vunpack.c.l.s4 1983009808
    %v10511 = vunpack.c.0.s8 %v10510
    %v10512 = vlaneseq
    %v10513 = vshrl.u32 %v10512, 7
    %v10514 = vsub.s32 %v10511, %v10513
    %v10515 = vrot.slane %v10507, %v10514
    %v10517 = vunpack.c.l.s4 1983009808
    %v10518 = vunpack.c.0.s8 %v10517
    %v10519 = vlaneseq
    %v10520 = vshrl.u32 %v10519, 7
    %v10521 = vsub.s32 %v10518, %v10520
    %v10522 = vrot.slane %v10508, %v10521
    %v10523 = vcombine.low %v10467, %v10483
    %v10524 = vcombine.high %v10467, %v10483
    %v10526 = vunpack.c.l.s4 1934713408
    %v10527 = vunpack.c.0.s8 %v10526
    %v10528 = vlaneseq
    %v10529 = vshrl.u32 %v10528, 7
    %v10530 = vsub.s32 %v10527, %v10529
    %v10531 = vrot.slane %v10523, %v10530
    %v10533 = vunpack.c.l.s4 1934713408
    %v10534 = vunpack.c.0.s8 %v10533
    %v10535 = vlaneseq
    %v10536 = vshrl.u32 %v10535, 7
    %v10537 = vsub.s32 %v10534, %v10536
    %v10538 = vrot.slane %v10524, %v10537
    %v10539 = vcombine.low %v10474, %v10490
    %v10540 = vcombine.high %v10474, %v10490
    %v10542 = vunpack.c.l.s4 1934713408
    %v10543 = vunpack.c.0.s8 %v10542
    %v10544 = vlaneseq
    %v10545 = vshrl.u32 %v10544, 7
    %v10546 = vsub.s32 %v10543, %v10545
    %v10547 = vrot.slane %v10539, %v10546
    %v10549 = vunpack.c.l.s4 1934713408
    %v10550 = vunpack.c.0.s8 %v10549
    %v10551 = vlaneseq
    %v10552 = vshrl.u32 %v10551, 7
    %v10553 = vsub.s32 %v10550, %v10552
    %v10554 = vrot.slane %v10540, %v10553
    %v10555 = vcombine.low %v10499, %v10515
    %v10556 = vcombine.high %v10499, %v10515
    %v10558 = vunpack.c.l.s4 1934713408
    %v10559 = vunpack.c.0.s8 %v10558
    %v10560 = vlaneseq
    %v10561 = vshrl.u32 %v10560, 7
    %v10562 = vsub.s32 %v10559, %v10561
    %v10563 = vrot.slane %v10555, %v10562
    %v10565 = vunpack.c.l.s4 1934713408
    %v10566 = vunpack.c.0.s8 %v10565
    %v10567 = vlaneseq
    %v10568 = vshrl.u32 %v10567, 7
    %v10569 = vsub.s32 %v10566, %v10568
    %v10570 = vrot.slane %v10556, %v10569
    %v10571 = vcombine.low %v10506, %v10522
    %v10572 = vcombine.high %v10506, %v10522
    %v10574 = vunpack.c.l.s4 1934713408
    %v10575 = vunpack.c.0.s8 %v10574
    %v10576 = vlaneseq
    %v10577 = vshrl.u32 %v10576, 7
    %v10578 = vsub.s32 %v10575, %v10577
    %v10579 = vrot.slane %v10571, %v10578
    %v10581 = vunpack.c.l.s4 1934713408
    %v10582 = vunpack.c.0.s8 %v10581
    %v10583 = vlaneseq
    %v10584 = vshrl.u32 %v10583, 7
    %v10585 = vsub.s32 %v10582, %v10584
    %v10586 = vrot.slane %v10572, %v10585
    %v10587 = vcombine.low %v10531, %v10563
    %v10588 = vcombine.high %v10531, %v10563
    %v10589 = vcombine.low %v10538, %v10570
    %v10590 = vcombine.high %v10538, %v10570
    %v10591 = vcombine.low %v10547, %v10579
    %v10592 = vcombine.high %v10547, %v10579
    %v10593 = vcombine.low %v10554, %v10586
    %v10594 = vcombine.high %v10554, %v10586
    %10597 = vrot.lane.b32.xlu0 %v10452, 8
    %v10598 = vpop.permute.xlu0 %10597
    %10599 = vrot.lane.b32.xlu0 %v10588, 8
    %v10600 = vpop.permute.xlu0 %10599
    %10605 = vrot.lane.b32.xlu0 %v10453, 16
    %v10606 = vpop.permute.xlu0 %10605
    %10607 = vrot.lane.b32.xlu0 %v10589, 16
    %v10608 = vpop.permute.xlu0 %10607
    %10613 = vrot.lane.b32.xlu0 %v10454, 24
    %v10614 = vpop.permute.xlu0 %10613
    %10615 = vrot.lane.b32.xlu0 %v10590, 24
    %v10616 = vpop.permute.xlu0 %10615
    %10621 = vrot.lane.b32.xlu0 %v10455, 32
    %v10622 = vpop.permute.xlu0 %10621
    %10623 = vrot.lane.b32.xlu0 %v10591, 32
    %v10624 = vpop.permute.xlu0 %10623
    %10629 = vrot.lane.b32.xlu0 %v10456, 40
    %v10630 = vpop.permute.xlu0 %10629
    %10631 = vrot.lane.b32.xlu0 %v10592, 40
    %v10632 = vpop.permute.xlu0 %10631
    %10637 = vrot.lane.b32.xlu0 %v10457, 48
    %v10638 = vpop.permute.xlu0 %10637
    %10639 = vrot.lane.b32.xlu0 %v10593, 48
    %v10640 = vpop.permute.xlu0 %10639
    %10645 = vrot.lane.b32.xlu0 %v10458, 56
    %v10646 = vpop.permute.xlu0 %10645
    %10647 = vrot.lane.b32.xlu0 %v10594, 56
    %v10648 = vpop.permute.xlu0 %10647
    %v10651 = vsel %vm2045, %v10451, %v10598
    %v10652 = vsel %vm2045, %v10587, %v10600
    %v10653 = vsel %vm78, %v10651, %v10606
    %v10654 = vsel %vm78, %v10652, %v10608
    %v10655 = vsel %vm5210, %v10653, %v10614
    %v10656 = vsel %vm5210, %v10654, %v10616
    %v10657 = vsel %vm5213, %v10655, %v10622
    %v10658 = vsel %vm5213, %v10656, %v10624
    %v10659 = vsel %vm5216, %v10657, %v10630
    %v10660 = vsel %vm5216, %v10658, %v10632
    %v10661 = vsel %vm5219, %v10659, %v10638
    %v10662 = vsel %vm5219, %v10660, %v10640
    %v10663 = vsel %vm5222, %v10661, %v10646
    %v10664 = vsel %vm5222, %v10662, %v10648
    %s10665 = scalar_lea.vmem %s6, 64
    %v10666 = vld [vmem:[%s10665] sm:$0xff]
    %v10667 = vld [vmem:[%s10665 + $0x8] sm:$0xff]
    %v10668 = vld [vmem:[%s10665 + $0x10] sm:$0xff]
    %v10669 = vld [vmem:[%s10665 + $0x18] sm:$0xff]
    %v10670 = vld [vmem:[%s10665 + $0x20] sm:$0xff]
    %v10671 = vld [vmem:[%s10665 + $0x28] sm:$0xff]
    %v10672 = vld [vmem:[%s10665 + $0x30] sm:$0xff]
    %v10673 = vld [vmem:[%s10665 + $0x38] sm:$0xff]
    %s10674 = scalar_lea.vmem %s7, 1
    %v10675 = vld [vmem:[%s10674] sm:$0x1]
    %v10677 = vlaneseq
    %v10678 = vshrl.u32 %v10677, 7
    %v10679 = vsub.s32 0, %v10678
    %v10680 = vrot.slane %v10675, %v10679
    %v10683 = vsel %vm193, %v10663, 0
    %v10686 = vsel %vm193, %v10664, 0
    %10688 = vmatprep.subr.mxu0 0.0
    %10689 = vmatpush1.msra.mxu0 %v10666
    %10690 = vmatprep.subr.mxu0 0.0
    %10691 = vmatpush1.msra.mxu0 %v10667
    %10692 = vmatprep.subr.mxu0 0.0
    %10693 = vmatpush1.msra.mxu0 %v10668
    %10694 = vmatprep.subr.mxu0 0.0
    %10695 = vmatpush1.msra.mxu0 %v10669
    %10696 = vmatprep.subr.mxu0 0.0
    %10697 = vmatpush1.msra.mxu0 %v10670
    %10698 = vmatprep.subr.mxu0 0.0
    %10699 = vmatpush1.msra.mxu0 %v10671
    %10700 = vmatprep.subr.mxu0 0.0
    %10701 = vmatpush1.msra.mxu0 %v10672
    %10702 = vmatprep.subr.mxu0 0.0
    %10703 = vmatpush1.msra.mxu0 %v10673
    %10704 = vmatprep.subr.mxu0 0.0
    %10705 = vmatpush1.msra.mxu0 0.0
    %10706 = vmatprep.subr.mxu0 0.0
    %10707 = vmatpush1.msra.mxu0 0.0
    %10708 = vmatprep.subr.mxu0 0.0
    %10709 = vmatpush1.msra.mxu0 0.0
    %10710 = vmatprep.subr.mxu0 0.0
    %10711 = vmatpush1.msra.mxu0 0.0
    %10712 = vmatprep.subr.mxu0 0.0
    %10713 = vmatpush1.msra.mxu0 0.0
    %10714 = vmatprep.subr.mxu0 0.0
    %10715 = vmatpush1.msra.mxu0 0.0
    %10716 = vmatprep.subr.mxu0 0.0
    %10717 = vmatpush1.msra.mxu0 0.0
    %10718 = vmatprep.subr.mxu0 0.0
    %10719 = vmatpush1.msra.mxu0 0.0
    %10720 = vmatprep.subr.mxu0 0.0
    %10721 = vmatpush1.msra.mxu0 0.0
    %10722 = vmatprep.subr.mxu0 0.0
    %10723 = vmatpush1.msra.mxu0 0.0
    %10724 = vmatprep.subr.mxu0 0.0
    %10725 = vmatpush1.msra.mxu0 0.0
    %10726 = vmatprep.subr.mxu0 0.0
    %10727 = vmatpush1.msra.mxu0 0.0
    %10728 = vmatprep.subr.mxu0 0.0
    %10729 = vmatpush1.msra.mxu0 0.0
    %10730 = vmatprep.subr.mxu0 0.0
    %10731 = vmatpush1.msra.mxu0 0.0
    %10732 = vmatprep.subr.mxu0 0.0
    %10733 = vmatpush1.msra.mxu0 0.0
    %10734 = vmatprep.subr.mxu0 0.0
    %10735 = vmatpush1.msra.mxu0 0.0
    %10736 = vmatprep.subr.mxu0 0.0
    %10737 = vmatpush1.msra.mxu0 0.0
    %10738 = vmatprep.subr.mxu0 0.0
    %10739 = vmatpush1.msra.mxu0 0.0
    %10740 = vmatprep.subr.mxu0 0.0
    %10741 = vmatpush1.msra.mxu0 0.0
    %10742 = vmatprep.subr.mxu0 0.0
    %10743 = vmatpush1.msra.mxu0 0.0
    %10744 = vmatprep.subr.mxu0 0.0
    %10745 = vmatpush1.msra.mxu0 0.0
    %10746 = vmatprep.subr.mxu0 0.0
    %10747 = vmatpush1.msra.mxu0 0.0
    %10748 = vmatprep.subr.mxu0 0.0
    %10749 = vmatpush1.msra.mxu0 0.0
    %10750 = vmatprep.subr.mxu0 0.0
    %10751 = vmatpush1.msra.mxu0 0.0
    %10752 = vmatprep.mubr.f32.mxu0 0.0
    %10753 = vmatmul.mubr.f32.gmra.mrb[0].mxu0 %v10683
    %v10754 = vpop.f32.mrb[0].mxu0
    %v10755 = vadd.f32 %v10680, %v10754
    %v10756 = vpop.f32.mrb[0].mxu0
    %10757 = vmatprep.mubr.f32.mxu0 0.0
    %10758 = vmatmul.mubr.f32.gmra.mrb[0].mxu0 %v10686
    %v10759 = vpop.f32.mrb[0].mxu0
    %v10760 = vadd.f32 %v10680, %v10759
    %v10761 = vpop.f32.mrb[0].mxu0
    %10762 = vdwg.mxu0
    %v10763 = vadd.f32 %v5608, %v10755
    %v10764 = vadd.f32 %v5609, %v10760
    %s10765 = scalar_lea.vmem %s8, 1
    %v10766 = vld [vmem:[%s10765] sm:$0x1]
    %s10767 = scalar_lea.vmem %s9, 1
    %v10768 = vld [vmem:[%s10767] sm:$0x1]
    %v10769 = vsel %vm193, %v10763, 0.0
    %10770 = vadd.xlane.f32.xlu0 %v10769
    %v10771 = vpop.xlane.xlu0 %10770
    %v10772 = vsel %vm193, %v10764, 0.0
    %10773 = vadd.xlane.f32.xlu0 %v10772
    %v10774 = vpop.xlane.xlu0 %10773
    %v10775 = vmul.f32 %v10771, %v5331
    %v10776 = vmul.f32 %v10774, %v5331
    %v10777 = vsub.f32 %v10763, %v10775
    %v10778 = vsub.f32 %v10764, %v10776
    %v10779 = vmul.f32 %v10777, %v10777
    %v10780 = vmul.f32 %v10778, %v10778
    %v10781 = vsel %vm193, %v10779, 0.0
    %10782 = vadd.xlane.f32.xlu0 %v10781
    %v10783 = vpop.xlane.xlu0 %10782
    %v10784 = vsel %vm193, %v10780, 0.0
    %10785 = vadd.xlane.f32.xlu0 %v10784
    %v10786 = vpop.xlane.xlu0 %10785
    %v10787 = vmul.f32 %v10783, %v5331
    %v10788 = vmul.f32 %v10786, %v5331
    %v10789 = vadd.f32 %v10787, 1e-05
    %v10790 = vadd.f32 %v10788, 1e-05
    %v10791 = vrsqrt.pop %v10789
    %v10792 = vrsqrt.pop %v10790
    %v10793 = vmul.f32 %v10777, %v10791
    %v10794 = vmul.f32 %v10778, %v10792
    %v10796 = vlaneseq
    %v10797 = vshrl.u32 %v10796, 7
    %v10798 = vsub.s32 0, %v10797
    %v10799 = vrot.slane %v10766, %v10798
    %v10801 = vmul.f32 %v10793, %v10799
    %v10802 = vmul.f32 %v10794, %v10799
    %v10804 = vlaneseq
    %v10805 = vshrl.u32 %v10804, 7
    %v10806 = vsub.s32 0, %v10805
    %v10807 = vrot.slane %v10768, %v10806
    %v10809 = vadd.f32 %v10801, %v10807
    %v10810 = vadd.f32 %v10802, %v10807
    %s10811 = scalar_lea.vmem [#allocation2], 64
    %v10812 = vld [vmem:[%s10811] sm:$0xff]
    %v10813 = vld [vmem:[%s10811 + $0x8] sm:$0xff]
    %v10814 = vld [vmem:[%s10811 + $0x10] sm:$0xff]
    %v10815 = vld [vmem:[%s10811 + $0x18] sm:$0xff]
    %v10816 = vld [vmem:[%s10811 + $0x20] sm:$0xff]
    %v10817 = vld [vmem:[%s10811 + $0x28] sm:$0xff]
    %v10818 = vld [vmem:[%s10811 + $0x30] sm:$0xff]
    %v10819 = vld [vmem:[%s10811 + $0x38] sm:$0xff]
    %s10820 = scalar_lea.vmem %s13, 1
    %v10821 = vld [vmem:[%s10820] sm:$0x1]
    %v10823 = vlaneseq
    %v10824 = vshrl.u32 %v10823, 7
    %v10825 = vsub.s32 0, %v10824
    %v10826 = vrot.slane %v10821, %v10825
    %v10829 = vsel %vm193, %v10809, 0
    %v10832 = vsel %vm193, %v10810, 0
    %10834 = vmatprep.subr.mxu0 0.0
    %10835 = vmatpush1.msra.mxu0 %v10812
    %10836 = vmatprep.subr.mxu0 0.0
    %10837 = vmatpush1.msra.mxu0 %v10813
    %10838 = vmatprep.subr.mxu0 0.0
    %10839 = vmatpush1.msra.mxu0 %v10814
    %10840 = vmatprep.subr.mxu0 0.0
    %10841 = vmatpush1.msra.mxu0 %v10815
    %10842 = vmatprep.subr.mxu0 0.0
    %10843 = vmatpush1.msra.mxu0 %v10816
    %10844 = vmatprep.subr.mxu0 0.0
    %10845 = vmatpush1.msra.mxu0 %v10817
    %10846 = vmatprep.subr.mxu0 0.0
    %10847 = vmatpush1.msra.mxu0 %v10818
    %10848 = vmatprep.subr.mxu0 0.0
    %10849 = vmatpush1.msra.mxu0 %v10819
    %10850 = vmatprep.subr.mxu0 0.0
    %10851 = vmatpush1.msra.mxu0 0.0
    %10852 = vmatprep.subr.mxu0 0.0
    %10853 = vmatpush1.msra.mxu0 0.0
    %10854 = vmatprep.subr.mxu0 0.0
    %10855 = vmatpush1.msra.mxu0 0.0
    %10856 = vmatprep.subr.mxu0 0.0
    %10857 = vmatpush1.msra.mxu0 0.0
    %10858 = vmatprep.subr.mxu0 0.0
    %10859 = vmatpush1.msra.mxu0 0.0
    %10860 = vmatprep.subr.mxu0 0.0
    %10861 = vmatpush1.msra.mxu0 0.0
    %10862 = vmatprep.subr.mxu0 0.0
    %10863 = vmatpush1.msra.mxu0 0.0
    %10864 = vmatprep.subr.mxu0 0.0
    %10865 = vmatpush1.msra.mxu0 0.0
    %10866 = vmatprep.subr.mxu0 0.0
    %10867 = vmatpush1.msra.mxu0 0.0
    %10868 = vmatprep.subr.mxu0 0.0
    %10869 = vmatpush1.msra.mxu0 0.0
    %10870 = vmatprep.subr.mxu0 0.0
    %10871 = vmatpush1.msra.mxu0 0.0
    %10872 = vmatprep.subr.mxu0 0.0
    %10873 = vmatpush1.msra.mxu0 0.0
    %10874 = vmatprep.subr.mxu0 0.0
    %10875 = vmatpush1.msra.mxu0 0.0
    %10876 = vmatprep.subr.mxu0 0.0
    %10877 = vmatpush1.msra.mxu0 0.0
    %10878 = vmatprep.subr.mxu0 0.0
    %10879 = vmatpush1.msra.mxu0 0.0
    %10880 = vmatprep.subr.mxu0 0.0
    %10881 = vmatpush1.msra.mxu0 0.0
    %10882 = vmatprep.subr.mxu0 0.0
    %10883 = vmatpush1.msra.mxu0 0.0
    %10884 = vmatprep.subr.mxu0 0.0
    %10885 = vmatpush1.msra.mxu0 0.0
    %10886 = vmatprep.subr.mxu0 0.0
    %10887 = vmatpush1.msra.mxu0 0.0
    %10888 = vmatprep.subr.mxu0 0.0
    %10889 = vmatpush1.msra.mxu0 0.0
    %10890 = vmatprep.subr.mxu0 0.0
    %10891 = vmatpush1.msra.mxu0 0.0
    %10892 = vmatprep.subr.mxu0 0.0
    %10893 = vmatpush1.msra.mxu0 0.0
    %10894 = vmatprep.subr.mxu0 0.0
    %10895 = vmatpush1.msra.mxu0 0.0
    %10896 = vmatprep.subr.mxu0 0.0
    %10897 = vmatpush1.msra.mxu0 0.0
    %10898 = vmatprep.mubr.f32.mxu0 0.0
    %10899 = vmatmul.mubr.f32.gmra.mrb[0].mxu0 %v10829
    %v10900 = vpop.f32.mrb[0].mxu0
    %v10901 = vadd.f32 %v10826, %v10900
    %v10902 = vpop.f32.mrb[0].mxu0
    %10903 = vmatprep.mubr.f32.mxu0 0.0
    %10904 = vmatmul.mubr.f32.gmra.mrb[0].mxu0 %v10832
    %v10905 = vpop.f32.mrb[0].mxu0
    %v10906 = vadd.f32 %v10826, %v10905
    %v10907 = vpop.f32.mrb[0].mxu0
    %10908 = vdwg.mxu0
    %v10909 = vmax.f32 %v10901, 0.0
    %v10910 = vmax.f32 %v10906, 0.0
    %s10911 = scalar_lea.vmem %s14, 128
    %v10912 = vld [vmem:[%s10911] sm:$0xff]
    %v10913 = vld [vmem:[%s10911 + $0x8] sm:$0xff]
    %v10914 = vld [vmem:[%s10911 + $0x10] sm:$0xff]
    %v10915 = vld [vmem:[%s10911 + $0x18] sm:$0xff]
    %v10916 = vld [vmem:[%s10911 + $0x20] sm:$0xff]
    %v10917 = vld [vmem:[%s10911 + $0x28] sm:$0xff]
    %v10918 = vld [vmem:[%s10911 + $0x30] sm:$0xff]
    %v10919 = vld [vmem:[%s10911 + $0x38] sm:$0xff]
    %v10920 = vld [vmem:[%s10911 + $0x40] sm:$0xff]
    %v10921 = vld [vmem:[%s10911 + $0x48] sm:$0xff]
    %v10922 = vld [vmem:[%s10911 + $0x50] sm:$0xff]
    %v10923 = vld [vmem:[%s10911 + $0x58] sm:$0xff]
    %v10924 = vld [vmem:[%s10911 + $0x60] sm:$0xff]
    %v10925 = vld [vmem:[%s10911 + $0x68] sm:$0xff]
    %v10926 = vld [vmem:[%s10911 + $0x70] sm:$0xff]
    %v10927 = vld [vmem:[%s10911 + $0x78] sm:$0xff]
    %s10928 = scalar_lea.vmem %s15, 1
    %v10929 = vld [vmem:[%s10928] sm:$0x1]
    %v10931 = vlaneseq
    %v10932 = vshrl.u32 %v10931, 7
    %v10933 = vsub.s32 0, %v10932
    %v10934 = vrot.slane %v10929, %v10933
    %10936 = vmatprep.subr.mxu0 0.0
    %10937 = vmatpush1.msra.mxu0 %v10912
    %10938 = vmatprep.subr.mxu0 0.0
    %10939 = vmatpush1.msra.mxu0 %v10913
    %10940 = vmatprep.subr.mxu0 0.0
    %10941 = vmatpush1.msra.mxu0 %v10914
    %10942 = vmatprep.subr.mxu0 0.0
    %10943 = vmatpush1.msra.mxu0 %v10915
    %10944 = vmatprep.subr.mxu0 0.0
    %10945 = vmatpush1.msra.mxu0 %v10916
    %10946 = vmatprep.subr.mxu0 0.0
    %10947 = vmatpush1.msra.mxu0 %v10917
    %10948 = vmatprep.subr.mxu0 0.0
    %10949 = vmatpush1.msra.mxu0 %v10918
    %10950 = vmatprep.subr.mxu0 0.0
    %10951 = vmatpush1.msra.mxu0 %v10919
    %10952 = vmatprep.subr.mxu0 0.0
    %10953 = vmatpush1.msra.mxu0 %v10920
    %10954 = vmatprep.subr.mxu0 0.0
    %10955 = vmatpush1.msra.mxu0 %v10921
    %10956 = vmatprep.subr.mxu0 0.0
    %10957 = vmatpush1.msra.mxu0 %v10922
    %10958 = vmatprep.subr.mxu0 0.0
    %10959 = vmatpush1.msra.mxu0 %v10923
    %10960 = vmatprep.subr.mxu0 0.0
    %10961 = vmatpush1.msra.mxu0 %v10924
    %10962 = vmatprep.subr.mxu0 0.0
    %10963 = vmatpush1.msra.mxu0 %v10925
    %10964 = vmatprep.subr.mxu0 0.0
    %10965 = vmatpush1.msra.mxu0 %v10926
    %10966 = vmatprep.subr.mxu0 0.0
    %10967 = vmatpush1.msra.mxu0 %v10927
    %10968 = vmatprep.subr.mxu0 0.0
    %10969 = vmatpush1.msra.mxu0 0.0
    %10970 = vmatprep.subr.mxu0 0.0
    %10971 = vmatpush1.msra.mxu0 0.0
    %10972 = vmatprep.subr.mxu0 0.0
    %10973 = vmatpush1.msra.mxu0 0.0
    %10974 = vmatprep.subr.mxu0 0.0
    %10975 = vmatpush1.msra.mxu0 0.0
    %10976 = vmatprep.subr.mxu0 0.0
    %10977 = vmatpush1.msra.mxu0 0.0
    %10978 = vmatprep.subr.mxu0 0.0
    %10979 = vmatpush1.msra.mxu0 0.0
    %10980 = vmatprep.subr.mxu0 0.0
    %10981 = vmatpush1.msra.mxu0 0.0
    %10982 = vmatprep.subr.mxu0 0.0
    %10983 = vmatpush1.msra.mxu0 0.0
    %10984 = vmatprep.subr.mxu0 0.0
    %10985 = vmatpush1.msra.mxu0 0.0
    %10986 = vmatprep.subr.mxu0 0.0
    %10987 = vmatpush1.msra.mxu0 0.0
    %10988 = vmatprep.subr.mxu0 0.0
    %10989 = vmatpush1.msra.mxu0 0.0
    %10990 = vmatprep.subr.mxu0 0.0
    %10991 = vmatpush1.msra.mxu0 0.0
    %10992 = vmatprep.subr.mxu0 0.0
    %10993 = vmatpush1.msra.mxu0 0.0
    %10994 = vmatprep.subr.mxu0 0.0
    %10995 = vmatpush1.msra.mxu0 0.0
    %10996 = vmatprep.subr.mxu0 0.0
    %10997 = vmatpush1.msra.mxu0 0.0
    %10998 = vmatprep.subr.mxu0 0.0
    %10999 = vmatpush1.msra.mxu0 0.0
    %11000 = vmatprep.mubr.f32.mxu0 0.0
    %11001 = vmatmul.mubr.f32.gmra.mrb[0].mxu0 %v10909
    %v11002 = vpop.f32.mrb[0].mxu0
    %v11003 = vadd.f32 %v10934, %v11002
    %v11004 = vpop.f32.mrb[0].mxu0
    %11005 = vmatprep.mubr.f32.mxu0 0.0
    %11006 = vmatmul.mubr.f32.gmra.mrb[0].mxu0 %v10910
    %v11007 = vpop.f32.mrb[0].mxu0
    %v11008 = vadd.f32 %v10934, %v11007
    %v11009 = vpop.f32.mrb[0].mxu0
    %11010 = vdwg.mxu0
    %v11011 = vadd.f32 %v10809, %v11003
    %v11012 = vadd.f32 %v10810, %v11008
    %s11013 = scalar_lea.vmem %s10, 1
    %v11014 = vld [vmem:[%s11013] sm:$0x1]
    %s11015 = scalar_lea.vmem %s11, 1
    %v11016 = vld [vmem:[%s11015] sm:$0x1]
    %v11017 = vsel %vm193, %v11011, 0.0
    %11018 = vadd.xlane.f32.xlu0 %v11017
    %v11019 = vpop.xlane.xlu0 %11018
    %v11020 = vsel %vm193, %v11012, 0.0
    %11021 = vadd.xlane.f32.xlu0 %v11020
    %v11022 = vpop.xlane.xlu0 %11021
    %v11023 = vmul.f32 %v11019, %v5331
    %v11024 = vmul.f32 %v11022, %v5331
    %v11025 = vsub.f32 %v11011, %v11023
    %v11026 = vsub.f32 %v11012, %v11024
    %v11027 = vmul.f32 %v11025, %v11025
    %v11028 = vmul.f32 %v11026, %v11026
    %v11029 = vsel %vm193, %v11027, 0.0
    %11030 = vadd.xlane.f32.xlu0 %v11029
    %v11031 = vpop.xlane.xlu0 %11030
    %v11032 = vsel %vm193, %v11028, 0.0
    %11033 = vadd.xlane.f32.xlu0 %v11032
    %v11034 = vpop.xlane.xlu0 %11033
    %v11035 = vmul.f32 %v11031, %v5331
    %v11036 = vmul.f32 %v11034, %v5331
    %v11037 = vadd.f32 %v11035, 1e-05
    %v11038 = vadd.f32 %v11036, 1e-05
    %v11039 = vrsqrt.pop %v11037
    %v11040 = vrsqrt.pop %v11038
    %v11041 = vmul.f32 %v11025, %v11039
    %v11042 = vmul.f32 %v11026, %v11040
    %v11044 = vlaneseq
    %v11045 = vshrl.u32 %v11044, 7
    %v11046 = vsub.s32 0, %v11045
    %v11047 = vrot.slane %v11014, %v11046
    %v11049 = vmul.f32 %v11041, %v11047
    %v11050 = vmul.f32 %v11042, %v11047
    %v11052 = vlaneseq
    %v11053 = vshrl.u32 %v11052, 7
    %v11054 = vsub.s32 0, %v11053
    %v11055 = vrot.slane %v11016, %v11054
    %v11057 = vadd.f32 %v11049, %v11055
    %v11058 = vadd.f32 %v11050, %v11055
    %v11061 = vrot.slane %v11058, 7
    %vm11064 = vcmask 523271
    %11065 = vst.msk [vmem:[%s16 - $0x7] sm:$0x80] %vm11064, %v11057
    %vm11066 = vcmask 516096
    %11067 = vst.msk [vmem:[%s16 + $0x1] sm:$0x1] %vm11066, %v11061
    // Predicated region
    $region70: #{transformer_forward.1} parent=1 // pred_check
      _
    $region71: #{transformer_forward.1} parent=1 // pred_check_branch
      %11069 = sbr.rel (0) target = $region73
    $region72: #{transformer_forward.1} parent=1 // pred_region
      _
    $region73: #{transformer_forward.1} parent=1 // pred_fallthru
      _
    // Predicated region
    $region74: #{transformer_forward.1} parent=1 // pred_check
      _
    $region75: #{transformer_forward.1} parent=1 // pred_check_branch
      %11071 = sbr.rel (0) target = $region77
    $region76: #{transformer_forward.1} parent=1 // pred_region
      _
    $region77: #{transformer_forward.1} parent=1 // pred_fallthru
      _
    %11072 = vsyncpa [#allocation3], 1

</llo_original>
